<compile_context>
chip_gen: v7x
topology: tpu7x:2x2x1
jax: 0.10.0
libtpu: 0.0.40
codegen_flags: <defaults>
</compile_context>

<pallas_src>
import jax
import jax.numpy as jnp
from jax.experimental import pallas as pl
from jax.experimental.pallas import tpu as pltpu  # noqa: F401  (kept for parity)


# ---------------------------------------------------------------------------
# One LSTM cell update (PyTorch gate order: i, f, g, o).
# Weights are stored pre-transposed as [in, 4H] so the kernel does x @ W.
# ---------------------------------------------------------------------------
def _lstm_step(x_t, h, c, wih_ref, whh_ref, b_ref, H):
    gates = (jnp.dot(x_t, wih_ref[...], preferred_element_type=jnp.float32)
             + jnp.dot(h, whh_ref[...], preferred_element_type=jnp.float32)
             + b_ref[...])                                   # (B, 4H)
    sig = jax.nn.sigmoid(gates)   # one full-vreg sigmoid over all 4H lanes
    tah = jnp.tanh(gates)         # one full-vreg tanh
    i = sig[:, 0 * H:1 * H]
    f = sig[:, 1 * H:2 * H]
    g = tah[:, 2 * H:3 * H]
    o = sig[:, 3 * H:4 * H]
    c_new = f * c + i * g
    h_new = o * jnp.tanh(c_new)
    return h_new, c_new


# ---------------------------------------------------------------------------
# Kernel 1: fused bidirectional LSTM encoder + bridge.
#   x_ref: (T, B, E) time-major embeddings (whole sequence resident in VMEM).
#   Outputs the decoder's initial state (h0, c0), each (B, H):
#       h0 = bridge(cat(h_fwd_T, h_bwd_T)),  c0 = bridge(cat(c_fwd_T, c_bwd_T))
# ---------------------------------------------------------------------------
def enc_bridge_kernel(x_ref, wih_f_ref, whh_f_ref, bf_ref,
                      wih_b_ref, whh_b_ref, bb_ref,
                      brw_ref, brb_ref,
                      h0_ref, c0_ref):
    T, B, _E = x_ref.shape
    H = brw_ref.shape[1]
    zeros = jnp.zeros((B, H), jnp.float32)
    hf, cf = zeros, zeros
    hb, cb = zeros, zeros
    # Fully unrolled static time loop; both directions interleaved per step.
    for t in range(T):
        hf, cf = _lstm_step(x_ref[t], hf, cf, wih_f_ref, whh_f_ref, bf_ref, H)
        hb, cb = _lstm_step(x_ref[T - 1 - t], hb, cb,
                            wih_b_ref, whh_b_ref, bb_ref, H)
    # Bridge: cat([h_f, h_b]) @ W + b  ==  h_f @ W[:H] + h_b @ W[H:] + b
    w_top = brw_ref[:H, :]
    w_bot = brw_ref[H:, :]
    h0_ref[...] = (jnp.dot(hf, w_top, preferred_element_type=jnp.float32)
                   + jnp.dot(hb, w_bot, preferred_element_type=jnp.float32)
                   + brb_ref[...])
    c0_ref[...] = (jnp.dot(cf, w_top, preferred_element_type=jnp.float32)
                   + jnp.dot(cb, w_bot, preferred_element_type=jnp.float32)
                   + brb_ref[...])


# ---------------------------------------------------------------------------
# Kernel 2: unidirectional LSTM decoder fused with fc_out.
#   x_ref: (T, B, E); out_ref: (T, B, Vpad) lane-dense (Vpad multiple of 128).
# ---------------------------------------------------------------------------
def dec_fc_kernel(x_ref, wih_ref, whh_ref, b_ref, h0_ref, c0_ref,
                  fcw_ref, fcb_ref, out_ref):
    T, _B, _E = x_ref.shape
    H = h0_ref.shape[1]
    h = h0_ref[...]
    c = c0_ref[...]
    for t in range(T):
        h, c = _lstm_step(x_ref[t], h, c, wih_ref, whh_ref, b_ref, H)
        out_ref[t] = (jnp.dot(h, fcw_ref[...],
                              preferred_element_type=jnp.float32)
                      + fcb_ref[...])


# ---------------------------------------------------------------------------
# Wrappers (grid-less pallas_calls: every operand is a few KB, whole arrays
# are mapped straight into VMEM; no tiling / vmem_limit tuning needed).
# ---------------------------------------------------------------------------
def _encode(x_tbe, p):
    _T, B, _E = x_tbe.shape
    H = p["bridge_w"].shape[1]
    return pl.pallas_call(
        enc_bridge_kernel,
        out_shape=(jax.ShapeDtypeStruct((B, H), jnp.float32),
                   jax.ShapeDtypeStruct((B, H), jnp.float32)),
    )(x_tbe, p["enc_wih_f"], p["enc_whh_f"], p["enc_b_f"],
      p["enc_wih_b"], p["enc_whh_b"], p["enc_b_b"],
      p["bridge_w"], p["bridge_b"])


def _decode(x_tbe, h0, c0, p):
    T, B, _E = x_tbe.shape
    Vp = p["fc_w_pad"].shape[1]
    return pl.pallas_call(
        dec_fc_kernel,
        out_shape=jax.ShapeDtypeStruct((T, B, Vp), jnp.float32),
    )(x_tbe, p["dec_wih"], p["dec_whh"], p["dec_b"], h0, c0,
      p["fc_w_pad"], p["fc_b_pad"])


def seq2seq_forward(params, src, tgt):
    # Embedding lookups (token-id gather) kept in plain JAX glue.
    enc_embed = jnp.take(params["src_emb"], src, axis=0)     # (B, T_src, E)
    dec_embed = jnp.take(params["tgt_emb"], tgt, axis=0)     # (B, T_tgt, E)

    x_enc = jnp.transpose(enc_embed, (1, 0, 2))              # (T_src, B, E)
    x_dec = jnp.transpose(dec_embed, (1, 0, 2))              # (T_tgt, B, E)

    # NOTE: the module's return value never uses the encoder's per-step
    # outputs (enc_outs), so they are intentionally not materialized.
    h0, c0 = _encode(x_enc, params)                          # (B, H) each
    logits_p = _decode(x_dec, h0, c0, params)                # (T_tgt, B, Vpad)

    v_out = params["fc_b"].shape[0]
    return jnp.transpose(logits_p, (1, 0, 2))[:, :, :v_out]  # (B, T_tgt, V_out)


# ---------------------------------------------------------------------------
# Deterministic parameter init (PyTorch-style distributions, transposed layout)
# ---------------------------------------------------------------------------
def init_params(key, V_in, V_out, E, H):
    ks = jax.random.split(key, 16)
    u = lambda k, shape, bound: jax.random.uniform(
        k, shape, jnp.float32, -bound, bound)
    kr = 1.0 / (H ** 0.5)

    def lstm_dir(k0, k1, k2, k3):
        w_ih = u(k0, (E, 4 * H), kr)                     # x @ W layout
        w_hh = u(k1, (H, 4 * H), kr)                     # h @ W layout
        b = (u(k2, (4 * H,), kr) + u(k3, (4 * H,), kr)).reshape(1, 4 * H)
        return w_ih, w_hh, b

    enc_wih_f, enc_whh_f, enc_b_f = lstm_dir(ks[0], ks[1], ks[2], ks[3])
    enc_wih_b, enc_whh_b, enc_b_b = lstm_dir(ks[4], ks[5], ks[6], ks[7])
    dec_wih, dec_whh, dec_b = lstm_dir(ks[8], ks[9], ks[10], ks[11])

    fc_w = u(ks[15], (H, V_out), 1.0 / (H ** 0.5))
    fc_b = jnp.zeros((V_out,), jnp.float32)
    Vp = max(128, ((V_out + 127) // 128) * 128)          # lane-dense fc output
    fc_w_pad = jnp.zeros((H, Vp), jnp.float32).at[:, :V_out].set(fc_w)
    fc_b_pad = jnp.zeros((1, Vp), jnp.float32).at[0, :V_out].set(fc_b)

    return {
        "src_emb": jax.random.normal(ks[12], (V_in, E), jnp.float32),
        "tgt_emb": jax.random.normal(ks[13], (V_out, E), jnp.float32),
        "enc_wih_f": enc_wih_f, "enc_whh_f": enc_whh_f, "enc_b_f": enc_b_f,
        "enc_wih_b": enc_wih_b, "enc_whh_b": enc_whh_b, "enc_b_b": enc_b_b,
        "dec_wih": dec_wih, "dec_whh": dec_whh, "dec_b": dec_b,
        "bridge_w": u(ks[14], (2 * H, H), 1.0 / ((2 * H) ** 0.5)),
        "bridge_b": jnp.zeros((1, H), jnp.float32),
        "fc_w": fc_w, "fc_b": fc_b,
        "fc_w_pad": fc_w_pad, "fc_b_pad": fc_b_pad,
    }


if __name__ == "__main__":
    B, T_src, T_tgt = 2, 8, 8
    E, H = 16, 32
    V_in, V_out = 64, 48

    key = jax.random.PRNGKey(0)
    kp, ksrc, ktgt = jax.random.split(key, 3)
    params = init_params(kp, V_in, V_out, E, H)

    src = jax.random.randint(ksrc, (B, T_src), 0, V_in, dtype=jnp.int32)
    tgt = jax.random.randint(ktgt, (B, T_tgt), 0, V_out, dtype=jnp.int32)

    fwd = jax.jit(seq2seq_forward)
    logits = fwd(params, src, tgt)
    jax.block_until_ready(logits)
    assert logits.shape == (B, T_tgt, V_out)
    assert bool(jnp.all(jnp.isfinite(logits)))
    print("KERNEL_OK")
</pallas_src>

<mosaic_0001>
module attributes {stable_mosaic.version = 11 : i64} {
  func.func @enc_bridge_kernel(%arg0: memref<8x2x16xf32, #tpu.memory_space<vmem>>, %arg1: memref<16x128xf32, #tpu.memory_space<vmem>>, %arg2: memref<32x128xf32, #tpu.memory_space<vmem>>, %arg3: memref<1x128xf32, #tpu.memory_space<vmem>>, %arg4: memref<16x128xf32, #tpu.memory_space<vmem>>, %arg5: memref<32x128xf32, #tpu.memory_space<vmem>>, %arg6: memref<1x128xf32, #tpu.memory_space<vmem>>, %arg7: memref<64x32xf32, #tpu.memory_space<vmem>>, %arg8: memref<1x32xf32, #tpu.memory_space<vmem>>, %arg9: memref<2x32xf32, #tpu.memory_space<vmem>>, %arg10: memref<2x32xf32, #tpu.memory_space<vmem>>) attributes {dimension_semantics = [], scalar_prefetch = 0 : i64, scratch_operands = 0 : i64, tpu.core_type = #tpu.core_type<tc>} {
    %cst = arith.constant 0.000000e+00 : f32
    %0 = vector.broadcast %cst : f32 to vector<2x32xf32>
    %c0 = arith.constant 0 : index
    %c0_0 = arith.constant 0 : index
    %c0_1 = arith.constant 0 : index
    %1 = vector.load %arg0[%c0, %c0_0, %c0_1] : memref<8x2x16xf32, #tpu.memory_space<vmem>>, vector<1x2x16xf32>
    %2 = vector.shape_cast %1 : vector<1x2x16xf32> to vector<2x16xf32>
    %c0_2 = arith.constant 0 : index
    %c0_3 = arith.constant 0 : index
    %3 = vector.load %arg1[%c0_2, %c0_3] : memref<16x128xf32, #tpu.memory_space<vmem>>, vector<16x128xf32>
    %cst_4 = arith.constant dense<0.000000e+00> : vector<2x128xf32>
    %4 = tpu.matmul %2, %3, %cst_4 {dimension_numbers = #tpu.dot_dimension_numbers<[1], [0], [0], [1], [0, 0, 1, 1], [], []>} : vector<2x16xf32>, vector<16x128xf32>, vector<2x128xf32> -> vector<2x128xf32>
    %c0_5 = arith.constant 0 : index
    %c0_6 = arith.constant 0 : index
    %5 = vector.load %arg2[%c0_5, %c0_6] : memref<32x128xf32, #tpu.memory_space<vmem>>, vector<32x128xf32>
    %cst_7 = arith.constant dense<0.000000e+00> : vector<2x128xf32>
    %6 = tpu.matmul %0, %5, %cst_7 {dimension_numbers = #tpu.dot_dimension_numbers<[1], [0], [0], [1], [0, 0, 1, 1], [], []>} : vector<2x32xf32>, vector<32x128xf32>, vector<2x128xf32> -> vector<2x128xf32>
    %7 = arith.addf %4, %6 : vector<2x128xf32>
    %c0_8 = arith.constant 0 : index
    %c0_9 = arith.constant 0 : index
    %8 = vector.load %arg3[%c0_8, %c0_9] : memref<1x128xf32, #tpu.memory_space<vmem>>, vector<1x128xf32>
    %9 = vector.broadcast %8 : vector<1x128xf32> to vector<2x128xf32>
    %10 = arith.addf %7, %9 : vector<2x128xf32>
    %11 = arith.negf %10 : vector<2x128xf32>
    %12 = math.exp %11 : vector<2x128xf32>
    %cst_10 = arith.constant 1.000000e+00 : f32
    %13 = vector.broadcast %cst_10 : f32 to vector<2x128xf32>
    %14 = arith.addf %13, %12 : vector<2x128xf32>
    %15 = arith.divf %13, %14 : vector<2x128xf32>
    %16 = math.tanh %10 : vector<2x128xf32>
    %17 = vector.extract_strided_slice %15 {offsets = [0, 0], sizes = [2, 32], strides = [1, 1]} : vector<2x128xf32> to vector<2x32xf32>
    %18 = vector.extract_strided_slice %15 {offsets = [0, 32], sizes = [2, 32], strides = [1, 1]} : vector<2x128xf32> to vector<2x32xf32>
    %19 = vector.extract_strided_slice %16 {offsets = [0, 64], sizes = [2, 32], strides = [1, 1]} : vector<2x128xf32> to vector<2x32xf32>
    %20 = vector.extract_strided_slice %15 {offsets = [0, 96], sizes = [2, 32], strides = [1, 1]} : vector<2x128xf32> to vector<2x32xf32>
    %21 = arith.mulf %18, %0 : vector<2x32xf32>
    %22 = arith.mulf %17, %19 : vector<2x32xf32>
    %23 = arith.addf %21, %22 : vector<2x32xf32>
    %24 = math.tanh %23 : vector<2x32xf32>
    %25 = arith.mulf %20, %24 : vector<2x32xf32>
    %c7 = arith.constant 7 : index
    %c0_11 = arith.constant 0 : index
    %c0_12 = arith.constant 0 : index
    %26 = vector.load %arg0[%c7, %c0_11, %c0_12] : memref<8x2x16xf32, #tpu.memory_space<vmem>>, vector<1x2x16xf32>
    %27 = vector.shape_cast %26 : vector<1x2x16xf32> to vector<2x16xf32>
    %c0_13 = arith.constant 0 : index
    %c0_14 = arith.constant 0 : index
    %28 = vector.load %arg4[%c0_13, %c0_14] : memref<16x128xf32, #tpu.memory_space<vmem>>, vector<16x128xf32>
    %cst_15 = arith.constant dense<0.000000e+00> : vector<2x128xf32>
    %29 = tpu.matmul %27, %28, %cst_15 {dimension_numbers = #tpu.dot_dimension_numbers<[1], [0], [0], [1], [0, 0, 1, 1], [], []>} : vector<2x16xf32>, vector<16x128xf32>, vector<2x128xf32> -> vector<2x128xf32>
    %c0_16 = arith.constant 0 : index
    %c0_17 = arith.constant 0 : index
    %30 = vector.load %arg5[%c0_16, %c0_17] : memref<32x128xf32, #tpu.memory_space<vmem>>, vector<32x128xf32>
    %cst_18 = arith.constant dense<0.000000e+00> : vector<2x128xf32>
    %31 = tpu.matmul %0, %30, %cst_18 {dimension_numbers = #tpu.dot_dimension_numbers<[1], [0], [0], [1], [0, 0, 1, 1], [], []>} : vector<2x32xf32>, vector<32x128xf32>, vector<2x128xf32> -> vector<2x128xf32>
    %32 = arith.addf %29, %31 : vector<2x128xf32>
    %c0_19 = arith.constant 0 : index
    %c0_20 = arith.constant 0 : index
    %33 = vector.load %arg6[%c0_19, %c0_20] : memref<1x128xf32, #tpu.memory_space<vmem>>, vector<1x128xf32>
    %34 = vector.broadcast %33 : vector<1x128xf32> to vector<2x128xf32>
    %35 = arith.addf %32, %34 : vector<2x128xf32>
    %36 = arith.negf %35 : vector<2x128xf32>
    %37 = math.exp %36 : vector<2x128xf32>
    %cst_21 = arith.constant 1.000000e+00 : f32
    %38 = vector.broadcast %cst_21 : f32 to vector<2x128xf32>
    %39 = arith.addf %38, %37 : vector<2x128xf32>
    %40 = arith.divf %38, %39 : vector<2x128xf32>
    %41 = math.tanh %35 : vector<2x128xf32>
    %42 = vector.extract_strided_slice %40 {offsets = [0, 0], sizes = [2, 32], strides = [1, 1]} : vector<2x128xf32> to vector<2x32xf32>
    %43 = vector.extract_strided_slice %40 {offsets = [0, 32], sizes = [2, 32], strides = [1, 1]} : vector<2x128xf32> to vector<2x32xf32>
    %44 = vector.extract_strided_slice %41 {offsets = [0, 64], sizes = [2, 32], strides = [1, 1]} : vector<2x128xf32> to vector<2x32xf32>
    %45 = vector.extract_strided_slice %40 {offsets = [0, 96], sizes = [2, 32], strides = [1, 1]} : vector<2x128xf32> to vector<2x32xf32>
    %46 = arith.mulf %43, %0 : vector<2x32xf32>
    %47 = arith.mulf %42, %44 : vector<2x32xf32>
    %48 = arith.addf %46, %47 : vector<2x32xf32>
    %49 = math.tanh %48 : vector<2x32xf32>
    %50 = arith.mulf %45, %49 : vector<2x32xf32>
    %c1 = arith.constant 1 : index
    %c0_22 = arith.constant 0 : index
    %c0_23 = arith.constant 0 : index
    %51 = vector.load %arg0[%c1, %c0_22, %c0_23] : memref<8x2x16xf32, #tpu.memory_space<vmem>>, vector<1x2x16xf32>
    %52 = vector.shape_cast %51 : vector<1x2x16xf32> to vector<2x16xf32>
    %c0_24 = arith.constant 0 : index
    %c0_25 = arith.constant 0 : index
    %53 = vector.load %arg1[%c0_24, %c0_25] : memref<16x128xf32, #tpu.memory_space<vmem>>, vector<16x128xf32>
    %cst_26 = arith.constant dense<0.000000e+00> : vector<2x128xf32>
    %54 = tpu.matmul %52, %53, %cst_26 {dimension_numbers = #tpu.dot_dimension_numbers<[1], [0], [0], [1], [0, 0, 1, 1], [], []>} : vector<2x16xf32>, vector<16x128xf32>, vector<2x128xf32> -> vector<2x128xf32>
    %c0_27 = arith.constant 0 : index
    %c0_28 = arith.constant 0 : index
    %55 = vector.load %arg2[%c0_27, %c0_28] : memref<32x128xf32, #tpu.memory_space<vmem>>, vector<32x128xf32>
    %cst_29 = arith.constant dense<0.000000e+00> : vector<2x128xf32>
    %56 = tpu.matmul %25, %55, %cst_29 {dimension_numbers = #tpu.dot_dimension_numbers<[1], [0], [0], [1], [0, 0, 1, 1], [], []>} : vector<2x32xf32>, vector<32x128xf32>, vector<2x128xf32> -> vector<2x128xf32>
    %57 = arith.addf %54, %56 : vector<2x128xf32>
    %c0_30 = arith.constant 0 : index
    %c0_31 = arith.constant 0 : index
    %58 = vector.load %arg3[%c0_30, %c0_31] : memref<1x128xf32, #tpu.memory_space<vmem>>, vector<1x128xf32>
    %59 = vector.broadcast %58 : vector<1x128xf32> to vector<2x128xf32>
    %60 = arith.addf %57, %59 : vector<2x128xf32>
    %61 = arith.negf %60 : vector<2x128xf32>
    %62 = math.exp %61 : vector<2x128xf32>
    %cst_32 = arith.constant 1.000000e+00 : f32
    %63 = vector.broadcast %cst_32 : f32 to vector<2x128xf32>
    %64 = arith.addf %63, %62 : vector<2x128xf32>
    %65 = arith.divf %63, %64 : vector<2x128xf32>
    %66 = math.tanh %60 : vector<2x128xf32>
    %67 = vector.extract_strided_slice %65 {offsets = [0, 0], sizes = [2, 32], strides = [1, 1]} : vector<2x128xf32> to vector<2x32xf32>
    %68 = vector.extract_strided_slice %65 {offsets = [0, 32], sizes = [2, 32], strides = [1, 1]} : vector<2x128xf32> to vector<2x32xf32>
    %69 = vector.extract_strided_slice %66 {offsets = [0, 64], sizes = [2, 32], strides = [1, 1]} : vector<2x128xf32> to vector<2x32xf32>
    %70 = vector.extract_strided_slice %65 {offsets = [0, 96], sizes = [2, 32], strides = [1, 1]} : vector<2x128xf32> to vector<2x32xf32>
    %71 = arith.mulf %68, %23 : vector<2x32xf32>
    %72 = arith.mulf %67, %69 : vector<2x32xf32>
    %73 = arith.addf %71, %72 : vector<2x32xf32>
    %74 = math.tanh %73 : vector<2x32xf32>
    %75 = arith.mulf %70, %74 : vector<2x32xf32>
    %c6 = arith.constant 6 : index
    %c0_33 = arith.constant 0 : index
    %c0_34 = arith.constant 0 : index
    %76 = vector.load %arg0[%c6, %c0_33, %c0_34] : memref<8x2x16xf32, #tpu.memory_space<vmem>>, vector<1x2x16xf32>
    %77 = vector.shape_cast %76 : vector<1x2x16xf32> to vector<2x16xf32>
    %c0_35 = arith.constant 0 : index
    %c0_36 = arith.constant 0 : index
    %78 = vector.load %arg4[%c0_35, %c0_36] : memref<16x128xf32, #tpu.memory_space<vmem>>, vector<16x128xf32>
    %cst_37 = arith.constant dense<0.000000e+00> : vector<2x128xf32>
    %79 = tpu.matmul %77, %78, %cst_37 {dimension_numbers = #tpu.dot_dimension_numbers<[1], [0], [0], [1], [0, 0, 1, 1], [], []>} : vector<2x16xf32>, vector<16x128xf32>, vector<2x128xf32> -> vector<2x128xf32>
    %c0_38 = arith.constant 0 : index
    %c0_39 = arith.constant 0 : index
    %80 = vector.load %arg5[%c0_38, %c0_39] : memref<32x128xf32, #tpu.memory_space<vmem>>, vector<32x128xf32>
    %cst_40 = arith.constant dense<0.000000e+00> : vector<2x128xf32>
    %81 = tpu.matmul %50, %80, %cst_40 {dimension_numbers = #tpu.dot_dimension_numbers<[1], [0], [0], [1], [0, 0, 1, 1], [], []>} : vector<2x32xf32>, vector<32x128xf32>, vector<2x128xf32> -> vector<2x128xf32>
    %82 = arith.addf %79, %81 : vector<2x128xf32>
    %c0_41 = arith.constant 0 : index
    %c0_42 = arith.constant 0 : index
    %83 = vector.load %arg6[%c0_41, %c0_42] : memref<1x128xf32, #tpu.memory_space<vmem>>, vector<1x128xf32>
    %84 = vector.broadcast %83 : vector<1x128xf32> to vector<2x128xf32>
    %85 = arith.addf %82, %84 : vector<2x128xf32>
    %86 = arith.negf %85 : vector<2x128xf32>
    %87 = math.exp %86 : vector<2x128xf32>
    %cst_43 = arith.constant 1.000000e+00 : f32
    %88 = vector.broadcast %cst_43 : f32 to vector<2x128xf32>
    %89 = arith.addf %88, %87 : vector<2x128xf32>
    %90 = arith.divf %88, %89 : vector<2x128xf32>
    %91 = math.tanh %85 : vector<2x128xf32>
    %92 = vector.extract_strided_slice %90 {offsets = [0, 0], sizes = [2, 32], strides = [1, 1]} : vector<2x128xf32> to vector<2x32xf32>
    %93 = vector.extract_strided_slice %90 {offsets = [0, 32], sizes = [2, 32], strides = [1, 1]} : vector<2x128xf32> to vector<2x32xf32>
    %94 = vector.extract_strided_slice %91 {offsets = [0, 64], sizes = [2, 32], strides = [1, 1]} : vector<2x128xf32> to vector<2x32xf32>
    %95 = vector.extract_strided_slice %90 {offsets = [0, 96], sizes = [2, 32], strides = [1, 1]} : vector<2x128xf32> to vector<2x32xf32>
    %96 = arith.mulf %93, %48 : vector<2x32xf32>
    %97 = arith.mulf %92, %94 : vector<2x32xf32>
    %98 = arith.addf %96, %97 : vector<2x32xf32>
    %99 = math.tanh %98 : vector<2x32xf32>
    %100 = arith.mulf %95, %99 : vector<2x32xf32>
    %c2 = arith.constant 2 : index
    %c0_44 = arith.constant 0 : index
    %c0_45 = arith.constant 0 : index
    %101 = vector.load %arg0[%c2, %c0_44, %c0_45] : memref<8x2x16xf32, #tpu.memory_space<vmem>>, vector<1x2x16xf32>
    %102 = vector.shape_cast %101 : vector<1x2x16xf32> to vector<2x16xf32>
    %c0_46 = arith.constant 0 : index
    %c0_47 = arith.constant 0 : index
    %103 = vector.load %arg1[%c0_46, %c0_47] : memref<16x128xf32, #tpu.memory_space<vmem>>, vector<16x128xf32>
    %cst_48 = arith.constant dense<0.000000e+00> : vector<2x128xf32>
    %104 = tpu.matmul %102, %103, %cst_48 {dimension_numbers = #tpu.dot_dimension_numbers<[1], [0], [0], [1], [0, 0, 1, 1], [], []>} : vector<2x16xf32>, vector<16x128xf32>, vector<2x128xf32> -> vector<2x128xf32>
    %c0_49 = arith.constant 0 : index
    %c0_50 = arith.constant 0 : index
    %105 = vector.load %arg2[%c0_49, %c0_50] : memref<32x128xf32, #tpu.memory_space<vmem>>, vector<32x128xf32>
    %cst_51 = arith.constant dense<0.000000e+00> : vector<2x128xf32>
    %106 = tpu.matmul %75, %105, %cst_51 {dimension_numbers = #tpu.dot_dimension_numbers<[1], [0], [0], [1], [0, 0, 1, 1], [], []>} : vector<2x32xf32>, vector<32x128xf32>, vector<2x128xf32> -> vector<2x128xf32>
    %107 = arith.addf %104, %106 : vector<2x128xf32>
    %c0_52 = arith.constant 0 : index
    %c0_53 = arith.constant 0 : index
    %108 = vector.load %arg3[%c0_52, %c0_53] : memref<1x128xf32, #tpu.memory_space<vmem>>, vector<1x128xf32>
    %109 = vector.broadcast %108 : vector<1x128xf32> to vector<2x128xf32>
    %110 = arith.addf %107, %109 : vector<2x128xf32>
    %111 = arith.negf %110 : vector<2x128xf32>
    %112 = math.exp %111 : vector<2x128xf32>
    %cst_54 = arith.constant 1.000000e+00 : f32
    %113 = vector.broadcast %cst_54 : f32 to vector<2x128xf32>
    %114 = arith.addf %113, %112 : vector<2x128xf32>
    %115 = arith.divf %113, %114 : vector<2x128xf32>
    %116 = math.tanh %110 : vector<2x128xf32>
    %117 = vector.extract_strided_slice %115 {offsets = [0, 0], sizes = [2, 32], strides = [1, 1]} : vector<2x128xf32> to vector<2x32xf32>
    %118 = vector.extract_strided_slice %115 {offsets = [0, 32], sizes = [2, 32], strides = [1, 1]} : vector<2x128xf32> to vector<2x32xf32>
    %119 = vector.extract_strided_slice %116 {offsets = [0, 64], sizes = [2, 32], strides = [1, 1]} : vector<2x128xf32> to vector<2x32xf32>
    %120 = vector.extract_strided_slice %115 {offsets = [0, 96], sizes = [2, 32], strides = [1, 1]} : vector<2x128xf32> to vector<2x32xf32>
    %121 = arith.mulf %118, %73 : vector<2x32xf32>
    %122 = arith.mulf %117, %119 : vector<2x32xf32>
    %123 = arith.addf %121, %122 : vector<2x32xf32>
    %124 = math.tanh %123 : vector<2x32xf32>
    %125 = arith.mulf %120, %124 : vector<2x32xf32>
    %c5 = arith.constant 5 : index
    %c0_55 = arith.constant 0 : index
    %c0_56 = arith.constant 0 : index
    %126 = vector.load %arg0[%c5, %c0_55, %c0_56] : memref<8x2x16xf32, #tpu.memory_space<vmem>>, vector<1x2x16xf32>
    %127 = vector.shape_cast %126 : vector<1x2x16xf32> to vector<2x16xf32>
    %c0_57 = arith.constant 0 : index
    %c0_58 = arith.constant 0 : index
    %128 = vector.load %arg4[%c0_57, %c0_58] : memref<16x128xf32, #tpu.memory_space<vmem>>, vector<16x128xf32>
    %cst_59 = arith.constant dense<0.000000e+00> : vector<2x128xf32>
    %129 = tpu.matmul %127, %128, %cst_59 {dimension_numbers = #tpu.dot_dimension_numbers<[1], [0], [0], [1], [0, 0, 1, 1], [], []>} : vector<2x16xf32>, vector<16x128xf32>, vector<2x128xf32> -> vector<2x128xf32>
    %c0_60 = arith.constant 0 : index
    %c0_61 = arith.constant 0 : index
    %130 = vector.load %arg5[%c0_60, %c0_61] : memref<32x128xf32, #tpu.memory_space<vmem>>, vector<32x128xf32>
    %cst_62 = arith.constant dense<0.000000e+00> : vector<2x128xf32>
    %131 = tpu.matmul %100, %130, %cst_62 {dimension_numbers = #tpu.dot_dimension_numbers<[1], [0], [0], [1], [0, 0, 1, 1], [], []>} : vector<2x32xf32>, vector<32x128xf32>, vector<2x128xf32> -> vector<2x128xf32>
    %132 = arith.addf %129, %131 : vector<2x128xf32>
    %c0_63 = arith.constant 0 : index
    %c0_64 = arith.constant 0 : index
    %133 = vector.load %arg6[%c0_63, %c0_64] : memref<1x128xf32, #tpu.memory_space<vmem>>, vector<1x128xf32>
    %134 = vector.broadcast %133 : vector<1x128xf32> to vector<2x128xf32>
    %135 = arith.addf %132, %134 : vector<2x128xf32>
    %136 = arith.negf %135 : vector<2x128xf32>
    %137 = math.exp %136 : vector<2x128xf32>
    %cst_65 = arith.constant 1.000000e+00 : f32
    %138 = vector.broadcast %cst_65 : f32 to vector<2x128xf32>
    %139 = arith.addf %138, %137 : vector<2x128xf32>
    %140 = arith.divf %138, %139 : vector<2x128xf32>
    %141 = math.tanh %135 : vector<2x128xf32>
    %142 = vector.extract_strided_slice %140 {offsets = [0, 0], sizes = [2, 32], strides = [1, 1]} : vector<2x128xf32> to vector<2x32xf32>
    %143 = vector.extract_strided_slice %140 {offsets = [0, 32], sizes = [2, 32], strides = [1, 1]} : vector<2x128xf32> to vector<2x32xf32>
    %144 = vector.extract_strided_slice %141 {offsets = [0, 64], sizes = [2, 32], strides = [1, 1]} : vector<2x128xf32> to vector<2x32xf32>
    %145 = vector.extract_strided_slice %140 {offsets = [0, 96], sizes = [2, 32], strides = [1, 1]} : vector<2x128xf32> to vector<2x32xf32>
    %146 = arith.mulf %143, %98 : vector<2x32xf32>
    %147 = arith.mulf %142, %144 : vector<2x32xf32>
    %148 = arith.addf %146, %147 : vector<2x32xf32>
    %149 = math.tanh %148 : vector<2x32xf32>
    %150 = arith.mulf %145, %149 : vector<2x32xf32>
    %c3 = arith.constant 3 : index
    %c0_66 = arith.constant 0 : index
    %c0_67 = arith.constant 0 : index
    %151 = vector.load %arg0[%c3, %c0_66, %c0_67] : memref<8x2x16xf32, #tpu.memory_space<vmem>>, vector<1x2x16xf32>
    %152 = vector.shape_cast %151 : vector<1x2x16xf32> to vector<2x16xf32>
    %c0_68 = arith.constant 0 : index
    %c0_69 = arith.constant 0 : index
    %153 = vector.load %arg1[%c0_68, %c0_69] : memref<16x128xf32, #tpu.memory_space<vmem>>, vector<16x128xf32>
    %cst_70 = arith.constant dense<0.000000e+00> : vector<2x128xf32>
    %154 = tpu.matmul %152, %153, %cst_70 {dimension_numbers = #tpu.dot_dimension_numbers<[1], [0], [0], [1], [0, 0, 1, 1], [], []>} : vector<2x16xf32>, vector<16x128xf32>, vector<2x128xf32> -> vector<2x128xf32>
    %c0_71 = arith.constant 0 : index
    %c0_72 = arith.constant 0 : index
    %155 = vector.load %arg2[%c0_71, %c0_72] : memref<32x128xf32, #tpu.memory_space<vmem>>, vector<32x128xf32>
    %cst_73 = arith.constant dense<0.000000e+00> : vector<2x128xf32>
    %156 = tpu.matmul %125, %155, %cst_73 {dimension_numbers = #tpu.dot_dimension_numbers<[1], [0], [0], [1], [0, 0, 1, 1], [], []>} : vector<2x32xf32>, vector<32x128xf32>, vector<2x128xf32> -> vector<2x128xf32>
    %157 = arith.addf %154, %156 : vector<2x128xf32>
    %c0_74 = arith.constant 0 : index
    %c0_75 = arith.constant 0 : index
    %158 = vector.load %arg3[%c0_74, %c0_75] : memref<1x128xf32, #tpu.memory_space<vmem>>, vector<1x128xf32>
    %159 = vector.broadcast %158 : vector<1x128xf32> to vector<2x128xf32>
    %160 = arith.addf %157, %159 : vector<2x128xf32>
    %161 = arith.negf %160 : vector<2x128xf32>
    %162 = math.exp %161 : vector<2x128xf32>
    %cst_76 = arith.constant 1.000000e+00 : f32
    %163 = vector.broadcast %cst_76 : f32 to vector<2x128xf32>
    %164 = arith.addf %163, %162 : vector<2x128xf32>
    %165 = arith.divf %163, %164 : vector<2x128xf32>
    %166 = math.tanh %160 : vector<2x128xf32>
    %167 = vector.extract_strided_slice %165 {offsets = [0, 0], sizes = [2, 32], strides = [1, 1]} : vector<2x128xf32> to vector<2x32xf32>
    %168 = vector.extract_strided_slice %165 {offsets = [0, 32], sizes = [2, 32], strides = [1, 1]} : vector<2x128xf32> to vector<2x32xf32>
    %169 = vector.extract_strided_slice %166 {offsets = [0, 64], sizes = [2, 32], strides = [1, 1]} : vector<2x128xf32> to vector<2x32xf32>
    %170 = vector.extract_strided_slice %165 {offsets = [0, 96], sizes = [2, 32], strides = [1, 1]} : vector<2x128xf32> to vector<2x32xf32>
    %171 = arith.mulf %168, %123 : vector<2x32xf32>
    %172 = arith.mulf %167, %169 : vector<2x32xf32>
    %173 = arith.addf %171, %172 : vector<2x32xf32>
    %174 = math.tanh %173 : vector<2x32xf32>
    %175 = arith.mulf %170, %174 : vector<2x32xf32>
    %c4 = arith.constant 4 : index
    %c0_77 = arith.constant 0 : index
    %c0_78 = arith.constant 0 : index
    %176 = vector.load %arg0[%c4, %c0_77, %c0_78] : memref<8x2x16xf32, #tpu.memory_space<vmem>>, vector<1x2x16xf32>
    %177 = vector.shape_cast %176 : vector<1x2x16xf32> to vector<2x16xf32>
    %c0_79 = arith.constant 0 : index
    %c0_80 = arith.constant 0 : index
    %178 = vector.load %arg4[%c0_79, %c0_80] : memref<16x128xf32, #tpu.memory_space<vmem>>, vector<16x128xf32>
    %cst_81 = arith.constant dense<0.000000e+00> : vector<2x128xf32>
    %179 = tpu.matmul %177, %178, %cst_81 {dimension_numbers = #tpu.dot_dimension_numbers<[1], [0], [0], [1], [0, 0, 1, 1], [], []>} : vector<2x16xf32>, vector<16x128xf32>, vector<2x128xf32> -> vector<2x128xf32>
    %c0_82 = arith.constant 0 : index
    %c0_83 = arith.constant 0 : index
    %180 = vector.load %arg5[%c0_82, %c0_83] : memref<32x128xf32, #tpu.memory_space<vmem>>, vector<32x128xf32>
    %cst_84 = arith.constant dense<0.000000e+00> : vector<2x128xf32>
    %181 = tpu.matmul %150, %180, %cst_84 {dimension_numbers = #tpu.dot_dimension_numbers<[1], [0], [0], [1], [0, 0, 1, 1], [], []>} : vector<2x32xf32>, vector<32x128xf32>, vector<2x128xf32> -> vector<2x128xf32>
    %182 = arith.addf %179, %181 : vector<2x128xf32>
    %c0_85 = arith.constant 0 : index
    %c0_86 = arith.constant 0 : index
    %183 = vector.load %arg6[%c0_85, %c0_86] : memref<1x128xf32, #tpu.memory_space<vmem>>, vector<1x128xf32>
    %184 = vector.broadcast %183 : vector<1x128xf32> to vector<2x128xf32>
    %185 = arith.addf %182, %184 : vector<2x128xf32>
    %186 = arith.negf %185 : vector<2x128xf32>
    %187 = math.exp %186 : vector<2x128xf32>
    %cst_87 = arith.constant 1.000000e+00 : f32
    %188 = vector.broadcast %cst_87 : f32 to vector<2x128xf32>
    %189 = arith.addf %188, %187 : vector<2x128xf32>
    %190 = arith.divf %188, %189 : vector<2x128xf32>
    %191 = math.tanh %185 : vector<2x128xf32>
    %192 = vector.extract_strided_slice %190 {offsets = [0, 0], sizes = [2, 32], strides = [1, 1]} : vector<2x128xf32> to vector<2x32xf32>
    %193 = vector.extract_strided_slice %190 {offsets = [0, 32], sizes = [2, 32], strides = [1, 1]} : vector<2x128xf32> to vector<2x32xf32>
    %194 = vector.extract_strided_slice %191 {offsets = [0, 64], sizes = [2, 32], strides = [1, 1]} : vector<2x128xf32> to vector<2x32xf32>
    %195 = vector.extract_strided_slice %190 {offsets = [0, 96], sizes = [2, 32], strides = [1, 1]} : vector<2x128xf32> to vector<2x32xf32>
    %196 = arith.mulf %193, %148 : vector<2x32xf32>
    %197 = arith.mulf %192, %194 : vector<2x32xf32>
    %198 = arith.addf %196, %197 : vector<2x32xf32>
    %199 = math.tanh %198 : vector<2x32xf32>
    %200 = arith.mulf %195, %199 : vector<2x32xf32>
    %c4_88 = arith.constant 4 : index
    %c0_89 = arith.constant 0 : index
    %c0_90 = arith.constant 0 : index
    %201 = vector.load %arg0[%c4_88, %c0_89, %c0_90] : memref<8x2x16xf32, #tpu.memory_space<vmem>>, vector<1x2x16xf32>
    %202 = vector.shape_cast %201 : vector<1x2x16xf32> to vector<2x16xf32>
    %c0_91 = arith.constant 0 : index
    %c0_92 = arith.constant 0 : index
    %203 = vector.load %arg1[%c0_91, %c0_92] : memref<16x128xf32, #tpu.memory_space<vmem>>, vector<16x128xf32>
    %cst_93 = arith.constant dense<0.000000e+00> : vector<2x128xf32>
    %204 = tpu.matmul %202, %203, %cst_93 {dimension_numbers = #tpu.dot_dimension_numbers<[1], [0], [0], [1], [0, 0, 1, 1], [], []>} : vector<2x16xf32>, vector<16x128xf32>, vector<2x128xf32> -> vector<2x128xf32>
    %c0_94 = arith.constant 0 : index
    %c0_95 = arith.constant 0 : index
    %205 = vector.load %arg2[%c0_94, %c0_95] : memref<32x128xf32, #tpu.memory_space<vmem>>, vector<32x128xf32>
    %cst_96 = arith.constant dense<0.000000e+00> : vector<2x128xf32>
    %206 = tpu.matmul %175, %205, %cst_96 {dimension_numbers = #tpu.dot_dimension_numbers<[1], [0], [0], [1], [0, 0, 1, 1], [], []>} : vector<2x32xf32>, vector<32x128xf32>, vector<2x128xf32> -> vector<2x128xf32>
    %207 = arith.addf %204, %206 : vector<2x128xf32>
    %c0_97 = arith.constant 0 : index
    %c0_98 = arith.constant 0 : index
    %208 = vector.load %arg3[%c0_97, %c0_98] : memref<1x128xf32, #tpu.memory_space<vmem>>, vector<1x128xf32>
    %209 = vector.broadcast %208 : vector<1x128xf32> to vector<2x128xf32>
    %210 = arith.addf %207, %209 : vector<2x128xf32>
    %211 = arith.negf %210 : vector<2x128xf32>
    %212 = math.exp %211 : vector<2x128xf32>
    %cst_99 = arith.constant 1.000000e+00 : f32
    %213 = vector.broadcast %cst_99 : f32 to vector<2x128xf32>
    %214 = arith.addf %213, %212 : vector<2x128xf32>
    %215 = arith.divf %213, %214 : vector<2x128xf32>
    %216 = math.tanh %210 : vector<2x128xf32>
    %217 = vector.extract_strided_slice %215 {offsets = [0, 0], sizes = [2, 32], strides = [1, 1]} : vector<2x128xf32> to vector<2x32xf32>
    %218 = vector.extract_strided_slice %215 {offsets = [0, 32], sizes = [2, 32], strides = [1, 1]} : vector<2x128xf32> to vector<2x32xf32>
    %219 = vector.extract_strided_slice %216 {offsets = [0, 64], sizes = [2, 32], strides = [1, 1]} : vector<2x128xf32> to vector<2x32xf32>
    %220 = vector.extract_strided_slice %215 {offsets = [0, 96], sizes = [2, 32], strides = [1, 1]} : vector<2x128xf32> to vector<2x32xf32>
    %221 = arith.mulf %218, %173 : vector<2x32xf32>
    %222 = arith.mulf %217, %219 : vector<2x32xf32>
    %223 = arith.addf %221, %222 : vector<2x32xf32>
    %224 = math.tanh %223 : vector<2x32xf32>
    %225 = arith.mulf %220, %224 : vector<2x32xf32>
    %c3_100 = arith.constant 3 : index
    %c0_101 = arith.constant 0 : index
    %c0_102 = arith.constant 0 : index
    %226 = vector.load %arg0[%c3_100, %c0_101, %c0_102] : memref<8x2x16xf32, #tpu.memory_space<vmem>>, vector<1x2x16xf32>
    %227 = vector.shape_cast %226 : vector<1x2x16xf32> to vector<2x16xf32>
    %c0_103 = arith.constant 0 : index
    %c0_104 = arith.constant 0 : index
    %228 = vector.load %arg4[%c0_103, %c0_104] : memref<16x128xf32, #tpu.memory_space<vmem>>, vector<16x128xf32>
    %cst_105 = arith.constant dense<0.000000e+00> : vector<2x128xf32>
    %229 = tpu.matmul %227, %228, %cst_105 {dimension_numbers = #tpu.dot_dimension_numbers<[1], [0], [0], [1], [0, 0, 1, 1], [], []>} : vector<2x16xf32>, vector<16x128xf32>, vector<2x128xf32> -> vector<2x128xf32>
    %c0_106 = arith.constant 0 : index
    %c0_107 = arith.constant 0 : index
    %230 = vector.load %arg5[%c0_106, %c0_107] : memref<32x128xf32, #tpu.memory_space<vmem>>, vector<32x128xf32>
    %cst_108 = arith.constant dense<0.000000e+00> : vector<2x128xf32>
    %231 = tpu.matmul %200, %230, %cst_108 {dimension_numbers = #tpu.dot_dimension_numbers<[1], [0], [0], [1], [0, 0, 1, 1], [], []>} : vector<2x32xf32>, vector<32x128xf32>, vector<2x128xf32> -> vector<2x128xf32>
    %232 = arith.addf %229, %231 : vector<2x128xf32>
    %c0_109 = arith.constant 0 : index
    %c0_110 = arith.constant 0 : index
    %233 = vector.load %arg6[%c0_109, %c0_110] : memref<1x128xf32, #tpu.memory_space<vmem>>, vector<1x128xf32>
    %234 = vector.broadcast %233 : vector<1x128xf32> to vector<2x128xf32>
    %235 = arith.addf %232, %234 : vector<2x128xf32>
    %236 = arith.negf %235 : vector<2x128xf32>
    %237 = math.exp %236 : vector<2x128xf32>
    %cst_111 = arith.constant 1.000000e+00 : f32
    %238 = vector.broadcast %cst_111 : f32 to vector<2x128xf32>
    %239 = arith.addf %238, %237 : vector<2x128xf32>
    %240 = arith.divf %238, %239 : vector<2x128xf32>
    %241 = math.tanh %235 : vector<2x128xf32>
    %242 = vector.extract_strided_slice %240 {offsets = [0, 0], sizes = [2, 32], strides = [1, 1]} : vector<2x128xf32> to vector<2x32xf32>
    %243 = vector.extract_strided_slice %240 {offsets = [0, 32], sizes = [2, 32], strides = [1, 1]} : vector<2x128xf32> to vector<2x32xf32>
    %244 = vector.extract_strided_slice %241 {offsets = [0, 64], sizes = [2, 32], strides = [1, 1]} : vector<2x128xf32> to vector<2x32xf32>
    %245 = vector.extract_strided_slice %240 {offsets = [0, 96], sizes = [2, 32], strides = [1, 1]} : vector<2x128xf32> to vector<2x32xf32>
    %246 = arith.mulf %243, %198 : vector<2x32xf32>
    %247 = arith.mulf %242, %244 : vector<2x32xf32>
    %248 = arith.addf %246, %247 : vector<2x32xf32>
    %249 = math.tanh %248 : vector<2x32xf32>
    %250 = arith.mulf %245, %249 : vector<2x32xf32>
    %c5_112 = arith.constant 5 : index
    %c0_113 = arith.constant 0 : index
    %c0_114 = arith.constant 0 : index
    %251 = vector.load %arg0[%c5_112, %c0_113, %c0_114] : memref<8x2x16xf32, #tpu.memory_space<vmem>>, vector<1x2x16xf32>
    %252 = vector.shape_cast %251 : vector<1x2x16xf32> to vector<2x16xf32>
    %c0_115 = arith.constant 0 : index
    %c0_116 = arith.constant 0 : index
    %253 = vector.load %arg1[%c0_115, %c0_116] : memref<16x128xf32, #tpu.memory_space<vmem>>, vector<16x128xf32>
    %cst_117 = arith.constant dense<0.000000e+00> : vector<2x128xf32>
    %254 = tpu.matmul %252, %253, %cst_117 {dimension_numbers = #tpu.dot_dimension_numbers<[1], [0], [0], [1], [0, 0, 1, 1], [], []>} : vector<2x16xf32>, vector<16x128xf32>, vector<2x128xf32> -> vector<2x128xf32>
    %c0_118 = arith.constant 0 : index
    %c0_119 = arith.constant 0 : index
    %255 = vector.load %arg2[%c0_118, %c0_119] : memref<32x128xf32, #tpu.memory_space<vmem>>, vector<32x128xf32>
    %cst_120 = arith.constant dense<0.000000e+00> : vector<2x128xf32>
    %256 = tpu.matmul %225, %255, %cst_120 {dimension_numbers = #tpu.dot_dimension_numbers<[1], [0], [0], [1], [0, 0, 1, 1], [], []>} : vector<2x32xf32>, vector<32x128xf32>, vector<2x128xf32> -> vector<2x128xf32>
    %257 = arith.addf %254, %256 : vector<2x128xf32>
    %c0_121 = arith.constant 0 : index
    %c0_122 = arith.constant 0 : index
    %258 = vector.load %arg3[%c0_121, %c0_122] : memref<1x128xf32, #tpu.memory_space<vmem>>, vector<1x128xf32>
    %259 = vector.broadcast %258 : vector<1x128xf32> to vector<2x128xf32>
    %260 = arith.addf %257, %259 : vector<2x128xf32>
    %261 = arith.negf %260 : vector<2x128xf32>
    %262 = math.exp %261 : vector<2x128xf32>
    %cst_123 = arith.constant 1.000000e+00 : f32
    %263 = vector.broadcast %cst_123 : f32 to vector<2x128xf32>
    %264 = arith.addf %263, %262 : vector<2x128xf32>
    %265 = arith.divf %263, %264 : vector<2x128xf32>
    %266 = math.tanh %260 : vector<2x128xf32>
    %267 = vector.extract_strided_slice %265 {offsets = [0, 0], sizes = [2, 32], strides = [1, 1]} : vector<2x128xf32> to vector<2x32xf32>
    %268 = vector.extract_strided_slice %265 {offsets = [0, 32], sizes = [2, 32], strides = [1, 1]} : vector<2x128xf32> to vector<2x32xf32>
    %269 = vector.extract_strided_slice %266 {offsets = [0, 64], sizes = [2, 32], strides = [1, 1]} : vector<2x128xf32> to vector<2x32xf32>
    %270 = vector.extract_strided_slice %265 {offsets = [0, 96], sizes = [2, 32], strides = [1, 1]} : vector<2x128xf32> to vector<2x32xf32>
    %271 = arith.mulf %268, %223 : vector<2x32xf32>
    %272 = arith.mulf %267, %269 : vector<2x32xf32>
    %273 = arith.addf %271, %272 : vector<2x32xf32>
    %274 = math.tanh %273 : vector<2x32xf32>
    %275 = arith.mulf %270, %274 : vector<2x32xf32>
    %c2_124 = arith.constant 2 : index
    %c0_125 = arith.constant 0 : index
    %c0_126 = arith.constant 0 : index
    %276 = vector.load %arg0[%c2_124, %c0_125, %c0_126] : memref<8x2x16xf32, #tpu.memory_space<vmem>>, vector<1x2x16xf32>
    %277 = vector.shape_cast %276 : vector<1x2x16xf32> to vector<2x16xf32>
    %c0_127 = arith.constant 0 : index
    %c0_128 = arith.constant 0 : index
    %278 = vector.load %arg4[%c0_127, %c0_128] : memref<16x128xf32, #tpu.memory_space<vmem>>, vector<16x128xf32>
    %cst_129 = arith.constant dense<0.000000e+00> : vector<2x128xf32>
    %279 = tpu.matmul %277, %278, %cst_129 {dimension_numbers = #tpu.dot_dimension_numbers<[1], [0], [0], [1], [0, 0, 1, 1], [], []>} : vector<2x16xf32>, vector<16x128xf32>, vector<2x128xf32> -> vector<2x128xf32>
    %c0_130 = arith.constant 0 : index
    %c0_131 = arith.constant 0 : index
    %280 = vector.load %arg5[%c0_130, %c0_131] : memref<32x128xf32, #tpu.memory_space<vmem>>, vector<32x128xf32>
    %cst_132 = arith.constant dense<0.000000e+00> : vector<2x128xf32>
    %281 = tpu.matmul %250, %280, %cst_132 {dimension_numbers = #tpu.dot_dimension_numbers<[1], [0], [0], [1], [0, 0, 1, 1], [], []>} : vector<2x32xf32>, vector<32x128xf32>, vector<2x128xf32> -> vector<2x128xf32>
    %282 = arith.addf %279, %281 : vector<2x128xf32>
    %c0_133 = arith.constant 0 : index
    %c0_134 = arith.constant 0 : index
    %283 = vector.load %arg6[%c0_133, %c0_134] : memref<1x128xf32, #tpu.memory_space<vmem>>, vector<1x128xf32>
    %284 = vector.broadcast %283 : vector<1x128xf32> to vector<2x128xf32>
    %285 = arith.addf %282, %284 : vector<2x128xf32>
    %286 = arith.negf %285 : vector<2x128xf32>
    %287 = math.exp %286 : vector<2x128xf32>
    %cst_135 = arith.constant 1.000000e+00 : f32
    %288 = vector.broadcast %cst_135 : f32 to vector<2x128xf32>
    %289 = arith.addf %288, %287 : vector<2x128xf32>
    %290 = arith.divf %288, %289 : vector<2x128xf32>
    %291 = math.tanh %285 : vector<2x128xf32>
    %292 = vector.extract_strided_slice %290 {offsets = [0, 0], sizes = [2, 32], strides = [1, 1]} : vector<2x128xf32> to vector<2x32xf32>
    %293 = vector.extract_strided_slice %290 {offsets = [0, 32], sizes = [2, 32], strides = [1, 1]} : vector<2x128xf32> to vector<2x32xf32>
    %294 = vector.extract_strided_slice %291 {offsets = [0, 64], sizes = [2, 32], strides = [1, 1]} : vector<2x128xf32> to vector<2x32xf32>
    %295 = vector.extract_strided_slice %290 {offsets = [0, 96], sizes = [2, 32], strides = [1, 1]} : vector<2x128xf32> to vector<2x32xf32>
    %296 = arith.mulf %293, %248 : vector<2x32xf32>
    %297 = arith.mulf %292, %294 : vector<2x32xf32>
    %298 = arith.addf %296, %297 : vector<2x32xf32>
    %299 = math.tanh %298 : vector<2x32xf32>
    %300 = arith.mulf %295, %299 : vector<2x32xf32>
    %c6_136 = arith.constant 6 : index
    %c0_137 = arith.constant 0 : index
    %c0_138 = arith.constant 0 : index
    %301 = vector.load %arg0[%c6_136, %c0_137, %c0_138] : memref<8x2x16xf32, #tpu.memory_space<vmem>>, vector<1x2x16xf32>
    %302 = vector.shape_cast %301 : vector<1x2x16xf32> to vector<2x16xf32>
    %c0_139 = arith.constant 0 : index
    %c0_140 = arith.constant 0 : index
    %303 = vector.load %arg1[%c0_139, %c0_140] : memref<16x128xf32, #tpu.memory_space<vmem>>, vector<16x128xf32>
    %cst_141 = arith.constant dense<0.000000e+00> : vector<2x128xf32>
    %304 = tpu.matmul %302, %303, %cst_141 {dimension_numbers = #tpu.dot_dimension_numbers<[1], [0], [0], [1], [0, 0, 1, 1], [], []>} : vector<2x16xf32>, vector<16x128xf32>, vector<2x128xf32> -> vector<2x128xf32>
    %c0_142 = arith.constant 0 : index
    %c0_143 = arith.constant 0 : index
    %305 = vector.load %arg2[%c0_142, %c0_143] : memref<32x128xf32, #tpu.memory_space<vmem>>, vector<32x128xf32>
    %cst_144 = arith.constant dense<0.000000e+00> : vector<2x128xf32>
    %306 = tpu.matmul %275, %305, %cst_144 {dimension_numbers = #tpu.dot_dimension_numbers<[1], [0], [0], [1], [0, 0, 1, 1], [], []>} : vector<2x32xf32>, vector<32x128xf32>, vector<2x128xf32> -> vector<2x128xf32>
    %307 = arith.addf %304, %306 : vector<2x128xf32>
    %c0_145 = arith.constant 0 : index
    %c0_146 = arith.constant 0 : index
    %308 = vector.load %arg3[%c0_145, %c0_146] : memref<1x128xf32, #tpu.memory_space<vmem>>, vector<1x128xf32>
    %309 = vector.broadcast %308 : vector<1x128xf32> to vector<2x128xf32>
    %310 = arith.addf %307, %309 : vector<2x128xf32>
    %311 = arith.negf %310 : vector<2x128xf32>
    %312 = math.exp %311 : vector<2x128xf32>
    %cst_147 = arith.constant 1.000000e+00 : f32
    %313 = vector.broadcast %cst_147 : f32 to vector<2x128xf32>
    %314 = arith.addf %313, %312 : vector<2x128xf32>
    %315 = arith.divf %313, %314 : vector<2x128xf32>
    %316 = math.tanh %310 : vector<2x128xf32>
    %317 = vector.extract_strided_slice %315 {offsets = [0, 0], sizes = [2, 32], strides = [1, 1]} : vector<2x128xf32> to vector<2x32xf32>
    %318 = vector.extract_strided_slice %315 {offsets = [0, 32], sizes = [2, 32], strides = [1, 1]} : vector<2x128xf32> to vector<2x32xf32>
    %319 = vector.extract_strided_slice %316 {offsets = [0, 64], sizes = [2, 32], strides = [1, 1]} : vector<2x128xf32> to vector<2x32xf32>
    %320 = vector.extract_strided_slice %315 {offsets = [0, 96], sizes = [2, 32], strides = [1, 1]} : vector<2x128xf32> to vector<2x32xf32>
    %321 = arith.mulf %318, %273 : vector<2x32xf32>
    %322 = arith.mulf %317, %319 : vector<2x32xf32>
    %323 = arith.addf %321, %322 : vector<2x32xf32>
    %324 = math.tanh %323 : vector<2x32xf32>
    %325 = arith.mulf %320, %324 : vector<2x32xf32>
    %c1_148 = arith.constant 1 : index
    %c0_149 = arith.constant 0 : index
    %c0_150 = arith.constant 0 : index
    %326 = vector.load %arg0[%c1_148, %c0_149, %c0_150] : memref<8x2x16xf32, #tpu.memory_space<vmem>>, vector<1x2x16xf32>
    %327 = vector.shape_cast %326 : vector<1x2x16xf32> to vector<2x16xf32>
    %c0_151 = arith.constant 0 : index
    %c0_152 = arith.constant 0 : index
    %328 = vector.load %arg4[%c0_151, %c0_152] : memref<16x128xf32, #tpu.memory_space<vmem>>, vector<16x128xf32>
    %cst_153 = arith.constant dense<0.000000e+00> : vector<2x128xf32>
    %329 = tpu.matmul %327, %328, %cst_153 {dimension_numbers = #tpu.dot_dimension_numbers<[1], [0], [0], [1], [0, 0, 1, 1], [], []>} : vector<2x16xf32>, vector<16x128xf32>, vector<2x128xf32> -> vector<2x128xf32>
    %c0_154 = arith.constant 0 : index
    %c0_155 = arith.constant 0 : index
    %330 = vector.load %arg5[%c0_154, %c0_155] : memref<32x128xf32, #tpu.memory_space<vmem>>, vector<32x128xf32>
    %cst_156 = arith.constant dense<0.000000e+00> : vector<2x128xf32>
    %331 = tpu.matmul %300, %330, %cst_156 {dimension_numbers = #tpu.dot_dimension_numbers<[1], [0], [0], [1], [0, 0, 1, 1], [], []>} : vector<2x32xf32>, vector<32x128xf32>, vector<2x128xf32> -> vector<2x128xf32>
    %332 = arith.addf %329, %331 : vector<2x128xf32>
    %c0_157 = arith.constant 0 : index
    %c0_158 = arith.constant 0 : index
    %333 = vector.load %arg6[%c0_157, %c0_158] : memref<1x128xf32, #tpu.memory_space<vmem>>, vector<1x128xf32>
    %334 = vector.broadcast %333 : vector<1x128xf32> to vector<2x128xf32>
    %335 = arith.addf %332, %334 : vector<2x128xf32>
    %336 = arith.negf %335 : vector<2x128xf32>
    %337 = math.exp %336 : vector<2x128xf32>
    %cst_159 = arith.constant 1.000000e+00 : f32
    %338 = vector.broadcast %cst_159 : f32 to vector<2x128xf32>
    %339 = arith.addf %338, %337 : vector<2x128xf32>
    %340 = arith.divf %338, %339 : vector<2x128xf32>
    %341 = math.tanh %335 : vector<2x128xf32>
    %342 = vector.extract_strided_slice %340 {offsets = [0, 0], sizes = [2, 32], strides = [1, 1]} : vector<2x128xf32> to vector<2x32xf32>
    %343 = vector.extract_strided_slice %340 {offsets = [0, 32], sizes = [2, 32], strides = [1, 1]} : vector<2x128xf32> to vector<2x32xf32>
    %344 = vector.extract_strided_slice %341 {offsets = [0, 64], sizes = [2, 32], strides = [1, 1]} : vector<2x128xf32> to vector<2x32xf32>
    %345 = vector.extract_strided_slice %340 {offsets = [0, 96], sizes = [2, 32], strides = [1, 1]} : vector<2x128xf32> to vector<2x32xf32>
    %346 = arith.mulf %343, %298 : vector<2x32xf32>
    %347 = arith.mulf %342, %344 : vector<2x32xf32>
    %348 = arith.addf %346, %347 : vector<2x32xf32>
    %349 = math.tanh %348 : vector<2x32xf32>
    %350 = arith.mulf %345, %349 : vector<2x32xf32>
    %c7_160 = arith.constant 7 : index
    %c0_161 = arith.constant 0 : index
    %c0_162 = arith.constant 0 : index
    %351 = vector.load %arg0[%c7_160, %c0_161, %c0_162] : memref<8x2x16xf32, #tpu.memory_space<vmem>>, vector<1x2x16xf32>
    %352 = vector.shape_cast %351 : vector<1x2x16xf32> to vector<2x16xf32>
    %c0_163 = arith.constant 0 : index
    %c0_164 = arith.constant 0 : index
    %353 = vector.load %arg1[%c0_163, %c0_164] : memref<16x128xf32, #tpu.memory_space<vmem>>, vector<16x128xf32>
    %cst_165 = arith.constant dense<0.000000e+00> : vector<2x128xf32>
    %354 = tpu.matmul %352, %353, %cst_165 {dimension_numbers = #tpu.dot_dimension_numbers<[1], [0], [0], [1], [0, 0, 1, 1], [], []>} : vector<2x16xf32>, vector<16x128xf32>, vector<2x128xf32> -> vector<2x128xf32>
    %c0_166 = arith.constant 0 : index
    %c0_167 = arith.constant 0 : index
    %355 = vector.load %arg2[%c0_166, %c0_167] : memref<32x128xf32, #tpu.memory_space<vmem>>, vector<32x128xf32>
    %cst_168 = arith.constant dense<0.000000e+00> : vector<2x128xf32>
    %356 = tpu.matmul %325, %355, %cst_168 {dimension_numbers = #tpu.dot_dimension_numbers<[1], [0], [0], [1], [0, 0, 1, 1], [], []>} : vector<2x32xf32>, vector<32x128xf32>, vector<2x128xf32> -> vector<2x128xf32>
    %357 = arith.addf %354, %356 : vector<2x128xf32>
    %c0_169 = arith.constant 0 : index
    %c0_170 = arith.constant 0 : index
    %358 = vector.load %arg3[%c0_169, %c0_170] : memref<1x128xf32, #tpu.memory_space<vmem>>, vector<1x128xf32>
    %359 = vector.broadcast %358 : vector<1x128xf32> to vector<2x128xf32>
    %360 = arith.addf %357, %359 : vector<2x128xf32>
    %361 = arith.negf %360 : vector<2x128xf32>
    %362 = math.exp %361 : vector<2x128xf32>
    %cst_171 = arith.constant 1.000000e+00 : f32
    %363 = vector.broadcast %cst_171 : f32 to vector<2x128xf32>
    %364 = arith.addf %363, %362 : vector<2x128xf32>
    %365 = arith.divf %363, %364 : vector<2x128xf32>
    %366 = math.tanh %360 : vector<2x128xf32>
    %367 = vector.extract_strided_slice %365 {offsets = [0, 0], sizes = [2, 32], strides = [1, 1]} : vector<2x128xf32> to vector<2x32xf32>
    %368 = vector.extract_strided_slice %365 {offsets = [0, 32], sizes = [2, 32], strides = [1, 1]} : vector<2x128xf32> to vector<2x32xf32>
    %369 = vector.extract_strided_slice %366 {offsets = [0, 64], sizes = [2, 32], strides = [1, 1]} : vector<2x128xf32> to vector<2x32xf32>
    %370 = vector.extract_strided_slice %365 {offsets = [0, 96], sizes = [2, 32], strides = [1, 1]} : vector<2x128xf32> to vector<2x32xf32>
    %371 = arith.mulf %368, %323 : vector<2x32xf32>
    %372 = arith.mulf %367, %369 : vector<2x32xf32>
    %373 = arith.addf %371, %372 : vector<2x32xf32>
    %374 = math.tanh %373 : vector<2x32xf32>
    %375 = arith.mulf %370, %374 : vector<2x32xf32>
    %c0_172 = arith.constant 0 : index
    %c0_173 = arith.constant 0 : index
    %c0_174 = arith.constant 0 : index
    %376 = vector.load %arg0[%c0_172, %c0_173, %c0_174] : memref<8x2x16xf32, #tpu.memory_space<vmem>>, vector<1x2x16xf32>
    %377 = vector.shape_cast %376 : vector<1x2x16xf32> to vector<2x16xf32>
    %c0_175 = arith.constant 0 : index
    %c0_176 = arith.constant 0 : index
    %378 = vector.load %arg4[%c0_175, %c0_176] : memref<16x128xf32, #tpu.memory_space<vmem>>, vector<16x128xf32>
    %cst_177 = arith.constant dense<0.000000e+00> : vector<2x128xf32>
    %379 = tpu.matmul %377, %378, %cst_177 {dimension_numbers = #tpu.dot_dimension_numbers<[1], [0], [0], [1], [0, 0, 1, 1], [], []>} : vector<2x16xf32>, vector<16x128xf32>, vector<2x128xf32> -> vector<2x128xf32>
    %c0_178 = arith.constant 0 : index
    %c0_179 = arith.constant 0 : index
    %380 = vector.load %arg5[%c0_178, %c0_179] : memref<32x128xf32, #tpu.memory_space<vmem>>, vector<32x128xf32>
    %cst_180 = arith.constant dense<0.000000e+00> : vector<2x128xf32>
    %381 = tpu.matmul %350, %380, %cst_180 {dimension_numbers = #tpu.dot_dimension_numbers<[1], [0], [0], [1], [0, 0, 1, 1], [], []>} : vector<2x32xf32>, vector<32x128xf32>, vector<2x128xf32> -> vector<2x128xf32>
    %382 = arith.addf %379, %381 : vector<2x128xf32>
    %c0_181 = arith.constant 0 : index
    %c0_182 = arith.constant 0 : index
    %383 = vector.load %arg6[%c0_181, %c0_182] : memref<1x128xf32, #tpu.memory_space<vmem>>, vector<1x128xf32>
    %384 = vector.broadcast %383 : vector<1x128xf32> to vector<2x128xf32>
    %385 = arith.addf %382, %384 : vector<2x128xf32>
    %386 = arith.negf %385 : vector<2x128xf32>
    %387 = math.exp %386 : vector<2x128xf32>
    %cst_183 = arith.constant 1.000000e+00 : f32
    %388 = vector.broadcast %cst_183 : f32 to vector<2x128xf32>
    %389 = arith.addf %388, %387 : vector<2x128xf32>
    %390 = arith.divf %388, %389 : vector<2x128xf32>
    %391 = math.tanh %385 : vector<2x128xf32>
    %392 = vector.extract_strided_slice %390 {offsets = [0, 0], sizes = [2, 32], strides = [1, 1]} : vector<2x128xf32> to vector<2x32xf32>
    %393 = vector.extract_strided_slice %390 {offsets = [0, 32], sizes = [2, 32], strides = [1, 1]} : vector<2x128xf32> to vector<2x32xf32>
    %394 = vector.extract_strided_slice %391 {offsets = [0, 64], sizes = [2, 32], strides = [1, 1]} : vector<2x128xf32> to vector<2x32xf32>
    %395 = vector.extract_strided_slice %390 {offsets = [0, 96], sizes = [2, 32], strides = [1, 1]} : vector<2x128xf32> to vector<2x32xf32>
    %396 = arith.mulf %393, %348 : vector<2x32xf32>
    %397 = arith.mulf %392, %394 : vector<2x32xf32>
    %398 = arith.addf %396, %397 : vector<2x32xf32>
    %399 = math.tanh %398 : vector<2x32xf32>
    %400 = arith.mulf %395, %399 : vector<2x32xf32>
    %c0_184 = arith.constant 0 : index
    %c0_185 = arith.constant 0 : index
    %401 = vector.load %arg7[%c0_184, %c0_185] : memref<64x32xf32, #tpu.memory_space<vmem>>, vector<32x32xf32>
    %c32 = arith.constant 32 : index
    %c0_186 = arith.constant 0 : index
    %402 = vector.load %arg7[%c32, %c0_186] : memref<64x32xf32, #tpu.memory_space<vmem>>, vector<32x32xf32>
    %cst_187 = arith.constant dense<0.000000e+00> : vector<2x32xf32>
    %403 = tpu.matmul %375, %401, %cst_187 {dimension_numbers = #tpu.dot_dimension_numbers<[1], [0], [0], [1], [0, 0, 1, 1], [], []>} : vector<2x32xf32>, vector<32x32xf32>, vector<2x32xf32> -> vector<2x32xf32>
    %cst_188 = arith.constant dense<0.000000e+00> : vector<2x32xf32>
    %404 = tpu.matmul %400, %402, %cst_188 {dimension_numbers = #tpu.dot_dimension_numbers<[1], [0], [0], [1], [0, 0, 1, 1], [], []>} : vector<2x32xf32>, vector<32x32xf32>, vector<2x32xf32> -> vector<2x32xf32>
    %405 = arith.addf %403, %404 : vector<2x32xf32>
    %c0_189 = arith.constant 0 : index
    %c0_190 = arith.constant 0 : index
    %406 = vector.load %arg8[%c0_189, %c0_190] : memref<1x32xf32, #tpu.memory_space<vmem>>, vector<1x32xf32>
    %407 = vector.broadcast %406 : vector<1x32xf32> to vector<2x32xf32>
    %408 = arith.addf %405, %407 : vector<2x32xf32>
    %c0_191 = arith.constant 0 : index
    %c0_192 = arith.constant 0 : index
    %409 = vector.load %arg9[%c0_191, %c0_192] : memref<2x32xf32, #tpu.memory_space<vmem>>, vector<2x32xf32>
    tpu.vector_store %arg9[%c0_191, %c0_192], %408 {strides = array<i32>} : memref<2x32xf32, #tpu.memory_space<vmem>>, vector<2x32xf32>,
    %cst_193 = arith.constant dense<0.000000e+00> : vector<2x32xf32>
    %410 = tpu.matmul %373, %401, %cst_193 {dimension_numbers = #tpu.dot_dimension_numbers<[1], [0], [0], [1], [0, 0, 1, 1], [], []>} : vector<2x32xf32>, vector<32x32xf32>, vector<2x32xf32> -> vector<2x32xf32>
    %cst_194 = arith.constant dense<0.000000e+00> : vector<2x32xf32>
    %411 = tpu.matmul %398, %402, %cst_194 {dimension_numbers = #tpu.dot_dimension_numbers<[1], [0], [0], [1], [0, 0, 1, 1], [], []>} : vector<2x32xf32>, vector<32x32xf32>, vector<2x32xf32> -> vector<2x32xf32>
    %412 = arith.addf %410, %411 : vector<2x32xf32>
    %c0_195 = arith.constant 0 : index
    %c0_196 = arith.constant 0 : index
    %413 = vector.load %arg8[%c0_195, %c0_196] : memref<1x32xf32, #tpu.memory_space<vmem>>, vector<1x32xf32>
    %414 = vector.broadcast %413 : vector<1x32xf32> to vector<2x32xf32>
    %415 = arith.addf %412, %414 : vector<2x32xf32>
    %c0_197 = arith.constant 0 : index
    %c0_198 = arith.constant 0 : index
    %416 = vector.load %arg10[%c0_197, %c0_198] : memref<2x32xf32, #tpu.memory_space<vmem>>, vector<2x32xf32>
    tpu.vector_store %arg10[%c0_197, %c0_198], %415 {strides = array<i32>} : memref<2x32xf32, #tpu.memory_space<vmem>>, vector<2x32xf32>,
    return
  }
}

module attributes {stable_mosaic.version = 11 : i64} {
  func.func @dec_fc_kernel(%arg0: memref<8x2x16xf32, #tpu.memory_space<vmem>>, %arg1: memref<16x128xf32, #tpu.memory_space<vmem>>, %arg2: memref<32x128xf32, #tpu.memory_space<vmem>>, %arg3: memref<1x128xf32, #tpu.memory_space<vmem>>, %arg4: memref<2x32xf32, #tpu.memory_space<vmem>>, %arg5: memref<2x32xf32, #tpu.memory_space<vmem>>, %arg6: memref<32x128xf32, #tpu.memory_space<vmem>>, %arg7: memref<1x128xf32, #tpu.memory_space<vmem>>, %arg8: memref<8x2x128xf32, #tpu.memory_space<vmem>>) attributes {dimension_semantics = [], scalar_prefetch = 0 : i64, scratch_operands = 0 : i64, tpu.core_type = #tpu.core_type<tc>} {
    %c0 = arith.constant 0 : index
    %c0_0 = arith.constant 0 : index
    %0 = vector.load %arg4[%c0, %c0_0] : memref<2x32xf32, #tpu.memory_space<vmem>>, vector<2x32xf32>
    %c0_1 = arith.constant 0 : index
    %c0_2 = arith.constant 0 : index
    %1 = vector.load %arg5[%c0_1, %c0_2] : memref<2x32xf32, #tpu.memory_space<vmem>>, vector<2x32xf32>
    %c0_3 = arith.constant 0 : index
    %c0_4 = arith.constant 0 : index
    %c0_5 = arith.constant 0 : index
    %2 = vector.load %arg0[%c0_3, %c0_4, %c0_5] : memref<8x2x16xf32, #tpu.memory_space<vmem>>, vector<1x2x16xf32>
    %3 = vector.shape_cast %2 : vector<1x2x16xf32> to vector<2x16xf32>
    %c0_6 = arith.constant 0 : index
    %c0_7 = arith.constant 0 : index
    %4 = vector.load %arg1[%c0_6, %c0_7] : memref<16x128xf32, #tpu.memory_space<vmem>>, vector<16x128xf32>
    %cst = arith.constant dense<0.000000e+00> : vector<2x128xf32>
    %5 = tpu.matmul %3, %4, %cst {dimension_numbers = #tpu.dot_dimension_numbers<[1], [0], [0], [1], [0, 0, 1, 1], [], []>} : vector<2x16xf32>, vector<16x128xf32>, vector<2x128xf32> -> vector<2x128xf32>
    %c0_8 = arith.constant 0 : index
    %c0_9 = arith.constant 0 : index
    %6 = vector.load %arg2[%c0_8, %c0_9] : memref<32x128xf32, #tpu.memory_space<vmem>>, vector<32x128xf32>
    %cst_10 = arith.constant dense<0.000000e+00> : vector<2x128xf32>
    %7 = tpu.matmul %0, %6, %cst_10 {dimension_numbers = #tpu.dot_dimension_numbers<[1], [0], [0], [1], [0, 0, 1, 1], [], []>} : vector<2x32xf32>, vector<32x128xf32>, vector<2x128xf32> -> vector<2x128xf32>
    %8 = arith.addf %5, %7 : vector<2x128xf32>
    %c0_11 = arith.constant 0 : index
    %c0_12 = arith.constant 0 : index
    %9 = vector.load %arg3[%c0_11, %c0_12] : memref<1x128xf32, #tpu.memory_space<vmem>>, vector<1x128xf32>
    %10 = vector.broadcast %9 : vector<1x128xf32> to vector<2x128xf32>
    %11 = arith.addf %8, %10 : vector<2x128xf32>
    %12 = arith.negf %11 : vector<2x128xf32>
    %13 = math.exp %12 : vector<2x128xf32>
    %cst_13 = arith.constant 1.000000e+00 : f32
    %14 = vector.broadcast %cst_13 : f32 to vector<2x128xf32>
    %15 = arith.addf %14, %13 : vector<2x128xf32>
    %16 = arith.divf %14, %15 : vector<2x128xf32>
    %17 = math.tanh %11 : vector<2x128xf32>
    %18 = vector.extract_strided_slice %16 {offsets = [0, 0], sizes = [2, 32], strides = [1, 1]} : vector<2x128xf32> to vector<2x32xf32>
    %19 = vector.extract_strided_slice %16 {offsets = [0, 32], sizes = [2, 32], strides = [1, 1]} : vector<2x128xf32> to vector<2x32xf32>
    %20 = vector.extract_strided_slice %17 {offsets = [0, 64], sizes = [2, 32], strides = [1, 1]} : vector<2x128xf32> to vector<2x32xf32>
    %21 = vector.extract_strided_slice %16 {offsets = [0, 96], sizes = [2, 32], strides = [1, 1]} : vector<2x128xf32> to vector<2x32xf32>
    %22 = arith.mulf %19, %1 : vector<2x32xf32>
    %23 = arith.mulf %18, %20 : vector<2x32xf32>
    %24 = arith.addf %22, %23 : vector<2x32xf32>
    %25 = math.tanh %24 : vector<2x32xf32>
    %26 = arith.mulf %21, %25 : vector<2x32xf32>
    %c0_14 = arith.constant 0 : index
    %c0_15 = arith.constant 0 : index
    %27 = vector.load %arg6[%c0_14, %c0_15] : memref<32x128xf32, #tpu.memory_space<vmem>>, vector<32x128xf32>
    %cst_16 = arith.constant dense<0.000000e+00> : vector<2x128xf32>
    %28 = tpu.matmul %26, %27, %cst_16 {dimension_numbers = #tpu.dot_dimension_numbers<[1], [0], [0], [1], [0, 0, 1, 1], [], []>} : vector<2x32xf32>, vector<32x128xf32>, vector<2x128xf32> -> vector<2x128xf32>
    %c0_17 = arith.constant 0 : index
    %c0_18 = arith.constant 0 : index
    %29 = vector.load %arg7[%c0_17, %c0_18] : memref<1x128xf32, #tpu.memory_space<vmem>>, vector<1x128xf32>
    %30 = vector.broadcast %29 : vector<1x128xf32> to vector<2x128xf32>
    %31 = arith.addf %28, %30 : vector<2x128xf32>
    %c0_19 = arith.constant 0 : index
    %c0_20 = arith.constant 0 : index
    %c0_21 = arith.constant 0 : index
    %32 = vector.load %arg8[%c0_19, %c0_20, %c0_21] : memref<8x2x128xf32, #tpu.memory_space<vmem>>, vector<1x2x128xf32>
    %33 = vector.shape_cast %32 : vector<1x2x128xf32> to vector<2x128xf32>
    %34 = vector.shape_cast %31 : vector<2x128xf32> to vector<1x2x128xf32>
    tpu.vector_store %arg8[%c0_19, %c0_20, %c0_21], %34 {strides = array<i32>} : memref<8x2x128xf32, #tpu.memory_space<vmem>>, vector<1x2x128xf32>,
    %c1 = arith.constant 1 : index
    %c0_22 = arith.constant 0 : index
    %c0_23 = arith.constant 0 : index
    %35 = vector.load %arg0[%c1, %c0_22, %c0_23] : memref<8x2x16xf32, #tpu.memory_space<vmem>>, vector<1x2x16xf32>
    %36 = vector.shape_cast %35 : vector<1x2x16xf32> to vector<2x16xf32>
    %c0_24 = arith.constant 0 : index
    %c0_25 = arith.constant 0 : index
    %37 = vector.load %arg1[%c0_24, %c0_25] : memref<16x128xf32, #tpu.memory_space<vmem>>, vector<16x128xf32>
    %cst_26 = arith.constant dense<0.000000e+00> : vector<2x128xf32>
    %38 = tpu.matmul %36, %37, %cst_26 {dimension_numbers = #tpu.dot_dimension_numbers<[1], [0], [0], [1], [0, 0, 1, 1], [], []>} : vector<2x16xf32>, vector<16x128xf32>, vector<2x128xf32> -> vector<2x128xf32>
    %c0_27 = arith.constant 0 : index
    %c0_28 = arith.constant 0 : index
    %39 = vector.load %arg2[%c0_27, %c0_28] : memref<32x128xf32, #tpu.memory_space<vmem>>, vector<32x128xf32>
    %cst_29 = arith.constant dense<0.000000e+00> : vector<2x128xf32>
    %40 = tpu.matmul %26, %39, %cst_29 {dimension_numbers = #tpu.dot_dimension_numbers<[1], [0], [0], [1], [0, 0, 1, 1], [], []>} : vector<2x32xf32>, vector<32x128xf32>, vector<2x128xf32> -> vector<2x128xf32>
    %41 = arith.addf %38, %40 : vector<2x128xf32>
    %c0_30 = arith.constant 0 : index
    %c0_31 = arith.constant 0 : index
    %42 = vector.load %arg3[%c0_30, %c0_31] : memref<1x128xf32, #tpu.memory_space<vmem>>, vector<1x128xf32>
    %43 = vector.broadcast %42 : vector<1x128xf32> to vector<2x128xf32>
    %44 = arith.addf %41, %43 : vector<2x128xf32>
    %45 = arith.negf %44 : vector<2x128xf32>
    %46 = math.exp %45 : vector<2x128xf32>
    %cst_32 = arith.constant 1.000000e+00 : f32
    %47 = vector.broadcast %cst_32 : f32 to vector<2x128xf32>
    %48 = arith.addf %47, %46 : vector<2x128xf32>
    %49 = arith.divf %47, %48 : vector<2x128xf32>
    %50 = math.tanh %44 : vector<2x128xf32>
    %51 = vector.extract_strided_slice %49 {offsets = [0, 0], sizes = [2, 32], strides = [1, 1]} : vector<2x128xf32> to vector<2x32xf32>
    %52 = vector.extract_strided_slice %49 {offsets = [0, 32], sizes = [2, 32], strides = [1, 1]} : vector<2x128xf32> to vector<2x32xf32>
    %53 = vector.extract_strided_slice %50 {offsets = [0, 64], sizes = [2, 32], strides = [1, 1]} : vector<2x128xf32> to vector<2x32xf32>
    %54 = vector.extract_strided_slice %49 {offsets = [0, 96], sizes = [2, 32], strides = [1, 1]} : vector<2x128xf32> to vector<2x32xf32>
    %55 = arith.mulf %52, %24 : vector<2x32xf32>
    %56 = arith.mulf %51, %53 : vector<2x32xf32>
    %57 = arith.addf %55, %56 : vector<2x32xf32>
    %58 = math.tanh %57 : vector<2x32xf32>
    %59 = arith.mulf %54, %58 : vector<2x32xf32>
    %c0_33 = arith.constant 0 : index
    %c0_34 = arith.constant 0 : index
    %60 = vector.load %arg6[%c0_33, %c0_34] : memref<32x128xf32, #tpu.memory_space<vmem>>, vector<32x128xf32>
    %cst_35 = arith.constant dense<0.000000e+00> : vector<2x128xf32>
    %61 = tpu.matmul %59, %60, %cst_35 {dimension_numbers = #tpu.dot_dimension_numbers<[1], [0], [0], [1], [0, 0, 1, 1], [], []>} : vector<2x32xf32>, vector<32x128xf32>, vector<2x128xf32> -> vector<2x128xf32>
    %c0_36 = arith.constant 0 : index
    %c0_37 = arith.constant 0 : index
    %62 = vector.load %arg7[%c0_36, %c0_37] : memref<1x128xf32, #tpu.memory_space<vmem>>, vector<1x128xf32>
    %63 = vector.broadcast %62 : vector<1x128xf32> to vector<2x128xf32>
    %64 = arith.addf %61, %63 : vector<2x128xf32>
    %c1_38 = arith.constant 1 : index
    %c0_39 = arith.constant 0 : index
    %c0_40 = arith.constant 0 : index
    %65 = vector.load %arg8[%c1_38, %c0_39, %c0_40] : memref<8x2x128xf32, #tpu.memory_space<vmem>>, vector<1x2x128xf32>
    %66 = vector.shape_cast %65 : vector<1x2x128xf32> to vector<2x128xf32>
    %67 = vector.shape_cast %64 : vector<2x128xf32> to vector<1x2x128xf32>
    tpu.vector_store %arg8[%c1_38, %c0_39, %c0_40], %67 {strides = array<i32>} : memref<8x2x128xf32, #tpu.memory_space<vmem>>, vector<1x2x128xf32>,
    %c2 = arith.constant 2 : index
    %c0_41 = arith.constant 0 : index
    %c0_42 = arith.constant 0 : index
    %68 = vector.load %arg0[%c2, %c0_41, %c0_42] : memref<8x2x16xf32, #tpu.memory_space<vmem>>, vector<1x2x16xf32>
    %69 = vector.shape_cast %68 : vector<1x2x16xf32> to vector<2x16xf32>
    %c0_43 = arith.constant 0 : index
    %c0_44 = arith.constant 0 : index
    %70 = vector.load %arg1[%c0_43, %c0_44] : memref<16x128xf32, #tpu.memory_space<vmem>>, vector<16x128xf32>
    %cst_45 = arith.constant dense<0.000000e+00> : vector<2x128xf32>
    %71 = tpu.matmul %69, %70, %cst_45 {dimension_numbers = #tpu.dot_dimension_numbers<[1], [0], [0], [1], [0, 0, 1, 1], [], []>} : vector<2x16xf32>, vector<16x128xf32>, vector<2x128xf32> -> vector<2x128xf32>
    %c0_46 = arith.constant 0 : index
    %c0_47 = arith.constant 0 : index
    %72 = vector.load %arg2[%c0_46, %c0_47] : memref<32x128xf32, #tpu.memory_space<vmem>>, vector<32x128xf32>
    %cst_48 = arith.constant dense<0.000000e+00> : vector<2x128xf32>
    %73 = tpu.matmul %59, %72, %cst_48 {dimension_numbers = #tpu.dot_dimension_numbers<[1], [0], [0], [1], [0, 0, 1, 1], [], []>} : vector<2x32xf32>, vector<32x128xf32>, vector<2x128xf32> -> vector<2x128xf32>
    %74 = arith.addf %71, %73 : vector<2x128xf32>
    %c0_49 = arith.constant 0 : index
    %c0_50 = arith.constant 0 : index
    %75 = vector.load %arg3[%c0_49, %c0_50] : memref<1x128xf32, #tpu.memory_space<vmem>>, vector<1x128xf32>
    %76 = vector.broadcast %75 : vector<1x128xf32> to vector<2x128xf32>
    %77 = arith.addf %74, %76 : vector<2x128xf32>
    %78 = arith.negf %77 : vector<2x128xf32>
    %79 = math.exp %78 : vector<2x128xf32>
    %cst_51 = arith.constant 1.000000e+00 : f32
    %80 = vector.broadcast %cst_51 : f32 to vector<2x128xf32>
    %81 = arith.addf %80, %79 : vector<2x128xf32>
    %82 = arith.divf %80, %81 : vector<2x128xf32>
    %83 = math.tanh %77 : vector<2x128xf32>
    %84 = vector.extract_strided_slice %82 {offsets = [0, 0], sizes = [2, 32], strides = [1, 1]} : vector<2x128xf32> to vector<2x32xf32>
    %85 = vector.extract_strided_slice %82 {offsets = [0, 32], sizes = [2, 32], strides = [1, 1]} : vector<2x128xf32> to vector<2x32xf32>
    %86 = vector.extract_strided_slice %83 {offsets = [0, 64], sizes = [2, 32], strides = [1, 1]} : vector<2x128xf32> to vector<2x32xf32>
    %87 = vector.extract_strided_slice %82 {offsets = [0, 96], sizes = [2, 32], strides = [1, 1]} : vector<2x128xf32> to vector<2x32xf32>
    %88 = arith.mulf %85, %57 : vector<2x32xf32>
    %89 = arith.mulf %84, %86 : vector<2x32xf32>
    %90 = arith.addf %88, %89 : vector<2x32xf32>
    %91 = math.tanh %90 : vector<2x32xf32>
    %92 = arith.mulf %87, %91 : vector<2x32xf32>
    %c0_52 = arith.constant 0 : index
    %c0_53 = arith.constant 0 : index
    %93 = vector.load %arg6[%c0_52, %c0_53] : memref<32x128xf32, #tpu.memory_space<vmem>>, vector<32x128xf32>
    %cst_54 = arith.constant dense<0.000000e+00> : vector<2x128xf32>
    %94 = tpu.matmul %92, %93, %cst_54 {dimension_numbers = #tpu.dot_dimension_numbers<[1], [0], [0], [1], [0, 0, 1, 1], [], []>} : vector<2x32xf32>, vector<32x128xf32>, vector<2x128xf32> -> vector<2x128xf32>
    %c0_55 = arith.constant 0 : index
    %c0_56 = arith.constant 0 : index
    %95 = vector.load %arg7[%c0_55, %c0_56] : memref<1x128xf32, #tpu.memory_space<vmem>>, vector<1x128xf32>
    %96 = vector.broadcast %95 : vector<1x128xf32> to vector<2x128xf32>
    %97 = arith.addf %94, %96 : vector<2x128xf32>
    %c2_57 = arith.constant 2 : index
    %c0_58 = arith.constant 0 : index
    %c0_59 = arith.constant 0 : index
    %98 = vector.load %arg8[%c2_57, %c0_58, %c0_59] : memref<8x2x128xf32, #tpu.memory_space<vmem>>, vector<1x2x128xf32>
    %99 = vector.shape_cast %98 : vector<1x2x128xf32> to vector<2x128xf32>
    %100 = vector.shape_cast %97 : vector<2x128xf32> to vector<1x2x128xf32>
    tpu.vector_store %arg8[%c2_57, %c0_58, %c0_59], %100 {strides = array<i32>} : memref<8x2x128xf32, #tpu.memory_space<vmem>>, vector<1x2x128xf32>,
    %c3 = arith.constant 3 : index
    %c0_60 = arith.constant 0 : index
    %c0_61 = arith.constant 0 : index
    %101 = vector.load %arg0[%c3, %c0_60, %c0_61] : memref<8x2x16xf32, #tpu.memory_space<vmem>>, vector<1x2x16xf32>
    %102 = vector.shape_cast %101 : vector<1x2x16xf32> to vector<2x16xf32>
    %c0_62 = arith.constant 0 : index
    %c0_63 = arith.constant 0 : index
    %103 = vector.load %arg1[%c0_62, %c0_63] : memref<16x128xf32, #tpu.memory_space<vmem>>, vector<16x128xf32>
    %cst_64 = arith.constant dense<0.000000e+00> : vector<2x128xf32>
    %104 = tpu.matmul %102, %103, %cst_64 {dimension_numbers = #tpu.dot_dimension_numbers<[1], [0], [0], [1], [0, 0, 1, 1], [], []>} : vector<2x16xf32>, vector<16x128xf32>, vector<2x128xf32> -> vector<2x128xf32>
    %c0_65 = arith.constant 0 : index
    %c0_66 = arith.constant 0 : index
    %105 = vector.load %arg2[%c0_65, %c0_66] : memref<32x128xf32, #tpu.memory_space<vmem>>, vector<32x128xf32>
    %cst_67 = arith.constant dense<0.000000e+00> : vector<2x128xf32>
    %106 = tpu.matmul %92, %105, %cst_67 {dimension_numbers = #tpu.dot_dimension_numbers<[1], [0], [0], [1], [0, 0, 1, 1], [], []>} : vector<2x32xf32>, vector<32x128xf32>, vector<2x128xf32> -> vector<2x128xf32>
    %107 = arith.addf %104, %106 : vector<2x128xf32>
    %c0_68 = arith.constant 0 : index
    %c0_69 = arith.constant 0 : index
    %108 = vector.load %arg3[%c0_68, %c0_69] : memref<1x128xf32, #tpu.memory_space<vmem>>, vector<1x128xf32>
    %109 = vector.broadcast %108 : vector<1x128xf32> to vector<2x128xf32>
    %110 = arith.addf %107, %109 : vector<2x128xf32>
    %111 = arith.negf %110 : vector<2x128xf32>
    %112 = math.exp %111 : vector<2x128xf32>
    %cst_70 = arith.constant 1.000000e+00 : f32
    %113 = vector.broadcast %cst_70 : f32 to vector<2x128xf32>
    %114 = arith.addf %113, %112 : vector<2x128xf32>
    %115 = arith.divf %113, %114 : vector<2x128xf32>
    %116 = math.tanh %110 : vector<2x128xf32>
    %117 = vector.extract_strided_slice %115 {offsets = [0, 0], sizes = [2, 32], strides = [1, 1]} : vector<2x128xf32> to vector<2x32xf32>
    %118 = vector.extract_strided_slice %115 {offsets = [0, 32], sizes = [2, 32], strides = [1, 1]} : vector<2x128xf32> to vector<2x32xf32>
    %119 = vector.extract_strided_slice %116 {offsets = [0, 64], sizes = [2, 32], strides = [1, 1]} : vector<2x128xf32> to vector<2x32xf32>
    %120 = vector.extract_strided_slice %115 {offsets = [0, 96], sizes = [2, 32], strides = [1, 1]} : vector<2x128xf32> to vector<2x32xf32>
    %121 = arith.mulf %118, %90 : vector<2x32xf32>
    %122 = arith.mulf %117, %119 : vector<2x32xf32>
    %123 = arith.addf %121, %122 : vector<2x32xf32>
    %124 = math.tanh %123 : vector<2x32xf32>
    %125 = arith.mulf %120, %124 : vector<2x32xf32>
    %c0_71 = arith.constant 0 : index
    %c0_72 = arith.constant 0 : index
    %126 = vector.load %arg6[%c0_71, %c0_72] : memref<32x128xf32, #tpu.memory_space<vmem>>, vector<32x128xf32>
    %cst_73 = arith.constant dense<0.000000e+00> : vector<2x128xf32>
    %127 = tpu.matmul %125, %126, %cst_73 {dimension_numbers = #tpu.dot_dimension_numbers<[1], [0], [0], [1], [0, 0, 1, 1], [], []>} : vector<2x32xf32>, vector<32x128xf32>, vector<2x128xf32> -> vector<2x128xf32>
    %c0_74 = arith.constant 0 : index
    %c0_75 = arith.constant 0 : index
    %128 = vector.load %arg7[%c0_74, %c0_75] : memref<1x128xf32, #tpu.memory_space<vmem>>, vector<1x128xf32>
    %129 = vector.broadcast %128 : vector<1x128xf32> to vector<2x128xf32>
    %130 = arith.addf %127, %129 : vector<2x128xf32>
    %c3_76 = arith.constant 3 : index
    %c0_77 = arith.constant 0 : index
    %c0_78 = arith.constant 0 : index
    %131 = vector.load %arg8[%c3_76, %c0_77, %c0_78] : memref<8x2x128xf32, #tpu.memory_space<vmem>>, vector<1x2x128xf32>
    %132 = vector.shape_cast %131 : vector<1x2x128xf32> to vector<2x128xf32>
    %133 = vector.shape_cast %130 : vector<2x128xf32> to vector<1x2x128xf32>
    tpu.vector_store %arg8[%c3_76, %c0_77, %c0_78], %133 {strides = array<i32>} : memref<8x2x128xf32, #tpu.memory_space<vmem>>, vector<1x2x128xf32>,
    %c4 = arith.constant 4 : index
    %c0_79 = arith.constant 0 : index
    %c0_80 = arith.constant 0 : index
    %134 = vector.load %arg0[%c4, %c0_79, %c0_80] : memref<8x2x16xf32, #tpu.memory_space<vmem>>, vector<1x2x16xf32>
    %135 = vector.shape_cast %134 : vector<1x2x16xf32> to vector<2x16xf32>
    %c0_81 = arith.constant 0 : index
    %c0_82 = arith.constant 0 : index
    %136 = vector.load %arg1[%c0_81, %c0_82] : memref<16x128xf32, #tpu.memory_space<vmem>>, vector<16x128xf32>
    %cst_83 = arith.constant dense<0.000000e+00> : vector<2x128xf32>
    %137 = tpu.matmul %135, %136, %cst_83 {dimension_numbers = #tpu.dot_dimension_numbers<[1], [0], [0], [1], [0, 0, 1, 1], [], []>} : vector<2x16xf32>, vector<16x128xf32>, vector<2x128xf32> -> vector<2x128xf32>
    %c0_84 = arith.constant 0 : index
    %c0_85 = arith.constant 0 : index
    %138 = vector.load %arg2[%c0_84, %c0_85] : memref<32x128xf32, #tpu.memory_space<vmem>>, vector<32x128xf32>
    %cst_86 = arith.constant dense<0.000000e+00> : vector<2x128xf32>
    %139 = tpu.matmul %125, %138, %cst_86 {dimension_numbers = #tpu.dot_dimension_numbers<[1], [0], [0], [1], [0, 0, 1, 1], [], []>} : vector<2x32xf32>, vector<32x128xf32>, vector<2x128xf32> -> vector<2x128xf32>
    %140 = arith.addf %137, %139 : vector<2x128xf32>
    %c0_87 = arith.constant 0 : index
    %c0_88 = arith.constant 0 : index
    %141 = vector.load %arg3[%c0_87, %c0_88] : memref<1x128xf32, #tpu.memory_space<vmem>>, vector<1x128xf32>
    %142 = vector.broadcast %141 : vector<1x128xf32> to vector<2x128xf32>
    %143 = arith.addf %140, %142 : vector<2x128xf32>
    %144 = arith.negf %143 : vector<2x128xf32>
    %145 = math.exp %144 : vector<2x128xf32>
    %cst_89 = arith.constant 1.000000e+00 : f32
    %146 = vector.broadcast %cst_89 : f32 to vector<2x128xf32>
    %147 = arith.addf %146, %145 : vector<2x128xf32>
    %148 = arith.divf %146, %147 : vector<2x128xf32>
    %149 = math.tanh %143 : vector<2x128xf32>
    %150 = vector.extract_strided_slice %148 {offsets = [0, 0], sizes = [2, 32], strides = [1, 1]} : vector<2x128xf32> to vector<2x32xf32>
    %151 = vector.extract_strided_slice %148 {offsets = [0, 32], sizes = [2, 32], strides = [1, 1]} : vector<2x128xf32> to vector<2x32xf32>
    %152 = vector.extract_strided_slice %149 {offsets = [0, 64], sizes = [2, 32], strides = [1, 1]} : vector<2x128xf32> to vector<2x32xf32>
    %153 = vector.extract_strided_slice %148 {offsets = [0, 96], sizes = [2, 32], strides = [1, 1]} : vector<2x128xf32> to vector<2x32xf32>
    %154 = arith.mulf %151, %123 : vector<2x32xf32>
    %155 = arith.mulf %150, %152 : vector<2x32xf32>
    %156 = arith.addf %154, %155 : vector<2x32xf32>
    %157 = math.tanh %156 : vector<2x32xf32>
    %158 = arith.mulf %153, %157 : vector<2x32xf32>
    %c0_90 = arith.constant 0 : index
    %c0_91 = arith.constant 0 : index
    %159 = vector.load %arg6[%c0_90, %c0_91] : memref<32x128xf32, #tpu.memory_space<vmem>>, vector<32x128xf32>
    %cst_92 = arith.constant dense<0.000000e+00> : vector<2x128xf32>
    %160 = tpu.matmul %158, %159, %cst_92 {dimension_numbers = #tpu.dot_dimension_numbers<[1], [0], [0], [1], [0, 0, 1, 1], [], []>} : vector<2x32xf32>, vector<32x128xf32>, vector<2x128xf32> -> vector<2x128xf32>
    %c0_93 = arith.constant 0 : index
    %c0_94 = arith.constant 0 : index
    %161 = vector.load %arg7[%c0_93, %c0_94] : memref<1x128xf32, #tpu.memory_space<vmem>>, vector<1x128xf32>
    %162 = vector.broadcast %161 : vector<1x128xf32> to vector<2x128xf32>
    %163 = arith.addf %160, %162 : vector<2x128xf32>
    %c4_95 = arith.constant 4 : index
    %c0_96 = arith.constant 0 : index
    %c0_97 = arith.constant 0 : index
    %164 = vector.load %arg8[%c4_95, %c0_96, %c0_97] : memref<8x2x128xf32, #tpu.memory_space<vmem>>, vector<1x2x128xf32>
    %165 = vector.shape_cast %164 : vector<1x2x128xf32> to vector<2x128xf32>
    %166 = vector.shape_cast %163 : vector<2x128xf32> to vector<1x2x128xf32>
    tpu.vector_store %arg8[%c4_95, %c0_96, %c0_97], %166 {strides = array<i32>} : memref<8x2x128xf32, #tpu.memory_space<vmem>>, vector<1x2x128xf32>,
    %c5 = arith.constant 5 : index
    %c0_98 = arith.constant 0 : index
    %c0_99 = arith.constant 0 : index
    %167 = vector.load %arg0[%c5, %c0_98, %c0_99] : memref<8x2x16xf32, #tpu.memory_space<vmem>>, vector<1x2x16xf32>
    %168 = vector.shape_cast %167 : vector<1x2x16xf32> to vector<2x16xf32>
    %c0_100 = arith.constant 0 : index
    %c0_101 = arith.constant 0 : index
    %169 = vector.load %arg1[%c0_100, %c0_101] : memref<16x128xf32, #tpu.memory_space<vmem>>, vector<16x128xf32>
    %cst_102 = arith.constant dense<0.000000e+00> : vector<2x128xf32>
    %170 = tpu.matmul %168, %169, %cst_102 {dimension_numbers = #tpu.dot_dimension_numbers<[1], [0], [0], [1], [0, 0, 1, 1], [], []>} : vector<2x16xf32>, vector<16x128xf32>, vector<2x128xf32> -> vector<2x128xf32>
    %c0_103 = arith.constant 0 : index
    %c0_104 = arith.constant 0 : index
    %171 = vector.load %arg2[%c0_103, %c0_104] : memref<32x128xf32, #tpu.memory_space<vmem>>, vector<32x128xf32>
    %cst_105 = arith.constant dense<0.000000e+00> : vector<2x128xf32>
    %172 = tpu.matmul %158, %171, %cst_105 {dimension_numbers = #tpu.dot_dimension_numbers<[1], [0], [0], [1], [0, 0, 1, 1], [], []>} : vector<2x32xf32>, vector<32x128xf32>, vector<2x128xf32> -> vector<2x128xf32>
    %173 = arith.addf %170, %172 : vector<2x128xf32>
    %c0_106 = arith.constant 0 : index
    %c0_107 = arith.constant 0 : index
    %174 = vector.load %arg3[%c0_106, %c0_107] : memref<1x128xf32, #tpu.memory_space<vmem>>, vector<1x128xf32>
    %175 = vector.broadcast %174 : vector<1x128xf32> to vector<2x128xf32>
    %176 = arith.addf %173, %175 : vector<2x128xf32>
    %177 = arith.negf %176 : vector<2x128xf32>
    %178 = math.exp %177 : vector<2x128xf32>
    %cst_108 = arith.constant 1.000000e+00 : f32
    %179 = vector.broadcast %cst_108 : f32 to vector<2x128xf32>
    %180 = arith.addf %179, %178 : vector<2x128xf32>
    %181 = arith.divf %179, %180 : vector<2x128xf32>
    %182 = math.tanh %176 : vector<2x128xf32>
    %183 = vector.extract_strided_slice %181 {offsets = [0, 0], sizes = [2, 32], strides = [1, 1]} : vector<2x128xf32> to vector<2x32xf32>
    %184 = vector.extract_strided_slice %181 {offsets = [0, 32], sizes = [2, 32], strides = [1, 1]} : vector<2x128xf32> to vector<2x32xf32>
    %185 = vector.extract_strided_slice %182 {offsets = [0, 64], sizes = [2, 32], strides = [1, 1]} : vector<2x128xf32> to vector<2x32xf32>
    %186 = vector.extract_strided_slice %181 {offsets = [0, 96], sizes = [2, 32], strides = [1, 1]} : vector<2x128xf32> to vector<2x32xf32>
    %187 = arith.mulf %184, %156 : vector<2x32xf32>
    %188 = arith.mulf %183, %185 : vector<2x32xf32>
    %189 = arith.addf %187, %188 : vector<2x32xf32>
    %190 = math.tanh %189 : vector<2x32xf32>
    %191 = arith.mulf %186, %190 : vector<2x32xf32>
    %c0_109 = arith.constant 0 : index
    %c0_110 = arith.constant 0 : index
    %192 = vector.load %arg6[%c0_109, %c0_110] : memref<32x128xf32, #tpu.memory_space<vmem>>, vector<32x128xf32>
    %cst_111 = arith.constant dense<0.000000e+00> : vector<2x128xf32>
    %193 = tpu.matmul %191, %192, %cst_111 {dimension_numbers = #tpu.dot_dimension_numbers<[1], [0], [0], [1], [0, 0, 1, 1], [], []>} : vector<2x32xf32>, vector<32x128xf32>, vector<2x128xf32> -> vector<2x128xf32>
    %c0_112 = arith.constant 0 : index
    %c0_113 = arith.constant 0 : index
    %194 = vector.load %arg7[%c0_112, %c0_113] : memref<1x128xf32, #tpu.memory_space<vmem>>, vector<1x128xf32>
    %195 = vector.broadcast %194 : vector<1x128xf32> to vector<2x128xf32>
    %196 = arith.addf %193, %195 : vector<2x128xf32>
    %c5_114 = arith.constant 5 : index
    %c0_115 = arith.constant 0 : index
    %c0_116 = arith.constant 0 : index
    %197 = vector.load %arg8[%c5_114, %c0_115, %c0_116] : memref<8x2x128xf32, #tpu.memory_space<vmem>>, vector<1x2x128xf32>
    %198 = vector.shape_cast %197 : vector<1x2x128xf32> to vector<2x128xf32>
    %199 = vector.shape_cast %196 : vector<2x128xf32> to vector<1x2x128xf32>
    tpu.vector_store %arg8[%c5_114, %c0_115, %c0_116], %199 {strides = array<i32>} : memref<8x2x128xf32, #tpu.memory_space<vmem>>, vector<1x2x128xf32>,
    %c6 = arith.constant 6 : index
    %c0_117 = arith.constant 0 : index
    %c0_118 = arith.constant 0 : index
    %200 = vector.load %arg0[%c6, %c0_117, %c0_118] : memref<8x2x16xf32, #tpu.memory_space<vmem>>, vector<1x2x16xf32>
    %201 = vector.shape_cast %200 : vector<1x2x16xf32> to vector<2x16xf32>
    %c0_119 = arith.constant 0 : index
    %c0_120 = arith.constant 0 : index
    %202 = vector.load %arg1[%c0_119, %c0_120] : memref<16x128xf32, #tpu.memory_space<vmem>>, vector<16x128xf32>
    %cst_121 = arith.constant dense<0.000000e+00> : vector<2x128xf32>
    %203 = tpu.matmul %201, %202, %cst_121 {dimension_numbers = #tpu.dot_dimension_numbers<[1], [0], [0], [1], [0, 0, 1, 1], [], []>} : vector<2x16xf32>, vector<16x128xf32>, vector<2x128xf32> -> vector<2x128xf32>
    %c0_122 = arith.constant 0 : index
    %c0_123 = arith.constant 0 : index
    %204 = vector.load %arg2[%c0_122, %c0_123] : memref<32x128xf32, #tpu.memory_space<vmem>>, vector<32x128xf32>
    %cst_124 = arith.constant dense<0.000000e+00> : vector<2x128xf32>
    %205 = tpu.matmul %191, %204, %cst_124 {dimension_numbers = #tpu.dot_dimension_numbers<[1], [0], [0], [1], [0, 0, 1, 1], [], []>} : vector<2x32xf32>, vector<32x128xf32>, vector<2x128xf32> -> vector<2x128xf32>
    %206 = arith.addf %203, %205 : vector<2x128xf32>
    %c0_125 = arith.constant 0 : index
    %c0_126 = arith.constant 0 : index
    %207 = vector.load %arg3[%c0_125, %c0_126] : memref<1x128xf32, #tpu.memory_space<vmem>>, vector<1x128xf32>
    %208 = vector.broadcast %207 : vector<1x128xf32> to vector<2x128xf32>
    %209 = arith.addf %206, %208 : vector<2x128xf32>
    %210 = arith.negf %209 : vector<2x128xf32>
    %211 = math.exp %210 : vector<2x128xf32>
    %cst_127 = arith.constant 1.000000e+00 : f32
    %212 = vector.broadcast %cst_127 : f32 to vector<2x128xf32>
    %213 = arith.addf %212, %211 : vector<2x128xf32>
    %214 = arith.divf %212, %213 : vector<2x128xf32>
    %215 = math.tanh %209 : vector<2x128xf32>
    %216 = vector.extract_strided_slice %214 {offsets = [0, 0], sizes = [2, 32], strides = [1, 1]} : vector<2x128xf32> to vector<2x32xf32>
    %217 = vector.extract_strided_slice %214 {offsets = [0, 32], sizes = [2, 32], strides = [1, 1]} : vector<2x128xf32> to vector<2x32xf32>
    %218 = vector.extract_strided_slice %215 {offsets = [0, 64], sizes = [2, 32], strides = [1, 1]} : vector<2x128xf32> to vector<2x32xf32>
    %219 = vector.extract_strided_slice %214 {offsets = [0, 96], sizes = [2, 32], strides = [1, 1]} : vector<2x128xf32> to vector<2x32xf32>
    %220 = arith.mulf %217, %189 : vector<2x32xf32>
    %221 = arith.mulf %216, %218 : vector<2x32xf32>
    %222 = arith.addf %220, %221 : vector<2x32xf32>
    %223 = math.tanh %222 : vector<2x32xf32>
    %224 = arith.mulf %219, %223 : vector<2x32xf32>
    %c0_128 = arith.constant 0 : index
    %c0_129 = arith.constant 0 : index
    %225 = vector.load %arg6[%c0_128, %c0_129] : memref<32x128xf32, #tpu.memory_space<vmem>>, vector<32x128xf32>
    %cst_130 = arith.constant dense<0.000000e+00> : vector<2x128xf32>
    %226 = tpu.matmul %224, %225, %cst_130 {dimension_numbers = #tpu.dot_dimension_numbers<[1], [0], [0], [1], [0, 0, 1, 1], [], []>} : vector<2x32xf32>, vector<32x128xf32>, vector<2x128xf32> -> vector<2x128xf32>
    %c0_131 = arith.constant 0 : index
    %c0_132 = arith.constant 0 : index
    %227 = vector.load %arg7[%c0_131, %c0_132] : memref<1x128xf32, #tpu.memory_space<vmem>>, vector<1x128xf32>
    %228 = vector.broadcast %227 : vector<1x128xf32> to vector<2x128xf32>
    %229 = arith.addf %226, %228 : vector<2x128xf32>
    %c6_133 = arith.constant 6 : index
    %c0_134 = arith.constant 0 : index
    %c0_135 = arith.constant 0 : index
    %230 = vector.load %arg8[%c6_133, %c0_134, %c0_135] : memref<8x2x128xf32, #tpu.memory_space<vmem>>, vector<1x2x128xf32>
    %231 = vector.shape_cast %230 : vector<1x2x128xf32> to vector<2x128xf32>
    %232 = vector.shape_cast %229 : vector<2x128xf32> to vector<1x2x128xf32>
    tpu.vector_store %arg8[%c6_133, %c0_134, %c0_135], %232 {strides = array<i32>} : memref<8x2x128xf32, #tpu.memory_space<vmem>>, vector<1x2x128xf32>,
    %c7 = arith.constant 7 : index
    %c0_136 = arith.constant 0 : index
    %c0_137 = arith.constant 0 : index
    %233 = vector.load %arg0[%c7, %c0_136, %c0_137] : memref<8x2x16xf32, #tpu.memory_space<vmem>>, vector<1x2x16xf32>
    %234 = vector.shape_cast %233 : vector<1x2x16xf32> to vector<2x16xf32>
    %c0_138 = arith.constant 0 : index
    %c0_139 = arith.constant 0 : index
    %235 = vector.load %arg1[%c0_138, %c0_139] : memref<16x128xf32, #tpu.memory_space<vmem>>, vector<16x128xf32>
    %cst_140 = arith.constant dense<0.000000e+00> : vector<2x128xf32>
    %236 = tpu.matmul %234, %235, %cst_140 {dimension_numbers = #tpu.dot_dimension_numbers<[1], [0], [0], [1], [0, 0, 1, 1], [], []>} : vector<2x16xf32>, vector<16x128xf32>, vector<2x128xf32> -> vector<2x128xf32>
    %c0_141 = arith.constant 0 : index
    %c0_142 = arith.constant 0 : index
    %237 = vector.load %arg2[%c0_141, %c0_142] : memref<32x128xf32, #tpu.memory_space<vmem>>, vector<32x128xf32>
    %cst_143 = arith.constant dense<0.000000e+00> : vector<2x128xf32>
    %238 = tpu.matmul %224, %237, %cst_143 {dimension_numbers = #tpu.dot_dimension_numbers<[1], [0], [0], [1], [0, 0, 1, 1], [], []>} : vector<2x32xf32>, vector<32x128xf32>, vector<2x128xf32> -> vector<2x128xf32>
    %239 = arith.addf %236, %238 : vector<2x128xf32>
    %c0_144 = arith.constant 0 : index
    %c0_145 = arith.constant 0 : index
    %240 = vector.load %arg3[%c0_144, %c0_145] : memref<1x128xf32, #tpu.memory_space<vmem>>, vector<1x128xf32>
    %241 = vector.broadcast %240 : vector<1x128xf32> to vector<2x128xf32>
    %242 = arith.addf %239, %241 : vector<2x128xf32>
    %243 = arith.negf %242 : vector<2x128xf32>
    %244 = math.exp %243 : vector<2x128xf32>
    %cst_146 = arith.constant 1.000000e+00 : f32
    %245 = vector.broadcast %cst_146 : f32 to vector<2x128xf32>
    %246 = arith.addf %245, %244 : vector<2x128xf32>
    %247 = arith.divf %245, %246 : vector<2x128xf32>
    %248 = math.tanh %242 : vector<2x128xf32>
    %249 = vector.extract_strided_slice %247 {offsets = [0, 0], sizes = [2, 32], strides = [1, 1]} : vector<2x128xf32> to vector<2x32xf32>
    %250 = vector.extract_strided_slice %247 {offsets = [0, 32], sizes = [2, 32], strides = [1, 1]} : vector<2x128xf32> to vector<2x32xf32>
    %251 = vector.extract_strided_slice %248 {offsets = [0, 64], sizes = [2, 32], strides = [1, 1]} : vector<2x128xf32> to vector<2x32xf32>
    %252 = vector.extract_strided_slice %247 {offsets = [0, 96], sizes = [2, 32], strides = [1, 1]} : vector<2x128xf32> to vector<2x32xf32>
    %253 = arith.mulf %250, %222 : vector<2x32xf32>
    %254 = arith.mulf %249, %251 : vector<2x32xf32>
    %255 = arith.addf %253, %254 : vector<2x32xf32>
    %256 = math.tanh %255 : vector<2x32xf32>
    %257 = arith.mulf %252, %256 : vector<2x32xf32>
    %c0_147 = arith.constant 0 : index
    %c0_148 = arith.constant 0 : index
    %258 = vector.load %arg6[%c0_147, %c0_148] : memref<32x128xf32, #tpu.memory_space<vmem>>, vector<32x128xf32>
    %cst_149 = arith.constant dense<0.000000e+00> : vector<2x128xf32>
    %259 = tpu.matmul %257, %258, %cst_149 {dimension_numbers = #tpu.dot_dimension_numbers<[1], [0], [0], [1], [0, 0, 1, 1], [], []>} : vector<2x32xf32>, vector<32x128xf32>, vector<2x128xf32> -> vector<2x128xf32>
    %c0_150 = arith.constant 0 : index
    %c0_151 = arith.constant 0 : index
    %260 = vector.load %arg7[%c0_150, %c0_151] : memref<1x128xf32, #tpu.memory_space<vmem>>, vector<1x128xf32>
    %261 = vector.broadcast %260 : vector<1x128xf32> to vector<2x128xf32>
    %262 = arith.addf %259, %261 : vector<2x128xf32>
    %c7_152 = arith.constant 7 : index
    %c0_153 = arith.constant 0 : index
    %c0_154 = arith.constant 0 : index
    %263 = vector.load %arg8[%c7_152, %c0_153, %c0_154] : memref<8x2x128xf32, #tpu.memory_space<vmem>>, vector<1x2x128xf32>
    %264 = vector.shape_cast %263 : vector<1x2x128xf32> to vector<2x128xf32>
    %265 = vector.shape_cast %262 : vector<2x128xf32> to vector<1x2x128xf32>
    tpu.vector_store %arg8[%c7_152, %c0_153, %c0_154], %265 {strides = array<i32>} : memref<8x2x128xf32, #tpu.memory_space<vmem>>, vector<1x2x128xf32>,
    return
  }
}

</mosaic_0001>

<llo_original>
// kernel: seq2seq_forward.3
$region0: #{seq2seq_forward.3}
  #allocation0 [shape = 'u32[]', space=smem, size = 0x4, offset = 0x4, fixed_abs, tag = 'smem constant byte address 0x4 - core index']
  #allocation1 [shape = 'u32[144,128]{1,0:T(1,128)}', space=vmem, size = 0x12000, scoped, tag = 'internal scratch']
  %s0 = inlined_call_operand.vmem [shape: f32[8,2,16], index: 0, kind: input, shape index: {}]
  %s1 = inlined_call_operand.vmem [shape: f32[16,128], index: 1, kind: input, shape index: {}]
  %s2 = inlined_call_operand.vmem [shape: f32[32,128], index: 2, kind: input, shape index: {}]
  %s3 = inlined_call_operand.vmem [shape: f32[1,128], index: 3, kind: input, shape index: {}]
  %s4 = inlined_call_operand.vmem [shape: f32[2,32], index: 4, kind: input, shape index: {}]
  %s5 = inlined_call_operand.vmem [shape: f32[2,32], index: 5, kind: input, shape index: {}]
  %s6 = inlined_call_operand.vmem [shape: f32[32,128], index: 6, kind: input, shape index: {}]
  %s7 = inlined_call_operand.vmem [shape: f32[1,128], index: 7, kind: input, shape index: {}]
  %s8 = inlined_call_operand.vmem [shape: f32[8,2,128], index: 8, kind: output, shape index: {}]
  %s9 = sld [smem:[#allocation0]]
  $region42: #{seq2seq_forward.3} parent=0
    _
  %s11 = ssub.s32 1, %s9
  %s12 = scalar_select 0, %s11, %s9
  // Predicated region
  $region2: #{seq2seq_forward.3} parent=0 // pred_check
    _
  $region3: #{seq2seq_forward.3} parent=0 // pred_check_branch
    %14 = sbr.rel (0) target = $region5
  $region4: #{seq2seq_forward.3} parent=0 // pred_region
    _
  $region5: #{seq2seq_forward.3} parent=0 // pred_fallthru
    _
  // Predicated region
  $region6: #{seq2seq_forward.3} parent=0 // pred_check
    _
  $region7: #{seq2seq_forward.3} parent=0 // pred_check_branch
    %16 = sbr.rel (0) target = $region9
  $region8: #{seq2seq_forward.3} parent=0 // pred_region
    _
  $region9: #{seq2seq_forward.3} parent=0 // pred_fallthru
    _
  // Predicated region
  $region10: #{seq2seq_forward.3} parent=0 // pred_check
    _
  $region11: #{seq2seq_forward.3} parent=0 // pred_check_branch
    %18 = sbr.rel (0) target = $region13
  $region12: #{seq2seq_forward.3} parent=0 // pred_region
    _
  $region13: #{seq2seq_forward.3} parent=0 // pred_fallthru
    _
  // Predicated region
  $region14: #{seq2seq_forward.3} parent=0 // pred_check
    _
  $region15: #{seq2seq_forward.3} parent=0 // pred_check_branch
    %20 = sbr.rel (0) target = $region17
  $region16: #{seq2seq_forward.3} parent=0 // pred_region
    _
  $region17: #{seq2seq_forward.3} parent=0 // pred_fallthru
    _
  // Predicated region
  $region18: #{seq2seq_forward.3} parent=0 // pred_check
    _
  $region19: #{seq2seq_forward.3} parent=0 // pred_check_branch
    %22 = sbr.rel (0) target = $region21
  $region20: #{seq2seq_forward.3} parent=0 // pred_region
    _
  $region21: #{seq2seq_forward.3} parent=0 // pred_fallthru
    _
  // Predicated region
  $region22: #{seq2seq_forward.3} parent=0 // pred_check
    _
  $region23: #{seq2seq_forward.3} parent=0 // pred_check_branch
    %24 = sbr.rel (0) target = $region25
  $region24: #{seq2seq_forward.3} parent=0 // pred_region
    _
  $region25: #{seq2seq_forward.3} parent=0 // pred_fallthru
    _
  // Predicated region
  $region26: #{seq2seq_forward.3} parent=0 // pred_check
    _
  $region27: #{seq2seq_forward.3} parent=0 // pred_check_branch
    %26 = sbr.rel (0) target = $region29
  $region28: #{seq2seq_forward.3} parent=0 // pred_region
    _
  $region29: #{seq2seq_forward.3} parent=0 // pred_fallthru
    _
  // Predicated region
  $region30: #{seq2seq_forward.3} parent=0 // pred_check
    _
  $region31: #{seq2seq_forward.3} parent=0 // pred_check_branch
    %28 = sbr.rel (0) target = $region33
  $region32: #{seq2seq_forward.3} parent=0 // pred_region
    _
  $region33: #{seq2seq_forward.3} parent=0 // pred_fallthru
    _
  %v29 = vld [vmem:[%s4] sm:$0x3]
  %v30 = vld [vmem:[%s5] sm:$0x3]
  %v31 = vld [vmem:[%s0] sm:$0x3]
  %v32 = vld [vmem:[%s1] sm:$0xff]
  %v33 = vld [vmem:[%s1 + $0x8] sm:$0xff]
  %v34 = vld [vmem:[%s2] sm:$0xff]
  %v35 = vld [vmem:[%s2 + $0x8] sm:$0xff]
  %v36 = vld [vmem:[%s2 + $0x10] sm:$0xff]
  %v37 = vld [vmem:[%s2 + $0x18] sm:$0xff]
  %vm38 = vcmask 261120
  %v40 = vsel %vm38, %v29, 0
  %42 = vmatprep.subr.mxu0 0.0
  %43 = vmatpush1.msra.mxu0 %v34
  %44 = vmatprep.subr.mxu0 0.0
  %45 = vmatpush1.msra.mxu0 %v35
  %46 = vmatprep.subr.mxu0 0.0
  %47 = vmatpush1.msra.mxu0 %v36
  %48 = vmatprep.subr.mxu0 0.0
  %49 = vmatpush1.msra.mxu0 %v37
  %50 = vmatprep.subr.mxu0 0.0
  %51 = vmatpush1.msra.mxu0 0.0
  %52 = vmatprep.subr.mxu0 0.0
  %53 = vmatpush1.msra.mxu0 0.0
  %54 = vmatprep.subr.mxu0 0.0
  %55 = vmatpush1.msra.mxu0 0.0
  %56 = vmatprep.subr.mxu0 0.0
  %57 = vmatpush1.msra.mxu0 0.0
  %58 = vmatprep.subr.mxu0 0.0
  %59 = vmatpush1.msra.mxu0 0.0
  %60 = vmatprep.subr.mxu0 0.0
  %61 = vmatpush1.msra.mxu0 0.0
  %62 = vmatprep.subr.mxu0 0.0
  %63 = vmatpush1.msra.mxu0 0.0
  %64 = vmatprep.subr.mxu0 0.0
  %65 = vmatpush1.msra.mxu0 0.0
  %66 = vmatprep.subr.mxu0 0.0
  %67 = vmatpush1.msra.mxu0 0.0
  %68 = vmatprep.subr.mxu0 0.0
  %69 = vmatpush1.msra.mxu0 0.0
  %70 = vmatprep.subr.mxu0 0.0
  %71 = vmatpush1.msra.mxu0 0.0
  %72 = vmatprep.subr.mxu0 0.0
  %73 = vmatpush1.msra.mxu0 0.0
  %74 = vmatprep.subr.mxu0 0.0
  %75 = vmatpush1.msra.mxu0 0.0
  %76 = vmatprep.subr.mxu0 0.0
  %77 = vmatpush1.msra.mxu0 0.0
  %78 = vmatprep.subr.mxu0 0.0
  %79 = vmatpush1.msra.mxu0 0.0
  %80 = vmatprep.subr.mxu0 0.0
  %81 = vmatpush1.msra.mxu0 0.0
  %82 = vmatprep.subr.mxu0 0.0
  %83 = vmatpush1.msra.mxu0 0.0
  %84 = vmatprep.subr.mxu0 0.0
  %85 = vmatpush1.msra.mxu0 0.0
  %86 = vmatprep.subr.mxu0 0.0
  %87 = vmatpush1.msra.mxu0 0.0
  %88 = vmatprep.subr.mxu0 0.0
  %89 = vmatpush1.msra.mxu0 0.0
  %90 = vmatprep.subr.mxu0 0.0
  %91 = vmatpush1.msra.mxu0 0.0
  %92 = vmatprep.subr.mxu0 0.0
  %93 = vmatpush1.msra.mxu0 0.0
  %94 = vmatprep.subr.mxu0 0.0
  %95 = vmatpush1.msra.mxu0 0.0
  %96 = vmatprep.subr.mxu0 0.0
  %97 = vmatpush1.msra.mxu0 0.0
  %98 = vmatprep.subr.mxu0 0.0
  %99 = vmatpush1.msra.mxu0 0.0
  %100 = vmatprep.subr.mxu0 0.0
  %101 = vmatpush1.msra.mxu0 0.0
  %102 = vmatprep.subr.mxu0 0.0
  %103 = vmatpush1.msra.mxu0 0.0
  %104 = vmatprep.subr.mxu0 0.0
  %105 = vmatpush1.msra.mxu0 0.0
  %106 = vmatprep.mubr.f32.mxu0 0.0
  %107 = vmatmul.mubr.f32.gmra.mrb[0].mxu0 %v40
  %v108 = vpop.f32.mrb[0].mxu0
  %v109 = vadd.f32 0.0, %v108
  %v110 = vpop.f32.mrb[0].mxu0
  %111 = vdwg.mxu0
  %vm112 = vcmask 130048
  %v114 = vsel %vm112, %v31, 0
  %116 = vmatprep.subr.mxu0 0.0
  %117 = vmatpush1.msra.mxu0 %v32
  %118 = vmatprep.subr.mxu0 0.0
  %119 = vmatpush1.msra.mxu0 %v33
  %120 = vmatprep.subr.mxu0 0.0
  %121 = vmatpush1.msra.mxu0 0.0
  %122 = vmatprep.subr.mxu0 0.0
  %123 = vmatpush1.msra.mxu0 0.0
  %124 = vmatprep.subr.mxu0 0.0
  %125 = vmatpush1.msra.mxu0 0.0
  %126 = vmatprep.subr.mxu0 0.0
  %127 = vmatpush1.msra.mxu0 0.0
  %128 = vmatprep.subr.mxu0 0.0
  %129 = vmatpush1.msra.mxu0 0.0
  %130 = vmatprep.subr.mxu0 0.0
  %131 = vmatpush1.msra.mxu0 0.0
  %132 = vmatprep.subr.mxu0 0.0
  %133 = vmatpush1.msra.mxu0 0.0
  %134 = vmatprep.subr.mxu0 0.0
  %135 = vmatpush1.msra.mxu0 0.0
  %136 = vmatprep.subr.mxu0 0.0
  %137 = vmatpush1.msra.mxu0 0.0
  %138 = vmatprep.subr.mxu0 0.0
  %139 = vmatpush1.msra.mxu0 0.0
  %140 = vmatprep.subr.mxu0 0.0
  %141 = vmatpush1.msra.mxu0 0.0
  %142 = vmatprep.subr.mxu0 0.0
  %143 = vmatpush1.msra.mxu0 0.0
  %144 = vmatprep.subr.mxu0 0.0
  %145 = vmatpush1.msra.mxu0 0.0
  %146 = vmatprep.subr.mxu0 0.0
  %147 = vmatpush1.msra.mxu0 0.0
  %148 = vmatprep.subr.mxu0 0.0
  %149 = vmatpush1.msra.mxu0 0.0
  %150 = vmatprep.subr.mxu0 0.0
  %151 = vmatpush1.msra.mxu0 0.0
  %152 = vmatprep.subr.mxu0 0.0
  %153 = vmatpush1.msra.mxu0 0.0
  %154 = vmatprep.subr.mxu0 0.0
  %155 = vmatpush1.msra.mxu0 0.0
  %156 = vmatprep.subr.mxu0 0.0
  %157 = vmatpush1.msra.mxu0 0.0
  %158 = vmatprep.subr.mxu0 0.0
  %159 = vmatpush1.msra.mxu0 0.0
  %160 = vmatprep.subr.mxu0 0.0
  %161 = vmatpush1.msra.mxu0 0.0
  %162 = vmatprep.subr.mxu0 0.0
  %163 = vmatpush1.msra.mxu0 0.0
  %164 = vmatprep.subr.mxu0 0.0
  %165 = vmatpush1.msra.mxu0 0.0
  %166 = vmatprep.subr.mxu0 0.0
  %167 = vmatpush1.msra.mxu0 0.0
  %168 = vmatprep.subr.mxu0 0.0
  %169 = vmatpush1.msra.mxu0 0.0
  %170 = vmatprep.subr.mxu0 0.0
  %171 = vmatpush1.msra.mxu0 0.0
  %172 = vmatprep.subr.mxu0 0.0
  %173 = vmatpush1.msra.mxu0 0.0
  %174 = vmatprep.subr.mxu0 0.0
  %175 = vmatpush1.msra.mxu0 0.0
  %176 = vmatprep.subr.mxu0 0.0
  %177 = vmatpush1.msra.mxu0 0.0
  %178 = vmatprep.subr.mxu0 0.0
  %179 = vmatpush1.msra.mxu0 0.0
  %180 = vmatprep.mubr.f32.mxu0 0.0
  %181 = vmatmul.mubr.f32.gmra.mrb[0].mxu0 %v114
  %v182 = vpop.f32.mrb[0].mxu0
  %v183 = vadd.f32 %v109, %v182
  %v184 = vpop.f32.mrb[0].mxu0
  %185 = vdwg.mxu0
  %v186 = vld [vmem:[%s3] sm:$0x1]
  %v188 = vlaneseq
  %v189 = vshrl.u32 %v188, 7
  %v190 = vsub.s32 0, %v189
  %v191 = vrot.slane %v186, %v190
  %v193 = vadd.f32 %v183, %v191
  %v194 = vxor.u32 %v193, 2147483648
  %v195 = vmul.f32 %v194, 1.442695
  %v196 = vpow.pop %v195
  %v197 = vadd.f32 %v196, 1.0
  %v198 = vrcp.pop %v197
  %v199 = vmul.f32 1.0, %v198
  %v200 = vtanh.pop %v193
  %202 = vrot.lane.b32.xlu0 %v30, 32
  %v203 = vpop.permute.xlu0 %202
  %v205 = vmul.f32 %v199, %v203
  %207 = vrot.lane.b32.xlu0 %v200, 64
  %v208 = vpop.permute.xlu0 %207
  %v210 = vmul.f32 %v199, %v208
  %212 = vrot.lane.b32.xlu0 %v210, 32
  %v213 = vpop.permute.xlu0 %212
  %v215 = vadd.f32 %v205, %v213
  %v216 = vtanh.pop %v215
  %218 = vrot.lane.b32.xlu0 %v216, 64
  %v219 = vpop.permute.xlu0 %218
  %v221 = vmul.f32 %v199, %v219
  %v222 = vld [vmem:[%s6] sm:$0xff]
  %v223 = vld [vmem:[%s6 + $0x8] sm:$0xff]
  %v224 = vld [vmem:[%s6 + $0x10] sm:$0xff]
  %v225 = vld [vmem:[%s6 + $0x18] sm:$0xff]
  %v226 = vld [vmem:[%s7] sm:$0x1]
  %v228 = vlaneseq
  %v229 = vshrl.u32 %v228, 7
  %v230 = vsub.s32 0, %v229
  %v231 = vrot.slane %v226, %v230
  %234 = vrot.lane.b32.xlu0 %v221, 32
  %v235 = vpop.permute.xlu0 %234
  %v236 = vsel %vm38, %v235, 0
  %238 = vmatprep.subr.mxu0 0.0
  %239 = vmatpush1.msra.mxu0 %v222
  %240 = vmatprep.subr.mxu0 0.0
  %241 = vmatpush1.msra.mxu0 %v223
  %242 = vmatprep.subr.mxu0 0.0
  %243 = vmatpush1.msra.mxu0 %v224
  %244 = vmatprep.subr.mxu0 0.0
  %245 = vmatpush1.msra.mxu0 %v225
  %246 = vmatprep.subr.mxu0 0.0
  %247 = vmatpush1.msra.mxu0 0.0
  %248 = vmatprep.subr.mxu0 0.0
  %249 = vmatpush1.msra.mxu0 0.0
  %250 = vmatprep.subr.mxu0 0.0
  %251 = vmatpush1.msra.mxu0 0.0
  %252 = vmatprep.subr.mxu0 0.0
  %253 = vmatpush1.msra.mxu0 0.0
  %254 = vmatprep.subr.mxu0 0.0
  %255 = vmatpush1.msra.mxu0 0.0
  %256 = vmatprep.subr.mxu0 0.0
  %257 = vmatpush1.msra.mxu0 0.0
  %258 = vmatprep.subr.mxu0 0.0
  %259 = vmatpush1.msra.mxu0 0.0
  %260 = vmatprep.subr.mxu0 0.0
  %261 = vmatpush1.msra.mxu0 0.0
  %262 = vmatprep.subr.mxu0 0.0
  %263 = vmatpush1.msra.mxu0 0.0
  %264 = vmatprep.subr.mxu0 0.0
  %265 = vmatpush1.msra.mxu0 0.0
  %266 = vmatprep.subr.mxu0 0.0
  %267 = vmatpush1.msra.mxu0 0.0
  %268 = vmatprep.subr.mxu0 0.0
  %269 = vmatpush1.msra.mxu0 0.0
  %270 = vmatprep.subr.mxu0 0.0
  %271 = vmatpush1.msra.mxu0 0.0
  %272 = vmatprep.subr.mxu0 0.0
  %273 = vmatpush1.msra.mxu0 0.0
  %274 = vmatprep.subr.mxu0 0.0
  %275 = vmatpush1.msra.mxu0 0.0
  %276 = vmatprep.subr.mxu0 0.0
  %277 = vmatpush1.msra.mxu0 0.0
  %278 = vmatprep.subr.mxu0 0.0
  %279 = vmatpush1.msra.mxu0 0.0
  %280 = vmatprep.subr.mxu0 0.0
  %281 = vmatpush1.msra.mxu0 0.0
  %282 = vmatprep.subr.mxu0 0.0
  %283 = vmatpush1.msra.mxu0 0.0
  %284 = vmatprep.subr.mxu0 0.0
  %285 = vmatpush1.msra.mxu0 0.0
  %286 = vmatprep.subr.mxu0 0.0
  %287 = vmatpush1.msra.mxu0 0.0
  %288 = vmatprep.subr.mxu0 0.0
  %289 = vmatpush1.msra.mxu0 0.0
  %290 = vmatprep.subr.mxu0 0.0
  %291 = vmatpush1.msra.mxu0 0.0
  %292 = vmatprep.subr.mxu0 0.0
  %293 = vmatpush1.msra.mxu0 0.0
  %294 = vmatprep.subr.mxu0 0.0
  %295 = vmatpush1.msra.mxu0 0.0
  %296 = vmatprep.subr.mxu0 0.0
  %297 = vmatpush1.msra.mxu0 0.0
  %298 = vmatprep.subr.mxu0 0.0
  %299 = vmatpush1.msra.mxu0 0.0
  %300 = vmatprep.subr.mxu0 0.0
  %301 = vmatpush1.msra.mxu0 0.0
  %302 = vmatprep.mubr.f32.mxu0 0.0
  %303 = vmatmul.mubr.f32.gmra.mrb[0].mxu0 %v236
  %v304 = vpop.f32.mrb[0].mxu0
  %v305 = vadd.f32 %v231, %v304
  %v306 = vpop.f32.mrb[0].mxu0
  %307 = vdwg.mxu0
  %308 = vst [vmem:[%s8] sm:$0x3] %v305
  %s309 = scalar_lea.vmem %s0, 2
  %v310 = vld [vmem:[%s309] sm:$0x3]
  %v311 = vld [vmem:[%s1] sm:$0xff]
  %v312 = vld [vmem:[%s1 + $0x8] sm:$0xff]
  %v313 = vld [vmem:[%s2] sm:$0xff]
  %v314 = vld [vmem:[%s2 + $0x8] sm:$0xff]
  %v315 = vld [vmem:[%s2 + $0x10] sm:$0xff]
  %v316 = vld [vmem:[%s2 + $0x18] sm:$0xff]
  %317 = vmatprep.subr.mxu0 0.0
  %318 = vmatpush1.msra.mxu0 %v313
  %319 = vmatprep.subr.mxu0 0.0
  %320 = vmatpush1.msra.mxu0 %v314
  %321 = vmatprep.subr.mxu0 0.0
  %322 = vmatpush1.msra.mxu0 %v315
  %323 = vmatprep.subr.mxu0 0.0
  %324 = vmatpush1.msra.mxu0 %v316
  %325 = vmatprep.subr.mxu0 0.0
  %326 = vmatpush1.msra.mxu0 0.0
  %327 = vmatprep.subr.mxu0 0.0
  %328 = vmatpush1.msra.mxu0 0.0
  %329 = vmatprep.subr.mxu0 0.0
  %330 = vmatpush1.msra.mxu0 0.0
  %331 = vmatprep.subr.mxu0 0.0
  %332 = vmatpush1.msra.mxu0 0.0
  %333 = vmatprep.subr.mxu0 0.0
  %334 = vmatpush1.msra.mxu0 0.0
  %335 = vmatprep.subr.mxu0 0.0
  %336 = vmatpush1.msra.mxu0 0.0
  %337 = vmatprep.subr.mxu0 0.0
  %338 = vmatpush1.msra.mxu0 0.0
  %339 = vmatprep.subr.mxu0 0.0
  %340 = vmatpush1.msra.mxu0 0.0
  %341 = vmatprep.subr.mxu0 0.0
  %342 = vmatpush1.msra.mxu0 0.0
  %343 = vmatprep.subr.mxu0 0.0
  %344 = vmatpush1.msra.mxu0 0.0
  %345 = vmatprep.subr.mxu0 0.0
  %346 = vmatpush1.msra.mxu0 0.0
  %347 = vmatprep.subr.mxu0 0.0
  %348 = vmatpush1.msra.mxu0 0.0
  %349 = vmatprep.subr.mxu0 0.0
  %350 = vmatpush1.msra.mxu0 0.0
  %351 = vmatprep.subr.mxu0 0.0
  %352 = vmatpush1.msra.mxu0 0.0
  %353 = vmatprep.subr.mxu0 0.0
  %354 = vmatpush1.msra.mxu0 0.0
  %355 = vmatprep.subr.mxu0 0.0
  %356 = vmatpush1.msra.mxu0 0.0
  %357 = vmatprep.subr.mxu0 0.0
  %358 = vmatpush1.msra.mxu0 0.0
  %359 = vmatprep.subr.mxu0 0.0
  %360 = vmatpush1.msra.mxu0 0.0
  %361 = vmatprep.subr.mxu0 0.0
  %362 = vmatpush1.msra.mxu0 0.0
  %363 = vmatprep.subr.mxu0 0.0
  %364 = vmatpush1.msra.mxu0 0.0
  %365 = vmatprep.subr.mxu0 0.0
  %366 = vmatpush1.msra.mxu0 0.0
  %367 = vmatprep.subr.mxu0 0.0
  %368 = vmatpush1.msra.mxu0 0.0
  %369 = vmatprep.subr.mxu0 0.0
  %370 = vmatpush1.msra.mxu0 0.0
  %371 = vmatprep.subr.mxu0 0.0
  %372 = vmatpush1.msra.mxu0 0.0
  %373 = vmatprep.subr.mxu0 0.0
  %374 = vmatpush1.msra.mxu0 0.0
  %375 = vmatprep.subr.mxu0 0.0
  %376 = vmatpush1.msra.mxu0 0.0
  %377 = vmatprep.subr.mxu0 0.0
  %378 = vmatpush1.msra.mxu0 0.0
  %379 = vmatprep.subr.mxu0 0.0
  %380 = vmatpush1.msra.mxu0 0.0
  %381 = vmatprep.mubr.f32.mxu0 0.0
  %382 = vmatmul.mubr.f32.gmra.mrb[0].mxu0 %v236
  %v383 = vpop.f32.mrb[0].mxu0
  %v384 = vadd.f32 0.0, %v383
  %v385 = vpop.f32.mrb[0].mxu0
  %386 = vdwg.mxu0
  %v388 = vsel %vm112, %v310, 0
  %390 = vmatprep.subr.mxu0 0.0
  %391 = vmatpush1.msra.mxu0 %v311
  %392 = vmatprep.subr.mxu0 0.0
  %393 = vmatpush1.msra.mxu0 %v312
  %394 = vmatprep.subr.mxu0 0.0
  %395 = vmatpush1.msra.mxu0 0.0
  %396 = vmatprep.subr.mxu0 0.0
  %397 = vmatpush1.msra.mxu0 0.0
  %398 = vmatprep.subr.mxu0 0.0
  %399 = vmatpush1.msra.mxu0 0.0
  %400 = vmatprep.subr.mxu0 0.0
  %401 = vmatpush1.msra.mxu0 0.0
  %402 = vmatprep.subr.mxu0 0.0
  %403 = vmatpush1.msra.mxu0 0.0
  %404 = vmatprep.subr.mxu0 0.0
  %405 = vmatpush1.msra.mxu0 0.0
  %406 = vmatprep.subr.mxu0 0.0
  %407 = vmatpush1.msra.mxu0 0.0
  %408 = vmatprep.subr.mxu0 0.0
  %409 = vmatpush1.msra.mxu0 0.0
  %410 = vmatprep.subr.mxu0 0.0
  %411 = vmatpush1.msra.mxu0 0.0
  %412 = vmatprep.subr.mxu0 0.0
  %413 = vmatpush1.msra.mxu0 0.0
  %414 = vmatprep.subr.mxu0 0.0
  %415 = vmatpush1.msra.mxu0 0.0
  %416 = vmatprep.subr.mxu0 0.0
  %417 = vmatpush1.msra.mxu0 0.0
  %418 = vmatprep.subr.mxu0 0.0
  %419 = vmatpush1.msra.mxu0 0.0
  %420 = vmatprep.subr.mxu0 0.0
  %421 = vmatpush1.msra.mxu0 0.0
  %422 = vmatprep.subr.mxu0 0.0
  %423 = vmatpush1.msra.mxu0 0.0
  %424 = vmatprep.subr.mxu0 0.0
  %425 = vmatpush1.msra.mxu0 0.0
  %426 = vmatprep.subr.mxu0 0.0
  %427 = vmatpush1.msra.mxu0 0.0
  %428 = vmatprep.subr.mxu0 0.0
  %429 = vmatpush1.msra.mxu0 0.0
  %430 = vmatprep.subr.mxu0 0.0
  %431 = vmatpush1.msra.mxu0 0.0
  %432 = vmatprep.subr.mxu0 0.0
  %433 = vmatpush1.msra.mxu0 0.0
  %434 = vmatprep.subr.mxu0 0.0
  %435 = vmatpush1.msra.mxu0 0.0
  %436 = vmatprep.subr.mxu0 0.0
  %437 = vmatpush1.msra.mxu0 0.0
  %438 = vmatprep.subr.mxu0 0.0
  %439 = vmatpush1.msra.mxu0 0.0
  %440 = vmatprep.subr.mxu0 0.0
  %441 = vmatpush1.msra.mxu0 0.0
  %442 = vmatprep.subr.mxu0 0.0
  %443 = vmatpush1.msra.mxu0 0.0
  %444 = vmatprep.subr.mxu0 0.0
  %445 = vmatpush1.msra.mxu0 0.0
  %446 = vmatprep.subr.mxu0 0.0
  %447 = vmatpush1.msra.mxu0 0.0
  %448 = vmatprep.subr.mxu0 0.0
  %449 = vmatpush1.msra.mxu0 0.0
  %450 = vmatprep.subr.mxu0 0.0
  %451 = vmatpush1.msra.mxu0 0.0
  %452 = vmatprep.subr.mxu0 0.0
  %453 = vmatpush1.msra.mxu0 0.0
  %454 = vmatprep.mubr.f32.mxu0 0.0
  %455 = vmatmul.mubr.f32.gmra.mrb[0].mxu0 %v388
  %v456 = vpop.f32.mrb[0].mxu0
  %v457 = vadd.f32 %v384, %v456
  %v458 = vpop.f32.mrb[0].mxu0
  %459 = vdwg.mxu0
  %v460 = vld [vmem:[%s3] sm:$0x1]
  %v462 = vlaneseq
  %v463 = vshrl.u32 %v462, 7
  %v464 = vsub.s32 0, %v463
  %v465 = vrot.slane %v460, %v464
  %v467 = vadd.f32 %v457, %v465
  %v468 = vxor.u32 %v467, 2147483648
  %v469 = vmul.f32 %v468, 1.442695
  %v470 = vpow.pop %v469
  %v471 = vadd.f32 %v470, 1.0
  %v472 = vrcp.pop %v471
  %v473 = vmul.f32 1.0, %v472
  %v474 = vtanh.pop %v467
  %v475 = vmul.f32 %v473, %v215
  %477 = vrot.lane.b32.xlu0 %v474, 64
  %v478 = vpop.permute.xlu0 %477
  %v480 = vmul.f32 %v473, %v478
  %482 = vrot.lane.b32.xlu0 %v480, 32
  %v483 = vpop.permute.xlu0 %482
  %v485 = vadd.f32 %v475, %v483
  %v486 = vtanh.pop %v485
  %488 = vrot.lane.b32.xlu0 %v486, 64
  %v489 = vpop.permute.xlu0 %488
  %v491 = vmul.f32 %v473, %v489
  %v492 = vld [vmem:[%s6] sm:$0xff]
  %v493 = vld [vmem:[%s6 + $0x8] sm:$0xff]
  %v494 = vld [vmem:[%s6 + $0x10] sm:$0xff]
  %v495 = vld [vmem:[%s6 + $0x18] sm:$0xff]
  %v496 = vld [vmem:[%s7] sm:$0x1]
  %v498 = vlaneseq
  %v499 = vshrl.u32 %v498, 7
  %v500 = vsub.s32 0, %v499
  %v501 = vrot.slane %v496, %v500
  %504 = vrot.lane.b32.xlu0 %v491, 32
  %v505 = vpop.permute.xlu0 %504
  %v506 = vsel %vm38, %v505, 0
  %508 = vmatprep.subr.mxu0 0.0
  %509 = vmatpush1.msra.mxu0 %v492
  %510 = vmatprep.subr.mxu0 0.0
  %511 = vmatpush1.msra.mxu0 %v493
  %512 = vmatprep.subr.mxu0 0.0
  %513 = vmatpush1.msra.mxu0 %v494
  %514 = vmatprep.subr.mxu0 0.0
  %515 = vmatpush1.msra.mxu0 %v495
  %516 = vmatprep.subr.mxu0 0.0
  %517 = vmatpush1.msra.mxu0 0.0
  %518 = vmatprep.subr.mxu0 0.0
  %519 = vmatpush1.msra.mxu0 0.0
  %520 = vmatprep.subr.mxu0 0.0
  %521 = vmatpush1.msra.mxu0 0.0
  %522 = vmatprep.subr.mxu0 0.0
  %523 = vmatpush1.msra.mxu0 0.0
  %524 = vmatprep.subr.mxu0 0.0
  %525 = vmatpush1.msra.mxu0 0.0
  %526 = vmatprep.subr.mxu0 0.0
  %527 = vmatpush1.msra.mxu0 0.0
  %528 = vmatprep.subr.mxu0 0.0
  %529 = vmatpush1.msra.mxu0 0.0
  %530 = vmatprep.subr.mxu0 0.0
  %531 = vmatpush1.msra.mxu0 0.0
  %532 = vmatprep.subr.mxu0 0.0
  %533 = vmatpush1.msra.mxu0 0.0
  %534 = vmatprep.subr.mxu0 0.0
  %535 = vmatpush1.msra.mxu0 0.0
  %536 = vmatprep.subr.mxu0 0.0
  %537 = vmatpush1.msra.mxu0 0.0
  %538 = vmatprep.subr.mxu0 0.0
  %539 = vmatpush1.msra.mxu0 0.0
  %540 = vmatprep.subr.mxu0 0.0
  %541 = vmatpush1.msra.mxu0 0.0
  %542 = vmatprep.subr.mxu0 0.0
  %543 = vmatpush1.msra.mxu0 0.0
  %544 = vmatprep.subr.mxu0 0.0
  %545 = vmatpush1.msra.mxu0 0.0
  %546 = vmatprep.subr.mxu0 0.0
  %547 = vmatpush1.msra.mxu0 0.0
  %548 = vmatprep.subr.mxu0 0.0
  %549 = vmatpush1.msra.mxu0 0.0
  %550 = vmatprep.subr.mxu0 0.0
  %551 = vmatpush1.msra.mxu0 0.0
  %552 = vmatprep.subr.mxu0 0.0
  %553 = vmatpush1.msra.mxu0 0.0
  %554 = vmatprep.subr.mxu0 0.0
  %555 = vmatpush1.msra.mxu0 0.0
  %556 = vmatprep.subr.mxu0 0.0
  %557 = vmatpush1.msra.mxu0 0.0
  %558 = vmatprep.subr.mxu0 0.0
  %559 = vmatpush1.msra.mxu0 0.0
  %560 = vmatprep.subr.mxu0 0.0
  %561 = vmatpush1.msra.mxu0 0.0
  %562 = vmatprep.subr.mxu0 0.0
  %563 = vmatpush1.msra.mxu0 0.0
  %564 = vmatprep.subr.mxu0 0.0
  %565 = vmatpush1.msra.mxu0 0.0
  %566 = vmatprep.subr.mxu0 0.0
  %567 = vmatpush1.msra.mxu0 0.0
  %568 = vmatprep.subr.mxu0 0.0
  %569 = vmatpush1.msra.mxu0 0.0
  %570 = vmatprep.subr.mxu0 0.0
  %571 = vmatpush1.msra.mxu0 0.0
  %572 = vmatprep.mubr.f32.mxu0 0.0
  %573 = vmatmul.mubr.f32.gmra.mrb[0].mxu0 %v506
  %v574 = vpop.f32.mrb[0].mxu0
  %v575 = vadd.f32 %v501, %v574
  %v576 = vpop.f32.mrb[0].mxu0
  %577 = vdwg.mxu0
  %s578 = scalar_lea.vmem %s8, 2
  %579 = vst [vmem:[%s578] sm:$0x3] %v575
  %s580 = scalar_lea.vmem %s0, 4
  %v581 = vld [vmem:[%s580] sm:$0x3]
  %v582 = vld [vmem:[%s1] sm:$0xff]
  %v583 = vld [vmem:[%s1 + $0x8] sm:$0xff]
  %v584 = vld [vmem:[%s2] sm:$0xff]
  %v585 = vld [vmem:[%s2 + $0x8] sm:$0xff]
  %v586 = vld [vmem:[%s2 + $0x10] sm:$0xff]
  %v587 = vld [vmem:[%s2 + $0x18] sm:$0xff]
  %588 = vmatprep.subr.mxu0 0.0
  %589 = vmatpush1.msra.mxu0 %v584
  %590 = vmatprep.subr.mxu0 0.0
  %591 = vmatpush1.msra.mxu0 %v585
  %592 = vmatprep.subr.mxu0 0.0
  %593 = vmatpush1.msra.mxu0 %v586
  %594 = vmatprep.subr.mxu0 0.0
  %595 = vmatpush1.msra.mxu0 %v587
  %596 = vmatprep.subr.mxu0 0.0
  %597 = vmatpush1.msra.mxu0 0.0
  %598 = vmatprep.subr.mxu0 0.0
  %599 = vmatpush1.msra.mxu0 0.0
  %600 = vmatprep.subr.mxu0 0.0
  %601 = vmatpush1.msra.mxu0 0.0
  %602 = vmatprep.subr.mxu0 0.0
  %603 = vmatpush1.msra.mxu0 0.0
  %604 = vmatprep.subr.mxu0 0.0
  %605 = vmatpush1.msra.mxu0 0.0
  %606 = vmatprep.subr.mxu0 0.0
  %607 = vmatpush1.msra.mxu0 0.0
  %608 = vmatprep.subr.mxu0 0.0
  %609 = vmatpush1.msra.mxu0 0.0
  %610 = vmatprep.subr.mxu0 0.0
  %611 = vmatpush1.msra.mxu0 0.0
  %612 = vmatprep.subr.mxu0 0.0
  %613 = vmatpush1.msra.mxu0 0.0
  %614 = vmatprep.subr.mxu0 0.0
  %615 = vmatpush1.msra.mxu0 0.0
  %616 = vmatprep.subr.mxu0 0.0
  %617 = vmatpush1.msra.mxu0 0.0
  %618 = vmatprep.subr.mxu0 0.0
  %619 = vmatpush1.msra.mxu0 0.0
  %620 = vmatprep.subr.mxu0 0.0
  %621 = vmatpush1.msra.mxu0 0.0
  %622 = vmatprep.subr.mxu0 0.0
  %623 = vmatpush1.msra.mxu0 0.0
  %624 = vmatprep.subr.mxu0 0.0
  %625 = vmatpush1.msra.mxu0 0.0
  %626 = vmatprep.subr.mxu0 0.0
  %627 = vmatpush1.msra.mxu0 0.0
  %628 = vmatprep.subr.mxu0 0.0
  %629 = vmatpush1.msra.mxu0 0.0
  %630 = vmatprep.subr.mxu0 0.0
  %631 = vmatpush1.msra.mxu0 0.0
  %632 = vmatprep.subr.mxu0 0.0
  %633 = vmatpush1.msra.mxu0 0.0
  %634 = vmatprep.subr.mxu0 0.0
  %635 = vmatpush1.msra.mxu0 0.0
  %636 = vmatprep.subr.mxu0 0.0
  %637 = vmatpush1.msra.mxu0 0.0
  %638 = vmatprep.subr.mxu0 0.0
  %639 = vmatpush1.msra.mxu0 0.0
  %640 = vmatprep.subr.mxu0 0.0
  %641 = vmatpush1.msra.mxu0 0.0
  %642 = vmatprep.subr.mxu0 0.0
  %643 = vmatpush1.msra.mxu0 0.0
  %644 = vmatprep.subr.mxu0 0.0
  %645 = vmatpush1.msra.mxu0 0.0
  %646 = vmatprep.subr.mxu0 0.0
  %647 = vmatpush1.msra.mxu0 0.0
  %648 = vmatprep.subr.mxu0 0.0
  %649 = vmatpush1.msra.mxu0 0.0
  %650 = vmatprep.subr.mxu0 0.0
  %651 = vmatpush1.msra.mxu0 0.0
  %652 = vmatprep.mubr.f32.mxu0 0.0
  %653 = vmatmul.mubr.f32.gmra.mrb[0].mxu0 %v506
  %v654 = vpop.f32.mrb[0].mxu0
  %v655 = vadd.f32 0.0, %v654
  %v656 = vpop.f32.mrb[0].mxu0
  %657 = vdwg.mxu0
  %v659 = vsel %vm112, %v581, 0
  %661 = vmatprep.subr.mxu0 0.0
  %662 = vmatpush1.msra.mxu0 %v582
  %663 = vmatprep.subr.mxu0 0.0
  %664 = vmatpush1.msra.mxu0 %v583
  %665 = vmatprep.subr.mxu0 0.0
  %666 = vmatpush1.msra.mxu0 0.0
  %667 = vmatprep.subr.mxu0 0.0
  %668 = vmatpush1.msra.mxu0 0.0
  %669 = vmatprep.subr.mxu0 0.0
  %670 = vmatpush1.msra.mxu0 0.0
  %671 = vmatprep.subr.mxu0 0.0
  %672 = vmatpush1.msra.mxu0 0.0
  %673 = vmatprep.subr.mxu0 0.0
  %674 = vmatpush1.msra.mxu0 0.0
  %675 = vmatprep.subr.mxu0 0.0
  %676 = vmatpush1.msra.mxu0 0.0
  %677 = vmatprep.subr.mxu0 0.0
  %678 = vmatpush1.msra.mxu0 0.0
  %679 = vmatprep.subr.mxu0 0.0
  %680 = vmatpush1.msra.mxu0 0.0
  %681 = vmatprep.subr.mxu0 0.0
  %682 = vmatpush1.msra.mxu0 0.0
  %683 = vmatprep.subr.mxu0 0.0
  %684 = vmatpush1.msra.mxu0 0.0
  %685 = vmatprep.subr.mxu0 0.0
  %686 = vmatpush1.msra.mxu0 0.0
  %687 = vmatprep.subr.mxu0 0.0
  %688 = vmatpush1.msra.mxu0 0.0
  %689 = vmatprep.subr.mxu0 0.0
  %690 = vmatpush1.msra.mxu0 0.0
  %691 = vmatprep.subr.mxu0 0.0
  %692 = vmatpush1.msra.mxu0 0.0
  %693 = vmatprep.subr.mxu0 0.0
  %694 = vmatpush1.msra.mxu0 0.0
  %695 = vmatprep.subr.mxu0 0.0
  %696 = vmatpush1.msra.mxu0 0.0
  %697 = vmatprep.subr.mxu0 0.0
  %698 = vmatpush1.msra.mxu0 0.0
  %699 = vmatprep.subr.mxu0 0.0
  %700 = vmatpush1.msra.mxu0 0.0
  %701 = vmatprep.subr.mxu0 0.0
  %702 = vmatpush1.msra.mxu0 0.0
  %703 = vmatprep.subr.mxu0 0.0
  %704 = vmatpush1.msra.mxu0 0.0
  %705 = vmatprep.subr.mxu0 0.0
  %706 = vmatpush1.msra.mxu0 0.0
  %707 = vmatprep.subr.mxu0 0.0
  %708 = vmatpush1.msra.mxu0 0.0
  %709 = vmatprep.subr.mxu0 0.0
  %710 = vmatpush1.msra.mxu0 0.0
  %711 = vmatprep.subr.mxu0 0.0
  %712 = vmatpush1.msra.mxu0 0.0
  %713 = vmatprep.subr.mxu0 0.0
  %714 = vmatpush1.msra.mxu0 0.0
  %715 = vmatprep.subr.mxu0 0.0
  %716 = vmatpush1.msra.mxu0 0.0
  %717 = vmatprep.subr.mxu0 0.0
  %718 = vmatpush1.msra.mxu0 0.0
  %719 = vmatprep.subr.mxu0 0.0
  %720 = vmatpush1.msra.mxu0 0.0
  %721 = vmatprep.subr.mxu0 0.0
  %722 = vmatpush1.msra.mxu0 0.0
  %723 = vmatprep.subr.mxu0 0.0
  %724 = vmatpush1.msra.mxu0 0.0
  %725 = vmatprep.mubr.f32.mxu0 0.0
  %726 = vmatmul.mubr.f32.gmra.mrb[0].mxu0 %v659
  %v727 = vpop.f32.mrb[0].mxu0
  %v728 = vadd.f32 %v655, %v727
  %v729 = vpop.f32.mrb[0].mxu0
  %730 = vdwg.mxu0
  %v731 = vld [vmem:[%s3] sm:$0x1]
  %v733 = vlaneseq
  %v734 = vshrl.u32 %v733, 7
  %v735 = vsub.s32 0, %v734
  %v736 = vrot.slane %v731, %v735
  %v738 = vadd.f32 %v728, %v736
  %v739 = vxor.u32 %v738, 2147483648
  %v740 = vmul.f32 %v739, 1.442695
  %v741 = vpow.pop %v740
  %v742 = vadd.f32 %v741, 1.0
  %v743 = vrcp.pop %v742
  %v744 = vmul.f32 1.0, %v743
  %v745 = vtanh.pop %v738
  %v746 = vmul.f32 %v744, %v485
  %748 = vrot.lane.b32.xlu0 %v745, 64
  %v749 = vpop.permute.xlu0 %748
  %v751 = vmul.f32 %v744, %v749
  %753 = vrot.lane.b32.xlu0 %v751, 32
  %v754 = vpop.permute.xlu0 %753
  %v756 = vadd.f32 %v746, %v754
  %v757 = vtanh.pop %v756
  %759 = vrot.lane.b32.xlu0 %v757, 64
  %v760 = vpop.permute.xlu0 %759
  %v762 = vmul.f32 %v744, %v760
  %v763 = vld [vmem:[%s6] sm:$0xff]
  %v764 = vld [vmem:[%s6 + $0x8] sm:$0xff]
  %v765 = vld [vmem:[%s6 + $0x10] sm:$0xff]
  %v766 = vld [vmem:[%s6 + $0x18] sm:$0xff]
  %v767 = vld [vmem:[%s7] sm:$0x1]
  %v769 = vlaneseq
  %v770 = vshrl.u32 %v769, 7
  %v771 = vsub.s32 0, %v770
  %v772 = vrot.slane %v767, %v771
  %775 = vrot.lane.b32.xlu0 %v762, 32
  %v776 = vpop.permute.xlu0 %775
  %v777 = vsel %vm38, %v776, 0
  %779 = vmatprep.subr.mxu0 0.0
  %780 = vmatpush1.msra.mxu0 %v763
  %781 = vmatprep.subr.mxu0 0.0
  %782 = vmatpush1.msra.mxu0 %v764
  %783 = vmatprep.subr.mxu0 0.0
  %784 = vmatpush1.msra.mxu0 %v765
  %785 = vmatprep.subr.mxu0 0.0
  %786 = vmatpush1.msra.mxu0 %v766
  %787 = vmatprep.subr.mxu0 0.0
  %788 = vmatpush1.msra.mxu0 0.0
  %789 = vmatprep.subr.mxu0 0.0
  %790 = vmatpush1.msra.mxu0 0.0
  %791 = vmatprep.subr.mxu0 0.0
  %792 = vmatpush1.msra.mxu0 0.0
  %793 = vmatprep.subr.mxu0 0.0
  %794 = vmatpush1.msra.mxu0 0.0
  %795 = vmatprep.subr.mxu0 0.0
  %796 = vmatpush1.msra.mxu0 0.0
  %797 = vmatprep.subr.mxu0 0.0
  %798 = vmatpush1.msra.mxu0 0.0
  %799 = vmatprep.subr.mxu0 0.0
  %800 = vmatpush1.msra.mxu0 0.0
  %801 = vmatprep.subr.mxu0 0.0
  %802 = vmatpush1.msra.mxu0 0.0
  %803 = vmatprep.subr.mxu0 0.0
  %804 = vmatpush1.msra.mxu0 0.0
  %805 = vmatprep.subr.mxu0 0.0
  %806 = vmatpush1.msra.mxu0 0.0
  %807 = vmatprep.subr.mxu0 0.0
  %808 = vmatpush1.msra.mxu0 0.0
  %809 = vmatprep.subr.mxu0 0.0
  %810 = vmatpush1.msra.mxu0 0.0
  %811 = vmatprep.subr.mxu0 0.0
  %812 = vmatpush1.msra.mxu0 0.0
  %813 = vmatprep.subr.mxu0 0.0
  %814 = vmatpush1.msra.mxu0 0.0
  %815 = vmatprep.subr.mxu0 0.0
  %816 = vmatpush1.msra.mxu0 0.0
  %817 = vmatprep.subr.mxu0 0.0
  %818 = vmatpush1.msra.mxu0 0.0
  %819 = vmatprep.subr.mxu0 0.0
  %820 = vmatpush1.msra.mxu0 0.0
  %821 = vmatprep.subr.mxu0 0.0
  %822 = vmatpush1.msra.mxu0 0.0
  %823 = vmatprep.subr.mxu0 0.0
  %824 = vmatpush1.msra.mxu0 0.0
  %825 = vmatprep.subr.mxu0 0.0
  %826 = vmatpush1.msra.mxu0 0.0
  %827 = vmatprep.subr.mxu0 0.0
  %828 = vmatpush1.msra.mxu0 0.0
  %829 = vmatprep.subr.mxu0 0.0
  %830 = vmatpush1.msra.mxu0 0.0
  %831 = vmatprep.subr.mxu0 0.0
  %832 = vmatpush1.msra.mxu0 0.0
  %833 = vmatprep.subr.mxu0 0.0
  %834 = vmatpush1.msra.mxu0 0.0
  %835 = vmatprep.subr.mxu0 0.0
  %836 = vmatpush1.msra.mxu0 0.0
  %837 = vmatprep.subr.mxu0 0.0
  %838 = vmatpush1.msra.mxu0 0.0
  %839 = vmatprep.subr.mxu0 0.0
  %840 = vmatpush1.msra.mxu0 0.0
  %841 = vmatprep.subr.mxu0 0.0
  %842 = vmatpush1.msra.mxu0 0.0
  %843 = vmatprep.mubr.f32.mxu0 0.0
  %844 = vmatmul.mubr.f32.gmra.mrb[0].mxu0 %v777
  %v845 = vpop.f32.mrb[0].mxu0
  %v846 = vadd.f32 %v772, %v845
  %v847 = vpop.f32.mrb[0].mxu0
  %848 = vdwg.mxu0
  %s849 = scalar_lea.vmem %s8, 4
  %850 = vst [vmem:[%s849] sm:$0x3] %v846
  %s851 = scalar_lea.vmem %s0, 6
  %v852 = vld [vmem:[%s851] sm:$0x3]
  %v853 = vld [vmem:[%s1] sm:$0xff]
  %v854 = vld [vmem:[%s1 + $0x8] sm:$0xff]
  %v855 = vld [vmem:[%s2] sm:$0xff]
  %v856 = vld [vmem:[%s2 + $0x8] sm:$0xff]
  %v857 = vld [vmem:[%s2 + $0x10] sm:$0xff]
  %v858 = vld [vmem:[%s2 + $0x18] sm:$0xff]
  %859 = vmatprep.subr.mxu0 0.0
  %860 = vmatpush1.msra.mxu0 %v855
  %861 = vmatprep.subr.mxu0 0.0
  %862 = vmatpush1.msra.mxu0 %v856
  %863 = vmatprep.subr.mxu0 0.0
  %864 = vmatpush1.msra.mxu0 %v857
  %865 = vmatprep.subr.mxu0 0.0
  %866 = vmatpush1.msra.mxu0 %v858
  %867 = vmatprep.subr.mxu0 0.0
  %868 = vmatpush1.msra.mxu0 0.0
  %869 = vmatprep.subr.mxu0 0.0
  %870 = vmatpush1.msra.mxu0 0.0
  %871 = vmatprep.subr.mxu0 0.0
  %872 = vmatpush1.msra.mxu0 0.0
  %873 = vmatprep.subr.mxu0 0.0
  %874 = vmatpush1.msra.mxu0 0.0
  %875 = vmatprep.subr.mxu0 0.0
  %876 = vmatpush1.msra.mxu0 0.0
  %877 = vmatprep.subr.mxu0 0.0
  %878 = vmatpush1.msra.mxu0 0.0
  %879 = vmatprep.subr.mxu0 0.0
  %880 = vmatpush1.msra.mxu0 0.0
  %881 = vmatprep.subr.mxu0 0.0
  %882 = vmatpush1.msra.mxu0 0.0
  %883 = vmatprep.subr.mxu0 0.0
  %884 = vmatpush1.msra.mxu0 0.0
  %885 = vmatprep.subr.mxu0 0.0
  %886 = vmatpush1.msra.mxu0 0.0
  %887 = vmatprep.subr.mxu0 0.0
  %888 = vmatpush1.msra.mxu0 0.0
  %889 = vmatprep.subr.mxu0 0.0
  %890 = vmatpush1.msra.mxu0 0.0
  %891 = vmatprep.subr.mxu0 0.0
  %892 = vmatpush1.msra.mxu0 0.0
  %893 = vmatprep.subr.mxu0 0.0
  %894 = vmatpush1.msra.mxu0 0.0
  %895 = vmatprep.subr.mxu0 0.0
  %896 = vmatpush1.msra.mxu0 0.0
  %897 = vmatprep.subr.mxu0 0.0
  %898 = vmatpush1.msra.mxu0 0.0
  %899 = vmatprep.subr.mxu0 0.0
  %900 = vmatpush1.msra.mxu0 0.0
  %901 = vmatprep.subr.mxu0 0.0
  %902 = vmatpush1.msra.mxu0 0.0
  %903 = vmatprep.subr.mxu0 0.0
  %904 = vmatpush1.msra.mxu0 0.0
  %905 = vmatprep.subr.mxu0 0.0
  %906 = vmatpush1.msra.mxu0 0.0
  %907 = vmatprep.subr.mxu0 0.0
  %908 = vmatpush1.msra.mxu0 0.0
  %909 = vmatprep.subr.mxu0 0.0
  %910 = vmatpush1.msra.mxu0 0.0
  %911 = vmatprep.subr.mxu0 0.0
  %912 = vmatpush1.msra.mxu0 0.0
  %913 = vmatprep.subr.mxu0 0.0
  %914 = vmatpush1.msra.mxu0 0.0
  %915 = vmatprep.subr.mxu0 0.0
  %916 = vmatpush1.msra.mxu0 0.0
  %917 = vmatprep.subr.mxu0 0.0
  %918 = vmatpush1.msra.mxu0 0.0
  %919 = vmatprep.subr.mxu0 0.0
  %920 = vmatpush1.msra.mxu0 0.0
  %921 = vmatprep.subr.mxu0 0.0
  %922 = vmatpush1.msra.mxu0 0.0
  %923 = vmatprep.mubr.f32.mxu0 0.0
  %924 = vmatmul.mubr.f32.gmra.mrb[0].mxu0 %v777
  %v925 = vpop.f32.mrb[0].mxu0
  %v926 = vadd.f32 0.0, %v925
  %v927 = vpop.f32.mrb[0].mxu0
  %928 = vdwg.mxu0
  %v930 = vsel %vm112, %v852, 0
  %932 = vmatprep.subr.mxu0 0.0
  %933 = vmatpush1.msra.mxu0 %v853
  %934 = vmatprep.subr.mxu0 0.0
  %935 = vmatpush1.msra.mxu0 %v854
  %936 = vmatprep.subr.mxu0 0.0
  %937 = vmatpush1.msra.mxu0 0.0
  %938 = vmatprep.subr.mxu0 0.0
  %939 = vmatpush1.msra.mxu0 0.0
  %940 = vmatprep.subr.mxu0 0.0
  %941 = vmatpush1.msra.mxu0 0.0
  %942 = vmatprep.subr.mxu0 0.0
  %943 = vmatpush1.msra.mxu0 0.0
  %944 = vmatprep.subr.mxu0 0.0
  %945 = vmatpush1.msra.mxu0 0.0
  %946 = vmatprep.subr.mxu0 0.0
  %947 = vmatpush1.msra.mxu0 0.0
  %948 = vmatprep.subr.mxu0 0.0
  %949 = vmatpush1.msra.mxu0 0.0
  %950 = vmatprep.subr.mxu0 0.0
  %951 = vmatpush1.msra.mxu0 0.0
  %952 = vmatprep.subr.mxu0 0.0
  %953 = vmatpush1.msra.mxu0 0.0
  %954 = vmatprep.subr.mxu0 0.0
  %955 = vmatpush1.msra.mxu0 0.0
  %956 = vmatprep.subr.mxu0 0.0
  %957 = vmatpush1.msra.mxu0 0.0
  %958 = vmatprep.subr.mxu0 0.0
  %959 = vmatpush1.msra.mxu0 0.0
  %960 = vmatprep.subr.mxu0 0.0
  %961 = vmatpush1.msra.mxu0 0.0
  %962 = vmatprep.subr.mxu0 0.0
  %963 = vmatpush1.msra.mxu0 0.0
  %964 = vmatprep.subr.mxu0 0.0
  %965 = vmatpush1.msra.mxu0 0.0
  %966 = vmatprep.subr.mxu0 0.0
  %967 = vmatpush1.msra.mxu0 0.0
  %968 = vmatprep.subr.mxu0 0.0
  %969 = vmatpush1.msra.mxu0 0.0
  %970 = vmatprep.subr.mxu0 0.0
  %971 = vmatpush1.msra.mxu0 0.0
  %972 = vmatprep.subr.mxu0 0.0
  %973 = vmatpush1.msra.mxu0 0.0
  %974 = vmatprep.subr.mxu0 0.0
  %975 = vmatpush1.msra.mxu0 0.0
  %976 = vmatprep.subr.mxu0 0.0
  %977 = vmatpush1.msra.mxu0 0.0
  %978 = vmatprep.subr.mxu0 0.0
  %979 = vmatpush1.msra.mxu0 0.0
  %980 = vmatprep.subr.mxu0 0.0
  %981 = vmatpush1.msra.mxu0 0.0
  %982 = vmatprep.subr.mxu0 0.0
  %983 = vmatpush1.msra.mxu0 0.0
  %984 = vmatprep.subr.mxu0 0.0
  %985 = vmatpush1.msra.mxu0 0.0
  %986 = vmatprep.subr.mxu0 0.0
  %987 = vmatpush1.msra.mxu0 0.0
  %988 = vmatprep.subr.mxu0 0.0
  %989 = vmatpush1.msra.mxu0 0.0
  %990 = vmatprep.subr.mxu0 0.0
  %991 = vmatpush1.msra.mxu0 0.0
  %992 = vmatprep.subr.mxu0 0.0
  %993 = vmatpush1.msra.mxu0 0.0
  %994 = vmatprep.subr.mxu0 0.0
  %995 = vmatpush1.msra.mxu0 0.0
  %996 = vmatprep.mubr.f32.mxu0 0.0
  %997 = vmatmul.mubr.f32.gmra.mrb[0].mxu0 %v930
  %v998 = vpop.f32.mrb[0].mxu0
  %v999 = vadd.f32 %v926, %v998
  %v1000 = vpop.f32.mrb[0].mxu0
  %1001 = vdwg.mxu0
  %v1002 = vld [vmem:[%s3] sm:$0x1]
  %v1004 = vlaneseq
  %v1005 = vshrl.u32 %v1004, 7
  %v1006 = vsub.s32 0, %v1005
  %v1007 = vrot.slane %v1002, %v1006
  %v1009 = vadd.f32 %v999, %v1007
  %v1010 = vxor.u32 %v1009, 2147483648
  %v1011 = vmul.f32 %v1010, 1.442695
  %v1012 = vpow.pop %v1011
  %v1013 = vadd.f32 %v1012, 1.0
  %v1014 = vrcp.pop %v1013
  %v1015 = vmul.f32 1.0, %v1014
  %v1016 = vtanh.pop %v1009
  %v1017 = vmul.f32 %v1015, %v756
  %1019 = vrot.lane.b32.xlu0 %v1016, 64
  %v1020 = vpop.permute.xlu0 %1019
  %v1022 = vmul.f32 %v1015, %v1020
  %1024 = vrot.lane.b32.xlu0 %v1022, 32
  %v1025 = vpop.permute.xlu0 %1024
  %v1027 = vadd.f32 %v1017, %v1025
  %v1028 = vtanh.pop %v1027
  %1030 = vrot.lane.b32.xlu0 %v1028, 64
  %v1031 = vpop.permute.xlu0 %1030
  %v1033 = vmul.f32 %v1015, %v1031
  %v1034 = vld [vmem:[%s6] sm:$0xff]
  %v1035 = vld [vmem:[%s6 + $0x8] sm:$0xff]
  %v1036 = vld [vmem:[%s6 + $0x10] sm:$0xff]
  %v1037 = vld [vmem:[%s6 + $0x18] sm:$0xff]
  %v1038 = vld [vmem:[%s7] sm:$0x1]
  %v1040 = vlaneseq
  %v1041 = vshrl.u32 %v1040, 7
  %v1042 = vsub.s32 0, %v1041
  %v1043 = vrot.slane %v1038, %v1042
  %1046 = vrot.lane.b32.xlu0 %v1033, 32
  %v1047 = vpop.permute.xlu0 %1046
  %v1048 = vsel %vm38, %v1047, 0
  %1050 = vmatprep.subr.mxu0 0.0
  %1051 = vmatpush1.msra.mxu0 %v1034
  %1052 = vmatprep.subr.mxu0 0.0
  %1053 = vmatpush1.msra.mxu0 %v1035
  %1054 = vmatprep.subr.mxu0 0.0
  %1055 = vmatpush1.msra.mxu0 %v1036
  %1056 = vmatprep.subr.mxu0 0.0
  %1057 = vmatpush1.msra.mxu0 %v1037
  %1058 = vmatprep.subr.mxu0 0.0
  %1059 = vmatpush1.msra.mxu0 0.0
  %1060 = vmatprep.subr.mxu0 0.0
  %1061 = vmatpush1.msra.mxu0 0.0
  %1062 = vmatprep.subr.mxu0 0.0
  %1063 = vmatpush1.msra.mxu0 0.0
  %1064 = vmatprep.subr.mxu0 0.0
  %1065 = vmatpush1.msra.mxu0 0.0
  %1066 = vmatprep.subr.mxu0 0.0
  %1067 = vmatpush1.msra.mxu0 0.0
  %1068 = vmatprep.subr.mxu0 0.0
  %1069 = vmatpush1.msra.mxu0 0.0
  %1070 = vmatprep.subr.mxu0 0.0
  %1071 = vmatpush1.msra.mxu0 0.0
  %1072 = vmatprep.subr.mxu0 0.0
  %1073 = vmatpush1.msra.mxu0 0.0
  %1074 = vmatprep.subr.mxu0 0.0
  %1075 = vmatpush1.msra.mxu0 0.0
  %1076 = vmatprep.subr.mxu0 0.0
  %1077 = vmatpush1.msra.mxu0 0.0
  %1078 = vmatprep.subr.mxu0 0.0
  %1079 = vmatpush1.msra.mxu0 0.0
  %1080 = vmatprep.subr.mxu0 0.0
  %1081 = vmatpush1.msra.mxu0 0.0
  %1082 = vmatprep.subr.mxu0 0.0
  %1083 = vmatpush1.msra.mxu0 0.0
  %1084 = vmatprep.subr.mxu0 0.0
  %1085 = vmatpush1.msra.mxu0 0.0
  %1086 = vmatprep.subr.mxu0 0.0
  %1087 = vmatpush1.msra.mxu0 0.0
  %1088 = vmatprep.subr.mxu0 0.0
  %1089 = vmatpush1.msra.mxu0 0.0
  %1090 = vmatprep.subr.mxu0 0.0
  %1091 = vmatpush1.msra.mxu0 0.0
  %1092 = vmatprep.subr.mxu0 0.0
  %1093 = vmatpush1.msra.mxu0 0.0
  %1094 = vmatprep.subr.mxu0 0.0
  %1095 = vmatpush1.msra.mxu0 0.0
  %1096 = vmatprep.subr.mxu0 0.0
  %1097 = vmatpush1.msra.mxu0 0.0
  %1098 = vmatprep.subr.mxu0 0.0
  %1099 = vmatpush1.msra.mxu0 0.0
  %1100 = vmatprep.subr.mxu0 0.0
  %1101 = vmatpush1.msra.mxu0 0.0
  %1102 = vmatprep.subr.mxu0 0.0
  %1103 = vmatpush1.msra.mxu0 0.0
  %1104 = vmatprep.subr.mxu0 0.0
  %1105 = vmatpush1.msra.mxu0 0.0
  %1106 = vmatprep.subr.mxu0 0.0
  %1107 = vmatpush1.msra.mxu0 0.0
  %1108 = vmatprep.subr.mxu0 0.0
  %1109 = vmatpush1.msra.mxu0 0.0
  %1110 = vmatprep.subr.mxu0 0.0
  %1111 = vmatpush1.msra.mxu0 0.0
  %1112 = vmatprep.subr.mxu0 0.0
  %1113 = vmatpush1.msra.mxu0 0.0
  %1114 = vmatprep.mubr.f32.mxu0 0.0
  %1115 = vmatmul.mubr.f32.gmra.mrb[0].mxu0 %v1048
  %v1116 = vpop.f32.mrb[0].mxu0
  %v1117 = vadd.f32 %v1043, %v1116
  %v1118 = vpop.f32.mrb[0].mxu0
  %1119 = vdwg.mxu0
  %s1120 = scalar_lea.vmem %s8, 6
  %1121 = vst [vmem:[%s1120] sm:$0x3] %v1117
  %s1122 = scalar_lea.vmem %s0, 8
  %v1123 = vld [vmem:[%s1122] sm:$0x3]
  %v1124 = vld [vmem:[%s1] sm:$0xff]
  %v1125 = vld [vmem:[%s1 + $0x8] sm:$0xff]
  %v1126 = vld [vmem:[%s2] sm:$0xff]
  %v1127 = vld [vmem:[%s2 + $0x8] sm:$0xff]
  %v1128 = vld [vmem:[%s2 + $0x10] sm:$0xff]
  %v1129 = vld [vmem:[%s2 + $0x18] sm:$0xff]
  %1130 = vmatprep.subr.mxu0 0.0
  %1131 = vmatpush1.msra.mxu0 %v1126
  %1132 = vmatprep.subr.mxu0 0.0
  %1133 = vmatpush1.msra.mxu0 %v1127
  %1134 = vmatprep.subr.mxu0 0.0
  %1135 = vmatpush1.msra.mxu0 %v1128
  %1136 = vmatprep.subr.mxu0 0.0
  %1137 = vmatpush1.msra.mxu0 %v1129
  %1138 = vmatprep.subr.mxu0 0.0
  %1139 = vmatpush1.msra.mxu0 0.0
  %1140 = vmatprep.subr.mxu0 0.0
  %1141 = vmatpush1.msra.mxu0 0.0
  %1142 = vmatprep.subr.mxu0 0.0
  %1143 = vmatpush1.msra.mxu0 0.0
  %1144 = vmatprep.subr.mxu0 0.0
  %1145 = vmatpush1.msra.mxu0 0.0
  %1146 = vmatprep.subr.mxu0 0.0
  %1147 = vmatpush1.msra.mxu0 0.0
  %1148 = vmatprep.subr.mxu0 0.0
  %1149 = vmatpush1.msra.mxu0 0.0
  %1150 = vmatprep.subr.mxu0 0.0
  %1151 = vmatpush1.msra.mxu0 0.0
  %1152 = vmatprep.subr.mxu0 0.0
  %1153 = vmatpush1.msra.mxu0 0.0
  %1154 = vmatprep.subr.mxu0 0.0
  %1155 = vmatpush1.msra.mxu0 0.0
  %1156 = vmatprep.subr.mxu0 0.0
  %1157 = vmatpush1.msra.mxu0 0.0
  %1158 = vmatprep.subr.mxu0 0.0
  %1159 = vmatpush1.msra.mxu0 0.0
  %1160 = vmatprep.subr.mxu0 0.0
  %1161 = vmatpush1.msra.mxu0 0.0
  %1162 = vmatprep.subr.mxu0 0.0
  %1163 = vmatpush1.msra.mxu0 0.0
  %1164 = vmatprep.subr.mxu0 0.0
  %1165 = vmatpush1.msra.mxu0 0.0
  %1166 = vmatprep.subr.mxu0 0.0
  %1167 = vmatpush1.msra.mxu0 0.0
  %1168 = vmatprep.subr.mxu0 0.0
  %1169 = vmatpush1.msra.mxu0 0.0
  %1170 = vmatprep.subr.mxu0 0.0
  %1171 = vmatpush1.msra.mxu0 0.0
  %1172 = vmatprep.subr.mxu0 0.0
  %1173 = vmatpush1.msra.mxu0 0.0
  %1174 = vmatprep.subr.mxu0 0.0
  %1175 = vmatpush1.msra.mxu0 0.0
  %1176 = vmatprep.subr.mxu0 0.0
  %1177 = vmatpush1.msra.mxu0 0.0
  %1178 = vmatprep.subr.mxu0 0.0
  %1179 = vmatpush1.msra.mxu0 0.0
  %1180 = vmatprep.subr.mxu0 0.0
  %1181 = vmatpush1.msra.mxu0 0.0
  %1182 = vmatprep.subr.mxu0 0.0
  %1183 = vmatpush1.msra.mxu0 0.0
  %1184 = vmatprep.subr.mxu0 0.0
  %1185 = vmatpush1.msra.mxu0 0.0
  %1186 = vmatprep.subr.mxu0 0.0
  %1187 = vmatpush1.msra.mxu0 0.0
  %1188 = vmatprep.subr.mxu0 0.0
  %1189 = vmatpush1.msra.mxu0 0.0
  %1190 = vmatprep.subr.mxu0 0.0
  %1191 = vmatpush1.msra.mxu0 0.0
  %1192 = vmatprep.subr.mxu0 0.0
  %1193 = vmatpush1.msra.mxu0 0.0
  %1194 = vmatprep.mubr.f32.mxu0 0.0
  %1195 = vmatmul.mubr.f32.gmra.mrb[0].mxu0 %v1048
  %v1196 = vpop.f32.mrb[0].mxu0
  %v1197 = vadd.f32 0.0, %v1196
  %v1198 = vpop.f32.mrb[0].mxu0
  %1199 = vdwg.mxu0
  %v1201 = vsel %vm112, %v1123, 0
  %1203 = vmatprep.subr.mxu0 0.0
  %1204 = vmatpush1.msra.mxu0 %v1124
  %1205 = vmatprep.subr.mxu0 0.0
  %1206 = vmatpush1.msra.mxu0 %v1125
  %1207 = vmatprep.subr.mxu0 0.0
  %1208 = vmatpush1.msra.mxu0 0.0
  %1209 = vmatprep.subr.mxu0 0.0
  %1210 = vmatpush1.msra.mxu0 0.0
  %1211 = vmatprep.subr.mxu0 0.0
  %1212 = vmatpush1.msra.mxu0 0.0
  %1213 = vmatprep.subr.mxu0 0.0
  %1214 = vmatpush1.msra.mxu0 0.0
  %1215 = vmatprep.subr.mxu0 0.0
  %1216 = vmatpush1.msra.mxu0 0.0
  %1217 = vmatprep.subr.mxu0 0.0
  %1218 = vmatpush1.msra.mxu0 0.0
  %1219 = vmatprep.subr.mxu0 0.0
  %1220 = vmatpush1.msra.mxu0 0.0
  %1221 = vmatprep.subr.mxu0 0.0
  %1222 = vmatpush1.msra.mxu0 0.0
  %1223 = vmatprep.subr.mxu0 0.0
  %1224 = vmatpush1.msra.mxu0 0.0
  %1225 = vmatprep.subr.mxu0 0.0
  %1226 = vmatpush1.msra.mxu0 0.0
  %1227 = vmatprep.subr.mxu0 0.0
  %1228 = vmatpush1.msra.mxu0 0.0
  %1229 = vmatprep.subr.mxu0 0.0
  %1230 = vmatpush1.msra.mxu0 0.0
  %1231 = vmatprep.subr.mxu0 0.0
  %1232 = vmatpush1.msra.mxu0 0.0
  %1233 = vmatprep.subr.mxu0 0.0
  %1234 = vmatpush1.msra.mxu0 0.0
  %1235 = vmatprep.subr.mxu0 0.0
  %1236 = vmatpush1.msra.mxu0 0.0
  %1237 = vmatprep.subr.mxu0 0.0
  %1238 = vmatpush1.msra.mxu0 0.0
  %1239 = vmatprep.subr.mxu0 0.0
  %1240 = vmatpush1.msra.mxu0 0.0
  %1241 = vmatprep.subr.mxu0 0.0
  %1242 = vmatpush1.msra.mxu0 0.0
  %1243 = vmatprep.subr.mxu0 0.0
  %1244 = vmatpush1.msra.mxu0 0.0
  %1245 = vmatprep.subr.mxu0 0.0
  %1246 = vmatpush1.msra.mxu0 0.0
  %1247 = vmatprep.subr.mxu0 0.0
  %1248 = vmatpush1.msra.mxu0 0.0
  %1249 = vmatprep.subr.mxu0 0.0
  %1250 = vmatpush1.msra.mxu0 0.0
  %1251 = vmatprep.subr.mxu0 0.0
  %1252 = vmatpush1.msra.mxu0 0.0
  %1253 = vmatprep.subr.mxu0 0.0
  %1254 = vmatpush1.msra.mxu0 0.0
  %1255 = vmatprep.subr.mxu0 0.0
  %1256 = vmatpush1.msra.mxu0 0.0
  %1257 = vmatprep.subr.mxu0 0.0
  %1258 = vmatpush1.msra.mxu0 0.0
  %1259 = vmatprep.subr.mxu0 0.0
  %1260 = vmatpush1.msra.mxu0 0.0
  %1261 = vmatprep.subr.mxu0 0.0
  %1262 = vmatpush1.msra.mxu0 0.0
  %1263 = vmatprep.subr.mxu0 0.0
  %1264 = vmatpush1.msra.mxu0 0.0
  %1265 = vmatprep.subr.mxu0 0.0
  %1266 = vmatpush1.msra.mxu0 0.0
  %1267 = vmatprep.mubr.f32.mxu0 0.0
  %1268 = vmatmul.mubr.f32.gmra.mrb[0].mxu0 %v1201
  %v1269 = vpop.f32.mrb[0].mxu0
  %v1270 = vadd.f32 %v1197, %v1269
  %v1271 = vpop.f32.mrb[0].mxu0
  %1272 = vdwg.mxu0
  %v1273 = vld [vmem:[%s3] sm:$0x1]
  %v1275 = vlaneseq
  %v1276 = vshrl.u32 %v1275, 7
  %v1277 = vsub.s32 0, %v1276
  %v1278 = vrot.slane %v1273, %v1277
  %v1280 = vadd.f32 %v1270, %v1278
  %v1281 = vxor.u32 %v1280, 2147483648
  %v1282 = vmul.f32 %v1281, 1.442695
  %v1283 = vpow.pop %v1282
  %v1284 = vadd.f32 %v1283, 1.0
  %v1285 = vrcp.pop %v1284
  %v1286 = vmul.f32 1.0, %v1285
  %v1287 = vtanh.pop %v1280
  %v1288 = vmul.f32 %v1286, %v1027
  %1290 = vrot.lane.b32.xlu0 %v1287, 64
  %v1291 = vpop.permute.xlu0 %1290
  %v1293 = vmul.f32 %v1286, %v1291
  %1295 = vrot.lane.b32.xlu0 %v1293, 32
  %v1296 = vpop.permute.xlu0 %1295
  %v1298 = vadd.f32 %v1288, %v1296
  %v1299 = vtanh.pop %v1298
  %1301 = vrot.lane.b32.xlu0 %v1299, 64
  %v1302 = vpop.permute.xlu0 %1301
  %v1304 = vmul.f32 %v1286, %v1302
  %v1305 = vld [vmem:[%s6] sm:$0xff]
  %v1306 = vld [vmem:[%s6 + $0x8] sm:$0xff]
  %v1307 = vld [vmem:[%s6 + $0x10] sm:$0xff]
  %v1308 = vld [vmem:[%s6 + $0x18] sm:$0xff]
  %v1309 = vld [vmem:[%s7] sm:$0x1]
  %v1311 = vlaneseq
  %v1312 = vshrl.u32 %v1311, 7
  %v1313 = vsub.s32 0, %v1312
  %v1314 = vrot.slane %v1309, %v1313
  %1317 = vrot.lane.b32.xlu0 %v1304, 32
  %v1318 = vpop.permute.xlu0 %1317
  %v1319 = vsel %vm38, %v1318, 0
  %1321 = vmatprep.subr.mxu0 0.0
  %1322 = vmatpush1.msra.mxu0 %v1305
  %1323 = vmatprep.subr.mxu0 0.0
  %1324 = vmatpush1.msra.mxu0 %v1306
  %1325 = vmatprep.subr.mxu0 0.0
  %1326 = vmatpush1.msra.mxu0 %v1307
  %1327 = vmatprep.subr.mxu0 0.0
  %1328 = vmatpush1.msra.mxu0 %v1308
  %1329 = vmatprep.subr.mxu0 0.0
  %1330 = vmatpush1.msra.mxu0 0.0
  %1331 = vmatprep.subr.mxu0 0.0
  %1332 = vmatpush1.msra.mxu0 0.0
  %1333 = vmatprep.subr.mxu0 0.0
  %1334 = vmatpush1.msra.mxu0 0.0
  %1335 = vmatprep.subr.mxu0 0.0
  %1336 = vmatpush1.msra.mxu0 0.0
  %1337 = vmatprep.subr.mxu0 0.0
  %1338 = vmatpush1.msra.mxu0 0.0
  %1339 = vmatprep.subr.mxu0 0.0
  %1340 = vmatpush1.msra.mxu0 0.0
  %1341 = vmatprep.subr.mxu0 0.0
  %1342 = vmatpush1.msra.mxu0 0.0
  %1343 = vmatprep.subr.mxu0 0.0
  %1344 = vmatpush1.msra.mxu0 0.0
  %1345 = vmatprep.subr.mxu0 0.0
  %1346 = vmatpush1.msra.mxu0 0.0
  %1347 = vmatprep.subr.mxu0 0.0
  %1348 = vmatpush1.msra.mxu0 0.0
  %1349 = vmatprep.subr.mxu0 0.0
  %1350 = vmatpush1.msra.mxu0 0.0
  %1351 = vmatprep.subr.mxu0 0.0
  %1352 = vmatpush1.msra.mxu0 0.0
  %1353 = vmatprep.subr.mxu0 0.0
  %1354 = vmatpush1.msra.mxu0 0.0
  %1355 = vmatprep.subr.mxu0 0.0
  %1356 = vmatpush1.msra.mxu0 0.0
  %1357 = vmatprep.subr.mxu0 0.0
  %1358 = vmatpush1.msra.mxu0 0.0
  %1359 = vmatprep.subr.mxu0 0.0
  %1360 = vmatpush1.msra.mxu0 0.0
  %1361 = vmatprep.subr.mxu0 0.0
  %1362 = vmatpush1.msra.mxu0 0.0
  %1363 = vmatprep.subr.mxu0 0.0
  %1364 = vmatpush1.msra.mxu0 0.0
  %1365 = vmatprep.subr.mxu0 0.0
  %1366 = vmatpush1.msra.mxu0 0.0
  %1367 = vmatprep.subr.mxu0 0.0
  %1368 = vmatpush1.msra.mxu0 0.0
  %1369 = vmatprep.subr.mxu0 0.0
  %1370 = vmatpush1.msra.mxu0 0.0
  %1371 = vmatprep.subr.mxu0 0.0
  %1372 = vmatpush1.msra.mxu0 0.0
  %1373 = vmatprep.subr.mxu0 0.0
  %1374 = vmatpush1.msra.mxu0 0.0
  %1375 = vmatprep.subr.mxu0 0.0
  %1376 = vmatpush1.msra.mxu0 0.0
  %1377 = vmatprep.subr.mxu0 0.0
  %1378 = vmatpush1.msra.mxu0 0.0
  %1379 = vmatprep.subr.mxu0 0.0
  %1380 = vmatpush1.msra.mxu0 0.0
  %1381 = vmatprep.subr.mxu0 0.0
  %1382 = vmatpush1.msra.mxu0 0.0
  %1383 = vmatprep.subr.mxu0 0.0
  %1384 = vmatpush1.msra.mxu0 0.0
  %1385 = vmatprep.mubr.f32.mxu0 0.0
  %1386 = vmatmul.mubr.f32.gmra.mrb[0].mxu0 %v1319
  %v1387 = vpop.f32.mrb[0].mxu0
  %v1388 = vadd.f32 %v1314, %v1387
  %v1389 = vpop.f32.mrb[0].mxu0
  %1390 = vdwg.mxu0
  %s1391 = scalar_lea.vmem %s8, 8
  %1392 = vst [vmem:[%s1391] sm:$0x3] %v1388
  %s1393 = scalar_lea.vmem %s0, 10
  %v1394 = vld [vmem:[%s1393] sm:$0x3]
  %v1395 = vld [vmem:[%s1] sm:$0xff]
  %v1396 = vld [vmem:[%s1 + $0x8] sm:$0xff]
  %v1397 = vld [vmem:[%s2] sm:$0xff]
  %v1398 = vld [vmem:[%s2 + $0x8] sm:$0xff]
  %v1399 = vld [vmem:[%s2 + $0x10] sm:$0xff]
  %v1400 = vld [vmem:[%s2 + $0x18] sm:$0xff]
  %1401 = vmatprep.subr.mxu0 0.0
  %1402 = vmatpush1.msra.mxu0 %v1397
  %1403 = vmatprep.subr.mxu0 0.0
  %1404 = vmatpush1.msra.mxu0 %v1398
  %1405 = vmatprep.subr.mxu0 0.0
  %1406 = vmatpush1.msra.mxu0 %v1399
  %1407 = vmatprep.subr.mxu0 0.0
  %1408 = vmatpush1.msra.mxu0 %v1400
  %1409 = vmatprep.subr.mxu0 0.0
  %1410 = vmatpush1.msra.mxu0 0.0
  %1411 = vmatprep.subr.mxu0 0.0
  %1412 = vmatpush1.msra.mxu0 0.0
  %1413 = vmatprep.subr.mxu0 0.0
  %1414 = vmatpush1.msra.mxu0 0.0
  %1415 = vmatprep.subr.mxu0 0.0
  %1416 = vmatpush1.msra.mxu0 0.0
  %1417 = vmatprep.subr.mxu0 0.0
  %1418 = vmatpush1.msra.mxu0 0.0
  %1419 = vmatprep.subr.mxu0 0.0
  %1420 = vmatpush1.msra.mxu0 0.0
  %1421 = vmatprep.subr.mxu0 0.0
  %1422 = vmatpush1.msra.mxu0 0.0
  %1423 = vmatprep.subr.mxu0 0.0
  %1424 = vmatpush1.msra.mxu0 0.0
  %1425 = vmatprep.subr.mxu0 0.0
  %1426 = vmatpush1.msra.mxu0 0.0
  %1427 = vmatprep.subr.mxu0 0.0
  %1428 = vmatpush1.msra.mxu0 0.0
  %1429 = vmatprep.subr.mxu0 0.0
  %1430 = vmatpush1.msra.mxu0 0.0
  %1431 = vmatprep.subr.mxu0 0.0
  %1432 = vmatpush1.msra.mxu0 0.0
  %1433 = vmatprep.subr.mxu0 0.0
  %1434 = vmatpush1.msra.mxu0 0.0
  %1435 = vmatprep.subr.mxu0 0.0
  %1436 = vmatpush1.msra.mxu0 0.0
  %1437 = vmatprep.subr.mxu0 0.0
  %1438 = vmatpush1.msra.mxu0 0.0
  %1439 = vmatprep.subr.mxu0 0.0
  %1440 = vmatpush1.msra.mxu0 0.0
  %1441 = vmatprep.subr.mxu0 0.0
  %1442 = vmatpush1.msra.mxu0 0.0
  %1443 = vmatprep.subr.mxu0 0.0
  %1444 = vmatpush1.msra.mxu0 0.0
  %1445 = vmatprep.subr.mxu0 0.0
  %1446 = vmatpush1.msra.mxu0 0.0
  %1447 = vmatprep.subr.mxu0 0.0
  %1448 = vmatpush1.msra.mxu0 0.0
  %1449 = vmatprep.subr.mxu0 0.0
  %1450 = vmatpush1.msra.mxu0 0.0
  %1451 = vmatprep.subr.mxu0 0.0
  %1452 = vmatpush1.msra.mxu0 0.0
  %1453 = vmatprep.subr.mxu0 0.0
  %1454 = vmatpush1.msra.mxu0 0.0
  %1455 = vmatprep.subr.mxu0 0.0
  %1456 = vmatpush1.msra.mxu0 0.0
  %1457 = vmatprep.subr.mxu0 0.0
  %1458 = vmatpush1.msra.mxu0 0.0
  %1459 = vmatprep.subr.mxu0 0.0
  %1460 = vmatpush1.msra.mxu0 0.0
  %1461 = vmatprep.subr.mxu0 0.0
  %1462 = vmatpush1.msra.mxu0 0.0
  %1463 = vmatprep.subr.mxu0 0.0
  %1464 = vmatpush1.msra.mxu0 0.0
  %1465 = vmatprep.mubr.f32.mxu0 0.0
  %1466 = vmatmul.mubr.f32.gmra.mrb[0].mxu0 %v1319
  %v1467 = vpop.f32.mrb[0].mxu0
  %v1468 = vadd.f32 0.0, %v1467
  %v1469 = vpop.f32.mrb[0].mxu0
  %1470 = vdwg.mxu0
  %v1472 = vsel %vm112, %v1394, 0
  %1474 = vmatprep.subr.mxu0 0.0
  %1475 = vmatpush1.msra.mxu0 %v1395
  %1476 = vmatprep.subr.mxu0 0.0
  %1477 = vmatpush1.msra.mxu0 %v1396
  %1478 = vmatprep.subr.mxu0 0.0
  %1479 = vmatpush1.msra.mxu0 0.0
  %1480 = vmatprep.subr.mxu0 0.0
  %1481 = vmatpush1.msra.mxu0 0.0
  %1482 = vmatprep.subr.mxu0 0.0
  %1483 = vmatpush1.msra.mxu0 0.0
  %1484 = vmatprep.subr.mxu0 0.0
  %1485 = vmatpush1.msra.mxu0 0.0
  %1486 = vmatprep.subr.mxu0 0.0
  %1487 = vmatpush1.msra.mxu0 0.0
  %1488 = vmatprep.subr.mxu0 0.0
  %1489 = vmatpush1.msra.mxu0 0.0
  %1490 = vmatprep.subr.mxu0 0.0
  %1491 = vmatpush1.msra.mxu0 0.0
  %1492 = vmatprep.subr.mxu0 0.0
  %1493 = vmatpush1.msra.mxu0 0.0
  %1494 = vmatprep.subr.mxu0 0.0
  %1495 = vmatpush1.msra.mxu0 0.0
  %1496 = vmatprep.subr.mxu0 0.0
  %1497 = vmatpush1.msra.mxu0 0.0
  %1498 = vmatprep.subr.mxu0 0.0
  %1499 = vmatpush1.msra.mxu0 0.0
  %1500 = vmatprep.subr.mxu0 0.0
  %1501 = vmatpush1.msra.mxu0 0.0
  %1502 = vmatprep.subr.mxu0 0.0
  %1503 = vmatpush1.msra.mxu0 0.0
  %1504 = vmatprep.subr.mxu0 0.0
  %1505 = vmatpush1.msra.mxu0 0.0
  %1506 = vmatprep.subr.mxu0 0.0
  %1507 = vmatpush1.msra.mxu0 0.0
  %1508 = vmatprep.subr.mxu0 0.0
  %1509 = vmatpush1.msra.mxu0 0.0
  %1510 = vmatprep.subr.mxu0 0.0
  %1511 = vmatpush1.msra.mxu0 0.0
  %1512 = vmatprep.subr.mxu0 0.0
  %1513 = vmatpush1.msra.mxu0 0.0
  %1514 = vmatprep.subr.mxu0 0.0
  %1515 = vmatpush1.msra.mxu0 0.0
  %1516 = vmatprep.subr.mxu0 0.0
  %1517 = vmatpush1.msra.mxu0 0.0
  %1518 = vmatprep.subr.mxu0 0.0
  %1519 = vmatpush1.msra.mxu0 0.0
  %1520 = vmatprep.subr.mxu0 0.0
  %1521 = vmatpush1.msra.mxu0 0.0
  %1522 = vmatprep.subr.mxu0 0.0
  %1523 = vmatpush1.msra.mxu0 0.0
  %1524 = vmatprep.subr.mxu0 0.0
  %1525 = vmatpush1.msra.mxu0 0.0
  %1526 = vmatprep.subr.mxu0 0.0
  %1527 = vmatpush1.msra.mxu0 0.0
  %1528 = vmatprep.subr.mxu0 0.0
  %1529 = vmatpush1.msra.mxu0 0.0
  %1530 = vmatprep.subr.mxu0 0.0
  %1531 = vmatpush1.msra.mxu0 0.0
  %1532 = vmatprep.subr.mxu0 0.0
  %1533 = vmatpush1.msra.mxu0 0.0
  %1534 = vmatprep.subr.mxu0 0.0
  %1535 = vmatpush1.msra.mxu0 0.0
  %1536 = vmatprep.subr.mxu0 0.0
  %1537 = vmatpush1.msra.mxu0 0.0
  %1538 = vmatprep.mubr.f32.mxu0 0.0
  %1539 = vmatmul.mubr.f32.gmra.mrb[0].mxu0 %v1472
  %v1540 = vpop.f32.mrb[0].mxu0
  %v1541 = vadd.f32 %v1468, %v1540
  %v1542 = vpop.f32.mrb[0].mxu0
  %1543 = vdwg.mxu0
  %v1544 = vld [vmem:[%s3] sm:$0x1]
  %v1546 = vlaneseq
  %v1547 = vshrl.u32 %v1546, 7
  %v1548 = vsub.s32 0, %v1547
  %v1549 = vrot.slane %v1544, %v1548
  %v1551 = vadd.f32 %v1541, %v1549
  %v1552 = vxor.u32 %v1551, 2147483648
  %v1553 = vmul.f32 %v1552, 1.442695
  %v1554 = vpow.pop %v1553
  %v1555 = vadd.f32 %v1554, 1.0
  %v1556 = vrcp.pop %v1555
  %v1557 = vmul.f32 1.0, %v1556
  %v1558 = vtanh.pop %v1551
  %v1559 = vmul.f32 %v1557, %v1298
  %1561 = vrot.lane.b32.xlu0 %v1558, 64
  %v1562 = vpop.permute.xlu0 %1561
  %v1564 = vmul.f32 %v1557, %v1562
  %1566 = vrot.lane.b32.xlu0 %v1564, 32
  %v1567 = vpop.permute.xlu0 %1566
  %v1569 = vadd.f32 %v1559, %v1567
  %v1570 = vtanh.pop %v1569
  %1572 = vrot.lane.b32.xlu0 %v1570, 64
  %v1573 = vpop.permute.xlu0 %1572
  %v1575 = vmul.f32 %v1557, %v1573
  %v1576 = vld [vmem:[%s6] sm:$0xff]
  %v1577 = vld [vmem:[%s6 + $0x8] sm:$0xff]
  %v1578 = vld [vmem:[%s6 + $0x10] sm:$0xff]
  %v1579 = vld [vmem:[%s6 + $0x18] sm:$0xff]
  %v1580 = vld [vmem:[%s7] sm:$0x1]
  %v1582 = vlaneseq
  %v1583 = vshrl.u32 %v1582, 7
  %v1584 = vsub.s32 0, %v1583
  %v1585 = vrot.slane %v1580, %v1584
  %1588 = vrot.lane.b32.xlu0 %v1575, 32
  %v1589 = vpop.permute.xlu0 %1588
  %v1590 = vsel %vm38, %v1589, 0
  %1592 = vmatprep.subr.mxu0 0.0
  %1593 = vmatpush1.msra.mxu0 %v1576
  %1594 = vmatprep.subr.mxu0 0.0
  %1595 = vmatpush1.msra.mxu0 %v1577
  %1596 = vmatprep.subr.mxu0 0.0
  %1597 = vmatpush1.msra.mxu0 %v1578
  %1598 = vmatprep.subr.mxu0 0.0
  %1599 = vmatpush1.msra.mxu0 %v1579
  %1600 = vmatprep.subr.mxu0 0.0
  %1601 = vmatpush1.msra.mxu0 0.0
  %1602 = vmatprep.subr.mxu0 0.0
  %1603 = vmatpush1.msra.mxu0 0.0
  %1604 = vmatprep.subr.mxu0 0.0
  %1605 = vmatpush1.msra.mxu0 0.0
  %1606 = vmatprep.subr.mxu0 0.0
  %1607 = vmatpush1.msra.mxu0 0.0
  %1608 = vmatprep.subr.mxu0 0.0
  %1609 = vmatpush1.msra.mxu0 0.0
  %1610 = vmatprep.subr.mxu0 0.0
  %1611 = vmatpush1.msra.mxu0 0.0
  %1612 = vmatprep.subr.mxu0 0.0
  %1613 = vmatpush1.msra.mxu0 0.0
  %1614 = vmatprep.subr.mxu0 0.0
  %1615 = vmatpush1.msra.mxu0 0.0
  %1616 = vmatprep.subr.mxu0 0.0
  %1617 = vmatpush1.msra.mxu0 0.0
  %1618 = vmatprep.subr.mxu0 0.0
  %1619 = vmatpush1.msra.mxu0 0.0
  %1620 = vmatprep.subr.mxu0 0.0
  %1621 = vmatpush1.msra.mxu0 0.0
  %1622 = vmatprep.subr.mxu0 0.0
  %1623 = vmatpush1.msra.mxu0 0.0
  %1624 = vmatprep.subr.mxu0 0.0
  %1625 = vmatpush1.msra.mxu0 0.0
  %1626 = vmatprep.subr.mxu0 0.0
  %1627 = vmatpush1.msra.mxu0 0.0
  %1628 = vmatprep.subr.mxu0 0.0
  %1629 = vmatpush1.msra.mxu0 0.0
  %1630 = vmatprep.subr.mxu0 0.0
  %1631 = vmatpush1.msra.mxu0 0.0
  %1632 = vmatprep.subr.mxu0 0.0
  %1633 = vmatpush1.msra.mxu0 0.0
  %1634 = vmatprep.subr.mxu0 0.0
  %1635 = vmatpush1.msra.mxu0 0.0
  %1636 = vmatprep.subr.mxu0 0.0
  %1637 = vmatpush1.msra.mxu0 0.0
  %1638 = vmatprep.subr.mxu0 0.0
  %1639 = vmatpush1.msra.mxu0 0.0
  %1640 = vmatprep.subr.mxu0 0.0
  %1641 = vmatpush1.msra.mxu0 0.0
  %1642 = vmatprep.subr.mxu0 0.0
  %1643 = vmatpush1.msra.mxu0 0.0
  %1644 = vmatprep.subr.mxu0 0.0
  %1645 = vmatpush1.msra.mxu0 0.0
  %1646 = vmatprep.subr.mxu0 0.0
  %1647 = vmatpush1.msra.mxu0 0.0
  %1648 = vmatprep.subr.mxu0 0.0
  %1649 = vmatpush1.msra.mxu0 0.0
  %1650 = vmatprep.subr.mxu0 0.0
  %1651 = vmatpush1.msra.mxu0 0.0
  %1652 = vmatprep.subr.mxu0 0.0
  %1653 = vmatpush1.msra.mxu0 0.0
  %1654 = vmatprep.subr.mxu0 0.0
  %1655 = vmatpush1.msra.mxu0 0.0
  %1656 = vmatprep.mubr.f32.mxu0 0.0
  %1657 = vmatmul.mubr.f32.gmra.mrb[0].mxu0 %v1590
  %v1658 = vpop.f32.mrb[0].mxu0
  %v1659 = vadd.f32 %v1585, %v1658
  %v1660 = vpop.f32.mrb[0].mxu0
  %1661 = vdwg.mxu0
  %s1662 = scalar_lea.vmem %s8, 10
  %1663 = vst [vmem:[%s1662] sm:$0x3] %v1659
  %s1664 = scalar_lea.vmem %s0, 12
  %v1665 = vld [vmem:[%s1664] sm:$0x3]
  %v1666 = vld [vmem:[%s1] sm:$0xff]
  %v1667 = vld [vmem:[%s1 + $0x8] sm:$0xff]
  %v1668 = vld [vmem:[%s2] sm:$0xff]
  %v1669 = vld [vmem:[%s2 + $0x8] sm:$0xff]
  %v1670 = vld [vmem:[%s2 + $0x10] sm:$0xff]
  %v1671 = vld [vmem:[%s2 + $0x18] sm:$0xff]
  %1672 = vmatprep.subr.mxu0 0.0
  %1673 = vmatpush1.msra.mxu0 %v1668
  %1674 = vmatprep.subr.mxu0 0.0
  %1675 = vmatpush1.msra.mxu0 %v1669
  %1676 = vmatprep.subr.mxu0 0.0
  %1677 = vmatpush1.msra.mxu0 %v1670
  %1678 = vmatprep.subr.mxu0 0.0
  %1679 = vmatpush1.msra.mxu0 %v1671
  %1680 = vmatprep.subr.mxu0 0.0
  %1681 = vmatpush1.msra.mxu0 0.0
  %1682 = vmatprep.subr.mxu0 0.0
  %1683 = vmatpush1.msra.mxu0 0.0
  %1684 = vmatprep.subr.mxu0 0.0
  %1685 = vmatpush1.msra.mxu0 0.0
  %1686 = vmatprep.subr.mxu0 0.0
  %1687 = vmatpush1.msra.mxu0 0.0
  %1688 = vmatprep.subr.mxu0 0.0
  %1689 = vmatpush1.msra.mxu0 0.0
  %1690 = vmatprep.subr.mxu0 0.0
  %1691 = vmatpush1.msra.mxu0 0.0
  %1692 = vmatprep.subr.mxu0 0.0
  %1693 = vmatpush1.msra.mxu0 0.0
  %1694 = vmatprep.subr.mxu0 0.0
  %1695 = vmatpush1.msra.mxu0 0.0
  %1696 = vmatprep.subr.mxu0 0.0
  %1697 = vmatpush1.msra.mxu0 0.0
  %1698 = vmatprep.subr.mxu0 0.0
  %1699 = vmatpush1.msra.mxu0 0.0
  %1700 = vmatprep.subr.mxu0 0.0
  %1701 = vmatpush1.msra.mxu0 0.0
  %1702 = vmatprep.subr.mxu0 0.0
  %1703 = vmatpush1.msra.mxu0 0.0
  %1704 = vmatprep.subr.mxu0 0.0
  %1705 = vmatpush1.msra.mxu0 0.0
  %1706 = vmatprep.subr.mxu0 0.0
  %1707 = vmatpush1.msra.mxu0 0.0
  %1708 = vmatprep.subr.mxu0 0.0
  %1709 = vmatpush1.msra.mxu0 0.0
  %1710 = vmatprep.subr.mxu0 0.0
  %1711 = vmatpush1.msra.mxu0 0.0
  %1712 = vmatprep.subr.mxu0 0.0
  %1713 = vmatpush1.msra.mxu0 0.0
  %1714 = vmatprep.subr.mxu0 0.0
  %1715 = vmatpush1.msra.mxu0 0.0
  %1716 = vmatprep.subr.mxu0 0.0
  %1717 = vmatpush1.msra.mxu0 0.0
  %1718 = vmatprep.subr.mxu0 0.0
  %1719 = vmatpush1.msra.mxu0 0.0
  %1720 = vmatprep.subr.mxu0 0.0
  %1721 = vmatpush1.msra.mxu0 0.0
  %1722 = vmatprep.subr.mxu0 0.0
  %1723 = vmatpush1.msra.mxu0 0.0
  %1724 = vmatprep.subr.mxu0 0.0
  %1725 = vmatpush1.msra.mxu0 0.0
  %1726 = vmatprep.subr.mxu0 0.0
  %1727 = vmatpush1.msra.mxu0 0.0
  %1728 = vmatprep.subr.mxu0 0.0
  %1729 = vmatpush1.msra.mxu0 0.0
  %1730 = vmatprep.subr.mxu0 0.0
  %1731 = vmatpush1.msra.mxu0 0.0
  %1732 = vmatprep.subr.mxu0 0.0
  %1733 = vmatpush1.msra.mxu0 0.0
  %1734 = vmatprep.subr.mxu0 0.0
  %1735 = vmatpush1.msra.mxu0 0.0
  %1736 = vmatprep.mubr.f32.mxu0 0.0
  %1737 = vmatmul.mubr.f32.gmra.mrb[0].mxu0 %v1590
  %v1738 = vpop.f32.mrb[0].mxu0
  %v1739 = vadd.f32 0.0, %v1738
  %v1740 = vpop.f32.mrb[0].mxu0
  %1741 = vdwg.mxu0
  %v1743 = vsel %vm112, %v1665, 0
  %1745 = vmatprep.subr.mxu0 0.0
  %1746 = vmatpush1.msra.mxu0 %v1666
  %1747 = vmatprep.subr.mxu0 0.0
  %1748 = vmatpush1.msra.mxu0 %v1667
  %1749 = vmatprep.subr.mxu0 0.0
  %1750 = vmatpush1.msra.mxu0 0.0
  %1751 = vmatprep.subr.mxu0 0.0
  %1752 = vmatpush1.msra.mxu0 0.0
  %1753 = vmatprep.subr.mxu0 0.0
  %1754 = vmatpush1.msra.mxu0 0.0
  %1755 = vmatprep.subr.mxu0 0.0
  %1756 = vmatpush1.msra.mxu0 0.0
  %1757 = vmatprep.subr.mxu0 0.0
  %1758 = vmatpush1.msra.mxu0 0.0
  %1759 = vmatprep.subr.mxu0 0.0
  %1760 = vmatpush1.msra.mxu0 0.0
  %1761 = vmatprep.subr.mxu0 0.0
  %1762 = vmatpush1.msra.mxu0 0.0
  %1763 = vmatprep.subr.mxu0 0.0
  %1764 = vmatpush1.msra.mxu0 0.0
  %1765 = vmatprep.subr.mxu0 0.0
  %1766 = vmatpush1.msra.mxu0 0.0
  %1767 = vmatprep.subr.mxu0 0.0
  %1768 = vmatpush1.msra.mxu0 0.0
  %1769 = vmatprep.subr.mxu0 0.0
  %1770 = vmatpush1.msra.mxu0 0.0
  %1771 = vmatprep.subr.mxu0 0.0
  %1772 = vmatpush1.msra.mxu0 0.0
  %1773 = vmatprep.subr.mxu0 0.0
  %1774 = vmatpush1.msra.mxu0 0.0
  %1775 = vmatprep.subr.mxu0 0.0
  %1776 = vmatpush1.msra.mxu0 0.0
  %1777 = vmatprep.subr.mxu0 0.0
  %1778 = vmatpush1.msra.mxu0 0.0
  %1779 = vmatprep.subr.mxu0 0.0
  %1780 = vmatpush1.msra.mxu0 0.0
  %1781 = vmatprep.subr.mxu0 0.0
  %1782 = vmatpush1.msra.mxu0 0.0
  %1783 = vmatprep.subr.mxu0 0.0
  %1784 = vmatpush1.msra.mxu0 0.0
  %1785 = vmatprep.subr.mxu0 0.0
  %1786 = vmatpush1.msra.mxu0 0.0
  %1787 = vmatprep.subr.mxu0 0.0
  %1788 = vmatpush1.msra.mxu0 0.0
  %1789 = vmatprep.subr.mxu0 0.0
  %1790 = vmatpush1.msra.mxu0 0.0
  %1791 = vmatprep.subr.mxu0 0.0
  %1792 = vmatpush1.msra.mxu0 0.0
  %1793 = vmatprep.subr.mxu0 0.0
  %1794 = vmatpush1.msra.mxu0 0.0
  %1795 = vmatprep.subr.mxu0 0.0
  %1796 = vmatpush1.msra.mxu0 0.0
  %1797 = vmatprep.subr.mxu0 0.0
  %1798 = vmatpush1.msra.mxu0 0.0
  %1799 = vmatprep.subr.mxu0 0.0
  %1800 = vmatpush1.msra.mxu0 0.0
  %1801 = vmatprep.subr.mxu0 0.0
  %1802 = vmatpush1.msra.mxu0 0.0
  %1803 = vmatprep.subr.mxu0 0.0
  %1804 = vmatpush1.msra.mxu0 0.0
  %1805 = vmatprep.subr.mxu0 0.0
  %1806 = vmatpush1.msra.mxu0 0.0
  %1807 = vmatprep.subr.mxu0 0.0
  %1808 = vmatpush1.msra.mxu0 0.0
  %1809 = vmatprep.mubr.f32.mxu0 0.0
  %1810 = vmatmul.mubr.f32.gmra.mrb[0].mxu0 %v1743
  %v1811 = vpop.f32.mrb[0].mxu0
  %v1812 = vadd.f32 %v1739, %v1811
  %v1813 = vpop.f32.mrb[0].mxu0
  %1814 = vdwg.mxu0
  %v1815 = vld [vmem:[%s3] sm:$0x1]
  %v1817 = vlaneseq
  %v1818 = vshrl.u32 %v1817, 7
  %v1819 = vsub.s32 0, %v1818
  %v1820 = vrot.slane %v1815, %v1819
  %v1822 = vadd.f32 %v1812, %v1820
  %v1823 = vxor.u32 %v1822, 2147483648
  %v1824 = vmul.f32 %v1823, 1.442695
  %v1825 = vpow.pop %v1824
  %v1826 = vadd.f32 %v1825, 1.0
  %v1827 = vrcp.pop %v1826
  %v1828 = vmul.f32 1.0, %v1827
  %v1829 = vtanh.pop %v1822
  %v1830 = vmul.f32 %v1828, %v1569
  %1832 = vrot.lane.b32.xlu0 %v1829, 64
  %v1833 = vpop.permute.xlu0 %1832
  %v1835 = vmul.f32 %v1828, %v1833
  %1837 = vrot.lane.b32.xlu0 %v1835, 32
  %v1838 = vpop.permute.xlu0 %1837
  %v1840 = vadd.f32 %v1830, %v1838
  %v1841 = vtanh.pop %v1840
  %1843 = vrot.lane.b32.xlu0 %v1841, 64
  %v1844 = vpop.permute.xlu0 %1843
  %v1846 = vmul.f32 %v1828, %v1844
  %v1847 = vld [vmem:[%s6] sm:$0xff]
  %v1848 = vld [vmem:[%s6 + $0x8] sm:$0xff]
  %v1849 = vld [vmem:[%s6 + $0x10] sm:$0xff]
  %v1850 = vld [vmem:[%s6 + $0x18] sm:$0xff]
  %v1851 = vld [vmem:[%s7] sm:$0x1]
  %v1853 = vlaneseq
  %v1854 = vshrl.u32 %v1853, 7
  %v1855 = vsub.s32 0, %v1854
  %v1856 = vrot.slane %v1851, %v1855
  %1859 = vrot.lane.b32.xlu0 %v1846, 32
  %v1860 = vpop.permute.xlu0 %1859
  %v1861 = vsel %vm38, %v1860, 0
  %1863 = vmatprep.subr.mxu0 0.0
  %1864 = vmatpush1.msra.mxu0 %v1847
  %1865 = vmatprep.subr.mxu0 0.0
  %1866 = vmatpush1.msra.mxu0 %v1848
  %1867 = vmatprep.subr.mxu0 0.0
  %1868 = vmatpush1.msra.mxu0 %v1849
  %1869 = vmatprep.subr.mxu0 0.0
  %1870 = vmatpush1.msra.mxu0 %v1850
  %1871 = vmatprep.subr.mxu0 0.0
  %1872 = vmatpush1.msra.mxu0 0.0
  %1873 = vmatprep.subr.mxu0 0.0
  %1874 = vmatpush1.msra.mxu0 0.0
  %1875 = vmatprep.subr.mxu0 0.0
  %1876 = vmatpush1.msra.mxu0 0.0
  %1877 = vmatprep.subr.mxu0 0.0
  %1878 = vmatpush1.msra.mxu0 0.0
  %1879 = vmatprep.subr.mxu0 0.0
  %1880 = vmatpush1.msra.mxu0 0.0
  %1881 = vmatprep.subr.mxu0 0.0
  %1882 = vmatpush1.msra.mxu0 0.0
  %1883 = vmatprep.subr.mxu0 0.0
  %1884 = vmatpush1.msra.mxu0 0.0
  %1885 = vmatprep.subr.mxu0 0.0
  %1886 = vmatpush1.msra.mxu0 0.0
  %1887 = vmatprep.subr.mxu0 0.0
  %1888 = vmatpush1.msra.mxu0 0.0
  %1889 = vmatprep.subr.mxu0 0.0
  %1890 = vmatpush1.msra.mxu0 0.0
  %1891 = vmatprep.subr.mxu0 0.0
  %1892 = vmatpush1.msra.mxu0 0.0
  %1893 = vmatprep.subr.mxu0 0.0
  %1894 = vmatpush1.msra.mxu0 0.0
  %1895 = vmatprep.subr.mxu0 0.0
  %1896 = vmatpush1.msra.mxu0 0.0
  %1897 = vmatprep.subr.mxu0 0.0
  %1898 = vmatpush1.msra.mxu0 0.0
  %1899 = vmatprep.subr.mxu0 0.0
  %1900 = vmatpush1.msra.mxu0 0.0
  %1901 = vmatprep.subr.mxu0 0.0
  %1902 = vmatpush1.msra.mxu0 0.0
  %1903 = vmatprep.subr.mxu0 0.0
  %1904 = vmatpush1.msra.mxu0 0.0
  %1905 = vmatprep.subr.mxu0 0.0
  %1906 = vmatpush1.msra.mxu0 0.0
  %1907 = vmatprep.subr.mxu0 0.0
  %1908 = vmatpush1.msra.mxu0 0.0
  %1909 = vmatprep.subr.mxu0 0.0
  %1910 = vmatpush1.msra.mxu0 0.0
  %1911 = vmatprep.subr.mxu0 0.0
  %1912 = vmatpush1.msra.mxu0 0.0
  %1913 = vmatprep.subr.mxu0 0.0
  %1914 = vmatpush1.msra.mxu0 0.0
  %1915 = vmatprep.subr.mxu0 0.0
  %1916 = vmatpush1.msra.mxu0 0.0
  %1917 = vmatprep.subr.mxu0 0.0
  %1918 = vmatpush1.msra.mxu0 0.0
  %1919 = vmatprep.subr.mxu0 0.0
  %1920 = vmatpush1.msra.mxu0 0.0
  %1921 = vmatprep.subr.mxu0 0.0
  %1922 = vmatpush1.msra.mxu0 0.0
  %1923 = vmatprep.subr.mxu0 0.0
  %1924 = vmatpush1.msra.mxu0 0.0
  %1925 = vmatprep.subr.mxu0 0.0
  %1926 = vmatpush1.msra.mxu0 0.0
  %1927 = vmatprep.mubr.f32.mxu0 0.0
  %1928 = vmatmul.mubr.f32.gmra.mrb[0].mxu0 %v1861
  %v1929 = vpop.f32.mrb[0].mxu0
  %v1930 = vadd.f32 %v1856, %v1929
  %v1931 = vpop.f32.mrb[0].mxu0
  %1932 = vdwg.mxu0
  %s1933 = scalar_lea.vmem %s8, 12
  %1934 = vst [vmem:[%s1933] sm:$0x3] %v1930
  %s1935 = scalar_lea.vmem %s0, 14
  %v1936 = vld [vmem:[%s1935] sm:$0x3]
  %v1937 = vld [vmem:[%s1] sm:$0xff]
  %v1938 = vld [vmem:[%s1 + $0x8] sm:$0xff]
  %v1939 = vld [vmem:[%s2] sm:$0xff]
  %v1940 = vld [vmem:[%s2 + $0x8] sm:$0xff]
  %v1941 = vld [vmem:[%s2 + $0x10] sm:$0xff]
  %v1942 = vld [vmem:[%s2 + $0x18] sm:$0xff]
  %1943 = vmatprep.subr.mxu0 0.0
  %1944 = vmatpush1.msra.mxu0 %v1939
  %1945 = vmatprep.subr.mxu0 0.0
  %1946 = vmatpush1.msra.mxu0 %v1940
  %1947 = vmatprep.subr.mxu0 0.0
  %1948 = vmatpush1.msra.mxu0 %v1941
  %1949 = vmatprep.subr.mxu0 0.0
  %1950 = vmatpush1.msra.mxu0 %v1942
  %1951 = vmatprep.subr.mxu0 0.0
  %1952 = vmatpush1.msra.mxu0 0.0
  %1953 = vmatprep.subr.mxu0 0.0
  %1954 = vmatpush1.msra.mxu0 0.0
  %1955 = vmatprep.subr.mxu0 0.0
  %1956 = vmatpush1.msra.mxu0 0.0
  %1957 = vmatprep.subr.mxu0 0.0
  %1958 = vmatpush1.msra.mxu0 0.0
  %1959 = vmatprep.subr.mxu0 0.0
  %1960 = vmatpush1.msra.mxu0 0.0
  %1961 = vmatprep.subr.mxu0 0.0
  %1962 = vmatpush1.msra.mxu0 0.0
  %1963 = vmatprep.subr.mxu0 0.0
  %1964 = vmatpush1.msra.mxu0 0.0
  %1965 = vmatprep.subr.mxu0 0.0
  %1966 = vmatpush1.msra.mxu0 0.0
  %1967 = vmatprep.subr.mxu0 0.0
  %1968 = vmatpush1.msra.mxu0 0.0
  %1969 = vmatprep.subr.mxu0 0.0
  %1970 = vmatpush1.msra.mxu0 0.0
  %1971 = vmatprep.subr.mxu0 0.0
  %1972 = vmatpush1.msra.mxu0 0.0
  %1973 = vmatprep.subr.mxu0 0.0
  %1974 = vmatpush1.msra.mxu0 0.0
  %1975 = vmatprep.subr.mxu0 0.0
  %1976 = vmatpush1.msra.mxu0 0.0
  %1977 = vmatprep.subr.mxu0 0.0
  %1978 = vmatpush1.msra.mxu0 0.0
  %1979 = vmatprep.subr.mxu0 0.0
  %1980 = vmatpush1.msra.mxu0 0.0
  %1981 = vmatprep.subr.mxu0 0.0
  %1982 = vmatpush1.msra.mxu0 0.0
  %1983 = vmatprep.subr.mxu0 0.0
  %1984 = vmatpush1.msra.mxu0 0.0
  %1985 = vmatprep.subr.mxu0 0.0
  %1986 = vmatpush1.msra.mxu0 0.0
  %1987 = vmatprep.subr.mxu0 0.0
  %1988 = vmatpush1.msra.mxu0 0.0
  %1989 = vmatprep.subr.mxu0 0.0
  %1990 = vmatpush1.msra.mxu0 0.0
  %1991 = vmatprep.subr.mxu0 0.0
  %1992 = vmatpush1.msra.mxu0 0.0
  %1993 = vmatprep.subr.mxu0 0.0
  %1994 = vmatpush1.msra.mxu0 0.0
  %1995 = vmatprep.subr.mxu0 0.0
  %1996 = vmatpush1.msra.mxu0 0.0
  %1997 = vmatprep.subr.mxu0 0.0
  %1998 = vmatpush1.msra.mxu0 0.0
  %1999 = vmatprep.subr.mxu0 0.0
  %2000 = vmatpush1.msra.mxu0 0.0
  %2001 = vmatprep.subr.mxu0 0.0
  %2002 = vmatpush1.msra.mxu0 0.0
  %2003 = vmatprep.subr.mxu0 0.0
  %2004 = vmatpush1.msra.mxu0 0.0
  %2005 = vmatprep.subr.mxu0 0.0
  %2006 = vmatpush1.msra.mxu0 0.0
  %2007 = vmatprep.mubr.f32.mxu0 0.0
  %2008 = vmatmul.mubr.f32.gmra.mrb[0].mxu0 %v1861
  %v2009 = vpop.f32.mrb[0].mxu0
  %v2010 = vadd.f32 0.0, %v2009
  %v2011 = vpop.f32.mrb[0].mxu0
  %2012 = vdwg.mxu0
  %v2014 = vsel %vm112, %v1936, 0
  %2016 = vmatprep.subr.mxu0 0.0
  %2017 = vmatpush1.msra.mxu0 %v1937
  %2018 = vmatprep.subr.mxu0 0.0
  %2019 = vmatpush1.msra.mxu0 %v1938
  %2020 = vmatprep.subr.mxu0 0.0
  %2021 = vmatpush1.msra.mxu0 0.0
  %2022 = vmatprep.subr.mxu0 0.0
  %2023 = vmatpush1.msra.mxu0 0.0
  %2024 = vmatprep.subr.mxu0 0.0
  %2025 = vmatpush1.msra.mxu0 0.0
  %2026 = vmatprep.subr.mxu0 0.0
  %2027 = vmatpush1.msra.mxu0 0.0
  %2028 = vmatprep.subr.mxu0 0.0
  %2029 = vmatpush1.msra.mxu0 0.0
  %2030 = vmatprep.subr.mxu0 0.0
  %2031 = vmatpush1.msra.mxu0 0.0
  %2032 = vmatprep.subr.mxu0 0.0
  %2033 = vmatpush1.msra.mxu0 0.0
  %2034 = vmatprep.subr.mxu0 0.0
  %2035 = vmatpush1.msra.mxu0 0.0
  %2036 = vmatprep.subr.mxu0 0.0
  %2037 = vmatpush1.msra.mxu0 0.0
  %2038 = vmatprep.subr.mxu0 0.0
  %2039 = vmatpush1.msra.mxu0 0.0
  %2040 = vmatprep.subr.mxu0 0.0
  %2041 = vmatpush1.msra.mxu0 0.0
  %2042 = vmatprep.subr.mxu0 0.0
  %2043 = vmatpush1.msra.mxu0 0.0
  %2044 = vmatprep.subr.mxu0 0.0
  %2045 = vmatpush1.msra.mxu0 0.0
  %2046 = vmatprep.subr.mxu0 0.0
  %2047 = vmatpush1.msra.mxu0 0.0
  %2048 = vmatprep.subr.mxu0 0.0
  %2049 = vmatpush1.msra.mxu0 0.0
  %2050 = vmatprep.subr.mxu0 0.0
  %2051 = vmatpush1.msra.mxu0 0.0
  %2052 = vmatprep.subr.mxu0 0.0
  %2053 = vmatpush1.msra.mxu0 0.0
  %2054 = vmatprep.subr.mxu0 0.0
  %2055 = vmatpush1.msra.mxu0 0.0
  %2056 = vmatprep.subr.mxu0 0.0
  %2057 = vmatpush1.msra.mxu0 0.0
  %2058 = vmatprep.subr.mxu0 0.0
  %2059 = vmatpush1.msra.mxu0 0.0
  %2060 = vmatprep.subr.mxu0 0.0
  %2061 = vmatpush1.msra.mxu0 0.0
  %2062 = vmatprep.subr.mxu0 0.0
  %2063 = vmatpush1.msra.mxu0 0.0
  %2064 = vmatprep.subr.mxu0 0.0
  %2065 = vmatpush1.msra.mxu0 0.0
  %2066 = vmatprep.subr.mxu0 0.0
  %2067 = vmatpush1.msra.mxu0 0.0
  %2068 = vmatprep.subr.mxu0 0.0
  %2069 = vmatpush1.msra.mxu0 0.0
  %2070 = vmatprep.subr.mxu0 0.0
  %2071 = vmatpush1.msra.mxu0 0.0
  %2072 = vmatprep.subr.mxu0 0.0
  %2073 = vmatpush1.msra.mxu0 0.0
  %2074 = vmatprep.subr.mxu0 0.0
  %2075 = vmatpush1.msra.mxu0 0.0
  %2076 = vmatprep.subr.mxu0 0.0
  %2077 = vmatpush1.msra.mxu0 0.0
  %2078 = vmatprep.subr.mxu0 0.0
  %2079 = vmatpush1.msra.mxu0 0.0
  %2080 = vmatprep.mubr.f32.mxu0 0.0
  %2081 = vmatmul.mubr.f32.gmra.mrb[0].mxu0 %v2014
  %v2082 = vpop.f32.mrb[0].mxu0
  %v2083 = vadd.f32 %v2010, %v2082
  %v2084 = vpop.f32.mrb[0].mxu0
  %2085 = vdwg.mxu0
  %v2086 = vld [vmem:[%s3] sm:$0x1]
  %v2088 = vlaneseq
  %v2089 = vshrl.u32 %v2088, 7
  %v2090 = vsub.s32 0, %v2089
  %v2091 = vrot.slane %v2086, %v2090
  %v2093 = vadd.f32 %v2083, %v2091
  %v2094 = vxor.u32 %v2093, 2147483648
  %v2095 = vmul.f32 %v2094, 1.442695
  %v2096 = vpow.pop %v2095
  %v2097 = vadd.f32 %v2096, 1.0
  %v2098 = vrcp.pop %v2097
  %v2099 = vmul.f32 1.0, %v2098
  %v2100 = vtanh.pop %v2093
  %v2101 = vmul.f32 %v2099, %v1840
  %2103 = vrot.lane.b32.xlu0 %v2100, 64
  %v2104 = vpop.permute.xlu0 %2103
  %v2106 = vmul.f32 %v2099, %v2104
  %2108 = vrot.lane.b32.xlu0 %v2106, 32
  %v2109 = vpop.permute.xlu0 %2108
  %v2111 = vadd.f32 %v2101, %v2109
  %v2112 = vtanh.pop %v2111
  %2114 = vrot.lane.b32.xlu0 %v2112, 64
  %v2115 = vpop.permute.xlu0 %2114
  %v2117 = vmul.f32 %v2099, %v2115
  %v2118 = vld [vmem:[%s6] sm:$0xff]
  %v2119 = vld [vmem:[%s6 + $0x8] sm:$0xff]
  %v2120 = vld [vmem:[%s6 + $0x10] sm:$0xff]
  %v2121 = vld [vmem:[%s6 + $0x18] sm:$0xff]
  %v2122 = vld [vmem:[%s7] sm:$0x1]
  %v2124 = vlaneseq
  %v2125 = vshrl.u32 %v2124, 7
  %v2126 = vsub.s32 0, %v2125
  %v2127 = vrot.slane %v2122, %v2126
  %2130 = vrot.lane.b32.xlu0 %v2117, 32
  %v2131 = vpop.permute.xlu0 %2130
  %v2132 = vsel %vm38, %v2131, 0
  %2134 = vmatprep.subr.mxu0 0.0
  %2135 = vmatpush1.msra.mxu0 %v2118
  %2136 = vmatprep.subr.mxu0 0.0
  %2137 = vmatpush1.msra.mxu0 %v2119
  %2138 = vmatprep.subr.mxu0 0.0
  %2139 = vmatpush1.msra.mxu0 %v2120
  %2140 = vmatprep.subr.mxu0 0.0
  %2141 = vmatpush1.msra.mxu0 %v2121
  %2142 = vmatprep.subr.mxu0 0.0
  %2143 = vmatpush1.msra.mxu0 0.0
  %2144 = vmatprep.subr.mxu0 0.0
  %2145 = vmatpush1.msra.mxu0 0.0
  %2146 = vmatprep.subr.mxu0 0.0
  %2147 = vmatpush1.msra.mxu0 0.0
  %2148 = vmatprep.subr.mxu0 0.0
  %2149 = vmatpush1.msra.mxu0 0.0
  %2150 = vmatprep.subr.mxu0 0.0
  %2151 = vmatpush1.msra.mxu0 0.0
  %2152 = vmatprep.subr.mxu0 0.0
  %2153 = vmatpush1.msra.mxu0 0.0
  %2154 = vmatprep.subr.mxu0 0.0
  %2155 = vmatpush1.msra.mxu0 0.0
  %2156 = vmatprep.subr.mxu0 0.0
  %2157 = vmatpush1.msra.mxu0 0.0
  %2158 = vmatprep.subr.mxu0 0.0
  %2159 = vmatpush1.msra.mxu0 0.0
  %2160 = vmatprep.subr.mxu0 0.0
  %2161 = vmatpush1.msra.mxu0 0.0
  %2162 = vmatprep.subr.mxu0 0.0
  %2163 = vmatpush1.msra.mxu0 0.0
  %2164 = vmatprep.subr.mxu0 0.0
  %2165 = vmatpush1.msra.mxu0 0.0
  %2166 = vmatprep.subr.mxu0 0.0
  %2167 = vmatpush1.msra.mxu0 0.0
  %2168 = vmatprep.subr.mxu0 0.0
  %2169 = vmatpush1.msra.mxu0 0.0
  %2170 = vmatprep.subr.mxu0 0.0
  %2171 = vmatpush1.msra.mxu0 0.0
  %2172 = vmatprep.subr.mxu0 0.0
  %2173 = vmatpush1.msra.mxu0 0.0
  %2174 = vmatprep.subr.mxu0 0.0
  %2175 = vmatpush1.msra.mxu0 0.0
  %2176 = vmatprep.subr.mxu0 0.0
  %2177 = vmatpush1.msra.mxu0 0.0
  %2178 = vmatprep.subr.mxu0 0.0
  %2179 = vmatpush1.msra.mxu0 0.0
  %2180 = vmatprep.subr.mxu0 0.0
  %2181 = vmatpush1.msra.mxu0 0.0
  %2182 = vmatprep.subr.mxu0 0.0
  %2183 = vmatpush1.msra.mxu0 0.0
  %2184 = vmatprep.subr.mxu0 0.0
  %2185 = vmatpush1.msra.mxu0 0.0
  %2186 = vmatprep.subr.mxu0 0.0
  %2187 = vmatpush1.msra.mxu0 0.0
  %2188 = vmatprep.subr.mxu0 0.0
  %2189 = vmatpush1.msra.mxu0 0.0
  %2190 = vmatprep.subr.mxu0 0.0
  %2191 = vmatpush1.msra.mxu0 0.0
  %2192 = vmatprep.subr.mxu0 0.0
  %2193 = vmatpush1.msra.mxu0 0.0
  %2194 = vmatprep.subr.mxu0 0.0
  %2195 = vmatpush1.msra.mxu0 0.0
  %2196 = vmatprep.subr.mxu0 0.0
  %2197 = vmatpush1.msra.mxu0 0.0
  %2198 = vmatprep.mubr.f32.mxu0 0.0
  %2199 = vmatmul.mubr.f32.gmra.mrb[0].mxu0 %v2132
  %v2200 = vpop.f32.mrb[0].mxu0
  %v2201 = vadd.f32 %v2127, %v2200
  %v2202 = vpop.f32.mrb[0].mxu0
  %2203 = vdwg.mxu0
  %s2204 = scalar_lea.vmem %s8, 14
  %2205 = vst [vmem:[%s2204] sm:$0x3] %v2201
  // Predicated region
  $region34: #{seq2seq_forward.3} parent=0 // pred_check
    _
  $region35: #{seq2seq_forward.3} parent=0 // pred_check_branch
    %2207 = sbr.rel (0) target = $region37
  $region36: #{seq2seq_forward.3} parent=0 // pred_region
    _
  $region37: #{seq2seq_forward.3} parent=0 // pred_fallthru
    _
  // Predicated region
  $region38: #{seq2seq_forward.3} parent=0 // pred_check
    _
  $region39: #{seq2seq_forward.3} parent=0 // pred_check_branch
    %2209 = sbr.rel (0) target = $region41
  $region40: #{seq2seq_forward.3} parent=0 // pred_region
    _
  $region41: #{seq2seq_forward.3} parent=0 // pred_fallthru
    _

// kernel: seq2seq_forward.2
$region0: #{seq2seq_forward.2}
  #allocation0 [shape = 'u32[]', space=smem, size = 0x4, offset = 0x4, fixed_abs, tag = 'smem constant byte address 0x4 - core index']
  #allocation1 [shape = 'u32[144,128]{1,0:T(1,128)}', space=vmem, size = 0x12000, scoped, tag = 'internal scratch']
  %s0 = inlined_call_operand.vmem [shape: f32[8,2,16], index: 0, kind: input, shape index: {}]
  %s1 = inlined_call_operand.vmem [shape: f32[16,128], index: 1, kind: input, shape index: {}]
  %s2 = inlined_call_operand.vmem [shape: f32[32,128], index: 2, kind: input, shape index: {}]
  %s3 = inlined_call_operand.vmem [shape: f32[1,128], index: 3, kind: input, shape index: {}]
  %s4 = inlined_call_operand.vmem [shape: f32[16,128], index: 4, kind: input, shape index: {}]
  %s5 = inlined_call_operand.vmem [shape: f32[32,128], index: 5, kind: input, shape index: {}]
  %s6 = inlined_call_operand.vmem [shape: f32[1,128], index: 6, kind: input, shape index: {}]
  %s7 = inlined_call_operand.vmem [shape: f32[64,32], index: 7, kind: input, shape index: {}]
  %s8 = inlined_call_operand.vmem [shape: f32[1,32], index: 8, kind: input, shape index: {}]
  %s9 = inlined_call_operand.vmem [shape: f32[2,32], index: 9, kind: output, shape index: {0}]
  %s10 = inlined_call_operand.vmem [shape: f32[2,32], index: 10, kind: output, shape index: {1}]
  %11 = xla_tuple %s9, %s10
  %s12 = sld [smem:[#allocation0]]
  $region54: #{seq2seq_forward.2} parent=0
    _
  %s14 = ssub.s32 1, %s12
  %s15 = scalar_select 0, %s14, %s12
  // Predicated region
  $region2: #{seq2seq_forward.2} parent=0 // pred_check
    _
  $region3: #{seq2seq_forward.2} parent=0 // pred_check_branch
    %17 = sbr.rel (0) target = $region5
  $region4: #{seq2seq_forward.2} parent=0 // pred_region
    _
  $region5: #{seq2seq_forward.2} parent=0 // pred_fallthru
    _
  // Predicated region
  $region6: #{seq2seq_forward.2} parent=0 // pred_check
    _
  $region7: #{seq2seq_forward.2} parent=0 // pred_check_branch
    %19 = sbr.rel (0) target = $region9
  $region8: #{seq2seq_forward.2} parent=0 // pred_region
    _
  $region9: #{seq2seq_forward.2} parent=0 // pred_fallthru
    _
  // Predicated region
  $region10: #{seq2seq_forward.2} parent=0 // pred_check
    _
  $region11: #{seq2seq_forward.2} parent=0 // pred_check_branch
    %21 = sbr.rel (0) target = $region13
  $region12: #{seq2seq_forward.2} parent=0 // pred_region
    _
  $region13: #{seq2seq_forward.2} parent=0 // pred_fallthru
    _
  // Predicated region
  $region14: #{seq2seq_forward.2} parent=0 // pred_check
    _
  $region15: #{seq2seq_forward.2} parent=0 // pred_check_branch
    %23 = sbr.rel (0) target = $region17
  $region16: #{seq2seq_forward.2} parent=0 // pred_region
    _
  $region17: #{seq2seq_forward.2} parent=0 // pred_fallthru
    _
  // Predicated region
  $region18: #{seq2seq_forward.2} parent=0 // pred_check
    _
  $region19: #{seq2seq_forward.2} parent=0 // pred_check_branch
    %25 = sbr.rel (0) target = $region21
  $region20: #{seq2seq_forward.2} parent=0 // pred_region
    _
  $region21: #{seq2seq_forward.2} parent=0 // pred_fallthru
    _
  // Predicated region
  $region22: #{seq2seq_forward.2} parent=0 // pred_check
    _
  $region23: #{seq2seq_forward.2} parent=0 // pred_check_branch
    %27 = sbr.rel (0) target = $region25
  $region24: #{seq2seq_forward.2} parent=0 // pred_region
    _
  $region25: #{seq2seq_forward.2} parent=0 // pred_fallthru
    _
  // Predicated region
  $region26: #{seq2seq_forward.2} parent=0 // pred_check
    _
  $region27: #{seq2seq_forward.2} parent=0 // pred_check_branch
    %29 = sbr.rel (0) target = $region29
  $region28: #{seq2seq_forward.2} parent=0 // pred_region
    _
  $region29: #{seq2seq_forward.2} parent=0 // pred_fallthru
    _
  // Predicated region
  $region30: #{seq2seq_forward.2} parent=0 // pred_check
    _
  $region31: #{seq2seq_forward.2} parent=0 // pred_check_branch
    %31 = sbr.rel (0) target = $region33
  $region32: #{seq2seq_forward.2} parent=0 // pred_region
    _
  $region33: #{seq2seq_forward.2} parent=0 // pred_fallthru
    _
  // Predicated region
  $region34: #{seq2seq_forward.2} parent=0 // pred_check
    _
  $region35: #{seq2seq_forward.2} parent=0 // pred_check_branch
    %33 = sbr.rel (0) target = $region37
  $region36: #{seq2seq_forward.2} parent=0 // pred_region
    _
  $region37: #{seq2seq_forward.2} parent=0 // pred_fallthru
    _
  %v34 = vld [vmem:[%s0] sm:$0x3]
  %v35 = vld [vmem:[%s1] sm:$0xff]
  %v36 = vld [vmem:[%s1 + $0x8] sm:$0xff]
  %v37 = vld [vmem:[%s2] sm:$0xff]
  %v38 = vld [vmem:[%s2 + $0x8] sm:$0xff]
  %v39 = vld [vmem:[%s2 + $0x10] sm:$0xff]
  %v40 = vld [vmem:[%s2 + $0x18] sm:$0xff]
  %vm41 = vcmask 261120
  %v43 = vsel %vm41, 0.0, 0
  %45 = vmatprep.subr.mxu0 0.0
  %46 = vmatpush1.msra.mxu0 %v37
  %47 = vmatprep.subr.mxu0 0.0
  %48 = vmatpush1.msra.mxu0 %v38
  %49 = vmatprep.subr.mxu0 0.0
  %50 = vmatpush1.msra.mxu0 %v39
  %51 = vmatprep.subr.mxu0 0.0
  %52 = vmatpush1.msra.mxu0 %v40
  %53 = vmatprep.subr.mxu0 0.0
  %54 = vmatpush1.msra.mxu0 0.0
  %55 = vmatprep.subr.mxu0 0.0
  %56 = vmatpush1.msra.mxu0 0.0
  %57 = vmatprep.subr.mxu0 0.0
  %58 = vmatpush1.msra.mxu0 0.0
  %59 = vmatprep.subr.mxu0 0.0
  %60 = vmatpush1.msra.mxu0 0.0
  %61 = vmatprep.subr.mxu0 0.0
  %62 = vmatpush1.msra.mxu0 0.0
  %63 = vmatprep.subr.mxu0 0.0
  %64 = vmatpush1.msra.mxu0 0.0
  %65 = vmatprep.subr.mxu0 0.0
  %66 = vmatpush1.msra.mxu0 0.0
  %67 = vmatprep.subr.mxu0 0.0
  %68 = vmatpush1.msra.mxu0 0.0
  %69 = vmatprep.subr.mxu0 0.0
  %70 = vmatpush1.msra.mxu0 0.0
  %71 = vmatprep.subr.mxu0 0.0
  %72 = vmatpush1.msra.mxu0 0.0
  %73 = vmatprep.subr.mxu0 0.0
  %74 = vmatpush1.msra.mxu0 0.0
  %75 = vmatprep.subr.mxu0 0.0
  %76 = vmatpush1.msra.mxu0 0.0
  %77 = vmatprep.subr.mxu0 0.0
  %78 = vmatpush1.msra.mxu0 0.0
  %79 = vmatprep.subr.mxu0 0.0
  %80 = vmatpush1.msra.mxu0 0.0
  %81 = vmatprep.subr.mxu0 0.0
  %82 = vmatpush1.msra.mxu0 0.0
  %83 = vmatprep.subr.mxu0 0.0
  %84 = vmatpush1.msra.mxu0 0.0
  %85 = vmatprep.subr.mxu0 0.0
  %86 = vmatpush1.msra.mxu0 0.0
  %87 = vmatprep.subr.mxu0 0.0
  %88 = vmatpush1.msra.mxu0 0.0
  %89 = vmatprep.subr.mxu0 0.0
  %90 = vmatpush1.msra.mxu0 0.0
  %91 = vmatprep.subr.mxu0 0.0
  %92 = vmatpush1.msra.mxu0 0.0
  %93 = vmatprep.subr.mxu0 0.0
  %94 = vmatpush1.msra.mxu0 0.0
  %95 = vmatprep.subr.mxu0 0.0
  %96 = vmatpush1.msra.mxu0 0.0
  %97 = vmatprep.subr.mxu0 0.0
  %98 = vmatpush1.msra.mxu0 0.0
  %99 = vmatprep.subr.mxu0 0.0
  %100 = vmatpush1.msra.mxu0 0.0
  %101 = vmatprep.subr.mxu0 0.0
  %102 = vmatpush1.msra.mxu0 0.0
  %103 = vmatprep.subr.mxu0 0.0
  %104 = vmatpush1.msra.mxu0 0.0
  %105 = vmatprep.subr.mxu0 0.0
  %106 = vmatpush1.msra.mxu0 0.0
  %107 = vmatprep.subr.mxu0 0.0
  %108 = vmatpush1.msra.mxu0 0.0
  %109 = vmatprep.mubr.f32.mxu0 0.0
  %110 = vmatmul.mubr.f32.gmra.mrb[0].mxu0 %v43
  %v111 = vpop.f32.mrb[0].mxu0
  %v112 = vadd.f32 0.0, %v111
  %v113 = vpop.f32.mrb[0].mxu0
  %114 = vdwg.mxu0
  %vm115 = vcmask 130048
  %v117 = vsel %vm115, %v34, 0
  %119 = vmatprep.subr.mxu0 0.0
  %120 = vmatpush1.msra.mxu0 %v35
  %121 = vmatprep.subr.mxu0 0.0
  %122 = vmatpush1.msra.mxu0 %v36
  %123 = vmatprep.subr.mxu0 0.0
  %124 = vmatpush1.msra.mxu0 0.0
  %125 = vmatprep.subr.mxu0 0.0
  %126 = vmatpush1.msra.mxu0 0.0
  %127 = vmatprep.subr.mxu0 0.0
  %128 = vmatpush1.msra.mxu0 0.0
  %129 = vmatprep.subr.mxu0 0.0
  %130 = vmatpush1.msra.mxu0 0.0
  %131 = vmatprep.subr.mxu0 0.0
  %132 = vmatpush1.msra.mxu0 0.0
  %133 = vmatprep.subr.mxu0 0.0
  %134 = vmatpush1.msra.mxu0 0.0
  %135 = vmatprep.subr.mxu0 0.0
  %136 = vmatpush1.msra.mxu0 0.0
  %137 = vmatprep.subr.mxu0 0.0
  %138 = vmatpush1.msra.mxu0 0.0
  %139 = vmatprep.subr.mxu0 0.0
  %140 = vmatpush1.msra.mxu0 0.0
  %141 = vmatprep.subr.mxu0 0.0
  %142 = vmatpush1.msra.mxu0 0.0
  %143 = vmatprep.subr.mxu0 0.0
  %144 = vmatpush1.msra.mxu0 0.0
  %145 = vmatprep.subr.mxu0 0.0
  %146 = vmatpush1.msra.mxu0 0.0
  %147 = vmatprep.subr.mxu0 0.0
  %148 = vmatpush1.msra.mxu0 0.0
  %149 = vmatprep.subr.mxu0 0.0
  %150 = vmatpush1.msra.mxu0 0.0
  %151 = vmatprep.subr.mxu0 0.0
  %152 = vmatpush1.msra.mxu0 0.0
  %153 = vmatprep.subr.mxu0 0.0
  %154 = vmatpush1.msra.mxu0 0.0
  %155 = vmatprep.subr.mxu0 0.0
  %156 = vmatpush1.msra.mxu0 0.0
  %157 = vmatprep.subr.mxu0 0.0
  %158 = vmatpush1.msra.mxu0 0.0
  %159 = vmatprep.subr.mxu0 0.0
  %160 = vmatpush1.msra.mxu0 0.0
  %161 = vmatprep.subr.mxu0 0.0
  %162 = vmatpush1.msra.mxu0 0.0
  %163 = vmatprep.subr.mxu0 0.0
  %164 = vmatpush1.msra.mxu0 0.0
  %165 = vmatprep.subr.mxu0 0.0
  %166 = vmatpush1.msra.mxu0 0.0
  %167 = vmatprep.subr.mxu0 0.0
  %168 = vmatpush1.msra.mxu0 0.0
  %169 = vmatprep.subr.mxu0 0.0
  %170 = vmatpush1.msra.mxu0 0.0
  %171 = vmatprep.subr.mxu0 0.0
  %172 = vmatpush1.msra.mxu0 0.0
  %173 = vmatprep.subr.mxu0 0.0
  %174 = vmatpush1.msra.mxu0 0.0
  %175 = vmatprep.subr.mxu0 0.0
  %176 = vmatpush1.msra.mxu0 0.0
  %177 = vmatprep.subr.mxu0 0.0
  %178 = vmatpush1.msra.mxu0 0.0
  %179 = vmatprep.subr.mxu0 0.0
  %180 = vmatpush1.msra.mxu0 0.0
  %181 = vmatprep.subr.mxu0 0.0
  %182 = vmatpush1.msra.mxu0 0.0
  %183 = vmatprep.mubr.f32.mxu0 0.0
  %184 = vmatmul.mubr.f32.gmra.mrb[0].mxu0 %v117
  %v185 = vpop.f32.mrb[0].mxu0
  %v186 = vadd.f32 %v112, %v185
  %v187 = vpop.f32.mrb[0].mxu0
  %188 = vdwg.mxu0
  %v189 = vld [vmem:[%s3] sm:$0x1]
  %v191 = vlaneseq
  %v192 = vshrl.u32 %v191, 7
  %v193 = vsub.s32 0, %v192
  %v194 = vrot.slane %v189, %v193
  %v196 = vadd.f32 %v186, %v194
  %v197 = vxor.u32 %v196, 2147483648
  %v198 = vmul.f32 %v197, 1.442695
  %v199 = vpow.pop %v198
  %v200 = vadd.f32 %v199, 1.0
  %v201 = vrcp.pop %v200
  %v202 = vmul.f32 1.0, %v201
  %v203 = vtanh.pop %v196
  %v204 = vmul.f32 %v202, 0.0
  %206 = vrot.lane.b32.xlu0 %v203, 64
  %v207 = vpop.permute.xlu0 %206
  %v209 = vmul.f32 %v202, %v207
  %211 = vrot.lane.b32.xlu0 %v209, 32
  %v212 = vpop.permute.xlu0 %211
  %v214 = vadd.f32 %v204, %v212
  %v215 = vtanh.pop %v214
  %217 = vrot.lane.b32.xlu0 %v215, 64
  %v218 = vpop.permute.xlu0 %217
  %v220 = vmul.f32 %v202, %v218
  %s221 = scalar_lea.vmem %s0, 14
  %v222 = vld [vmem:[%s221] sm:$0x3]
  %v223 = vld [vmem:[%s4] sm:$0xff]
  %v224 = vld [vmem:[%s4 + $0x8] sm:$0xff]
  %v225 = vld [vmem:[%s5] sm:$0xff]
  %v226 = vld [vmem:[%s5 + $0x8] sm:$0xff]
  %v227 = vld [vmem:[%s5 + $0x10] sm:$0xff]
  %v228 = vld [vmem:[%s5 + $0x18] sm:$0xff]
  %229 = vmatprep.subr.mxu0 0.0
  %230 = vmatpush1.msra.mxu0 %v225
  %231 = vmatprep.subr.mxu0 0.0
  %232 = vmatpush1.msra.mxu0 %v226
  %233 = vmatprep.subr.mxu0 0.0
  %234 = vmatpush1.msra.mxu0 %v227
  %235 = vmatprep.subr.mxu0 0.0
  %236 = vmatpush1.msra.mxu0 %v228
  %237 = vmatprep.subr.mxu0 0.0
  %238 = vmatpush1.msra.mxu0 0.0
  %239 = vmatprep.subr.mxu0 0.0
  %240 = vmatpush1.msra.mxu0 0.0
  %241 = vmatprep.subr.mxu0 0.0
  %242 = vmatpush1.msra.mxu0 0.0
  %243 = vmatprep.subr.mxu0 0.0
  %244 = vmatpush1.msra.mxu0 0.0
  %245 = vmatprep.subr.mxu0 0.0
  %246 = vmatpush1.msra.mxu0 0.0
  %247 = vmatprep.subr.mxu0 0.0
  %248 = vmatpush1.msra.mxu0 0.0
  %249 = vmatprep.subr.mxu0 0.0
  %250 = vmatpush1.msra.mxu0 0.0
  %251 = vmatprep.subr.mxu0 0.0
  %252 = vmatpush1.msra.mxu0 0.0
  %253 = vmatprep.subr.mxu0 0.0
  %254 = vmatpush1.msra.mxu0 0.0
  %255 = vmatprep.subr.mxu0 0.0
  %256 = vmatpush1.msra.mxu0 0.0
  %257 = vmatprep.subr.mxu0 0.0
  %258 = vmatpush1.msra.mxu0 0.0
  %259 = vmatprep.subr.mxu0 0.0
  %260 = vmatpush1.msra.mxu0 0.0
  %261 = vmatprep.subr.mxu0 0.0
  %262 = vmatpush1.msra.mxu0 0.0
  %263 = vmatprep.subr.mxu0 0.0
  %264 = vmatpush1.msra.mxu0 0.0
  %265 = vmatprep.subr.mxu0 0.0
  %266 = vmatpush1.msra.mxu0 0.0
  %267 = vmatprep.subr.mxu0 0.0
  %268 = vmatpush1.msra.mxu0 0.0
  %269 = vmatprep.subr.mxu0 0.0
  %270 = vmatpush1.msra.mxu0 0.0
  %271 = vmatprep.subr.mxu0 0.0
  %272 = vmatpush1.msra.mxu0 0.0
  %273 = vmatprep.subr.mxu0 0.0
  %274 = vmatpush1.msra.mxu0 0.0
  %275 = vmatprep.subr.mxu0 0.0
  %276 = vmatpush1.msra.mxu0 0.0
  %277 = vmatprep.subr.mxu0 0.0
  %278 = vmatpush1.msra.mxu0 0.0
  %279 = vmatprep.subr.mxu0 0.0
  %280 = vmatpush1.msra.mxu0 0.0
  %281 = vmatprep.subr.mxu0 0.0
  %282 = vmatpush1.msra.mxu0 0.0
  %283 = vmatprep.subr.mxu0 0.0
  %284 = vmatpush1.msra.mxu0 0.0
  %285 = vmatprep.subr.mxu0 0.0
  %286 = vmatpush1.msra.mxu0 0.0
  %287 = vmatprep.subr.mxu0 0.0
  %288 = vmatpush1.msra.mxu0 0.0
  %289 = vmatprep.subr.mxu0 0.0
  %290 = vmatpush1.msra.mxu0 0.0
  %291 = vmatprep.subr.mxu0 0.0
  %292 = vmatpush1.msra.mxu0 0.0
  %293 = vmatprep.mubr.f32.mxu0 0.0
  %294 = vmatmul.mubr.f32.gmra.mrb[0].mxu0 %v43
  %v295 = vpop.f32.mrb[0].mxu0
  %v296 = vadd.f32 0.0, %v295
  %v297 = vpop.f32.mrb[0].mxu0
  %298 = vdwg.mxu0
  %v300 = vsel %vm115, %v222, 0
  %302 = vmatprep.subr.mxu0 0.0
  %303 = vmatpush1.msra.mxu0 %v223
  %304 = vmatprep.subr.mxu0 0.0
  %305 = vmatpush1.msra.mxu0 %v224
  %306 = vmatprep.subr.mxu0 0.0
  %307 = vmatpush1.msra.mxu0 0.0
  %308 = vmatprep.subr.mxu0 0.0
  %309 = vmatpush1.msra.mxu0 0.0
  %310 = vmatprep.subr.mxu0 0.0
  %311 = vmatpush1.msra.mxu0 0.0
  %312 = vmatprep.subr.mxu0 0.0
  %313 = vmatpush1.msra.mxu0 0.0
  %314 = vmatprep.subr.mxu0 0.0
  %315 = vmatpush1.msra.mxu0 0.0
  %316 = vmatprep.subr.mxu0 0.0
  %317 = vmatpush1.msra.mxu0 0.0
  %318 = vmatprep.subr.mxu0 0.0
  %319 = vmatpush1.msra.mxu0 0.0
  %320 = vmatprep.subr.mxu0 0.0
  %321 = vmatpush1.msra.mxu0 0.0
  %322 = vmatprep.subr.mxu0 0.0
  %323 = vmatpush1.msra.mxu0 0.0
  %324 = vmatprep.subr.mxu0 0.0
  %325 = vmatpush1.msra.mxu0 0.0
  %326 = vmatprep.subr.mxu0 0.0
  %327 = vmatpush1.msra.mxu0 0.0
  %328 = vmatprep.subr.mxu0 0.0
  %329 = vmatpush1.msra.mxu0 0.0
  %330 = vmatprep.subr.mxu0 0.0
  %331 = vmatpush1.msra.mxu0 0.0
  %332 = vmatprep.subr.mxu0 0.0
  %333 = vmatpush1.msra.mxu0 0.0
  %334 = vmatprep.subr.mxu0 0.0
  %335 = vmatpush1.msra.mxu0 0.0
  %336 = vmatprep.subr.mxu0 0.0
  %337 = vmatpush1.msra.mxu0 0.0
  %338 = vmatprep.subr.mxu0 0.0
  %339 = vmatpush1.msra.mxu0 0.0
  %340 = vmatprep.subr.mxu0 0.0
  %341 = vmatpush1.msra.mxu0 0.0
  %342 = vmatprep.subr.mxu0 0.0
  %343 = vmatpush1.msra.mxu0 0.0
  %344 = vmatprep.subr.mxu0 0.0
  %345 = vmatpush1.msra.mxu0 0.0
  %346 = vmatprep.subr.mxu0 0.0
  %347 = vmatpush1.msra.mxu0 0.0
  %348 = vmatprep.subr.mxu0 0.0
  %349 = vmatpush1.msra.mxu0 0.0
  %350 = vmatprep.subr.mxu0 0.0
  %351 = vmatpush1.msra.mxu0 0.0
  %352 = vmatprep.subr.mxu0 0.0
  %353 = vmatpush1.msra.mxu0 0.0
  %354 = vmatprep.subr.mxu0 0.0
  %355 = vmatpush1.msra.mxu0 0.0
  %356 = vmatprep.subr.mxu0 0.0
  %357 = vmatpush1.msra.mxu0 0.0
  %358 = vmatprep.subr.mxu0 0.0
  %359 = vmatpush1.msra.mxu0 0.0
  %360 = vmatprep.subr.mxu0 0.0
  %361 = vmatpush1.msra.mxu0 0.0
  %362 = vmatprep.subr.mxu0 0.0
  %363 = vmatpush1.msra.mxu0 0.0
  %364 = vmatprep.subr.mxu0 0.0
  %365 = vmatpush1.msra.mxu0 0.0
  %366 = vmatprep.mubr.f32.mxu0 0.0
  %367 = vmatmul.mubr.f32.gmra.mrb[0].mxu0 %v300
  %v368 = vpop.f32.mrb[0].mxu0
  %v369 = vadd.f32 %v296, %v368
  %v370 = vpop.f32.mrb[0].mxu0
  %371 = vdwg.mxu0
  %v372 = vld [vmem:[%s6] sm:$0x1]
  %v374 = vlaneseq
  %v375 = vshrl.u32 %v374, 7
  %v376 = vsub.s32 0, %v375
  %v377 = vrot.slane %v372, %v376
  %v379 = vadd.f32 %v369, %v377
  %v380 = vxor.u32 %v379, 2147483648
  %v381 = vmul.f32 %v380, 1.442695
  %v382 = vpow.pop %v381
  %v383 = vadd.f32 %v382, 1.0
  %v384 = vrcp.pop %v383
  %v385 = vmul.f32 1.0, %v384
  %v386 = vtanh.pop %v379
  %v387 = vmul.f32 %v385, 0.0
  %389 = vrot.lane.b32.xlu0 %v386, 64
  %v390 = vpop.permute.xlu0 %389
  %v392 = vmul.f32 %v385, %v390
  %394 = vrot.lane.b32.xlu0 %v392, 32
  %v395 = vpop.permute.xlu0 %394
  %v397 = vadd.f32 %v387, %v395
  %v398 = vtanh.pop %v397
  %400 = vrot.lane.b32.xlu0 %v398, 64
  %v401 = vpop.permute.xlu0 %400
  %v403 = vmul.f32 %v385, %v401
  %s404 = scalar_lea.vmem %s0, 2
  %v405 = vld [vmem:[%s404] sm:$0x3]
  %407 = vrot.lane.b32.xlu0 %v220, 32
  %v408 = vpop.permute.xlu0 %407
  %v409 = vsel %vm41, %v408, 0
  %411 = vmatprep.subr.mxu0 0.0
  %412 = vmatpush1.msra.mxu0 %v37
  %413 = vmatprep.subr.mxu0 0.0
  %414 = vmatpush1.msra.mxu0 %v38
  %415 = vmatprep.subr.mxu0 0.0
  %416 = vmatpush1.msra.mxu0 %v39
  %417 = vmatprep.subr.mxu0 0.0
  %418 = vmatpush1.msra.mxu0 %v40
  %419 = vmatprep.subr.mxu0 0.0
  %420 = vmatpush1.msra.mxu0 0.0
  %421 = vmatprep.subr.mxu0 0.0
  %422 = vmatpush1.msra.mxu0 0.0
  %423 = vmatprep.subr.mxu0 0.0
  %424 = vmatpush1.msra.mxu0 0.0
  %425 = vmatprep.subr.mxu0 0.0
  %426 = vmatpush1.msra.mxu0 0.0
  %427 = vmatprep.subr.mxu0 0.0
  %428 = vmatpush1.msra.mxu0 0.0
  %429 = vmatprep.subr.mxu0 0.0
  %430 = vmatpush1.msra.mxu0 0.0
  %431 = vmatprep.subr.mxu0 0.0
  %432 = vmatpush1.msra.mxu0 0.0
  %433 = vmatprep.subr.mxu0 0.0
  %434 = vmatpush1.msra.mxu0 0.0
  %435 = vmatprep.subr.mxu0 0.0
  %436 = vmatpush1.msra.mxu0 0.0
  %437 = vmatprep.subr.mxu0 0.0
  %438 = vmatpush1.msra.mxu0 0.0
  %439 = vmatprep.subr.mxu0 0.0
  %440 = vmatpush1.msra.mxu0 0.0
  %441 = vmatprep.subr.mxu0 0.0
  %442 = vmatpush1.msra.mxu0 0.0
  %443 = vmatprep.subr.mxu0 0.0
  %444 = vmatpush1.msra.mxu0 0.0
  %445 = vmatprep.subr.mxu0 0.0
  %446 = vmatpush1.msra.mxu0 0.0
  %447 = vmatprep.subr.mxu0 0.0
  %448 = vmatpush1.msra.mxu0 0.0
  %449 = vmatprep.subr.mxu0 0.0
  %450 = vmatpush1.msra.mxu0 0.0
  %451 = vmatprep.subr.mxu0 0.0
  %452 = vmatpush1.msra.mxu0 0.0
  %453 = vmatprep.subr.mxu0 0.0
  %454 = vmatpush1.msra.mxu0 0.0
  %455 = vmatprep.subr.mxu0 0.0
  %456 = vmatpush1.msra.mxu0 0.0
  %457 = vmatprep.subr.mxu0 0.0
  %458 = vmatpush1.msra.mxu0 0.0
  %459 = vmatprep.subr.mxu0 0.0
  %460 = vmatpush1.msra.mxu0 0.0
  %461 = vmatprep.subr.mxu0 0.0
  %462 = vmatpush1.msra.mxu0 0.0
  %463 = vmatprep.subr.mxu0 0.0
  %464 = vmatpush1.msra.mxu0 0.0
  %465 = vmatprep.subr.mxu0 0.0
  %466 = vmatpush1.msra.mxu0 0.0
  %467 = vmatprep.subr.mxu0 0.0
  %468 = vmatpush1.msra.mxu0 0.0
  %469 = vmatprep.subr.mxu0 0.0
  %470 = vmatpush1.msra.mxu0 0.0
  %471 = vmatprep.subr.mxu0 0.0
  %472 = vmatpush1.msra.mxu0 0.0
  %473 = vmatprep.subr.mxu0 0.0
  %474 = vmatpush1.msra.mxu0 0.0
  %475 = vmatprep.mubr.f32.mxu0 0.0
  %476 = vmatmul.mubr.f32.gmra.mrb[0].mxu0 %v409
  %v477 = vpop.f32.mrb[0].mxu0
  %v478 = vadd.f32 0.0, %v477
  %v479 = vpop.f32.mrb[0].mxu0
  %480 = vdwg.mxu0
  %v482 = vsel %vm115, %v405, 0
  %484 = vmatprep.subr.mxu0 0.0
  %485 = vmatpush1.msra.mxu0 %v35
  %486 = vmatprep.subr.mxu0 0.0
  %487 = vmatpush1.msra.mxu0 %v36
  %488 = vmatprep.subr.mxu0 0.0
  %489 = vmatpush1.msra.mxu0 0.0
  %490 = vmatprep.subr.mxu0 0.0
  %491 = vmatpush1.msra.mxu0 0.0
  %492 = vmatprep.subr.mxu0 0.0
  %493 = vmatpush1.msra.mxu0 0.0
  %494 = vmatprep.subr.mxu0 0.0
  %495 = vmatpush1.msra.mxu0 0.0
  %496 = vmatprep.subr.mxu0 0.0
  %497 = vmatpush1.msra.mxu0 0.0
  %498 = vmatprep.subr.mxu0 0.0
  %499 = vmatpush1.msra.mxu0 0.0
  %500 = vmatprep.subr.mxu0 0.0
  %501 = vmatpush1.msra.mxu0 0.0
  %502 = vmatprep.subr.mxu0 0.0
  %503 = vmatpush1.msra.mxu0 0.0
  %504 = vmatprep.subr.mxu0 0.0
  %505 = vmatpush1.msra.mxu0 0.0
  %506 = vmatprep.subr.mxu0 0.0
  %507 = vmatpush1.msra.mxu0 0.0
  %508 = vmatprep.subr.mxu0 0.0
  %509 = vmatpush1.msra.mxu0 0.0
  %510 = vmatprep.subr.mxu0 0.0
  %511 = vmatpush1.msra.mxu0 0.0
  %512 = vmatprep.subr.mxu0 0.0
  %513 = vmatpush1.msra.mxu0 0.0
  %514 = vmatprep.subr.mxu0 0.0
  %515 = vmatpush1.msra.mxu0 0.0
  %516 = vmatprep.subr.mxu0 0.0
  %517 = vmatpush1.msra.mxu0 0.0
  %518 = vmatprep.subr.mxu0 0.0
  %519 = vmatpush1.msra.mxu0 0.0
  %520 = vmatprep.subr.mxu0 0.0
  %521 = vmatpush1.msra.mxu0 0.0
  %522 = vmatprep.subr.mxu0 0.0
  %523 = vmatpush1.msra.mxu0 0.0
  %524 = vmatprep.subr.mxu0 0.0
  %525 = vmatpush1.msra.mxu0 0.0
  %526 = vmatprep.subr.mxu0 0.0
  %527 = vmatpush1.msra.mxu0 0.0
  %528 = vmatprep.subr.mxu0 0.0
  %529 = vmatpush1.msra.mxu0 0.0
  %530 = vmatprep.subr.mxu0 0.0
  %531 = vmatpush1.msra.mxu0 0.0
  %532 = vmatprep.subr.mxu0 0.0
  %533 = vmatpush1.msra.mxu0 0.0
  %534 = vmatprep.subr.mxu0 0.0
  %535 = vmatpush1.msra.mxu0 0.0
  %536 = vmatprep.subr.mxu0 0.0
  %537 = vmatpush1.msra.mxu0 0.0
  %538 = vmatprep.subr.mxu0 0.0
  %539 = vmatpush1.msra.mxu0 0.0
  %540 = vmatprep.subr.mxu0 0.0
  %541 = vmatpush1.msra.mxu0 0.0
  %542 = vmatprep.subr.mxu0 0.0
  %543 = vmatpush1.msra.mxu0 0.0
  %544 = vmatprep.subr.mxu0 0.0
  %545 = vmatpush1.msra.mxu0 0.0
  %546 = vmatprep.subr.mxu0 0.0
  %547 = vmatpush1.msra.mxu0 0.0
  %548 = vmatprep.mubr.f32.mxu0 0.0
  %549 = vmatmul.mubr.f32.gmra.mrb[0].mxu0 %v482
  %v550 = vpop.f32.mrb[0].mxu0
  %v551 = vadd.f32 %v478, %v550
  %v552 = vpop.f32.mrb[0].mxu0
  %553 = vdwg.mxu0
  %v554 = vadd.f32 %v551, %v194
  %v555 = vxor.u32 %v554, 2147483648
  %v556 = vmul.f32 %v555, 1.442695
  %v557 = vpow.pop %v556
  %v558 = vadd.f32 %v557, 1.0
  %v559 = vrcp.pop %v558
  %v560 = vmul.f32 1.0, %v559
  %v561 = vtanh.pop %v554
  %v562 = vmul.f32 %v560, %v214
  %564 = vrot.lane.b32.xlu0 %v561, 64
  %v565 = vpop.permute.xlu0 %564
  %v567 = vmul.f32 %v560, %v565
  %569 = vrot.lane.b32.xlu0 %v567, 32
  %v570 = vpop.permute.xlu0 %569
  %v572 = vadd.f32 %v562, %v570
  %v573 = vtanh.pop %v572
  %575 = vrot.lane.b32.xlu0 %v573, 64
  %v576 = vpop.permute.xlu0 %575
  %v578 = vmul.f32 %v560, %v576
  %s579 = scalar_lea.vmem %s0, 12
  %v580 = vld [vmem:[%s579] sm:$0x3]
  %582 = vrot.lane.b32.xlu0 %v403, 32
  %v583 = vpop.permute.xlu0 %582
  %v584 = vsel %vm41, %v583, 0
  %586 = vmatprep.subr.mxu0 0.0
  %587 = vmatpush1.msra.mxu0 %v225
  %588 = vmatprep.subr.mxu0 0.0
  %589 = vmatpush1.msra.mxu0 %v226
  %590 = vmatprep.subr.mxu0 0.0
  %591 = vmatpush1.msra.mxu0 %v227
  %592 = vmatprep.subr.mxu0 0.0
  %593 = vmatpush1.msra.mxu0 %v228
  %594 = vmatprep.subr.mxu0 0.0
  %595 = vmatpush1.msra.mxu0 0.0
  %596 = vmatprep.subr.mxu0 0.0
  %597 = vmatpush1.msra.mxu0 0.0
  %598 = vmatprep.subr.mxu0 0.0
  %599 = vmatpush1.msra.mxu0 0.0
  %600 = vmatprep.subr.mxu0 0.0
  %601 = vmatpush1.msra.mxu0 0.0
  %602 = vmatprep.subr.mxu0 0.0
  %603 = vmatpush1.msra.mxu0 0.0
  %604 = vmatprep.subr.mxu0 0.0
  %605 = vmatpush1.msra.mxu0 0.0
  %606 = vmatprep.subr.mxu0 0.0
  %607 = vmatpush1.msra.mxu0 0.0
  %608 = vmatprep.subr.mxu0 0.0
  %609 = vmatpush1.msra.mxu0 0.0
  %610 = vmatprep.subr.mxu0 0.0
  %611 = vmatpush1.msra.mxu0 0.0
  %612 = vmatprep.subr.mxu0 0.0
  %613 = vmatpush1.msra.mxu0 0.0
  %614 = vmatprep.subr.mxu0 0.0
  %615 = vmatpush1.msra.mxu0 0.0
  %616 = vmatprep.subr.mxu0 0.0
  %617 = vmatpush1.msra.mxu0 0.0
  %618 = vmatprep.subr.mxu0 0.0
  %619 = vmatpush1.msra.mxu0 0.0
  %620 = vmatprep.subr.mxu0 0.0
  %621 = vmatpush1.msra.mxu0 0.0
  %622 = vmatprep.subr.mxu0 0.0
  %623 = vmatpush1.msra.mxu0 0.0
  %624 = vmatprep.subr.mxu0 0.0
  %625 = vmatpush1.msra.mxu0 0.0
  %626 = vmatprep.subr.mxu0 0.0
  %627 = vmatpush1.msra.mxu0 0.0
  %628 = vmatprep.subr.mxu0 0.0
  %629 = vmatpush1.msra.mxu0 0.0
  %630 = vmatprep.subr.mxu0 0.0
  %631 = vmatpush1.msra.mxu0 0.0
  %632 = vmatprep.subr.mxu0 0.0
  %633 = vmatpush1.msra.mxu0 0.0
  %634 = vmatprep.subr.mxu0 0.0
  %635 = vmatpush1.msra.mxu0 0.0
  %636 = vmatprep.subr.mxu0 0.0
  %637 = vmatpush1.msra.mxu0 0.0
  %638 = vmatprep.subr.mxu0 0.0
  %639 = vmatpush1.msra.mxu0 0.0
  %640 = vmatprep.subr.mxu0 0.0
  %641 = vmatpush1.msra.mxu0 0.0
  %642 = vmatprep.subr.mxu0 0.0
  %643 = vmatpush1.msra.mxu0 0.0
  %644 = vmatprep.subr.mxu0 0.0
  %645 = vmatpush1.msra.mxu0 0.0
  %646 = vmatprep.subr.mxu0 0.0
  %647 = vmatpush1.msra.mxu0 0.0
  %648 = vmatprep.subr.mxu0 0.0
  %649 = vmatpush1.msra.mxu0 0.0
  %650 = vmatprep.mubr.f32.mxu0 0.0
  %651 = vmatmul.mubr.f32.gmra.mrb[0].mxu0 %v584
  %v652 = vpop.f32.mrb[0].mxu0
  %v653 = vadd.f32 0.0, %v652
  %v654 = vpop.f32.mrb[0].mxu0
  %655 = vdwg.mxu0
  %v657 = vsel %vm115, %v580, 0
  %659 = vmatprep.subr.mxu0 0.0
  %660 = vmatpush1.msra.mxu0 %v223
  %661 = vmatprep.subr.mxu0 0.0
  %662 = vmatpush1.msra.mxu0 %v224
  %663 = vmatprep.subr.mxu0 0.0
  %664 = vmatpush1.msra.mxu0 0.0
  %665 = vmatprep.subr.mxu0 0.0
  %666 = vmatpush1.msra.mxu0 0.0
  %667 = vmatprep.subr.mxu0 0.0
  %668 = vmatpush1.msra.mxu0 0.0
  %669 = vmatprep.subr.mxu0 0.0
  %670 = vmatpush1.msra.mxu0 0.0
  %671 = vmatprep.subr.mxu0 0.0
  %672 = vmatpush1.msra.mxu0 0.0
  %673 = vmatprep.subr.mxu0 0.0
  %674 = vmatpush1.msra.mxu0 0.0
  %675 = vmatprep.subr.mxu0 0.0
  %676 = vmatpush1.msra.mxu0 0.0
  %677 = vmatprep.subr.mxu0 0.0
  %678 = vmatpush1.msra.mxu0 0.0
  %679 = vmatprep.subr.mxu0 0.0
  %680 = vmatpush1.msra.mxu0 0.0
  %681 = vmatprep.subr.mxu0 0.0
  %682 = vmatpush1.msra.mxu0 0.0
  %683 = vmatprep.subr.mxu0 0.0
  %684 = vmatpush1.msra.mxu0 0.0
  %685 = vmatprep.subr.mxu0 0.0
  %686 = vmatpush1.msra.mxu0 0.0
  %687 = vmatprep.subr.mxu0 0.0
  %688 = vmatpush1.msra.mxu0 0.0
  %689 = vmatprep.subr.mxu0 0.0
  %690 = vmatpush1.msra.mxu0 0.0
  %691 = vmatprep.subr.mxu0 0.0
  %692 = vmatpush1.msra.mxu0 0.0
  %693 = vmatprep.subr.mxu0 0.0
  %694 = vmatpush1.msra.mxu0 0.0
  %695 = vmatprep.subr.mxu0 0.0
  %696 = vmatpush1.msra.mxu0 0.0
  %697 = vmatprep.subr.mxu0 0.0
  %698 = vmatpush1.msra.mxu0 0.0
  %699 = vmatprep.subr.mxu0 0.0
  %700 = vmatpush1.msra.mxu0 0.0
  %701 = vmatprep.subr.mxu0 0.0
  %702 = vmatpush1.msra.mxu0 0.0
  %703 = vmatprep.subr.mxu0 0.0
  %704 = vmatpush1.msra.mxu0 0.0
  %705 = vmatprep.subr.mxu0 0.0
  %706 = vmatpush1.msra.mxu0 0.0
  %707 = vmatprep.subr.mxu0 0.0
  %708 = vmatpush1.msra.mxu0 0.0
  %709 = vmatprep.subr.mxu0 0.0
  %710 = vmatpush1.msra.mxu0 0.0
  %711 = vmatprep.subr.mxu0 0.0
  %712 = vmatpush1.msra.mxu0 0.0
  %713 = vmatprep.subr.mxu0 0.0
  %714 = vmatpush1.msra.mxu0 0.0
  %715 = vmatprep.subr.mxu0 0.0
  %716 = vmatpush1.msra.mxu0 0.0
  %717 = vmatprep.subr.mxu0 0.0
  %718 = vmatpush1.msra.mxu0 0.0
  %719 = vmatprep.subr.mxu0 0.0
  %720 = vmatpush1.msra.mxu0 0.0
  %721 = vmatprep.subr.mxu0 0.0
  %722 = vmatpush1.msra.mxu0 0.0
  %723 = vmatprep.mubr.f32.mxu0 0.0
  %724 = vmatmul.mubr.f32.gmra.mrb[0].mxu0 %v657
  %v725 = vpop.f32.mrb[0].mxu0
  %v726 = vadd.f32 %v653, %v725
  %v727 = vpop.f32.mrb[0].mxu0
  %728 = vdwg.mxu0
  %v729 = vadd.f32 %v726, %v377
  %v730 = vxor.u32 %v729, 2147483648
  %v731 = vmul.f32 %v730, 1.442695
  %v732 = vpow.pop %v731
  %v733 = vadd.f32 %v732, 1.0
  %v734 = vrcp.pop %v733
  %v735 = vmul.f32 1.0, %v734
  %v736 = vtanh.pop %v729
  %v737 = vmul.f32 %v735, %v397
  %739 = vrot.lane.b32.xlu0 %v736, 64
  %v740 = vpop.permute.xlu0 %739
  %v742 = vmul.f32 %v735, %v740
  %744 = vrot.lane.b32.xlu0 %v742, 32
  %v745 = vpop.permute.xlu0 %744
  %v747 = vadd.f32 %v737, %v745
  %v748 = vtanh.pop %v747
  %750 = vrot.lane.b32.xlu0 %v748, 64
  %v751 = vpop.permute.xlu0 %750
  %v753 = vmul.f32 %v735, %v751
  %s754 = scalar_lea.vmem %s0, 4
  %v755 = vld [vmem:[%s754] sm:$0x3]
  %757 = vrot.lane.b32.xlu0 %v578, 32
  %v758 = vpop.permute.xlu0 %757
  %v759 = vsel %vm41, %v758, 0
  %761 = vmatprep.subr.mxu0 0.0
  %762 = vmatpush1.msra.mxu0 %v37
  %763 = vmatprep.subr.mxu0 0.0
  %764 = vmatpush1.msra.mxu0 %v38
  %765 = vmatprep.subr.mxu0 0.0
  %766 = vmatpush1.msra.mxu0 %v39
  %767 = vmatprep.subr.mxu0 0.0
  %768 = vmatpush1.msra.mxu0 %v40
  %769 = vmatprep.subr.mxu0 0.0
  %770 = vmatpush1.msra.mxu0 0.0
  %771 = vmatprep.subr.mxu0 0.0
  %772 = vmatpush1.msra.mxu0 0.0
  %773 = vmatprep.subr.mxu0 0.0
  %774 = vmatpush1.msra.mxu0 0.0
  %775 = vmatprep.subr.mxu0 0.0
  %776 = vmatpush1.msra.mxu0 0.0
  %777 = vmatprep.subr.mxu0 0.0
  %778 = vmatpush1.msra.mxu0 0.0
  %779 = vmatprep.subr.mxu0 0.0
  %780 = vmatpush1.msra.mxu0 0.0
  %781 = vmatprep.subr.mxu0 0.0
  %782 = vmatpush1.msra.mxu0 0.0
  %783 = vmatprep.subr.mxu0 0.0
  %784 = vmatpush1.msra.mxu0 0.0
  %785 = vmatprep.subr.mxu0 0.0
  %786 = vmatpush1.msra.mxu0 0.0
  %787 = vmatprep.subr.mxu0 0.0
  %788 = vmatpush1.msra.mxu0 0.0
  %789 = vmatprep.subr.mxu0 0.0
  %790 = vmatpush1.msra.mxu0 0.0
  %791 = vmatprep.subr.mxu0 0.0
  %792 = vmatpush1.msra.mxu0 0.0
  %793 = vmatprep.subr.mxu0 0.0
  %794 = vmatpush1.msra.mxu0 0.0
  %795 = vmatprep.subr.mxu0 0.0
  %796 = vmatpush1.msra.mxu0 0.0
  %797 = vmatprep.subr.mxu0 0.0
  %798 = vmatpush1.msra.mxu0 0.0
  %799 = vmatprep.subr.mxu0 0.0
  %800 = vmatpush1.msra.mxu0 0.0
  %801 = vmatprep.subr.mxu0 0.0
  %802 = vmatpush1.msra.mxu0 0.0
  %803 = vmatprep.subr.mxu0 0.0
  %804 = vmatpush1.msra.mxu0 0.0
  %805 = vmatprep.subr.mxu0 0.0
  %806 = vmatpush1.msra.mxu0 0.0
  %807 = vmatprep.subr.mxu0 0.0
  %808 = vmatpush1.msra.mxu0 0.0
  %809 = vmatprep.subr.mxu0 0.0
  %810 = vmatpush1.msra.mxu0 0.0
  %811 = vmatprep.subr.mxu0 0.0
  %812 = vmatpush1.msra.mxu0 0.0
  %813 = vmatprep.subr.mxu0 0.0
  %814 = vmatpush1.msra.mxu0 0.0
  %815 = vmatprep.subr.mxu0 0.0
  %816 = vmatpush1.msra.mxu0 0.0
  %817 = vmatprep.subr.mxu0 0.0
  %818 = vmatpush1.msra.mxu0 0.0
  %819 = vmatprep.subr.mxu0 0.0
  %820 = vmatpush1.msra.mxu0 0.0
  %821 = vmatprep.subr.mxu0 0.0
  %822 = vmatpush1.msra.mxu0 0.0
  %823 = vmatprep.subr.mxu0 0.0
  %824 = vmatpush1.msra.mxu0 0.0
  %825 = vmatprep.mubr.f32.mxu0 0.0
  %826 = vmatmul.mubr.f32.gmra.mrb[0].mxu0 %v759
  %v827 = vpop.f32.mrb[0].mxu0
  %v828 = vadd.f32 0.0, %v827
  %v829 = vpop.f32.mrb[0].mxu0
  %830 = vdwg.mxu0
  %v832 = vsel %vm115, %v755, 0
  %834 = vmatprep.subr.mxu0 0.0
  %835 = vmatpush1.msra.mxu0 %v35
  %836 = vmatprep.subr.mxu0 0.0
  %837 = vmatpush1.msra.mxu0 %v36
  %838 = vmatprep.subr.mxu0 0.0
  %839 = vmatpush1.msra.mxu0 0.0
  %840 = vmatprep.subr.mxu0 0.0
  %841 = vmatpush1.msra.mxu0 0.0
  %842 = vmatprep.subr.mxu0 0.0
  %843 = vmatpush1.msra.mxu0 0.0
  %844 = vmatprep.subr.mxu0 0.0
  %845 = vmatpush1.msra.mxu0 0.0
  %846 = vmatprep.subr.mxu0 0.0
  %847 = vmatpush1.msra.mxu0 0.0
  %848 = vmatprep.subr.mxu0 0.0
  %849 = vmatpush1.msra.mxu0 0.0
  %850 = vmatprep.subr.mxu0 0.0
  %851 = vmatpush1.msra.mxu0 0.0
  %852 = vmatprep.subr.mxu0 0.0
  %853 = vmatpush1.msra.mxu0 0.0
  %854 = vmatprep.subr.mxu0 0.0
  %855 = vmatpush1.msra.mxu0 0.0
  %856 = vmatprep.subr.mxu0 0.0
  %857 = vmatpush1.msra.mxu0 0.0
  %858 = vmatprep.subr.mxu0 0.0
  %859 = vmatpush1.msra.mxu0 0.0
  %860 = vmatprep.subr.mxu0 0.0
  %861 = vmatpush1.msra.mxu0 0.0
  %862 = vmatprep.subr.mxu0 0.0
  %863 = vmatpush1.msra.mxu0 0.0
  %864 = vmatprep.subr.mxu0 0.0
  %865 = vmatpush1.msra.mxu0 0.0
  %866 = vmatprep.subr.mxu0 0.0
  %867 = vmatpush1.msra.mxu0 0.0
  %868 = vmatprep.subr.mxu0 0.0
  %869 = vmatpush1.msra.mxu0 0.0
  %870 = vmatprep.subr.mxu0 0.0
  %871 = vmatpush1.msra.mxu0 0.0
  %872 = vmatprep.subr.mxu0 0.0
  %873 = vmatpush1.msra.mxu0 0.0
  %874 = vmatprep.subr.mxu0 0.0
  %875 = vmatpush1.msra.mxu0 0.0
  %876 = vmatprep.subr.mxu0 0.0
  %877 = vmatpush1.msra.mxu0 0.0
  %878 = vmatprep.subr.mxu0 0.0
  %879 = vmatpush1.msra.mxu0 0.0
  %880 = vmatprep.subr.mxu0 0.0
  %881 = vmatpush1.msra.mxu0 0.0
  %882 = vmatprep.subr.mxu0 0.0
  %883 = vmatpush1.msra.mxu0 0.0
  %884 = vmatprep.subr.mxu0 0.0
  %885 = vmatpush1.msra.mxu0 0.0
  %886 = vmatprep.subr.mxu0 0.0
  %887 = vmatpush1.msra.mxu0 0.0
  %888 = vmatprep.subr.mxu0 0.0
  %889 = vmatpush1.msra.mxu0 0.0
  %890 = vmatprep.subr.mxu0 0.0
  %891 = vmatpush1.msra.mxu0 0.0
  %892 = vmatprep.subr.mxu0 0.0
  %893 = vmatpush1.msra.mxu0 0.0
  %894 = vmatprep.subr.mxu0 0.0
  %895 = vmatpush1.msra.mxu0 0.0
  %896 = vmatprep.subr.mxu0 0.0
  %897 = vmatpush1.msra.mxu0 0.0
  %898 = vmatprep.mubr.f32.mxu0 0.0
  %899 = vmatmul.mubr.f32.gmra.mrb[0].mxu0 %v832
  %v900 = vpop.f32.mrb[0].mxu0
  %v901 = vadd.f32 %v828, %v900
  %v902 = vpop.f32.mrb[0].mxu0
  %903 = vdwg.mxu0
  %v904 = vadd.f32 %v901, %v194
  %v905 = vxor.u32 %v904, 2147483648
  %v906 = vmul.f32 %v905, 1.442695
  %v907 = vpow.pop %v906
  %v908 = vadd.f32 %v907, 1.0
  %v909 = vrcp.pop %v908
  %v910 = vmul.f32 1.0, %v909
  %v911 = vtanh.pop %v904
  %v912 = vmul.f32 %v910, %v572
  %914 = vrot.lane.b32.xlu0 %v911, 64
  %v915 = vpop.permute.xlu0 %914
  %v917 = vmul.f32 %v910, %v915
  %919 = vrot.lane.b32.xlu0 %v917, 32
  %v920 = vpop.permute.xlu0 %919
  %v922 = vadd.f32 %v912, %v920
  %v923 = vtanh.pop %v922
  %925 = vrot.lane.b32.xlu0 %v923, 64
  %v926 = vpop.permute.xlu0 %925
  %v928 = vmul.f32 %v910, %v926
  %s929 = scalar_lea.vmem %s0, 10
  %v930 = vld [vmem:[%s929] sm:$0x3]
  %932 = vrot.lane.b32.xlu0 %v753, 32
  %v933 = vpop.permute.xlu0 %932
  %v934 = vsel %vm41, %v933, 0
  %936 = vmatprep.subr.mxu0 0.0
  %937 = vmatpush1.msra.mxu0 %v225
  %938 = vmatprep.subr.mxu0 0.0
  %939 = vmatpush1.msra.mxu0 %v226
  %940 = vmatprep.subr.mxu0 0.0
  %941 = vmatpush1.msra.mxu0 %v227
  %942 = vmatprep.subr.mxu0 0.0
  %943 = vmatpush1.msra.mxu0 %v228
  %944 = vmatprep.subr.mxu0 0.0
  %945 = vmatpush1.msra.mxu0 0.0
  %946 = vmatprep.subr.mxu0 0.0
  %947 = vmatpush1.msra.mxu0 0.0
  %948 = vmatprep.subr.mxu0 0.0
  %949 = vmatpush1.msra.mxu0 0.0
  %950 = vmatprep.subr.mxu0 0.0
  %951 = vmatpush1.msra.mxu0 0.0
  %952 = vmatprep.subr.mxu0 0.0
  %953 = vmatpush1.msra.mxu0 0.0
  %954 = vmatprep.subr.mxu0 0.0
  %955 = vmatpush1.msra.mxu0 0.0
  %956 = vmatprep.subr.mxu0 0.0
  %957 = vmatpush1.msra.mxu0 0.0
  %958 = vmatprep.subr.mxu0 0.0
  %959 = vmatpush1.msra.mxu0 0.0
  %960 = vmatprep.subr.mxu0 0.0
  %961 = vmatpush1.msra.mxu0 0.0
  %962 = vmatprep.subr.mxu0 0.0
  %963 = vmatpush1.msra.mxu0 0.0
  %964 = vmatprep.subr.mxu0 0.0
  %965 = vmatpush1.msra.mxu0 0.0
  %966 = vmatprep.subr.mxu0 0.0
  %967 = vmatpush1.msra.mxu0 0.0
  %968 = vmatprep.subr.mxu0 0.0
  %969 = vmatpush1.msra.mxu0 0.0
  %970 = vmatprep.subr.mxu0 0.0
  %971 = vmatpush1.msra.mxu0 0.0
  %972 = vmatprep.subr.mxu0 0.0
  %973 = vmatpush1.msra.mxu0 0.0
  %974 = vmatprep.subr.mxu0 0.0
  %975 = vmatpush1.msra.mxu0 0.0
  %976 = vmatprep.subr.mxu0 0.0
  %977 = vmatpush1.msra.mxu0 0.0
  %978 = vmatprep.subr.mxu0 0.0
  %979 = vmatpush1.msra.mxu0 0.0
  %980 = vmatprep.subr.mxu0 0.0
  %981 = vmatpush1.msra.mxu0 0.0
  %982 = vmatprep.subr.mxu0 0.0
  %983 = vmatpush1.msra.mxu0 0.0
  %984 = vmatprep.subr.mxu0 0.0
  %985 = vmatpush1.msra.mxu0 0.0
  %986 = vmatprep.subr.mxu0 0.0
  %987 = vmatpush1.msra.mxu0 0.0
  %988 = vmatprep.subr.mxu0 0.0
  %989 = vmatpush1.msra.mxu0 0.0
  %990 = vmatprep.subr.mxu0 0.0
  %991 = vmatpush1.msra.mxu0 0.0
  %992 = vmatprep.subr.mxu0 0.0
  %993 = vmatpush1.msra.mxu0 0.0
  %994 = vmatprep.subr.mxu0 0.0
  %995 = vmatpush1.msra.mxu0 0.0
  %996 = vmatprep.subr.mxu0 0.0
  %997 = vmatpush1.msra.mxu0 0.0
  %998 = vmatprep.subr.mxu0 0.0
  %999 = vmatpush1.msra.mxu0 0.0
  %1000 = vmatprep.mubr.f32.mxu0 0.0
  %1001 = vmatmul.mubr.f32.gmra.mrb[0].mxu0 %v934
  %v1002 = vpop.f32.mrb[0].mxu0
  %v1003 = vadd.f32 0.0, %v1002
  %v1004 = vpop.f32.mrb[0].mxu0
  %1005 = vdwg.mxu0
  %v1007 = vsel %vm115, %v930, 0
  %1009 = vmatprep.subr.mxu0 0.0
  %1010 = vmatpush1.msra.mxu0 %v223
  %1011 = vmatprep.subr.mxu0 0.0
  %1012 = vmatpush1.msra.mxu0 %v224
  %1013 = vmatprep.subr.mxu0 0.0
  %1014 = vmatpush1.msra.mxu0 0.0
  %1015 = vmatprep.subr.mxu0 0.0
  %1016 = vmatpush1.msra.mxu0 0.0
  %1017 = vmatprep.subr.mxu0 0.0
  %1018 = vmatpush1.msra.mxu0 0.0
  %1019 = vmatprep.subr.mxu0 0.0
  %1020 = vmatpush1.msra.mxu0 0.0
  %1021 = vmatprep.subr.mxu0 0.0
  %1022 = vmatpush1.msra.mxu0 0.0
  %1023 = vmatprep.subr.mxu0 0.0
  %1024 = vmatpush1.msra.mxu0 0.0
  %1025 = vmatprep.subr.mxu0 0.0
  %1026 = vmatpush1.msra.mxu0 0.0
  %1027 = vmatprep.subr.mxu0 0.0
  %1028 = vmatpush1.msra.mxu0 0.0
  %1029 = vmatprep.subr.mxu0 0.0
  %1030 = vmatpush1.msra.mxu0 0.0
  %1031 = vmatprep.subr.mxu0 0.0
  %1032 = vmatpush1.msra.mxu0 0.0
  %1033 = vmatprep.subr.mxu0 0.0
  %1034 = vmatpush1.msra.mxu0 0.0
  %1035 = vmatprep.subr.mxu0 0.0
  %1036 = vmatpush1.msra.mxu0 0.0
  %1037 = vmatprep.subr.mxu0 0.0
  %1038 = vmatpush1.msra.mxu0 0.0
  %1039 = vmatprep.subr.mxu0 0.0
  %1040 = vmatpush1.msra.mxu0 0.0
  %1041 = vmatprep.subr.mxu0 0.0
  %1042 = vmatpush1.msra.mxu0 0.0
  %1043 = vmatprep.subr.mxu0 0.0
  %1044 = vmatpush1.msra.mxu0 0.0
  %1045 = vmatprep.subr.mxu0 0.0
  %1046 = vmatpush1.msra.mxu0 0.0
  %1047 = vmatprep.subr.mxu0 0.0
  %1048 = vmatpush1.msra.mxu0 0.0
  %1049 = vmatprep.subr.mxu0 0.0
  %1050 = vmatpush1.msra.mxu0 0.0
  %1051 = vmatprep.subr.mxu0 0.0
  %1052 = vmatpush1.msra.mxu0 0.0
  %1053 = vmatprep.subr.mxu0 0.0
  %1054 = vmatpush1.msra.mxu0 0.0
  %1055 = vmatprep.subr.mxu0 0.0
  %1056 = vmatpush1.msra.mxu0 0.0
  %1057 = vmatprep.subr.mxu0 0.0
  %1058 = vmatpush1.msra.mxu0 0.0
  %1059 = vmatprep.subr.mxu0 0.0
  %1060 = vmatpush1.msra.mxu0 0.0
  %1061 = vmatprep.subr.mxu0 0.0
  %1062 = vmatpush1.msra.mxu0 0.0
  %1063 = vmatprep.subr.mxu0 0.0
  %1064 = vmatpush1.msra.mxu0 0.0
  %1065 = vmatprep.subr.mxu0 0.0
  %1066 = vmatpush1.msra.mxu0 0.0
  %1067 = vmatprep.subr.mxu0 0.0
  %1068 = vmatpush1.msra.mxu0 0.0
  %1069 = vmatprep.subr.mxu0 0.0
  %1070 = vmatpush1.msra.mxu0 0.0
  %1071 = vmatprep.subr.mxu0 0.0
  %1072 = vmatpush1.msra.mxu0 0.0
  %1073 = vmatprep.mubr.f32.mxu0 0.0
  %1074 = vmatmul.mubr.f32.gmra.mrb[0].mxu0 %v1007
  %v1075 = vpop.f32.mrb[0].mxu0
  %v1076 = vadd.f32 %v1003, %v1075
  %v1077 = vpop.f32.mrb[0].mxu0
  %1078 = vdwg.mxu0
  %v1079 = vadd.f32 %v1076, %v377
  %v1080 = vxor.u32 %v1079, 2147483648
  %v1081 = vmul.f32 %v1080, 1.442695
  %v1082 = vpow.pop %v1081
  %v1083 = vadd.f32 %v1082, 1.0
  %v1084 = vrcp.pop %v1083
  %v1085 = vmul.f32 1.0, %v1084
  %v1086 = vtanh.pop %v1079
  %v1087 = vmul.f32 %v1085, %v747
  %1089 = vrot.lane.b32.xlu0 %v1086, 64
  %v1090 = vpop.permute.xlu0 %1089
  %v1092 = vmul.f32 %v1085, %v1090
  %1094 = vrot.lane.b32.xlu0 %v1092, 32
  %v1095 = vpop.permute.xlu0 %1094
  %v1097 = vadd.f32 %v1087, %v1095
  %v1098 = vtanh.pop %v1097
  %1100 = vrot.lane.b32.xlu0 %v1098, 64
  %v1101 = vpop.permute.xlu0 %1100
  %v1103 = vmul.f32 %v1085, %v1101
  %s1104 = scalar_lea.vmem %s0, 6
  %v1105 = vld [vmem:[%s1104] sm:$0x3]
  %1107 = vrot.lane.b32.xlu0 %v928, 32
  %v1108 = vpop.permute.xlu0 %1107
  %v1109 = vsel %vm41, %v1108, 0
  %1111 = vmatprep.subr.mxu0 0.0
  %1112 = vmatpush1.msra.mxu0 %v37
  %1113 = vmatprep.subr.mxu0 0.0
  %1114 = vmatpush1.msra.mxu0 %v38
  %1115 = vmatprep.subr.mxu0 0.0
  %1116 = vmatpush1.msra.mxu0 %v39
  %1117 = vmatprep.subr.mxu0 0.0
  %1118 = vmatpush1.msra.mxu0 %v40
  %1119 = vmatprep.subr.mxu0 0.0
  %1120 = vmatpush1.msra.mxu0 0.0
  %1121 = vmatprep.subr.mxu0 0.0
  %1122 = vmatpush1.msra.mxu0 0.0
  %1123 = vmatprep.subr.mxu0 0.0
  %1124 = vmatpush1.msra.mxu0 0.0
  %1125 = vmatprep.subr.mxu0 0.0
  %1126 = vmatpush1.msra.mxu0 0.0
  %1127 = vmatprep.subr.mxu0 0.0
  %1128 = vmatpush1.msra.mxu0 0.0
  %1129 = vmatprep.subr.mxu0 0.0
  %1130 = vmatpush1.msra.mxu0 0.0
  %1131 = vmatprep.subr.mxu0 0.0
  %1132 = vmatpush1.msra.mxu0 0.0
  %1133 = vmatprep.subr.mxu0 0.0
  %1134 = vmatpush1.msra.mxu0 0.0
  %1135 = vmatprep.subr.mxu0 0.0
  %1136 = vmatpush1.msra.mxu0 0.0
  %1137 = vmatprep.subr.mxu0 0.0
  %1138 = vmatpush1.msra.mxu0 0.0
  %1139 = vmatprep.subr.mxu0 0.0
  %1140 = vmatpush1.msra.mxu0 0.0
  %1141 = vmatprep.subr.mxu0 0.0
  %1142 = vmatpush1.msra.mxu0 0.0
  %1143 = vmatprep.subr.mxu0 0.0
  %1144 = vmatpush1.msra.mxu0 0.0
  %1145 = vmatprep.subr.mxu0 0.0
  %1146 = vmatpush1.msra.mxu0 0.0
  %1147 = vmatprep.subr.mxu0 0.0
  %1148 = vmatpush1.msra.mxu0 0.0
  %1149 = vmatprep.subr.mxu0 0.0
  %1150 = vmatpush1.msra.mxu0 0.0
  %1151 = vmatprep.subr.mxu0 0.0
  %1152 = vmatpush1.msra.mxu0 0.0
  %1153 = vmatprep.subr.mxu0 0.0
  %1154 = vmatpush1.msra.mxu0 0.0
  %1155 = vmatprep.subr.mxu0 0.0
  %1156 = vmatpush1.msra.mxu0 0.0
  %1157 = vmatprep.subr.mxu0 0.0
  %1158 = vmatpush1.msra.mxu0 0.0
  %1159 = vmatprep.subr.mxu0 0.0
  %1160 = vmatpush1.msra.mxu0 0.0
  %1161 = vmatprep.subr.mxu0 0.0
  %1162 = vmatpush1.msra.mxu0 0.0
  %1163 = vmatprep.subr.mxu0 0.0
  %1164 = vmatpush1.msra.mxu0 0.0
  %1165 = vmatprep.subr.mxu0 0.0
  %1166 = vmatpush1.msra.mxu0 0.0
  %1167 = vmatprep.subr.mxu0 0.0
  %1168 = vmatpush1.msra.mxu0 0.0
  %1169 = vmatprep.subr.mxu0 0.0
  %1170 = vmatpush1.msra.mxu0 0.0
  %1171 = vmatprep.subr.mxu0 0.0
  %1172 = vmatpush1.msra.mxu0 0.0
  %1173 = vmatprep.subr.mxu0 0.0
  %1174 = vmatpush1.msra.mxu0 0.0
  %1175 = vmatprep.mubr.f32.mxu0 0.0
  %1176 = vmatmul.mubr.f32.gmra.mrb[0].mxu0 %v1109
  %v1177 = vpop.f32.mrb[0].mxu0
  %v1178 = vadd.f32 0.0, %v1177
  %v1179 = vpop.f32.mrb[0].mxu0
  %1180 = vdwg.mxu0
  %v1182 = vsel %vm115, %v1105, 0
  %1184 = vmatprep.subr.mxu0 0.0
  %1185 = vmatpush1.msra.mxu0 %v35
  %1186 = vmatprep.subr.mxu0 0.0
  %1187 = vmatpush1.msra.mxu0 %v36
  %1188 = vmatprep.subr.mxu0 0.0
  %1189 = vmatpush1.msra.mxu0 0.0
  %1190 = vmatprep.subr.mxu0 0.0
  %1191 = vmatpush1.msra.mxu0 0.0
  %1192 = vmatprep.subr.mxu0 0.0
  %1193 = vmatpush1.msra.mxu0 0.0
  %1194 = vmatprep.subr.mxu0 0.0
  %1195 = vmatpush1.msra.mxu0 0.0
  %1196 = vmatprep.subr.mxu0 0.0
  %1197 = vmatpush1.msra.mxu0 0.0
  %1198 = vmatprep.subr.mxu0 0.0
  %1199 = vmatpush1.msra.mxu0 0.0
  %1200 = vmatprep.subr.mxu0 0.0
  %1201 = vmatpush1.msra.mxu0 0.0
  %1202 = vmatprep.subr.mxu0 0.0
  %1203 = vmatpush1.msra.mxu0 0.0
  %1204 = vmatprep.subr.mxu0 0.0
  %1205 = vmatpush1.msra.mxu0 0.0
  %1206 = vmatprep.subr.mxu0 0.0
  %1207 = vmatpush1.msra.mxu0 0.0
  %1208 = vmatprep.subr.mxu0 0.0
  %1209 = vmatpush1.msra.mxu0 0.0
  %1210 = vmatprep.subr.mxu0 0.0
  %1211 = vmatpush1.msra.mxu0 0.0
  %1212 = vmatprep.subr.mxu0 0.0
  %1213 = vmatpush1.msra.mxu0 0.0
  %1214 = vmatprep.subr.mxu0 0.0
  %1215 = vmatpush1.msra.mxu0 0.0
  %1216 = vmatprep.subr.mxu0 0.0
  %1217 = vmatpush1.msra.mxu0 0.0
  %1218 = vmatprep.subr.mxu0 0.0
  %1219 = vmatpush1.msra.mxu0 0.0
  %1220 = vmatprep.subr.mxu0 0.0
  %1221 = vmatpush1.msra.mxu0 0.0
  %1222 = vmatprep.subr.mxu0 0.0
  %1223 = vmatpush1.msra.mxu0 0.0
  %1224 = vmatprep.subr.mxu0 0.0
  %1225 = vmatpush1.msra.mxu0 0.0
  %1226 = vmatprep.subr.mxu0 0.0
  %1227 = vmatpush1.msra.mxu0 0.0
  %1228 = vmatprep.subr.mxu0 0.0
  %1229 = vmatpush1.msra.mxu0 0.0
  %1230 = vmatprep.subr.mxu0 0.0
  %1231 = vmatpush1.msra.mxu0 0.0
  %1232 = vmatprep.subr.mxu0 0.0
  %1233 = vmatpush1.msra.mxu0 0.0
  %1234 = vmatprep.subr.mxu0 0.0
  %1235 = vmatpush1.msra.mxu0 0.0
  %1236 = vmatprep.subr.mxu0 0.0
  %1237 = vmatpush1.msra.mxu0 0.0
  %1238 = vmatprep.subr.mxu0 0.0
  %1239 = vmatpush1.msra.mxu0 0.0
  %1240 = vmatprep.subr.mxu0 0.0
  %1241 = vmatpush1.msra.mxu0 0.0
  %1242 = vmatprep.subr.mxu0 0.0
  %1243 = vmatpush1.msra.mxu0 0.0
  %1244 = vmatprep.subr.mxu0 0.0
  %1245 = vmatpush1.msra.mxu0 0.0
  %1246 = vmatprep.subr.mxu0 0.0
  %1247 = vmatpush1.msra.mxu0 0.0
  %1248 = vmatprep.mubr.f32.mxu0 0.0
  %1249 = vmatmul.mubr.f32.gmra.mrb[0].mxu0 %v1182
  %v1250 = vpop.f32.mrb[0].mxu0
  %v1251 = vadd.f32 %v1178, %v1250
  %v1252 = vpop.f32.mrb[0].mxu0
  %1253 = vdwg.mxu0
  %v1254 = vadd.f32 %v1251, %v194
  %v1255 = vxor.u32 %v1254, 2147483648
  %v1256 = vmul.f32 %v1255, 1.442695
  %v1257 = vpow.pop %v1256
  %v1258 = vadd.f32 %v1257, 1.0
  %v1259 = vrcp.pop %v1258
  %v1260 = vmul.f32 1.0, %v1259
  %v1261 = vtanh.pop %v1254
  %v1262 = vmul.f32 %v1260, %v922
  %1264 = vrot.lane.b32.xlu0 %v1261, 64
  %v1265 = vpop.permute.xlu0 %1264
  %v1267 = vmul.f32 %v1260, %v1265
  %1269 = vrot.lane.b32.xlu0 %v1267, 32
  %v1270 = vpop.permute.xlu0 %1269
  %v1272 = vadd.f32 %v1262, %v1270
  %v1273 = vtanh.pop %v1272
  %1275 = vrot.lane.b32.xlu0 %v1273, 64
  %v1276 = vpop.permute.xlu0 %1275
  %v1278 = vmul.f32 %v1260, %v1276
  %s1279 = scalar_lea.vmem %s0, 8
  %v1280 = vld [vmem:[%s1279] sm:$0x3]
  %1282 = vrot.lane.b32.xlu0 %v1103, 32
  %v1283 = vpop.permute.xlu0 %1282
  %v1284 = vsel %vm41, %v1283, 0
  %1286 = vmatprep.subr.mxu0 0.0
  %1287 = vmatpush1.msra.mxu0 %v225
  %1288 = vmatprep.subr.mxu0 0.0
  %1289 = vmatpush1.msra.mxu0 %v226
  %1290 = vmatprep.subr.mxu0 0.0
  %1291 = vmatpush1.msra.mxu0 %v227
  %1292 = vmatprep.subr.mxu0 0.0
  %1293 = vmatpush1.msra.mxu0 %v228
  %1294 = vmatprep.subr.mxu0 0.0
  %1295 = vmatpush1.msra.mxu0 0.0
  %1296 = vmatprep.subr.mxu0 0.0
  %1297 = vmatpush1.msra.mxu0 0.0
  %1298 = vmatprep.subr.mxu0 0.0
  %1299 = vmatpush1.msra.mxu0 0.0
  %1300 = vmatprep.subr.mxu0 0.0
  %1301 = vmatpush1.msra.mxu0 0.0
  %1302 = vmatprep.subr.mxu0 0.0
  %1303 = vmatpush1.msra.mxu0 0.0
  %1304 = vmatprep.subr.mxu0 0.0
  %1305 = vmatpush1.msra.mxu0 0.0
  %1306 = vmatprep.subr.mxu0 0.0
  %1307 = vmatpush1.msra.mxu0 0.0
  %1308 = vmatprep.subr.mxu0 0.0
  %1309 = vmatpush1.msra.mxu0 0.0
  %1310 = vmatprep.subr.mxu0 0.0
  %1311 = vmatpush1.msra.mxu0 0.0
  %1312 = vmatprep.subr.mxu0 0.0
  %1313 = vmatpush1.msra.mxu0 0.0
  %1314 = vmatprep.subr.mxu0 0.0
  %1315 = vmatpush1.msra.mxu0 0.0
  %1316 = vmatprep.subr.mxu0 0.0
  %1317 = vmatpush1.msra.mxu0 0.0
  %1318 = vmatprep.subr.mxu0 0.0
  %1319 = vmatpush1.msra.mxu0 0.0
  %1320 = vmatprep.subr.mxu0 0.0
  %1321 = vmatpush1.msra.mxu0 0.0
  %1322 = vmatprep.subr.mxu0 0.0
  %1323 = vmatpush1.msra.mxu0 0.0
  %1324 = vmatprep.subr.mxu0 0.0
  %1325 = vmatpush1.msra.mxu0 0.0
  %1326 = vmatprep.subr.mxu0 0.0
  %1327 = vmatpush1.msra.mxu0 0.0
  %1328 = vmatprep.subr.mxu0 0.0
  %1329 = vmatpush1.msra.mxu0 0.0
  %1330 = vmatprep.subr.mxu0 0.0
  %1331 = vmatpush1.msra.mxu0 0.0
  %1332 = vmatprep.subr.mxu0 0.0
  %1333 = vmatpush1.msra.mxu0 0.0
  %1334 = vmatprep.subr.mxu0 0.0
  %1335 = vmatpush1.msra.mxu0 0.0
  %1336 = vmatprep.subr.mxu0 0.0
  %1337 = vmatpush1.msra.mxu0 0.0
  %1338 = vmatprep.subr.mxu0 0.0
  %1339 = vmatpush1.msra.mxu0 0.0
  %1340 = vmatprep.subr.mxu0 0.0
  %1341 = vmatpush1.msra.mxu0 0.0
  %1342 = vmatprep.subr.mxu0 0.0
  %1343 = vmatpush1.msra.mxu0 0.0
  %1344 = vmatprep.subr.mxu0 0.0
  %1345 = vmatpush1.msra.mxu0 0.0
  %1346 = vmatprep.subr.mxu0 0.0
  %1347 = vmatpush1.msra.mxu0 0.0
  %1348 = vmatprep.subr.mxu0 0.0
  %1349 = vmatpush1.msra.mxu0 0.0
  %1350 = vmatprep.mubr.f32.mxu0 0.0
  %1351 = vmatmul.mubr.f32.gmra.mrb[0].mxu0 %v1284
  %v1352 = vpop.f32.mrb[0].mxu0
  %v1353 = vadd.f32 0.0, %v1352
  %v1354 = vpop.f32.mrb[0].mxu0
  %1355 = vdwg.mxu0
  %v1357 = vsel %vm115, %v1280, 0
  %1359 = vmatprep.subr.mxu0 0.0
  %1360 = vmatpush1.msra.mxu0 %v223
  %1361 = vmatprep.subr.mxu0 0.0
  %1362 = vmatpush1.msra.mxu0 %v224
  %1363 = vmatprep.subr.mxu0 0.0
  %1364 = vmatpush1.msra.mxu0 0.0
  %1365 = vmatprep.subr.mxu0 0.0
  %1366 = vmatpush1.msra.mxu0 0.0
  %1367 = vmatprep.subr.mxu0 0.0
  %1368 = vmatpush1.msra.mxu0 0.0
  %1369 = vmatprep.subr.mxu0 0.0
  %1370 = vmatpush1.msra.mxu0 0.0
  %1371 = vmatprep.subr.mxu0 0.0
  %1372 = vmatpush1.msra.mxu0 0.0
  %1373 = vmatprep.subr.mxu0 0.0
  %1374 = vmatpush1.msra.mxu0 0.0
  %1375 = vmatprep.subr.mxu0 0.0
  %1376 = vmatpush1.msra.mxu0 0.0
  %1377 = vmatprep.subr.mxu0 0.0
  %1378 = vmatpush1.msra.mxu0 0.0
  %1379 = vmatprep.subr.mxu0 0.0
  %1380 = vmatpush1.msra.mxu0 0.0
  %1381 = vmatprep.subr.mxu0 0.0
  %1382 = vmatpush1.msra.mxu0 0.0
  %1383 = vmatprep.subr.mxu0 0.0
  %1384 = vmatpush1.msra.mxu0 0.0
  %1385 = vmatprep.subr.mxu0 0.0
  %1386 = vmatpush1.msra.mxu0 0.0
  %1387 = vmatprep.subr.mxu0 0.0
  %1388 = vmatpush1.msra.mxu0 0.0
  %1389 = vmatprep.subr.mxu0 0.0
  %1390 = vmatpush1.msra.mxu0 0.0
  %1391 = vmatprep.subr.mxu0 0.0
  %1392 = vmatpush1.msra.mxu0 0.0
  %1393 = vmatprep.subr.mxu0 0.0
  %1394 = vmatpush1.msra.mxu0 0.0
  %1395 = vmatprep.subr.mxu0 0.0
  %1396 = vmatpush1.msra.mxu0 0.0
  %1397 = vmatprep.subr.mxu0 0.0
  %1398 = vmatpush1.msra.mxu0 0.0
  %1399 = vmatprep.subr.mxu0 0.0
  %1400 = vmatpush1.msra.mxu0 0.0
  %1401 = vmatprep.subr.mxu0 0.0
  %1402 = vmatpush1.msra.mxu0 0.0
  %1403 = vmatprep.subr.mxu0 0.0
  %1404 = vmatpush1.msra.mxu0 0.0
  %1405 = vmatprep.subr.mxu0 0.0
  %1406 = vmatpush1.msra.mxu0 0.0
  %1407 = vmatprep.subr.mxu0 0.0
  %1408 = vmatpush1.msra.mxu0 0.0
  %1409 = vmatprep.subr.mxu0 0.0
  %1410 = vmatpush1.msra.mxu0 0.0
  %1411 = vmatprep.subr.mxu0 0.0
  %1412 = vmatpush1.msra.mxu0 0.0
  %1413 = vmatprep.subr.mxu0 0.0
  %1414 = vmatpush1.msra.mxu0 0.0
  %1415 = vmatprep.subr.mxu0 0.0
  %1416 = vmatpush1.msra.mxu0 0.0
  %1417 = vmatprep.subr.mxu0 0.0
  %1418 = vmatpush1.msra.mxu0 0.0
  %1419 = vmatprep.subr.mxu0 0.0
  %1420 = vmatpush1.msra.mxu0 0.0
  %1421 = vmatprep.subr.mxu0 0.0
  %1422 = vmatpush1.msra.mxu0 0.0
  %1423 = vmatprep.mubr.f32.mxu0 0.0
  %1424 = vmatmul.mubr.f32.gmra.mrb[0].mxu0 %v1357
  %v1425 = vpop.f32.mrb[0].mxu0
  %v1426 = vadd.f32 %v1353, %v1425
  %v1427 = vpop.f32.mrb[0].mxu0
  %1428 = vdwg.mxu0
  %v1429 = vadd.f32 %v1426, %v377
  %v1430 = vxor.u32 %v1429, 2147483648
  %v1431 = vmul.f32 %v1430, 1.442695
  %v1432 = vpow.pop %v1431
  %v1433 = vadd.f32 %v1432, 1.0
  %v1434 = vrcp.pop %v1433
  %v1435 = vmul.f32 1.0, %v1434
  %v1436 = vtanh.pop %v1429
  %v1437 = vmul.f32 %v1435, %v1097
  %1439 = vrot.lane.b32.xlu0 %v1436, 64
  %v1440 = vpop.permute.xlu0 %1439
  %v1442 = vmul.f32 %v1435, %v1440
  %1444 = vrot.lane.b32.xlu0 %v1442, 32
  %v1445 = vpop.permute.xlu0 %1444
  %v1447 = vadd.f32 %v1437, %v1445
  %v1448 = vtanh.pop %v1447
  %1450 = vrot.lane.b32.xlu0 %v1448, 64
  %v1451 = vpop.permute.xlu0 %1450
  %v1453 = vmul.f32 %v1435, %v1451
  %1455 = vrot.lane.b32.xlu0 %v1278, 32
  %v1456 = vpop.permute.xlu0 %1455
  %v1457 = vsel %vm41, %v1456, 0
  %1459 = vmatprep.subr.mxu0 0.0
  %1460 = vmatpush1.msra.mxu0 %v37
  %1461 = vmatprep.subr.mxu0 0.0
  %1462 = vmatpush1.msra.mxu0 %v38
  %1463 = vmatprep.subr.mxu0 0.0
  %1464 = vmatpush1.msra.mxu0 %v39
  %1465 = vmatprep.subr.mxu0 0.0
  %1466 = vmatpush1.msra.mxu0 %v40
  %1467 = vmatprep.subr.mxu0 0.0
  %1468 = vmatpush1.msra.mxu0 0.0
  %1469 = vmatprep.subr.mxu0 0.0
  %1470 = vmatpush1.msra.mxu0 0.0
  %1471 = vmatprep.subr.mxu0 0.0
  %1472 = vmatpush1.msra.mxu0 0.0
  %1473 = vmatprep.subr.mxu0 0.0
  %1474 = vmatpush1.msra.mxu0 0.0
  %1475 = vmatprep.subr.mxu0 0.0
  %1476 = vmatpush1.msra.mxu0 0.0
  %1477 = vmatprep.subr.mxu0 0.0
  %1478 = vmatpush1.msra.mxu0 0.0
  %1479 = vmatprep.subr.mxu0 0.0
  %1480 = vmatpush1.msra.mxu0 0.0
  %1481 = vmatprep.subr.mxu0 0.0
  %1482 = vmatpush1.msra.mxu0 0.0
  %1483 = vmatprep.subr.mxu0 0.0
  %1484 = vmatpush1.msra.mxu0 0.0
  %1485 = vmatprep.subr.mxu0 0.0
  %1486 = vmatpush1.msra.mxu0 0.0
  %1487 = vmatprep.subr.mxu0 0.0
  %1488 = vmatpush1.msra.mxu0 0.0
  %1489 = vmatprep.subr.mxu0 0.0
  %1490 = vmatpush1.msra.mxu0 0.0
  %1491 = vmatprep.subr.mxu0 0.0
  %1492 = vmatpush1.msra.mxu0 0.0
  %1493 = vmatprep.subr.mxu0 0.0
  %1494 = vmatpush1.msra.mxu0 0.0
  %1495 = vmatprep.subr.mxu0 0.0
  %1496 = vmatpush1.msra.mxu0 0.0
  %1497 = vmatprep.subr.mxu0 0.0
  %1498 = vmatpush1.msra.mxu0 0.0
  %1499 = vmatprep.subr.mxu0 0.0
  %1500 = vmatpush1.msra.mxu0 0.0
  %1501 = vmatprep.subr.mxu0 0.0
  %1502 = vmatpush1.msra.mxu0 0.0
  %1503 = vmatprep.subr.mxu0 0.0
  %1504 = vmatpush1.msra.mxu0 0.0
  %1505 = vmatprep.subr.mxu0 0.0
  %1506 = vmatpush1.msra.mxu0 0.0
  %1507 = vmatprep.subr.mxu0 0.0
  %1508 = vmatpush1.msra.mxu0 0.0
  %1509 = vmatprep.subr.mxu0 0.0
  %1510 = vmatpush1.msra.mxu0 0.0
  %1511 = vmatprep.subr.mxu0 0.0
  %1512 = vmatpush1.msra.mxu0 0.0
  %1513 = vmatprep.subr.mxu0 0.0
  %1514 = vmatpush1.msra.mxu0 0.0
  %1515 = vmatprep.subr.mxu0 0.0
  %1516 = vmatpush1.msra.mxu0 0.0
  %1517 = vmatprep.subr.mxu0 0.0
  %1518 = vmatpush1.msra.mxu0 0.0
  %1519 = vmatprep.subr.mxu0 0.0
  %1520 = vmatpush1.msra.mxu0 0.0
  %1521 = vmatprep.subr.mxu0 0.0
  %1522 = vmatpush1.msra.mxu0 0.0
  %1523 = vmatprep.mubr.f32.mxu0 0.0
  %1524 = vmatmul.mubr.f32.gmra.mrb[0].mxu0 %v1457
  %v1525 = vpop.f32.mrb[0].mxu0
  %v1526 = vadd.f32 0.0, %v1525
  %v1527 = vpop.f32.mrb[0].mxu0
  %1528 = vdwg.mxu0
  %1529 = vmatprep.subr.mxu0 0.0
  %1530 = vmatpush1.msra.mxu0 %v35
  %1531 = vmatprep.subr.mxu0 0.0
  %1532 = vmatpush1.msra.mxu0 %v36
  %1533 = vmatprep.subr.mxu0 0.0
  %1534 = vmatpush1.msra.mxu0 0.0
  %1535 = vmatprep.subr.mxu0 0.0
  %1536 = vmatpush1.msra.mxu0 0.0
  %1537 = vmatprep.subr.mxu0 0.0
  %1538 = vmatpush1.msra.mxu0 0.0
  %1539 = vmatprep.subr.mxu0 0.0
  %1540 = vmatpush1.msra.mxu0 0.0
  %1541 = vmatprep.subr.mxu0 0.0
  %1542 = vmatpush1.msra.mxu0 0.0
  %1543 = vmatprep.subr.mxu0 0.0
  %1544 = vmatpush1.msra.mxu0 0.0
  %1545 = vmatprep.subr.mxu0 0.0
  %1546 = vmatpush1.msra.mxu0 0.0
  %1547 = vmatprep.subr.mxu0 0.0
  %1548 = vmatpush1.msra.mxu0 0.0
  %1549 = vmatprep.subr.mxu0 0.0
  %1550 = vmatpush1.msra.mxu0 0.0
  %1551 = vmatprep.subr.mxu0 0.0
  %1552 = vmatpush1.msra.mxu0 0.0
  %1553 = vmatprep.subr.mxu0 0.0
  %1554 = vmatpush1.msra.mxu0 0.0
  %1555 = vmatprep.subr.mxu0 0.0
  %1556 = vmatpush1.msra.mxu0 0.0
  %1557 = vmatprep.subr.mxu0 0.0
  %1558 = vmatpush1.msra.mxu0 0.0
  %1559 = vmatprep.subr.mxu0 0.0
  %1560 = vmatpush1.msra.mxu0 0.0
  %1561 = vmatprep.subr.mxu0 0.0
  %1562 = vmatpush1.msra.mxu0 0.0
  %1563 = vmatprep.subr.mxu0 0.0
  %1564 = vmatpush1.msra.mxu0 0.0
  %1565 = vmatprep.subr.mxu0 0.0
  %1566 = vmatpush1.msra.mxu0 0.0
  %1567 = vmatprep.subr.mxu0 0.0
  %1568 = vmatpush1.msra.mxu0 0.0
  %1569 = vmatprep.subr.mxu0 0.0
  %1570 = vmatpush1.msra.mxu0 0.0
  %1571 = vmatprep.subr.mxu0 0.0
  %1572 = vmatpush1.msra.mxu0 0.0
  %1573 = vmatprep.subr.mxu0 0.0
  %1574 = vmatpush1.msra.mxu0 0.0
  %1575 = vmatprep.subr.mxu0 0.0
  %1576 = vmatpush1.msra.mxu0 0.0
  %1577 = vmatprep.subr.mxu0 0.0
  %1578 = vmatpush1.msra.mxu0 0.0
  %1579 = vmatprep.subr.mxu0 0.0
  %1580 = vmatpush1.msra.mxu0 0.0
  %1581 = vmatprep.subr.mxu0 0.0
  %1582 = vmatpush1.msra.mxu0 0.0
  %1583 = vmatprep.subr.mxu0 0.0
  %1584 = vmatpush1.msra.mxu0 0.0
  %1585 = vmatprep.subr.mxu0 0.0
  %1586 = vmatpush1.msra.mxu0 0.0
  %1587 = vmatprep.subr.mxu0 0.0
  %1588 = vmatpush1.msra.mxu0 0.0
  %1589 = vmatprep.subr.mxu0 0.0
  %1590 = vmatpush1.msra.mxu0 0.0
  %1591 = vmatprep.subr.mxu0 0.0
  %1592 = vmatpush1.msra.mxu0 0.0
  %1593 = vmatprep.mubr.f32.mxu0 0.0
  %1594 = vmatmul.mubr.f32.gmra.mrb[0].mxu0 %v1357
  %v1595 = vpop.f32.mrb[0].mxu0
  %v1596 = vadd.f32 %v1526, %v1595
  %v1597 = vpop.f32.mrb[0].mxu0
  %1598 = vdwg.mxu0
  %v1599 = vadd.f32 %v1596, %v194
  %v1600 = vxor.u32 %v1599, 2147483648
  %v1601 = vmul.f32 %v1600, 1.442695
  %v1602 = vpow.pop %v1601
  %v1603 = vadd.f32 %v1602, 1.0
  %v1604 = vrcp.pop %v1603
  %v1605 = vmul.f32 1.0, %v1604
  %v1606 = vtanh.pop %v1599
  %v1607 = vmul.f32 %v1605, %v1272
  %1609 = vrot.lane.b32.xlu0 %v1606, 64
  %v1610 = vpop.permute.xlu0 %1609
  %v1612 = vmul.f32 %v1605, %v1610
  %1614 = vrot.lane.b32.xlu0 %v1612, 32
  %v1615 = vpop.permute.xlu0 %1614
  %v1617 = vadd.f32 %v1607, %v1615
  %v1618 = vtanh.pop %v1617
  %1620 = vrot.lane.b32.xlu0 %v1618, 64
  %v1621 = vpop.permute.xlu0 %1620
  %v1623 = vmul.f32 %v1605, %v1621
  %1625 = vrot.lane.b32.xlu0 %v1453, 32
  %v1626 = vpop.permute.xlu0 %1625
  %v1627 = vsel %vm41, %v1626, 0
  %1629 = vmatprep.subr.mxu0 0.0
  %1630 = vmatpush1.msra.mxu0 %v225
  %1631 = vmatprep.subr.mxu0 0.0
  %1632 = vmatpush1.msra.mxu0 %v226
  %1633 = vmatprep.subr.mxu0 0.0
  %1634 = vmatpush1.msra.mxu0 %v227
  %1635 = vmatprep.subr.mxu0 0.0
  %1636 = vmatpush1.msra.mxu0 %v228
  %1637 = vmatprep.subr.mxu0 0.0
  %1638 = vmatpush1.msra.mxu0 0.0
  %1639 = vmatprep.subr.mxu0 0.0
  %1640 = vmatpush1.msra.mxu0 0.0
  %1641 = vmatprep.subr.mxu0 0.0
  %1642 = vmatpush1.msra.mxu0 0.0
  %1643 = vmatprep.subr.mxu0 0.0
  %1644 = vmatpush1.msra.mxu0 0.0
  %1645 = vmatprep.subr.mxu0 0.0
  %1646 = vmatpush1.msra.mxu0 0.0
  %1647 = vmatprep.subr.mxu0 0.0
  %1648 = vmatpush1.msra.mxu0 0.0
  %1649 = vmatprep.subr.mxu0 0.0
  %1650 = vmatpush1.msra.mxu0 0.0
  %1651 = vmatprep.subr.mxu0 0.0
  %1652 = vmatpush1.msra.mxu0 0.0
  %1653 = vmatprep.subr.mxu0 0.0
  %1654 = vmatpush1.msra.mxu0 0.0
  %1655 = vmatprep.subr.mxu0 0.0
  %1656 = vmatpush1.msra.mxu0 0.0
  %1657 = vmatprep.subr.mxu0 0.0
  %1658 = vmatpush1.msra.mxu0 0.0
  %1659 = vmatprep.subr.mxu0 0.0
  %1660 = vmatpush1.msra.mxu0 0.0
  %1661 = vmatprep.subr.mxu0 0.0
  %1662 = vmatpush1.msra.mxu0 0.0
  %1663 = vmatprep.subr.mxu0 0.0
  %1664 = vmatpush1.msra.mxu0 0.0
  %1665 = vmatprep.subr.mxu0 0.0
  %1666 = vmatpush1.msra.mxu0 0.0
  %1667 = vmatprep.subr.mxu0 0.0
  %1668 = vmatpush1.msra.mxu0 0.0
  %1669 = vmatprep.subr.mxu0 0.0
  %1670 = vmatpush1.msra.mxu0 0.0
  %1671 = vmatprep.subr.mxu0 0.0
  %1672 = vmatpush1.msra.mxu0 0.0
  %1673 = vmatprep.subr.mxu0 0.0
  %1674 = vmatpush1.msra.mxu0 0.0
  %1675 = vmatprep.subr.mxu0 0.0
  %1676 = vmatpush1.msra.mxu0 0.0
  %1677 = vmatprep.subr.mxu0 0.0
  %1678 = vmatpush1.msra.mxu0 0.0
  %1679 = vmatprep.subr.mxu0 0.0
  %1680 = vmatpush1.msra.mxu0 0.0
  %1681 = vmatprep.subr.mxu0 0.0
  %1682 = vmatpush1.msra.mxu0 0.0
  %1683 = vmatprep.subr.mxu0 0.0
  %1684 = vmatpush1.msra.mxu0 0.0
  %1685 = vmatprep.subr.mxu0 0.0
  %1686 = vmatpush1.msra.mxu0 0.0
  %1687 = vmatprep.subr.mxu0 0.0
  %1688 = vmatpush1.msra.mxu0 0.0
  %1689 = vmatprep.subr.mxu0 0.0
  %1690 = vmatpush1.msra.mxu0 0.0
  %1691 = vmatprep.subr.mxu0 0.0
  %1692 = vmatpush1.msra.mxu0 0.0
  %1693 = vmatprep.mubr.f32.mxu0 0.0
  %1694 = vmatmul.mubr.f32.gmra.mrb[0].mxu0 %v1627
  %v1695 = vpop.f32.mrb[0].mxu0
  %v1696 = vadd.f32 0.0, %v1695
  %v1697 = vpop.f32.mrb[0].mxu0
  %1698 = vdwg.mxu0
  %1699 = vmatprep.subr.mxu0 0.0
  %1700 = vmatpush1.msra.mxu0 %v223
  %1701 = vmatprep.subr.mxu0 0.0
  %1702 = vmatpush1.msra.mxu0 %v224
  %1703 = vmatprep.subr.mxu0 0.0
  %1704 = vmatpush1.msra.mxu0 0.0
  %1705 = vmatprep.subr.mxu0 0.0
  %1706 = vmatpush1.msra.mxu0 0.0
  %1707 = vmatprep.subr.mxu0 0.0
  %1708 = vmatpush1.msra.mxu0 0.0
  %1709 = vmatprep.subr.mxu0 0.0
  %1710 = vmatpush1.msra.mxu0 0.0
  %1711 = vmatprep.subr.mxu0 0.0
  %1712 = vmatpush1.msra.mxu0 0.0
  %1713 = vmatprep.subr.mxu0 0.0
  %1714 = vmatpush1.msra.mxu0 0.0
  %1715 = vmatprep.subr.mxu0 0.0
  %1716 = vmatpush1.msra.mxu0 0.0
  %1717 = vmatprep.subr.mxu0 0.0
  %1718 = vmatpush1.msra.mxu0 0.0
  %1719 = vmatprep.subr.mxu0 0.0
  %1720 = vmatpush1.msra.mxu0 0.0
  %1721 = vmatprep.subr.mxu0 0.0
  %1722 = vmatpush1.msra.mxu0 0.0
  %1723 = vmatprep.subr.mxu0 0.0
  %1724 = vmatpush1.msra.mxu0 0.0
  %1725 = vmatprep.subr.mxu0 0.0
  %1726 = vmatpush1.msra.mxu0 0.0
  %1727 = vmatprep.subr.mxu0 0.0
  %1728 = vmatpush1.msra.mxu0 0.0
  %1729 = vmatprep.subr.mxu0 0.0
  %1730 = vmatpush1.msra.mxu0 0.0
  %1731 = vmatprep.subr.mxu0 0.0
  %1732 = vmatpush1.msra.mxu0 0.0
  %1733 = vmatprep.subr.mxu0 0.0
  %1734 = vmatpush1.msra.mxu0 0.0
  %1735 = vmatprep.subr.mxu0 0.0
  %1736 = vmatpush1.msra.mxu0 0.0
  %1737 = vmatprep.subr.mxu0 0.0
  %1738 = vmatpush1.msra.mxu0 0.0
  %1739 = vmatprep.subr.mxu0 0.0
  %1740 = vmatpush1.msra.mxu0 0.0
  %1741 = vmatprep.subr.mxu0 0.0
  %1742 = vmatpush1.msra.mxu0 0.0
  %1743 = vmatprep.subr.mxu0 0.0
  %1744 = vmatpush1.msra.mxu0 0.0
  %1745 = vmatprep.subr.mxu0 0.0
  %1746 = vmatpush1.msra.mxu0 0.0
  %1747 = vmatprep.subr.mxu0 0.0
  %1748 = vmatpush1.msra.mxu0 0.0
  %1749 = vmatprep.subr.mxu0 0.0
  %1750 = vmatpush1.msra.mxu0 0.0
  %1751 = vmatprep.subr.mxu0 0.0
  %1752 = vmatpush1.msra.mxu0 0.0
  %1753 = vmatprep.subr.mxu0 0.0
  %1754 = vmatpush1.msra.mxu0 0.0
  %1755 = vmatprep.subr.mxu0 0.0
  %1756 = vmatpush1.msra.mxu0 0.0
  %1757 = vmatprep.subr.mxu0 0.0
  %1758 = vmatpush1.msra.mxu0 0.0
  %1759 = vmatprep.subr.mxu0 0.0
  %1760 = vmatpush1.msra.mxu0 0.0
  %1761 = vmatprep.subr.mxu0 0.0
  %1762 = vmatpush1.msra.mxu0 0.0
  %1763 = vmatprep.mubr.f32.mxu0 0.0
  %1764 = vmatmul.mubr.f32.gmra.mrb[0].mxu0 %v1182
  %v1765 = vpop.f32.mrb[0].mxu0
  %v1766 = vadd.f32 %v1696, %v1765
  %v1767 = vpop.f32.mrb[0].mxu0
  %1768 = vdwg.mxu0
  %v1769 = vadd.f32 %v1766, %v377
  %v1770 = vxor.u32 %v1769, 2147483648
  %v1771 = vmul.f32 %v1770, 1.442695
  %v1772 = vpow.pop %v1771
  %v1773 = vadd.f32 %v1772, 1.0
  %v1774 = vrcp.pop %v1773
  %v1775 = vmul.f32 1.0, %v1774
  %v1776 = vtanh.pop %v1769
  %v1777 = vmul.f32 %v1775, %v1447
  %1779 = vrot.lane.b32.xlu0 %v1776, 64
  %v1780 = vpop.permute.xlu0 %1779
  %v1782 = vmul.f32 %v1775, %v1780
  %1784 = vrot.lane.b32.xlu0 %v1782, 32
  %v1785 = vpop.permute.xlu0 %1784
  %v1787 = vadd.f32 %v1777, %v1785
  %v1788 = vtanh.pop %v1787
  %1790 = vrot.lane.b32.xlu0 %v1788, 64
  %v1791 = vpop.permute.xlu0 %1790
  %v1793 = vmul.f32 %v1775, %v1791
  %1795 = vrot.lane.b32.xlu0 %v1623, 32
  %v1796 = vpop.permute.xlu0 %1795
  %v1797 = vsel %vm41, %v1796, 0
  %1799 = vmatprep.subr.mxu0 0.0
  %1800 = vmatpush1.msra.mxu0 %v37
  %1801 = vmatprep.subr.mxu0 0.0
  %1802 = vmatpush1.msra.mxu0 %v38
  %1803 = vmatprep.subr.mxu0 0.0
  %1804 = vmatpush1.msra.mxu0 %v39
  %1805 = vmatprep.subr.mxu0 0.0
  %1806 = vmatpush1.msra.mxu0 %v40
  %1807 = vmatprep.subr.mxu0 0.0
  %1808 = vmatpush1.msra.mxu0 0.0
  %1809 = vmatprep.subr.mxu0 0.0
  %1810 = vmatpush1.msra.mxu0 0.0
  %1811 = vmatprep.subr.mxu0 0.0
  %1812 = vmatpush1.msra.mxu0 0.0
  %1813 = vmatprep.subr.mxu0 0.0
  %1814 = vmatpush1.msra.mxu0 0.0
  %1815 = vmatprep.subr.mxu0 0.0
  %1816 = vmatpush1.msra.mxu0 0.0
  %1817 = vmatprep.subr.mxu0 0.0
  %1818 = vmatpush1.msra.mxu0 0.0
  %1819 = vmatprep.subr.mxu0 0.0
  %1820 = vmatpush1.msra.mxu0 0.0
  %1821 = vmatprep.subr.mxu0 0.0
  %1822 = vmatpush1.msra.mxu0 0.0
  %1823 = vmatprep.subr.mxu0 0.0
  %1824 = vmatpush1.msra.mxu0 0.0
  %1825 = vmatprep.subr.mxu0 0.0
  %1826 = vmatpush1.msra.mxu0 0.0
  %1827 = vmatprep.subr.mxu0 0.0
  %1828 = vmatpush1.msra.mxu0 0.0
  %1829 = vmatprep.subr.mxu0 0.0
  %1830 = vmatpush1.msra.mxu0 0.0
  %1831 = vmatprep.subr.mxu0 0.0
  %1832 = vmatpush1.msra.mxu0 0.0
  %1833 = vmatprep.subr.mxu0 0.0
  %1834 = vmatpush1.msra.mxu0 0.0
  %1835 = vmatprep.subr.mxu0 0.0
  %1836 = vmatpush1.msra.mxu0 0.0
  %1837 = vmatprep.subr.mxu0 0.0
  %1838 = vmatpush1.msra.mxu0 0.0
  %1839 = vmatprep.subr.mxu0 0.0
  %1840 = vmatpush1.msra.mxu0 0.0
  %1841 = vmatprep.subr.mxu0 0.0
  %1842 = vmatpush1.msra.mxu0 0.0
  %1843 = vmatprep.subr.mxu0 0.0
  %1844 = vmatpush1.msra.mxu0 0.0
  %1845 = vmatprep.subr.mxu0 0.0
  %1846 = vmatpush1.msra.mxu0 0.0
  %1847 = vmatprep.subr.mxu0 0.0
  %1848 = vmatpush1.msra.mxu0 0.0
  %1849 = vmatprep.subr.mxu0 0.0
  %1850 = vmatpush1.msra.mxu0 0.0
  %1851 = vmatprep.subr.mxu0 0.0
  %1852 = vmatpush1.msra.mxu0 0.0
  %1853 = vmatprep.subr.mxu0 0.0
  %1854 = vmatpush1.msra.mxu0 0.0
  %1855 = vmatprep.subr.mxu0 0.0
  %1856 = vmatpush1.msra.mxu0 0.0
  %1857 = vmatprep.subr.mxu0 0.0
  %1858 = vmatpush1.msra.mxu0 0.0
  %1859 = vmatprep.subr.mxu0 0.0
  %1860 = vmatpush1.msra.mxu0 0.0
  %1861 = vmatprep.subr.mxu0 0.0
  %1862 = vmatpush1.msra.mxu0 0.0
  %1863 = vmatprep.mubr.f32.mxu0 0.0
  %1864 = vmatmul.mubr.f32.gmra.mrb[0].mxu0 %v1797
  %v1865 = vpop.f32.mrb[0].mxu0
  %v1866 = vadd.f32 0.0, %v1865
  %v1867 = vpop.f32.mrb[0].mxu0
  %1868 = vdwg.mxu0
  %1869 = vmatprep.subr.mxu0 0.0
  %1870 = vmatpush1.msra.mxu0 %v35
  %1871 = vmatprep.subr.mxu0 0.0
  %1872 = vmatpush1.msra.mxu0 %v36
  %1873 = vmatprep.subr.mxu0 0.0
  %1874 = vmatpush1.msra.mxu0 0.0
  %1875 = vmatprep.subr.mxu0 0.0
  %1876 = vmatpush1.msra.mxu0 0.0
  %1877 = vmatprep.subr.mxu0 0.0
  %1878 = vmatpush1.msra.mxu0 0.0
  %1879 = vmatprep.subr.mxu0 0.0
  %1880 = vmatpush1.msra.mxu0 0.0
  %1881 = vmatprep.subr.mxu0 0.0
  %1882 = vmatpush1.msra.mxu0 0.0
  %1883 = vmatprep.subr.mxu0 0.0
  %1884 = vmatpush1.msra.mxu0 0.0
  %1885 = vmatprep.subr.mxu0 0.0
  %1886 = vmatpush1.msra.mxu0 0.0
  %1887 = vmatprep.subr.mxu0 0.0
  %1888 = vmatpush1.msra.mxu0 0.0
  %1889 = vmatprep.subr.mxu0 0.0
  %1890 = vmatpush1.msra.mxu0 0.0
  %1891 = vmatprep.subr.mxu0 0.0
  %1892 = vmatpush1.msra.mxu0 0.0
  %1893 = vmatprep.subr.mxu0 0.0
  %1894 = vmatpush1.msra.mxu0 0.0
  %1895 = vmatprep.subr.mxu0 0.0
  %1896 = vmatpush1.msra.mxu0 0.0
  %1897 = vmatprep.subr.mxu0 0.0
  %1898 = vmatpush1.msra.mxu0 0.0
  %1899 = vmatprep.subr.mxu0 0.0
  %1900 = vmatpush1.msra.mxu0 0.0
  %1901 = vmatprep.subr.mxu0 0.0
  %1902 = vmatpush1.msra.mxu0 0.0
  %1903 = vmatprep.subr.mxu0 0.0
  %1904 = vmatpush1.msra.mxu0 0.0
  %1905 = vmatprep.subr.mxu0 0.0
  %1906 = vmatpush1.msra.mxu0 0.0
  %1907 = vmatprep.subr.mxu0 0.0
  %1908 = vmatpush1.msra.mxu0 0.0
  %1909 = vmatprep.subr.mxu0 0.0
  %1910 = vmatpush1.msra.mxu0 0.0
  %1911 = vmatprep.subr.mxu0 0.0
  %1912 = vmatpush1.msra.mxu0 0.0
  %1913 = vmatprep.subr.mxu0 0.0
  %1914 = vmatpush1.msra.mxu0 0.0
  %1915 = vmatprep.subr.mxu0 0.0
  %1916 = vmatpush1.msra.mxu0 0.0
  %1917 = vmatprep.subr.mxu0 0.0
  %1918 = vmatpush1.msra.mxu0 0.0
  %1919 = vmatprep.subr.mxu0 0.0
  %1920 = vmatpush1.msra.mxu0 0.0
  %1921 = vmatprep.subr.mxu0 0.0
  %1922 = vmatpush1.msra.mxu0 0.0
  %1923 = vmatprep.subr.mxu0 0.0
  %1924 = vmatpush1.msra.mxu0 0.0
  %1925 = vmatprep.subr.mxu0 0.0
  %1926 = vmatpush1.msra.mxu0 0.0
  %1927 = vmatprep.subr.mxu0 0.0
  %1928 = vmatpush1.msra.mxu0 0.0
  %1929 = vmatprep.subr.mxu0 0.0
  %1930 = vmatpush1.msra.mxu0 0.0
  %1931 = vmatprep.subr.mxu0 0.0
  %1932 = vmatpush1.msra.mxu0 0.0
  %1933 = vmatprep.mubr.f32.mxu0 0.0
  %1934 = vmatmul.mubr.f32.gmra.mrb[0].mxu0 %v1007
  %v1935 = vpop.f32.mrb[0].mxu0
  %v1936 = vadd.f32 %v1866, %v1935
  %v1937 = vpop.f32.mrb[0].mxu0
  %1938 = vdwg.mxu0
  %v1939 = vadd.f32 %v1936, %v194
  %v1940 = vxor.u32 %v1939, 2147483648
  %v1941 = vmul.f32 %v1940, 1.442695
  %v1942 = vpow.pop %v1941
  %v1943 = vadd.f32 %v1942, 1.0
  %v1944 = vrcp.pop %v1943
  %v1945 = vmul.f32 1.0, %v1944
  %v1946 = vtanh.pop %v1939
  %v1947 = vmul.f32 %v1945, %v1617
  %1949 = vrot.lane.b32.xlu0 %v1946, 64
  %v1950 = vpop.permute.xlu0 %1949
  %v1952 = vmul.f32 %v1945, %v1950
  %1954 = vrot.lane.b32.xlu0 %v1952, 32
  %v1955 = vpop.permute.xlu0 %1954
  %v1957 = vadd.f32 %v1947, %v1955
  %v1958 = vtanh.pop %v1957
  %1960 = vrot.lane.b32.xlu0 %v1958, 64
  %v1961 = vpop.permute.xlu0 %1960
  %v1963 = vmul.f32 %v1945, %v1961
  %1965 = vrot.lane.b32.xlu0 %v1793, 32
  %v1966 = vpop.permute.xlu0 %1965
  %v1967 = vsel %vm41, %v1966, 0
  %1969 = vmatprep.subr.mxu0 0.0
  %1970 = vmatpush1.msra.mxu0 %v225
  %1971 = vmatprep.subr.mxu0 0.0
  %1972 = vmatpush1.msra.mxu0 %v226
  %1973 = vmatprep.subr.mxu0 0.0
  %1974 = vmatpush1.msra.mxu0 %v227
  %1975 = vmatprep.subr.mxu0 0.0
  %1976 = vmatpush1.msra.mxu0 %v228
  %1977 = vmatprep.subr.mxu0 0.0
  %1978 = vmatpush1.msra.mxu0 0.0
  %1979 = vmatprep.subr.mxu0 0.0
  %1980 = vmatpush1.msra.mxu0 0.0
  %1981 = vmatprep.subr.mxu0 0.0
  %1982 = vmatpush1.msra.mxu0 0.0
  %1983 = vmatprep.subr.mxu0 0.0
  %1984 = vmatpush1.msra.mxu0 0.0
  %1985 = vmatprep.subr.mxu0 0.0
  %1986 = vmatpush1.msra.mxu0 0.0
  %1987 = vmatprep.subr.mxu0 0.0
  %1988 = vmatpush1.msra.mxu0 0.0
  %1989 = vmatprep.subr.mxu0 0.0
  %1990 = vmatpush1.msra.mxu0 0.0
  %1991 = vmatprep.subr.mxu0 0.0
  %1992 = vmatpush1.msra.mxu0 0.0
  %1993 = vmatprep.subr.mxu0 0.0
  %1994 = vmatpush1.msra.mxu0 0.0
  %1995 = vmatprep.subr.mxu0 0.0
  %1996 = vmatpush1.msra.mxu0 0.0
  %1997 = vmatprep.subr.mxu0 0.0
  %1998 = vmatpush1.msra.mxu0 0.0
  %1999 = vmatprep.subr.mxu0 0.0
  %2000 = vmatpush1.msra.mxu0 0.0
  %2001 = vmatprep.subr.mxu0 0.0
  %2002 = vmatpush1.msra.mxu0 0.0
  %2003 = vmatprep.subr.mxu0 0.0
  %2004 = vmatpush1.msra.mxu0 0.0
  %2005 = vmatprep.subr.mxu0 0.0
  %2006 = vmatpush1.msra.mxu0 0.0
  %2007 = vmatprep.subr.mxu0 0.0
  %2008 = vmatpush1.msra.mxu0 0.0
  %2009 = vmatprep.subr.mxu0 0.0
  %2010 = vmatpush1.msra.mxu0 0.0
  %2011 = vmatprep.subr.mxu0 0.0
  %2012 = vmatpush1.msra.mxu0 0.0
  %2013 = vmatprep.subr.mxu0 0.0
  %2014 = vmatpush1.msra.mxu0 0.0
  %2015 = vmatprep.subr.mxu0 0.0
  %2016 = vmatpush1.msra.mxu0 0.0
  %2017 = vmatprep.subr.mxu0 0.0
  %2018 = vmatpush1.msra.mxu0 0.0
  %2019 = vmatprep.subr.mxu0 0.0
  %2020 = vmatpush1.msra.mxu0 0.0
  %2021 = vmatprep.subr.mxu0 0.0
  %2022 = vmatpush1.msra.mxu0 0.0
  %2023 = vmatprep.subr.mxu0 0.0
  %2024 = vmatpush1.msra.mxu0 0.0
  %2025 = vmatprep.subr.mxu0 0.0
  %2026 = vmatpush1.msra.mxu0 0.0
  %2027 = vmatprep.subr.mxu0 0.0
  %2028 = vmatpush1.msra.mxu0 0.0
  %2029 = vmatprep.subr.mxu0 0.0
  %2030 = vmatpush1.msra.mxu0 0.0
  %2031 = vmatprep.subr.mxu0 0.0
  %2032 = vmatpush1.msra.mxu0 0.0
  %2033 = vmatprep.mubr.f32.mxu0 0.0
  %2034 = vmatmul.mubr.f32.gmra.mrb[0].mxu0 %v1967
  %v2035 = vpop.f32.mrb[0].mxu0
  %v2036 = vadd.f32 0.0, %v2035
  %v2037 = vpop.f32.mrb[0].mxu0
  %2038 = vdwg.mxu0
  %2039 = vmatprep.subr.mxu0 0.0
  %2040 = vmatpush1.msra.mxu0 %v223
  %2041 = vmatprep.subr.mxu0 0.0
  %2042 = vmatpush1.msra.mxu0 %v224
  %2043 = vmatprep.subr.mxu0 0.0
  %2044 = vmatpush1.msra.mxu0 0.0
  %2045 = vmatprep.subr.mxu0 0.0
  %2046 = vmatpush1.msra.mxu0 0.0
  %2047 = vmatprep.subr.mxu0 0.0
  %2048 = vmatpush1.msra.mxu0 0.0
  %2049 = vmatprep.subr.mxu0 0.0
  %2050 = vmatpush1.msra.mxu0 0.0
  %2051 = vmatprep.subr.mxu0 0.0
  %2052 = vmatpush1.msra.mxu0 0.0
  %2053 = vmatprep.subr.mxu0 0.0
  %2054 = vmatpush1.msra.mxu0 0.0
  %2055 = vmatprep.subr.mxu0 0.0
  %2056 = vmatpush1.msra.mxu0 0.0
  %2057 = vmatprep.subr.mxu0 0.0
  %2058 = vmatpush1.msra.mxu0 0.0
  %2059 = vmatprep.subr.mxu0 0.0
  %2060 = vmatpush1.msra.mxu0 0.0
  %2061 = vmatprep.subr.mxu0 0.0
  %2062 = vmatpush1.msra.mxu0 0.0
  %2063 = vmatprep.subr.mxu0 0.0
  %2064 = vmatpush1.msra.mxu0 0.0
  %2065 = vmatprep.subr.mxu0 0.0
  %2066 = vmatpush1.msra.mxu0 0.0
  %2067 = vmatprep.subr.mxu0 0.0
  %2068 = vmatpush1.msra.mxu0 0.0
  %2069 = vmatprep.subr.mxu0 0.0
  %2070 = vmatpush1.msra.mxu0 0.0
  %2071 = vmatprep.subr.mxu0 0.0
  %2072 = vmatpush1.msra.mxu0 0.0
  %2073 = vmatprep.subr.mxu0 0.0
  %2074 = vmatpush1.msra.mxu0 0.0
  %2075 = vmatprep.subr.mxu0 0.0
  %2076 = vmatpush1.msra.mxu0 0.0
  %2077 = vmatprep.subr.mxu0 0.0
  %2078 = vmatpush1.msra.mxu0 0.0
  %2079 = vmatprep.subr.mxu0 0.0
  %2080 = vmatpush1.msra.mxu0 0.0
  %2081 = vmatprep.subr.mxu0 0.0
  %2082 = vmatpush1.msra.mxu0 0.0
  %2083 = vmatprep.subr.mxu0 0.0
  %2084 = vmatpush1.msra.mxu0 0.0
  %2085 = vmatprep.subr.mxu0 0.0
  %2086 = vmatpush1.msra.mxu0 0.0
  %2087 = vmatprep.subr.mxu0 0.0
  %2088 = vmatpush1.msra.mxu0 0.0
  %2089 = vmatprep.subr.mxu0 0.0
  %2090 = vmatpush1.msra.mxu0 0.0
  %2091 = vmatprep.subr.mxu0 0.0
  %2092 = vmatpush1.msra.mxu0 0.0
  %2093 = vmatprep.subr.mxu0 0.0
  %2094 = vmatpush1.msra.mxu0 0.0
  %2095 = vmatprep.subr.mxu0 0.0
  %2096 = vmatpush1.msra.mxu0 0.0
  %2097 = vmatprep.subr.mxu0 0.0
  %2098 = vmatpush1.msra.mxu0 0.0
  %2099 = vmatprep.subr.mxu0 0.0
  %2100 = vmatpush1.msra.mxu0 0.0
  %2101 = vmatprep.subr.mxu0 0.0
  %2102 = vmatpush1.msra.mxu0 0.0
  %2103 = vmatprep.mubr.f32.mxu0 0.0
  %2104 = vmatmul.mubr.f32.gmra.mrb[0].mxu0 %v832
  %v2105 = vpop.f32.mrb[0].mxu0
  %v2106 = vadd.f32 %v2036, %v2105
  %v2107 = vpop.f32.mrb[0].mxu0
  %2108 = vdwg.mxu0
  %v2109 = vadd.f32 %v2106, %v377
  %v2110 = vxor.u32 %v2109, 2147483648
  %v2111 = vmul.f32 %v2110, 1.442695
  %v2112 = vpow.pop %v2111
  %v2113 = vadd.f32 %v2112, 1.0
  %v2114 = vrcp.pop %v2113
  %v2115 = vmul.f32 1.0, %v2114
  %v2116 = vtanh.pop %v2109
  %v2117 = vmul.f32 %v2115, %v1787
  %2119 = vrot.lane.b32.xlu0 %v2116, 64
  %v2120 = vpop.permute.xlu0 %2119
  %v2122 = vmul.f32 %v2115, %v2120
  %2124 = vrot.lane.b32.xlu0 %v2122, 32
  %v2125 = vpop.permute.xlu0 %2124
  %v2127 = vadd.f32 %v2117, %v2125
  %v2128 = vtanh.pop %v2127
  %2130 = vrot.lane.b32.xlu0 %v2128, 64
  %v2131 = vpop.permute.xlu0 %2130
  %v2133 = vmul.f32 %v2115, %v2131
  %2135 = vrot.lane.b32.xlu0 %v1963, 32
  %v2136 = vpop.permute.xlu0 %2135
  %v2137 = vsel %vm41, %v2136, 0
  %2139 = vmatprep.subr.mxu0 0.0
  %2140 = vmatpush1.msra.mxu0 %v37
  %2141 = vmatprep.subr.mxu0 0.0
  %2142 = vmatpush1.msra.mxu0 %v38
  %2143 = vmatprep.subr.mxu0 0.0
  %2144 = vmatpush1.msra.mxu0 %v39
  %2145 = vmatprep.subr.mxu0 0.0
  %2146 = vmatpush1.msra.mxu0 %v40
  %2147 = vmatprep.subr.mxu0 0.0
  %2148 = vmatpush1.msra.mxu0 0.0
  %2149 = vmatprep.subr.mxu0 0.0
  %2150 = vmatpush1.msra.mxu0 0.0
  %2151 = vmatprep.subr.mxu0 0.0
  %2152 = vmatpush1.msra.mxu0 0.0
  %2153 = vmatprep.subr.mxu0 0.0
  %2154 = vmatpush1.msra.mxu0 0.0
  %2155 = vmatprep.subr.mxu0 0.0
  %2156 = vmatpush1.msra.mxu0 0.0
  %2157 = vmatprep.subr.mxu0 0.0
  %2158 = vmatpush1.msra.mxu0 0.0
  %2159 = vmatprep.subr.mxu0 0.0
  %2160 = vmatpush1.msra.mxu0 0.0
  %2161 = vmatprep.subr.mxu0 0.0
  %2162 = vmatpush1.msra.mxu0 0.0
  %2163 = vmatprep.subr.mxu0 0.0
  %2164 = vmatpush1.msra.mxu0 0.0
  %2165 = vmatprep.subr.mxu0 0.0
  %2166 = vmatpush1.msra.mxu0 0.0
  %2167 = vmatprep.subr.mxu0 0.0
  %2168 = vmatpush1.msra.mxu0 0.0
  %2169 = vmatprep.subr.mxu0 0.0
  %2170 = vmatpush1.msra.mxu0 0.0
  %2171 = vmatprep.subr.mxu0 0.0
  %2172 = vmatpush1.msra.mxu0 0.0
  %2173 = vmatprep.subr.mxu0 0.0
  %2174 = vmatpush1.msra.mxu0 0.0
  %2175 = vmatprep.subr.mxu0 0.0
  %2176 = vmatpush1.msra.mxu0 0.0
  %2177 = vmatprep.subr.mxu0 0.0
  %2178 = vmatpush1.msra.mxu0 0.0
  %2179 = vmatprep.subr.mxu0 0.0
  %2180 = vmatpush1.msra.mxu0 0.0
  %2181 = vmatprep.subr.mxu0 0.0
  %2182 = vmatpush1.msra.mxu0 0.0
  %2183 = vmatprep.subr.mxu0 0.0
  %2184 = vmatpush1.msra.mxu0 0.0
  %2185 = vmatprep.subr.mxu0 0.0
  %2186 = vmatpush1.msra.mxu0 0.0
  %2187 = vmatprep.subr.mxu0 0.0
  %2188 = vmatpush1.msra.mxu0 0.0
  %2189 = vmatprep.subr.mxu0 0.0
  %2190 = vmatpush1.msra.mxu0 0.0
  %2191 = vmatprep.subr.mxu0 0.0
  %2192 = vmatpush1.msra.mxu0 0.0
  %2193 = vmatprep.subr.mxu0 0.0
  %2194 = vmatpush1.msra.mxu0 0.0
  %2195 = vmatprep.subr.mxu0 0.0
  %2196 = vmatpush1.msra.mxu0 0.0
  %2197 = vmatprep.subr.mxu0 0.0
  %2198 = vmatpush1.msra.mxu0 0.0
  %2199 = vmatprep.subr.mxu0 0.0
  %2200 = vmatpush1.msra.mxu0 0.0
  %2201 = vmatprep.subr.mxu0 0.0
  %2202 = vmatpush1.msra.mxu0 0.0
  %2203 = vmatprep.mubr.f32.mxu0 0.0
  %2204 = vmatmul.mubr.f32.gmra.mrb[0].mxu0 %v2137
  %v2205 = vpop.f32.mrb[0].mxu0
  %v2206 = vadd.f32 0.0, %v2205
  %v2207 = vpop.f32.mrb[0].mxu0
  %2208 = vdwg.mxu0
  %2209 = vmatprep.subr.mxu0 0.0
  %2210 = vmatpush1.msra.mxu0 %v35
  %2211 = vmatprep.subr.mxu0 0.0
  %2212 = vmatpush1.msra.mxu0 %v36
  %2213 = vmatprep.subr.mxu0 0.0
  %2214 = vmatpush1.msra.mxu0 0.0
  %2215 = vmatprep.subr.mxu0 0.0
  %2216 = vmatpush1.msra.mxu0 0.0
  %2217 = vmatprep.subr.mxu0 0.0
  %2218 = vmatpush1.msra.mxu0 0.0
  %2219 = vmatprep.subr.mxu0 0.0
  %2220 = vmatpush1.msra.mxu0 0.0
  %2221 = vmatprep.subr.mxu0 0.0
  %2222 = vmatpush1.msra.mxu0 0.0
  %2223 = vmatprep.subr.mxu0 0.0
  %2224 = vmatpush1.msra.mxu0 0.0
  %2225 = vmatprep.subr.mxu0 0.0
  %2226 = vmatpush1.msra.mxu0 0.0
  %2227 = vmatprep.subr.mxu0 0.0
  %2228 = vmatpush1.msra.mxu0 0.0
  %2229 = vmatprep.subr.mxu0 0.0
  %2230 = vmatpush1.msra.mxu0 0.0
  %2231 = vmatprep.subr.mxu0 0.0
  %2232 = vmatpush1.msra.mxu0 0.0
  %2233 = vmatprep.subr.mxu0 0.0
  %2234 = vmatpush1.msra.mxu0 0.0
  %2235 = vmatprep.subr.mxu0 0.0
  %2236 = vmatpush1.msra.mxu0 0.0
  %2237 = vmatprep.subr.mxu0 0.0
  %2238 = vmatpush1.msra.mxu0 0.0
  %2239 = vmatprep.subr.mxu0 0.0
  %2240 = vmatpush1.msra.mxu0 0.0
  %2241 = vmatprep.subr.mxu0 0.0
  %2242 = vmatpush1.msra.mxu0 0.0
  %2243 = vmatprep.subr.mxu0 0.0
  %2244 = vmatpush1.msra.mxu0 0.0
  %2245 = vmatprep.subr.mxu0 0.0
  %2246 = vmatpush1.msra.mxu0 0.0
  %2247 = vmatprep.subr.mxu0 0.0
  %2248 = vmatpush1.msra.mxu0 0.0
  %2249 = vmatprep.subr.mxu0 0.0
  %2250 = vmatpush1.msra.mxu0 0.0
  %2251 = vmatprep.subr.mxu0 0.0
  %2252 = vmatpush1.msra.mxu0 0.0
  %2253 = vmatprep.subr.mxu0 0.0
  %2254 = vmatpush1.msra.mxu0 0.0
  %2255 = vmatprep.subr.mxu0 0.0
  %2256 = vmatpush1.msra.mxu0 0.0
  %2257 = vmatprep.subr.mxu0 0.0
  %2258 = vmatpush1.msra.mxu0 0.0
  %2259 = vmatprep.subr.mxu0 0.0
  %2260 = vmatpush1.msra.mxu0 0.0
  %2261 = vmatprep.subr.mxu0 0.0
  %2262 = vmatpush1.msra.mxu0 0.0
  %2263 = vmatprep.subr.mxu0 0.0
  %2264 = vmatpush1.msra.mxu0 0.0
  %2265 = vmatprep.subr.mxu0 0.0
  %2266 = vmatpush1.msra.mxu0 0.0
  %2267 = vmatprep.subr.mxu0 0.0
  %2268 = vmatpush1.msra.mxu0 0.0
  %2269 = vmatprep.subr.mxu0 0.0
  %2270 = vmatpush1.msra.mxu0 0.0
  %2271 = vmatprep.subr.mxu0 0.0
  %2272 = vmatpush1.msra.mxu0 0.0
  %2273 = vmatprep.mubr.f32.mxu0 0.0
  %2274 = vmatmul.mubr.f32.gmra.mrb[0].mxu0 %v657
  %v2275 = vpop.f32.mrb[0].mxu0
  %v2276 = vadd.f32 %v2206, %v2275
  %v2277 = vpop.f32.mrb[0].mxu0
  %2278 = vdwg.mxu0
  %v2279 = vadd.f32 %v2276, %v194
  %v2280 = vxor.u32 %v2279, 2147483648
  %v2281 = vmul.f32 %v2280, 1.442695
  %v2282 = vpow.pop %v2281
  %v2283 = vadd.f32 %v2282, 1.0
  %v2284 = vrcp.pop %v2283
  %v2285 = vmul.f32 1.0, %v2284
  %v2286 = vtanh.pop %v2279
  %v2287 = vmul.f32 %v2285, %v1957
  %2289 = vrot.lane.b32.xlu0 %v2286, 64
  %v2290 = vpop.permute.xlu0 %2289
  %v2292 = vmul.f32 %v2285, %v2290
  %2294 = vrot.lane.b32.xlu0 %v2292, 32
  %v2295 = vpop.permute.xlu0 %2294
  %v2297 = vadd.f32 %v2287, %v2295
  %v2298 = vtanh.pop %v2297
  %2300 = vrot.lane.b32.xlu0 %v2298, 64
  %v2301 = vpop.permute.xlu0 %2300
  %v2303 = vmul.f32 %v2285, %v2301
  %2305 = vrot.lane.b32.xlu0 %v2133, 32
  %v2306 = vpop.permute.xlu0 %2305
  %v2307 = vsel %vm41, %v2306, 0
  %2309 = vmatprep.subr.mxu0 0.0
  %2310 = vmatpush1.msra.mxu0 %v225
  %2311 = vmatprep.subr.mxu0 0.0
  %2312 = vmatpush1.msra.mxu0 %v226
  %2313 = vmatprep.subr.mxu0 0.0
  %2314 = vmatpush1.msra.mxu0 %v227
  %2315 = vmatprep.subr.mxu0 0.0
  %2316 = vmatpush1.msra.mxu0 %v228
  %2317 = vmatprep.subr.mxu0 0.0
  %2318 = vmatpush1.msra.mxu0 0.0
  %2319 = vmatprep.subr.mxu0 0.0
  %2320 = vmatpush1.msra.mxu0 0.0
  %2321 = vmatprep.subr.mxu0 0.0
  %2322 = vmatpush1.msra.mxu0 0.0
  %2323 = vmatprep.subr.mxu0 0.0
  %2324 = vmatpush1.msra.mxu0 0.0
  %2325 = vmatprep.subr.mxu0 0.0
  %2326 = vmatpush1.msra.mxu0 0.0
  %2327 = vmatprep.subr.mxu0 0.0
  %2328 = vmatpush1.msra.mxu0 0.0
  %2329 = vmatprep.subr.mxu0 0.0
  %2330 = vmatpush1.msra.mxu0 0.0
  %2331 = vmatprep.subr.mxu0 0.0
  %2332 = vmatpush1.msra.mxu0 0.0
  %2333 = vmatprep.subr.mxu0 0.0
  %2334 = vmatpush1.msra.mxu0 0.0
  %2335 = vmatprep.subr.mxu0 0.0
  %2336 = vmatpush1.msra.mxu0 0.0
  %2337 = vmatprep.subr.mxu0 0.0
  %2338 = vmatpush1.msra.mxu0 0.0
  %2339 = vmatprep.subr.mxu0 0.0
  %2340 = vmatpush1.msra.mxu0 0.0
  %2341 = vmatprep.subr.mxu0 0.0
  %2342 = vmatpush1.msra.mxu0 0.0
  %2343 = vmatprep.subr.mxu0 0.0
  %2344 = vmatpush1.msra.mxu0 0.0
  %2345 = vmatprep.subr.mxu0 0.0
  %2346 = vmatpush1.msra.mxu0 0.0
  %2347 = vmatprep.subr.mxu0 0.0
  %2348 = vmatpush1.msra.mxu0 0.0
  %2349 = vmatprep.subr.mxu0 0.0
  %2350 = vmatpush1.msra.mxu0 0.0
  %2351 = vmatprep.subr.mxu0 0.0
  %2352 = vmatpush1.msra.mxu0 0.0
  %2353 = vmatprep.subr.mxu0 0.0
  %2354 = vmatpush1.msra.mxu0 0.0
  %2355 = vmatprep.subr.mxu0 0.0
  %2356 = vmatpush1.msra.mxu0 0.0
  %2357 = vmatprep.subr.mxu0 0.0
  %2358 = vmatpush1.msra.mxu0 0.0
  %2359 = vmatprep.subr.mxu0 0.0
  %2360 = vmatpush1.msra.mxu0 0.0
  %2361 = vmatprep.subr.mxu0 0.0
  %2362 = vmatpush1.msra.mxu0 0.0
  %2363 = vmatprep.subr.mxu0 0.0
  %2364 = vmatpush1.msra.mxu0 0.0
  %2365 = vmatprep.subr.mxu0 0.0
  %2366 = vmatpush1.msra.mxu0 0.0
  %2367 = vmatprep.subr.mxu0 0.0
  %2368 = vmatpush1.msra.mxu0 0.0
  %2369 = vmatprep.subr.mxu0 0.0
  %2370 = vmatpush1.msra.mxu0 0.0
  %2371 = vmatprep.subr.mxu0 0.0
  %2372 = vmatpush1.msra.mxu0 0.0
  %2373 = vmatprep.mubr.f32.mxu0 0.0
  %2374 = vmatmul.mubr.f32.gmra.mrb[0].mxu0 %v2307
  %v2375 = vpop.f32.mrb[0].mxu0
  %v2376 = vadd.f32 0.0, %v2375
  %v2377 = vpop.f32.mrb[0].mxu0
  %2378 = vdwg.mxu0
  %2379 = vmatprep.subr.mxu0 0.0
  %2380 = vmatpush1.msra.mxu0 %v223
  %2381 = vmatprep.subr.mxu0 0.0
  %2382 = vmatpush1.msra.mxu0 %v224
  %2383 = vmatprep.subr.mxu0 0.0
  %2384 = vmatpush1.msra.mxu0 0.0
  %2385 = vmatprep.subr.mxu0 0.0
  %2386 = vmatpush1.msra.mxu0 0.0
  %2387 = vmatprep.subr.mxu0 0.0
  %2388 = vmatpush1.msra.mxu0 0.0
  %2389 = vmatprep.subr.mxu0 0.0
  %2390 = vmatpush1.msra.mxu0 0.0
  %2391 = vmatprep.subr.mxu0 0.0
  %2392 = vmatpush1.msra.mxu0 0.0
  %2393 = vmatprep.subr.mxu0 0.0
  %2394 = vmatpush1.msra.mxu0 0.0
  %2395 = vmatprep.subr.mxu0 0.0
  %2396 = vmatpush1.msra.mxu0 0.0
  %2397 = vmatprep.subr.mxu0 0.0
  %2398 = vmatpush1.msra.mxu0 0.0
  %2399 = vmatprep.subr.mxu0 0.0
  %2400 = vmatpush1.msra.mxu0 0.0
  %2401 = vmatprep.subr.mxu0 0.0
  %2402 = vmatpush1.msra.mxu0 0.0
  %2403 = vmatprep.subr.mxu0 0.0
  %2404 = vmatpush1.msra.mxu0 0.0
  %2405 = vmatprep.subr.mxu0 0.0
  %2406 = vmatpush1.msra.mxu0 0.0
  %2407 = vmatprep.subr.mxu0 0.0
  %2408 = vmatpush1.msra.mxu0 0.0
  %2409 = vmatprep.subr.mxu0 0.0
  %2410 = vmatpush1.msra.mxu0 0.0
  %2411 = vmatprep.subr.mxu0 0.0
  %2412 = vmatpush1.msra.mxu0 0.0
  %2413 = vmatprep.subr.mxu0 0.0
  %2414 = vmatpush1.msra.mxu0 0.0
  %2415 = vmatprep.subr.mxu0 0.0
  %2416 = vmatpush1.msra.mxu0 0.0
  %2417 = vmatprep.subr.mxu0 0.0
  %2418 = vmatpush1.msra.mxu0 0.0
  %2419 = vmatprep.subr.mxu0 0.0
  %2420 = vmatpush1.msra.mxu0 0.0
  %2421 = vmatprep.subr.mxu0 0.0
  %2422 = vmatpush1.msra.mxu0 0.0
  %2423 = vmatprep.subr.mxu0 0.0
  %2424 = vmatpush1.msra.mxu0 0.0
  %2425 = vmatprep.subr.mxu0 0.0
  %2426 = vmatpush1.msra.mxu0 0.0
  %2427 = vmatprep.subr.mxu0 0.0
  %2428 = vmatpush1.msra.mxu0 0.0
  %2429 = vmatprep.subr.mxu0 0.0
  %2430 = vmatpush1.msra.mxu0 0.0
  %2431 = vmatprep.subr.mxu0 0.0
  %2432 = vmatpush1.msra.mxu0 0.0
  %2433 = vmatprep.subr.mxu0 0.0
  %2434 = vmatpush1.msra.mxu0 0.0
  %2435 = vmatprep.subr.mxu0 0.0
  %2436 = vmatpush1.msra.mxu0 0.0
  %2437 = vmatprep.subr.mxu0 0.0
  %2438 = vmatpush1.msra.mxu0 0.0
  %2439 = vmatprep.subr.mxu0 0.0
  %2440 = vmatpush1.msra.mxu0 0.0
  %2441 = vmatprep.subr.mxu0 0.0
  %2442 = vmatpush1.msra.mxu0 0.0
  %2443 = vmatprep.mubr.f32.mxu0 0.0
  %2444 = vmatmul.mubr.f32.gmra.mrb[0].mxu0 %v482
  %v2445 = vpop.f32.mrb[0].mxu0
  %v2446 = vadd.f32 %v2376, %v2445
  %v2447 = vpop.f32.mrb[0].mxu0
  %2448 = vdwg.mxu0
  %v2449 = vadd.f32 %v2446, %v377
  %v2450 = vxor.u32 %v2449, 2147483648
  %v2451 = vmul.f32 %v2450, 1.442695
  %v2452 = vpow.pop %v2451
  %v2453 = vadd.f32 %v2452, 1.0
  %v2454 = vrcp.pop %v2453
  %v2455 = vmul.f32 1.0, %v2454
  %v2456 = vtanh.pop %v2449
  %v2457 = vmul.f32 %v2455, %v2127
  %2459 = vrot.lane.b32.xlu0 %v2456, 64
  %v2460 = vpop.permute.xlu0 %2459
  %v2462 = vmul.f32 %v2455, %v2460
  %2464 = vrot.lane.b32.xlu0 %v2462, 32
  %v2465 = vpop.permute.xlu0 %2464
  %v2467 = vadd.f32 %v2457, %v2465
  %v2468 = vtanh.pop %v2467
  %2470 = vrot.lane.b32.xlu0 %v2468, 64
  %v2471 = vpop.permute.xlu0 %2470
  %v2473 = vmul.f32 %v2455, %v2471
  %2475 = vrot.lane.b32.xlu0 %v2303, 32
  %v2476 = vpop.permute.xlu0 %2475
  %v2477 = vsel %vm41, %v2476, 0
  %2479 = vmatprep.subr.mxu0 0.0
  %2480 = vmatpush1.msra.mxu0 %v37
  %2481 = vmatprep.subr.mxu0 0.0
  %2482 = vmatpush1.msra.mxu0 %v38
  %2483 = vmatprep.subr.mxu0 0.0
  %2484 = vmatpush1.msra.mxu0 %v39
  %2485 = vmatprep.subr.mxu0 0.0
  %2486 = vmatpush1.msra.mxu0 %v40
  %2487 = vmatprep.subr.mxu0 0.0
  %2488 = vmatpush1.msra.mxu0 0.0
  %2489 = vmatprep.subr.mxu0 0.0
  %2490 = vmatpush1.msra.mxu0 0.0
  %2491 = vmatprep.subr.mxu0 0.0
  %2492 = vmatpush1.msra.mxu0 0.0
  %2493 = vmatprep.subr.mxu0 0.0
  %2494 = vmatpush1.msra.mxu0 0.0
  %2495 = vmatprep.subr.mxu0 0.0
  %2496 = vmatpush1.msra.mxu0 0.0
  %2497 = vmatprep.subr.mxu0 0.0
  %2498 = vmatpush1.msra.mxu0 0.0
  %2499 = vmatprep.subr.mxu0 0.0
  %2500 = vmatpush1.msra.mxu0 0.0
  %2501 = vmatprep.subr.mxu0 0.0
  %2502 = vmatpush1.msra.mxu0 0.0
  %2503 = vmatprep.subr.mxu0 0.0
  %2504 = vmatpush1.msra.mxu0 0.0
  %2505 = vmatprep.subr.mxu0 0.0
  %2506 = vmatpush1.msra.mxu0 0.0
  %2507 = vmatprep.subr.mxu0 0.0
  %2508 = vmatpush1.msra.mxu0 0.0
  %2509 = vmatprep.subr.mxu0 0.0
  %2510 = vmatpush1.msra.mxu0 0.0
  %2511 = vmatprep.subr.mxu0 0.0
  %2512 = vmatpush1.msra.mxu0 0.0
  %2513 = vmatprep.subr.mxu0 0.0
  %2514 = vmatpush1.msra.mxu0 0.0
  %2515 = vmatprep.subr.mxu0 0.0
  %2516 = vmatpush1.msra.mxu0 0.0
  %2517 = vmatprep.subr.mxu0 0.0
  %2518 = vmatpush1.msra.mxu0 0.0
  %2519 = vmatprep.subr.mxu0 0.0
  %2520 = vmatpush1.msra.mxu0 0.0
  %2521 = vmatprep.subr.mxu0 0.0
  %2522 = vmatpush1.msra.mxu0 0.0
  %2523 = vmatprep.subr.mxu0 0.0
  %2524 = vmatpush1.msra.mxu0 0.0
  %2525 = vmatprep.subr.mxu0 0.0
  %2526 = vmatpush1.msra.mxu0 0.0
  %2527 = vmatprep.subr.mxu0 0.0
  %2528 = vmatpush1.msra.mxu0 0.0
  %2529 = vmatprep.subr.mxu0 0.0
  %2530 = vmatpush1.msra.mxu0 0.0
  %2531 = vmatprep.subr.mxu0 0.0
  %2532 = vmatpush1.msra.mxu0 0.0
  %2533 = vmatprep.subr.mxu0 0.0
  %2534 = vmatpush1.msra.mxu0 0.0
  %2535 = vmatprep.subr.mxu0 0.0
  %2536 = vmatpush1.msra.mxu0 0.0
  %2537 = vmatprep.subr.mxu0 0.0
  %2538 = vmatpush1.msra.mxu0 0.0
  %2539 = vmatprep.subr.mxu0 0.0
  %2540 = vmatpush1.msra.mxu0 0.0
  %2541 = vmatprep.subr.mxu0 0.0
  %2542 = vmatpush1.msra.mxu0 0.0
  %2543 = vmatprep.mubr.f32.mxu0 0.0
  %2544 = vmatmul.mubr.f32.gmra.mrb[0].mxu0 %v2477
  %v2545 = vpop.f32.mrb[0].mxu0
  %v2546 = vadd.f32 0.0, %v2545
  %v2547 = vpop.f32.mrb[0].mxu0
  %2548 = vdwg.mxu0
  %2549 = vmatprep.subr.mxu0 0.0
  %2550 = vmatpush1.msra.mxu0 %v35
  %2551 = vmatprep.subr.mxu0 0.0
  %2552 = vmatpush1.msra.mxu0 %v36
  %2553 = vmatprep.subr.mxu0 0.0
  %2554 = vmatpush1.msra.mxu0 0.0
  %2555 = vmatprep.subr.mxu0 0.0
  %2556 = vmatpush1.msra.mxu0 0.0
  %2557 = vmatprep.subr.mxu0 0.0
  %2558 = vmatpush1.msra.mxu0 0.0
  %2559 = vmatprep.subr.mxu0 0.0
  %2560 = vmatpush1.msra.mxu0 0.0
  %2561 = vmatprep.subr.mxu0 0.0
  %2562 = vmatpush1.msra.mxu0 0.0
  %2563 = vmatprep.subr.mxu0 0.0
  %2564 = vmatpush1.msra.mxu0 0.0
  %2565 = vmatprep.subr.mxu0 0.0
  %2566 = vmatpush1.msra.mxu0 0.0
  %2567 = vmatprep.subr.mxu0 0.0
  %2568 = vmatpush1.msra.mxu0 0.0
  %2569 = vmatprep.subr.mxu0 0.0
  %2570 = vmatpush1.msra.mxu0 0.0
  %2571 = vmatprep.subr.mxu0 0.0
  %2572 = vmatpush1.msra.mxu0 0.0
  %2573 = vmatprep.subr.mxu0 0.0
  %2574 = vmatpush1.msra.mxu0 0.0
  %2575 = vmatprep.subr.mxu0 0.0
  %2576 = vmatpush1.msra.mxu0 0.0
  %2577 = vmatprep.subr.mxu0 0.0
  %2578 = vmatpush1.msra.mxu0 0.0
  %2579 = vmatprep.subr.mxu0 0.0
  %2580 = vmatpush1.msra.mxu0 0.0
  %2581 = vmatprep.subr.mxu0 0.0
  %2582 = vmatpush1.msra.mxu0 0.0
  %2583 = vmatprep.subr.mxu0 0.0
  %2584 = vmatpush1.msra.mxu0 0.0
  %2585 = vmatprep.subr.mxu0 0.0
  %2586 = vmatpush1.msra.mxu0 0.0
  %2587 = vmatprep.subr.mxu0 0.0
  %2588 = vmatpush1.msra.mxu0 0.0
  %2589 = vmatprep.subr.mxu0 0.0
  %2590 = vmatpush1.msra.mxu0 0.0
  %2591 = vmatprep.subr.mxu0 0.0
  %2592 = vmatpush1.msra.mxu0 0.0
  %2593 = vmatprep.subr.mxu0 0.0
  %2594 = vmatpush1.msra.mxu0 0.0
  %2595 = vmatprep.subr.mxu0 0.0
  %2596 = vmatpush1.msra.mxu0 0.0
  %2597 = vmatprep.subr.mxu0 0.0
  %2598 = vmatpush1.msra.mxu0 0.0
  %2599 = vmatprep.subr.mxu0 0.0
  %2600 = vmatpush1.msra.mxu0 0.0
  %2601 = vmatprep.subr.mxu0 0.0
  %2602 = vmatpush1.msra.mxu0 0.0
  %2603 = vmatprep.subr.mxu0 0.0
  %2604 = vmatpush1.msra.mxu0 0.0
  %2605 = vmatprep.subr.mxu0 0.0
  %2606 = vmatpush1.msra.mxu0 0.0
  %2607 = vmatprep.subr.mxu0 0.0
  %2608 = vmatpush1.msra.mxu0 0.0
  %2609 = vmatprep.subr.mxu0 0.0
  %2610 = vmatpush1.msra.mxu0 0.0
  %2611 = vmatprep.subr.mxu0 0.0
  %2612 = vmatpush1.msra.mxu0 0.0
  %2613 = vmatprep.mubr.f32.mxu0 0.0
  %2614 = vmatmul.mubr.f32.gmra.mrb[0].mxu0 %v300
  %v2615 = vpop.f32.mrb[0].mxu0
  %v2616 = vadd.f32 %v2546, %v2615
  %v2617 = vpop.f32.mrb[0].mxu0
  %2618 = vdwg.mxu0
  %v2619 = vadd.f32 %v2616, %v194
  %v2620 = vxor.u32 %v2619, 2147483648
  %v2621 = vmul.f32 %v2620, 1.442695
  %v2622 = vpow.pop %v2621
  %v2623 = vadd.f32 %v2622, 1.0
  %v2624 = vrcp.pop %v2623
  %v2625 = vmul.f32 1.0, %v2624
  %v2626 = vtanh.pop %v2619
  %v2627 = vmul.f32 %v2625, %v2297
  %2629 = vrot.lane.b32.xlu0 %v2626, 64
  %v2630 = vpop.permute.xlu0 %2629
  %v2632 = vmul.f32 %v2625, %v2630
  %2634 = vrot.lane.b32.xlu0 %v2632, 32
  %v2635 = vpop.permute.xlu0 %2634
  %v2637 = vadd.f32 %v2627, %v2635
  %v2638 = vtanh.pop %v2637
  %2640 = vrot.lane.b32.xlu0 %v2638, 64
  %v2641 = vpop.permute.xlu0 %2640
  %v2643 = vmul.f32 %v2625, %v2641
  %2645 = vrot.lane.b32.xlu0 %v2473, 32
  %v2646 = vpop.permute.xlu0 %2645
  %v2647 = vsel %vm41, %v2646, 0
  %2649 = vmatprep.subr.mxu0 0.0
  %2650 = vmatpush1.msra.mxu0 %v225
  %2651 = vmatprep.subr.mxu0 0.0
  %2652 = vmatpush1.msra.mxu0 %v226
  %2653 = vmatprep.subr.mxu0 0.0
  %2654 = vmatpush1.msra.mxu0 %v227
  %2655 = vmatprep.subr.mxu0 0.0
  %2656 = vmatpush1.msra.mxu0 %v228
  %2657 = vmatprep.subr.mxu0 0.0
  %2658 = vmatpush1.msra.mxu0 0.0
  %2659 = vmatprep.subr.mxu0 0.0
  %2660 = vmatpush1.msra.mxu0 0.0
  %2661 = vmatprep.subr.mxu0 0.0
  %2662 = vmatpush1.msra.mxu0 0.0
  %2663 = vmatprep.subr.mxu0 0.0
  %2664 = vmatpush1.msra.mxu0 0.0
  %2665 = vmatprep.subr.mxu0 0.0
  %2666 = vmatpush1.msra.mxu0 0.0
  %2667 = vmatprep.subr.mxu0 0.0
  %2668 = vmatpush1.msra.mxu0 0.0
  %2669 = vmatprep.subr.mxu0 0.0
  %2670 = vmatpush1.msra.mxu0 0.0
  %2671 = vmatprep.subr.mxu0 0.0
  %2672 = vmatpush1.msra.mxu0 0.0
  %2673 = vmatprep.subr.mxu0 0.0
  %2674 = vmatpush1.msra.mxu0 0.0
  %2675 = vmatprep.subr.mxu0 0.0
  %2676 = vmatpush1.msra.mxu0 0.0
  %2677 = vmatprep.subr.mxu0 0.0
  %2678 = vmatpush1.msra.mxu0 0.0
  %2679 = vmatprep.subr.mxu0 0.0
  %2680 = vmatpush1.msra.mxu0 0.0
  %2681 = vmatprep.subr.mxu0 0.0
  %2682 = vmatpush1.msra.mxu0 0.0
  %2683 = vmatprep.subr.mxu0 0.0
  %2684 = vmatpush1.msra.mxu0 0.0
  %2685 = vmatprep.subr.mxu0 0.0
  %2686 = vmatpush1.msra.mxu0 0.0
  %2687 = vmatprep.subr.mxu0 0.0
  %2688 = vmatpush1.msra.mxu0 0.0
  %2689 = vmatprep.subr.mxu0 0.0
  %2690 = vmatpush1.msra.mxu0 0.0
  %2691 = vmatprep.subr.mxu0 0.0
  %2692 = vmatpush1.msra.mxu0 0.0
  %2693 = vmatprep.subr.mxu0 0.0
  %2694 = vmatpush1.msra.mxu0 0.0
  %2695 = vmatprep.subr.mxu0 0.0
  %2696 = vmatpush1.msra.mxu0 0.0
  %2697 = vmatprep.subr.mxu0 0.0
  %2698 = vmatpush1.msra.mxu0 0.0
  %2699 = vmatprep.subr.mxu0 0.0
  %2700 = vmatpush1.msra.mxu0 0.0
  %2701 = vmatprep.subr.mxu0 0.0
  %2702 = vmatpush1.msra.mxu0 0.0
  %2703 = vmatprep.subr.mxu0 0.0
  %2704 = vmatpush1.msra.mxu0 0.0
  %2705 = vmatprep.subr.mxu0 0.0
  %2706 = vmatpush1.msra.mxu0 0.0
  %2707 = vmatprep.subr.mxu0 0.0
  %2708 = vmatpush1.msra.mxu0 0.0
  %2709 = vmatprep.subr.mxu0 0.0
  %2710 = vmatpush1.msra.mxu0 0.0
  %2711 = vmatprep.subr.mxu0 0.0
  %2712 = vmatpush1.msra.mxu0 0.0
  %2713 = vmatprep.mubr.f32.mxu0 0.0
  %2714 = vmatmul.mubr.f32.gmra.mrb[0].mxu0 %v2647
  %v2715 = vpop.f32.mrb[0].mxu0
  %v2716 = vadd.f32 0.0, %v2715
  %v2717 = vpop.f32.mrb[0].mxu0
  %2718 = vdwg.mxu0
  %2719 = vmatprep.subr.mxu0 0.0
  %2720 = vmatpush1.msra.mxu0 %v223
  %2721 = vmatprep.subr.mxu0 0.0
  %2722 = vmatpush1.msra.mxu0 %v224
  %2723 = vmatprep.subr.mxu0 0.0
  %2724 = vmatpush1.msra.mxu0 0.0
  %2725 = vmatprep.subr.mxu0 0.0
  %2726 = vmatpush1.msra.mxu0 0.0
  %2727 = vmatprep.subr.mxu0 0.0
  %2728 = vmatpush1.msra.mxu0 0.0
  %2729 = vmatprep.subr.mxu0 0.0
  %2730 = vmatpush1.msra.mxu0 0.0
  %2731 = vmatprep.subr.mxu0 0.0
  %2732 = vmatpush1.msra.mxu0 0.0
  %2733 = vmatprep.subr.mxu0 0.0
  %2734 = vmatpush1.msra.mxu0 0.0
  %2735 = vmatprep.subr.mxu0 0.0
  %2736 = vmatpush1.msra.mxu0 0.0
  %2737 = vmatprep.subr.mxu0 0.0
  %2738 = vmatpush1.msra.mxu0 0.0
  %2739 = vmatprep.subr.mxu0 0.0
  %2740 = vmatpush1.msra.mxu0 0.0
  %2741 = vmatprep.subr.mxu0 0.0
  %2742 = vmatpush1.msra.mxu0 0.0
  %2743 = vmatprep.subr.mxu0 0.0
  %2744 = vmatpush1.msra.mxu0 0.0
  %2745 = vmatprep.subr.mxu0 0.0
  %2746 = vmatpush1.msra.mxu0 0.0
  %2747 = vmatprep.subr.mxu0 0.0
  %2748 = vmatpush1.msra.mxu0 0.0
  %2749 = vmatprep.subr.mxu0 0.0
  %2750 = vmatpush1.msra.mxu0 0.0
  %2751 = vmatprep.subr.mxu0 0.0
  %2752 = vmatpush1.msra.mxu0 0.0
  %2753 = vmatprep.subr.mxu0 0.0
  %2754 = vmatpush1.msra.mxu0 0.0
  %2755 = vmatprep.subr.mxu0 0.0
  %2756 = vmatpush1.msra.mxu0 0.0
  %2757 = vmatprep.subr.mxu0 0.0
  %2758 = vmatpush1.msra.mxu0 0.0
  %2759 = vmatprep.subr.mxu0 0.0
  %2760 = vmatpush1.msra.mxu0 0.0
  %2761 = vmatprep.subr.mxu0 0.0
  %2762 = vmatpush1.msra.mxu0 0.0
  %2763 = vmatprep.subr.mxu0 0.0
  %2764 = vmatpush1.msra.mxu0 0.0
  %2765 = vmatprep.subr.mxu0 0.0
  %2766 = vmatpush1.msra.mxu0 0.0
  %2767 = vmatprep.subr.mxu0 0.0
  %2768 = vmatpush1.msra.mxu0 0.0
  %2769 = vmatprep.subr.mxu0 0.0
  %2770 = vmatpush1.msra.mxu0 0.0
  %2771 = vmatprep.subr.mxu0 0.0
  %2772 = vmatpush1.msra.mxu0 0.0
  %2773 = vmatprep.subr.mxu0 0.0
  %2774 = vmatpush1.msra.mxu0 0.0
  %2775 = vmatprep.subr.mxu0 0.0
  %2776 = vmatpush1.msra.mxu0 0.0
  %2777 = vmatprep.subr.mxu0 0.0
  %2778 = vmatpush1.msra.mxu0 0.0
  %2779 = vmatprep.subr.mxu0 0.0
  %2780 = vmatpush1.msra.mxu0 0.0
  %2781 = vmatprep.subr.mxu0 0.0
  %2782 = vmatpush1.msra.mxu0 0.0
  %2783 = vmatprep.mubr.f32.mxu0 0.0
  %2784 = vmatmul.mubr.f32.gmra.mrb[0].mxu0 %v117
  %v2785 = vpop.f32.mrb[0].mxu0
  %v2786 = vadd.f32 %v2716, %v2785
  %v2787 = vpop.f32.mrb[0].mxu0
  %2788 = vdwg.mxu0
  %v2789 = vadd.f32 %v2786, %v377
  %v2790 = vxor.u32 %v2789, 2147483648
  %v2791 = vmul.f32 %v2790, 1.442695
  %v2792 = vpow.pop %v2791
  %v2793 = vadd.f32 %v2792, 1.0
  %v2794 = vrcp.pop %v2793
  %v2795 = vmul.f32 1.0, %v2794
  %v2796 = vtanh.pop %v2789
  %v2797 = vmul.f32 %v2795, %v2467
  %2799 = vrot.lane.b32.xlu0 %v2796, 64
  %v2800 = vpop.permute.xlu0 %2799
  %v2802 = vmul.f32 %v2795, %v2800
  %2804 = vrot.lane.b32.xlu0 %v2802, 32
  %v2805 = vpop.permute.xlu0 %2804
  %v2807 = vadd.f32 %v2797, %v2805
  %v2808 = vtanh.pop %v2807
  %2810 = vrot.lane.b32.xlu0 %v2808, 64
  %v2811 = vpop.permute.xlu0 %2810
  %v2813 = vmul.f32 %v2795, %v2811
  %v2814 = vld [vmem:[%s7] sm:$0xff]
  %v2815 = vld [vmem:[%s7 + $0x8] sm:$0xff]
  %v2816 = vld [vmem:[%s7 + $0x10] sm:$0xff]
  %v2817 = vld [vmem:[%s7 + $0x18] sm:$0xff]
  %v2818 = vld [vmem:[%s7 + $0x20] sm:$0xff]
  %v2819 = vld [vmem:[%s7 + $0x28] sm:$0xff]
  %v2820 = vld [vmem:[%s7 + $0x30] sm:$0xff]
  %v2821 = vld [vmem:[%s7 + $0x38] sm:$0xff]
  %2823 = vrot.lane.b32.xlu0 %v2813, 32
  %v2824 = vpop.permute.xlu0 %2823
  %v2825 = vsel %vm41, %v2824, 0
  %2827 = vmatprep.subr.mxu0 0.0
  %2828 = vmatpush1.msra.mxu0 %v2818
  %2829 = vmatprep.subr.mxu0 0.0
  %2830 = vmatpush1.msra.mxu0 %v2819
  %2831 = vmatprep.subr.mxu0 0.0
  %2832 = vmatpush1.msra.mxu0 %v2820
  %2833 = vmatprep.subr.mxu0 0.0
  %2834 = vmatpush1.msra.mxu0 %v2821
  %2835 = vmatprep.subr.mxu0 0.0
  %2836 = vmatpush1.msra.mxu0 0.0
  %2837 = vmatprep.subr.mxu0 0.0
  %2838 = vmatpush1.msra.mxu0 0.0
  %2839 = vmatprep.subr.mxu0 0.0
  %2840 = vmatpush1.msra.mxu0 0.0
  %2841 = vmatprep.subr.mxu0 0.0
  %2842 = vmatpush1.msra.mxu0 0.0
  %2843 = vmatprep.subr.mxu0 0.0
  %2844 = vmatpush1.msra.mxu0 0.0
  %2845 = vmatprep.subr.mxu0 0.0
  %2846 = vmatpush1.msra.mxu0 0.0
  %2847 = vmatprep.subr.mxu0 0.0
  %2848 = vmatpush1.msra.mxu0 0.0
  %2849 = vmatprep.subr.mxu0 0.0
  %2850 = vmatpush1.msra.mxu0 0.0
  %2851 = vmatprep.subr.mxu0 0.0
  %2852 = vmatpush1.msra.mxu0 0.0
  %2853 = vmatprep.subr.mxu0 0.0
  %2854 = vmatpush1.msra.mxu0 0.0
  %2855 = vmatprep.subr.mxu0 0.0
  %2856 = vmatpush1.msra.mxu0 0.0
  %2857 = vmatprep.subr.mxu0 0.0
  %2858 = vmatpush1.msra.mxu0 0.0
  %2859 = vmatprep.subr.mxu0 0.0
  %2860 = vmatpush1.msra.mxu0 0.0
  %2861 = vmatprep.subr.mxu0 0.0
  %2862 = vmatpush1.msra.mxu0 0.0
  %2863 = vmatprep.subr.mxu0 0.0
  %2864 = vmatpush1.msra.mxu0 0.0
  %2865 = vmatprep.subr.mxu0 0.0
  %2866 = vmatpush1.msra.mxu0 0.0
  %2867 = vmatprep.subr.mxu0 0.0
  %2868 = vmatpush1.msra.mxu0 0.0
  %2869 = vmatprep.subr.mxu0 0.0
  %2870 = vmatpush1.msra.mxu0 0.0
  %2871 = vmatprep.subr.mxu0 0.0
  %2872 = vmatpush1.msra.mxu0 0.0
  %2873 = vmatprep.subr.mxu0 0.0
  %2874 = vmatpush1.msra.mxu0 0.0
  %2875 = vmatprep.subr.mxu0 0.0
  %2876 = vmatpush1.msra.mxu0 0.0
  %2877 = vmatprep.subr.mxu0 0.0
  %2878 = vmatpush1.msra.mxu0 0.0
  %2879 = vmatprep.subr.mxu0 0.0
  %2880 = vmatpush1.msra.mxu0 0.0
  %2881 = vmatprep.subr.mxu0 0.0
  %2882 = vmatpush1.msra.mxu0 0.0
  %2883 = vmatprep.subr.mxu0 0.0
  %2884 = vmatpush1.msra.mxu0 0.0
  %2885 = vmatprep.subr.mxu0 0.0
  %2886 = vmatpush1.msra.mxu0 0.0
  %2887 = vmatprep.subr.mxu0 0.0
  %2888 = vmatpush1.msra.mxu0 0.0
  %2889 = vmatprep.subr.mxu0 0.0
  %2890 = vmatpush1.msra.mxu0 0.0
  %2891 = vmatprep.mubr.f32.mxu0 0.0
  %2892 = vmatmul.mubr.f32.gmra.mrb[0].mxu0 %v2825
  %v2893 = vpop.f32.mrb[0].mxu0
  %v2894 = vadd.f32 0.0, %v2893
  %v2895 = vpop.f32.mrb[0].mxu0
  %2896 = vdwg.mxu0
  %2898 = vrot.lane.b32.xlu0 %v2643, 32
  %v2899 = vpop.permute.xlu0 %2898
  %v2900 = vsel %vm41, %v2899, 0
  %2902 = vmatprep.subr.mxu0 0.0
  %2903 = vmatpush1.msra.mxu0 %v2814
  %2904 = vmatprep.subr.mxu0 0.0
  %2905 = vmatpush1.msra.mxu0 %v2815
  %2906 = vmatprep.subr.mxu0 0.0
  %2907 = vmatpush1.msra.mxu0 %v2816
  %2908 = vmatprep.subr.mxu0 0.0
  %2909 = vmatpush1.msra.mxu0 %v2817
  %2910 = vmatprep.subr.mxu0 0.0
  %2911 = vmatpush1.msra.mxu0 0.0
  %2912 = vmatprep.subr.mxu0 0.0
  %2913 = vmatpush1.msra.mxu0 0.0
  %2914 = vmatprep.subr.mxu0 0.0
  %2915 = vmatpush1.msra.mxu0 0.0
  %2916 = vmatprep.subr.mxu0 0.0
  %2917 = vmatpush1.msra.mxu0 0.0
  %2918 = vmatprep.subr.mxu0 0.0
  %2919 = vmatpush1.msra.mxu0 0.0
  %2920 = vmatprep.subr.mxu0 0.0
  %2921 = vmatpush1.msra.mxu0 0.0
  %2922 = vmatprep.subr.mxu0 0.0
  %2923 = vmatpush1.msra.mxu0 0.0
  %2924 = vmatprep.subr.mxu0 0.0
  %2925 = vmatpush1.msra.mxu0 0.0
  %2926 = vmatprep.subr.mxu0 0.0
  %2927 = vmatpush1.msra.mxu0 0.0
  %2928 = vmatprep.subr.mxu0 0.0
  %2929 = vmatpush1.msra.mxu0 0.0
  %2930 = vmatprep.subr.mxu0 0.0
  %2931 = vmatpush1.msra.mxu0 0.0
  %2932 = vmatprep.subr.mxu0 0.0
  %2933 = vmatpush1.msra.mxu0 0.0
  %2934 = vmatprep.subr.mxu0 0.0
  %2935 = vmatpush1.msra.mxu0 0.0
  %2936 = vmatprep.subr.mxu0 0.0
  %2937 = vmatpush1.msra.mxu0 0.0
  %2938 = vmatprep.subr.mxu0 0.0
  %2939 = vmatpush1.msra.mxu0 0.0
  %2940 = vmatprep.subr.mxu0 0.0
  %2941 = vmatpush1.msra.mxu0 0.0
  %2942 = vmatprep.subr.mxu0 0.0
  %2943 = vmatpush1.msra.mxu0 0.0
  %2944 = vmatprep.subr.mxu0 0.0
  %2945 = vmatpush1.msra.mxu0 0.0
  %2946 = vmatprep.subr.mxu0 0.0
  %2947 = vmatpush1.msra.mxu0 0.0
  %2948 = vmatprep.subr.mxu0 0.0
  %2949 = vmatpush1.msra.mxu0 0.0
  %2950 = vmatprep.subr.mxu0 0.0
  %2951 = vmatpush1.msra.mxu0 0.0
  %2952 = vmatprep.subr.mxu0 0.0
  %2953 = vmatpush1.msra.mxu0 0.0
  %2954 = vmatprep.subr.mxu0 0.0
  %2955 = vmatpush1.msra.mxu0 0.0
  %2956 = vmatprep.subr.mxu0 0.0
  %2957 = vmatpush1.msra.mxu0 0.0
  %2958 = vmatprep.subr.mxu0 0.0
  %2959 = vmatpush1.msra.mxu0 0.0
  %2960 = vmatprep.subr.mxu0 0.0
  %2961 = vmatpush1.msra.mxu0 0.0
  %2962 = vmatprep.subr.mxu0 0.0
  %2963 = vmatpush1.msra.mxu0 0.0
  %2964 = vmatprep.subr.mxu0 0.0
  %2965 = vmatpush1.msra.mxu0 0.0
  %2966 = vmatprep.mubr.f32.mxu0 0.0
  %2967 = vmatmul.mubr.f32.gmra.mrb[0].mxu0 %v2900
  %v2968 = vpop.f32.mrb[0].mxu0
  %v2969 = vadd.f32 %v2894, %v2968
  %v2970 = vpop.f32.mrb[0].mxu0
  %2971 = vdwg.mxu0
  %v2972 = vld [vmem:[%s8] sm:$0x1]
  %v2974 = vlaneseq
  %v2975 = vshrl.u32 %v2974, 7
  %v2976 = vsub.s32 0, %v2975
  %v2977 = vrot.slane %v2972, %v2976
  %v2979 = vadd.f32 %v2969, %v2977
  %vm2980 = vcmask 254976
  %2981 = vst.msk [vmem:[%s9] sm:$0x3] %vm2980, %v2979
  %2983 = vrot.lane.b32.xlu0 %v2807, 96
  %v2984 = vpop.permute.xlu0 %2983
  %v2985 = vsel %vm41, %v2984, 0
  %2987 = vmatprep.subr.mxu0 0.0
  %2988 = vmatpush1.msra.mxu0 %v2818
  %2989 = vmatprep.subr.mxu0 0.0
  %2990 = vmatpush1.msra.mxu0 %v2819
  %2991 = vmatprep.subr.mxu0 0.0
  %2992 = vmatpush1.msra.mxu0 %v2820
  %2993 = vmatprep.subr.mxu0 0.0
  %2994 = vmatpush1.msra.mxu0 %v2821
  %2995 = vmatprep.subr.mxu0 0.0
  %2996 = vmatpush1.msra.mxu0 0.0
  %2997 = vmatprep.subr.mxu0 0.0
  %2998 = vmatpush1.msra.mxu0 0.0
  %2999 = vmatprep.subr.mxu0 0.0
  %3000 = vmatpush1.msra.mxu0 0.0
  %3001 = vmatprep.subr.mxu0 0.0
  %3002 = vmatpush1.msra.mxu0 0.0
  %3003 = vmatprep.subr.mxu0 0.0
  %3004 = vmatpush1.msra.mxu0 0.0
  %3005 = vmatprep.subr.mxu0 0.0
  %3006 = vmatpush1.msra.mxu0 0.0
  %3007 = vmatprep.subr.mxu0 0.0
  %3008 = vmatpush1.msra.mxu0 0.0
  %3009 = vmatprep.subr.mxu0 0.0
  %3010 = vmatpush1.msra.mxu0 0.0
  %3011 = vmatprep.subr.mxu0 0.0
  %3012 = vmatpush1.msra.mxu0 0.0
  %3013 = vmatprep.subr.mxu0 0.0
  %3014 = vmatpush1.msra.mxu0 0.0
  %3015 = vmatprep.subr.mxu0 0.0
  %3016 = vmatpush1.msra.mxu0 0.0
  %3017 = vmatprep.subr.mxu0 0.0
  %3018 = vmatpush1.msra.mxu0 0.0
  %3019 = vmatprep.subr.mxu0 0.0
  %3020 = vmatpush1.msra.mxu0 0.0
  %3021 = vmatprep.subr.mxu0 0.0
  %3022 = vmatpush1.msra.mxu0 0.0
  %3023 = vmatprep.subr.mxu0 0.0
  %3024 = vmatpush1.msra.mxu0 0.0
  %3025 = vmatprep.subr.mxu0 0.0
  %3026 = vmatpush1.msra.mxu0 0.0
  %3027 = vmatprep.subr.mxu0 0.0
  %3028 = vmatpush1.msra.mxu0 0.0
  %3029 = vmatprep.subr.mxu0 0.0
  %3030 = vmatpush1.msra.mxu0 0.0
  %3031 = vmatprep.subr.mxu0 0.0
  %3032 = vmatpush1.msra.mxu0 0.0
  %3033 = vmatprep.subr.mxu0 0.0
  %3034 = vmatpush1.msra.mxu0 0.0
  %3035 = vmatprep.subr.mxu0 0.0
  %3036 = vmatpush1.msra.mxu0 0.0
  %3037 = vmatprep.subr.mxu0 0.0
  %3038 = vmatpush1.msra.mxu0 0.0
  %3039 = vmatprep.subr.mxu0 0.0
  %3040 = vmatpush1.msra.mxu0 0.0
  %3041 = vmatprep.subr.mxu0 0.0
  %3042 = vmatpush1.msra.mxu0 0.0
  %3043 = vmatprep.subr.mxu0 0.0
  %3044 = vmatpush1.msra.mxu0 0.0
  %3045 = vmatprep.subr.mxu0 0.0
  %3046 = vmatpush1.msra.mxu0 0.0
  %3047 = vmatprep.subr.mxu0 0.0
  %3048 = vmatpush1.msra.mxu0 0.0
  %3049 = vmatprep.subr.mxu0 0.0
  %3050 = vmatpush1.msra.mxu0 0.0
  %3051 = vmatprep.mubr.f32.mxu0 0.0
  %3052 = vmatmul.mubr.f32.gmra.mrb[0].mxu0 %v2985
  %v3053 = vpop.f32.mrb[0].mxu0
  %v3054 = vadd.f32 0.0, %v3053
  %v3055 = vpop.f32.mrb[0].mxu0
  %3056 = vdwg.mxu0
  %3058 = vrot.lane.b32.xlu0 %v2637, 96
  %v3059 = vpop.permute.xlu0 %3058
  %v3060 = vsel %vm41, %v3059, 0
  %3062 = vmatprep.subr.mxu0 0.0
  %3063 = vmatpush1.msra.mxu0 %v2814
  %3064 = vmatprep.subr.mxu0 0.0
  %3065 = vmatpush1.msra.mxu0 %v2815
  %3066 = vmatprep.subr.mxu0 0.0
  %3067 = vmatpush1.msra.mxu0 %v2816
  %3068 = vmatprep.subr.mxu0 0.0
  %3069 = vmatpush1.msra.mxu0 %v2817
  %3070 = vmatprep.subr.mxu0 0.0
  %3071 = vmatpush1.msra.mxu0 0.0
  %3072 = vmatprep.subr.mxu0 0.0
  %3073 = vmatpush1.msra.mxu0 0.0
  %3074 = vmatprep.subr.mxu0 0.0
  %3075 = vmatpush1.msra.mxu0 0.0
  %3076 = vmatprep.subr.mxu0 0.0
  %3077 = vmatpush1.msra.mxu0 0.0
  %3078 = vmatprep.subr.mxu0 0.0
  %3079 = vmatpush1.msra.mxu0 0.0
  %3080 = vmatprep.subr.mxu0 0.0
  %3081 = vmatpush1.msra.mxu0 0.0
  %3082 = vmatprep.subr.mxu0 0.0
  %3083 = vmatpush1.msra.mxu0 0.0
  %3084 = vmatprep.subr.mxu0 0.0
  %3085 = vmatpush1.msra.mxu0 0.0
  %3086 = vmatprep.subr.mxu0 0.0
  %3087 = vmatpush1.msra.mxu0 0.0
  %3088 = vmatprep.subr.mxu0 0.0
  %3089 = vmatpush1.msra.mxu0 0.0
  %3090 = vmatprep.subr.mxu0 0.0
  %3091 = vmatpush1.msra.mxu0 0.0
  %3092 = vmatprep.subr.mxu0 0.0
  %3093 = vmatpush1.msra.mxu0 0.0
  %3094 = vmatprep.subr.mxu0 0.0
  %3095 = vmatpush1.msra.mxu0 0.0
  %3096 = vmatprep.subr.mxu0 0.0
  %3097 = vmatpush1.msra.mxu0 0.0
  %3098 = vmatprep.subr.mxu0 0.0
  %3099 = vmatpush1.msra.mxu0 0.0
  %3100 = vmatprep.subr.mxu0 0.0
  %3101 = vmatpush1.msra.mxu0 0.0
  %3102 = vmatprep.subr.mxu0 0.0
  %3103 = vmatpush1.msra.mxu0 0.0
  %3104 = vmatprep.subr.mxu0 0.0
  %3105 = vmatpush1.msra.mxu0 0.0
  %3106 = vmatprep.subr.mxu0 0.0
  %3107 = vmatpush1.msra.mxu0 0.0
  %3108 = vmatprep.subr.mxu0 0.0
  %3109 = vmatpush1.msra.mxu0 0.0
  %3110 = vmatprep.subr.mxu0 0.0
  %3111 = vmatpush1.msra.mxu0 0.0
  %3112 = vmatprep.subr.mxu0 0.0
  %3113 = vmatpush1.msra.mxu0 0.0
  %3114 = vmatprep.subr.mxu0 0.0
  %3115 = vmatpush1.msra.mxu0 0.0
  %3116 = vmatprep.subr.mxu0 0.0
  %3117 = vmatpush1.msra.mxu0 0.0
  %3118 = vmatprep.subr.mxu0 0.0
  %3119 = vmatpush1.msra.mxu0 0.0
  %3120 = vmatprep.subr.mxu0 0.0
  %3121 = vmatpush1.msra.mxu0 0.0
  %3122 = vmatprep.subr.mxu0 0.0
  %3123 = vmatpush1.msra.mxu0 0.0
  %3124 = vmatprep.subr.mxu0 0.0
  %3125 = vmatpush1.msra.mxu0 0.0
  %3126 = vmatprep.mubr.f32.mxu0 0.0
  %3127 = vmatmul.mubr.f32.gmra.mrb[0].mxu0 %v3060
  %v3128 = vpop.f32.mrb[0].mxu0
  %v3129 = vadd.f32 %v3054, %v3128
  %v3130 = vpop.f32.mrb[0].mxu0
  %3131 = vdwg.mxu0
  %v3132 = vld [vmem:[%s8] sm:$0x1]
  %v3134 = vlaneseq
  %v3135 = vshrl.u32 %v3134, 7
  %v3136 = vsub.s32 0, %v3135
  %v3137 = vrot.slane %v3132, %v3136
  %v3139 = vadd.f32 %v3129, %v3137
  %3140 = vst.msk [vmem:[%s10] sm:$0x3] %vm2980, %v3139
  // Predicated region
  $region38: #{seq2seq_forward.2} parent=0 // pred_check
    _
  $region39: #{seq2seq_forward.2} parent=0 // pred_check_branch
    %3142 = sbr.rel (0) target = $region41
  $region40: #{seq2seq_forward.2} parent=0 // pred_region
    _
  $region41: #{seq2seq_forward.2} parent=0 // pred_fallthru
    _
  // Predicated region
  $region42: #{seq2seq_forward.2} parent=0 // pred_check
    _
  $region43: #{seq2seq_forward.2} parent=0 // pred_check_branch
    %3144 = sbr.rel (0) target = $region45
  $region44: #{seq2seq_forward.2} parent=0 // pred_region
    _
  $region45: #{seq2seq_forward.2} parent=0 // pred_fallthru
    _
  // Predicated region
  $region46: #{seq2seq_forward.2} parent=0 // pred_check
    _
  $region47: #{seq2seq_forward.2} parent=0 // pred_check_branch
    %3146 = sbr.rel (0) target = $region49
  $region48: #{seq2seq_forward.2} parent=0 // pred_region
    _
  $region49: #{seq2seq_forward.2} parent=0 // pred_fallthru
    _
  // Predicated region
  $region50: #{seq2seq_forward.2} parent=0 // pred_check
    _
  $region51: #{seq2seq_forward.2} parent=0 // pred_check_branch
    %3148 = sbr.rel (0) target = $region53
  $region52: #{seq2seq_forward.2} parent=0 // pred_region
    _
  $region53: #{seq2seq_forward.2} parent=0 // pred_fallthru
    _

</llo_original>
